<compile_context>
chip_gen: v7x
topology: tpu7x:2x2x1
jax: 0.10.0
libtpu: 0.0.40
codegen_flags: <defaults>
</compile_context>

<pallas_src>
import functools
import math

import jax
import jax.numpy as jnp
from jax.experimental import pallas as pl
from jax.experimental.pallas import tpu as pltpu


# ----------------------------------------------------------------------------
# Fused kernel: 2-layer bidirectional LSTM + last-timestep MLP head.
# ----------------------------------------------------------------------------
def fused_bilstm_mlp_kernel(
    # ---- VMEM inputs (small / needed immediately) ----
    x_ref,                                   # (T*B, Din) f32, time-major flat
    w_ih0f_ref, w_ih0r_ref,                  # (Din, 4H)  bf16
    w_hh0_ref,                               # (2H, 4H)   bf16  [fwd; rev] stacked
    b0f_ref, b0r_ref,                        # (1, 4H)    f32
    b1f_ref, b1r_ref,                        # (1, 4H)    f32
    bm1_ref, bm2_ref,                        # (1, 1024), (1, out) f32
    wm2_ref,                                 # (1024, out) f32 (tiny)
    # ---- HBM inputs (overlapped manual DMA) ----
    w_ih1ff_hbm, w_ih1fb_hbm, w_hh1f_hbm,    # (H, 4H) bf16
    w_ih1rf_hbm, w_ih1rb_hbm,                # (H, 4H) bf16
    wm1f_hbm, wm1b_hbm,                      # (H, 1024) bf16
    # ---- output ----
    out_ref,                                 # (B, out) f32
    # ---- scratch ----
    w_ih1ff_v, w_ih1fb_v, w_hh1f_v,          # VMEM bf16 DMA targets
    w_ih1rf_v, w_ih1rb_v, wm1f_v, wm1b_v,
    dma_sem,                                 # DMA semaphores, shape (7,)
    *, T, B,
):
    f32, bf16 = jnp.float32, jnp.bfloat16
    H = w_hh0_ref.shape[0] // 2

    # Kick off layer-1 / MLP weight DMAs; they complete under the layer-0
    # recurrence instead of sitting on the critical path before compute starts.
    dmas_l1 = [
        pltpu.make_async_copy(w_ih1ff_hbm, w_ih1ff_v, dma_sem.at[0]),
        pltpu.make_async_copy(w_ih1fb_hbm, w_ih1fb_v, dma_sem.at[1]),
        pltpu.make_async_copy(w_hh1f_hbm, w_hh1f_v, dma_sem.at[2]),
        pltpu.make_async_copy(w_ih1rf_hbm, w_ih1rf_v, dma_sem.at[3]),
        pltpu.make_async_copy(w_ih1rb_hbm, w_ih1rb_v, dma_sem.at[4]),
    ]
    dmas_mlp = [
        pltpu.make_async_copy(wm1f_hbm, wm1f_v, dma_sem.at[5]),
        pltpu.make_async_copy(wm1b_hbm, wm1b_v, dma_sem.at[6]),
    ]
    for cp in dmas_l1 + dmas_mlp:
        cp.start()

    def cell(gates, c_prev):
        # PyTorch gate order: i, f, g, o.
        i_g = jax.nn.sigmoid(gates[:, 0 * H:1 * H])
        f_g = jax.nn.sigmoid(gates[:, 1 * H:2 * H])
        g_g = jnp.tanh(gates[:, 2 * H:3 * H])
        o_g = jax.nn.sigmoid(gates[:, 3 * H:4 * H])
        c_new = f_g * c_prev + i_g * g_g
        return o_g * jnp.tanh(c_new), c_new

    # ---- layer 0: hoisted input projections as single 2-D matmuls ----------
    x = x_ref[...].astype(bf16)                                   # (T*B, Din)
    xg_f = jnp.dot(x, w_ih0f_ref[...], preferred_element_type=f32) + b0f_ref[...]
    xg_r = jnp.dot(x, w_ih0r_ref[...], preferred_element_type=f32) + b0r_ref[...]
    w_hh0 = w_hh0_ref[...]                                        # (2H, 4H) bf16

    # Block-diagonal mask so both directions share ONE (2B,2H)@(2H,4H) matmul:
    # rows 0:B carry [h_fwd, 0], rows B:2B carry [0, h_rev].
    row = jax.lax.broadcasted_iota(jnp.int32, (2 * B, 2 * H), 0)
    col = jax.lax.broadcasted_iota(jnp.int32, (2 * B, 2 * H), 1)
    blk_mask = jnp.where((row < B) == (col < H), 1.0, 0.0).astype(bf16)

    # ---- layer 0: fused fwd+rev recurrence. Step s processes forward time s
    # and reverse time T-1-s packed along sublanes: one matmul + one packed
    # set of sigmoid/tanh per step. Hidden states stay vreg-resident.
    c = jnp.zeros((2 * B, H), f32)
    h_blk = None
    h_steps = []
    for s in range(T):
        gx = jnp.concatenate(
            [xg_f[s * B:(s + 1) * B], xg_r[(T - 1 - s) * B:(T - s) * B]], axis=0)
        if s == 0:  # h0 == 0 -> W_hh term vanishes
            gates = gx
        else:
            gates = gx + jnp.dot(h_blk, w_hh0, preferred_element_type=f32)
        h, c = cell(gates, c)                                     # (2B, H)
        h_steps.append(h)
        h_blk = jnp.concatenate([h, h], axis=1).astype(bf16) * blk_mask

    # Reassemble layer-0 outputs in original time order (static concats).
    out0_f = jnp.concatenate([h_steps[t][:B] for t in range(T)], axis=0).astype(bf16)
    out0_b = jnp.concatenate([h_steps[T - 1 - t][B:] for t in range(T)], axis=0).astype(bf16)
    h0f_last = h_steps[T - 1][:B]   # layer-0 fwd output at t = T-1
    h0b_last = h_steps[0][B:]       # layer-0 rev output at t = T-1

    # ---- layer-1 weights must be resident from here on ----------------------
    for cp in dmas_l1:
        cp.wait()

    # layer 1, forward: hoisted projection over the full layer-0 output,
    # then the serial recurrence (only the final hidden state is kept).
    x1g = (jnp.dot(out0_f, w_ih1ff_v[...], preferred_element_type=f32)
           + jnp.dot(out0_b, w_ih1fb_v[...], preferred_element_type=f32)
           + b1f_ref[...])                                        # (T*B, 4H)
    w_hh1f = w_hh1f_v[...]
    h1 = None
    c1 = jnp.zeros((B, H), f32)
    for t in range(T):
        g = x1g[t * B:(t + 1) * B]
        if t > 0:
            g = g + jnp.dot(h1.astype(bf16), w_hh1f, preferred_element_type=f32)
        h1, c1 = cell(g, c1)
    h1f_last = h1

    # layer 1, reverse: only its output at the LAST time index is consumed,
    # which is exactly its first step from a zero state (c_prev = 0 =>
    # h = o * tanh(i * g); the W_hh term multiplies zero and vanishes).
    g = (jnp.dot(h0f_last.astype(bf16), w_ih1rf_v[...], preferred_element_type=f32)
         + jnp.dot(h0b_last.astype(bf16), w_ih1rb_v[...], preferred_element_type=f32)
         + b1r_ref[...])
    i_g = jax.nn.sigmoid(g[:, 0 * H:1 * H])
    g_g = jnp.tanh(g[:, 2 * H:3 * H])
    o_g = jax.nn.sigmoid(g[:, 3 * H:4 * H])
    h1b_last = o_g * jnp.tanh(i_g * g_g)

    # ---- MLP head: Linear(2H,1024) -> ReLU -> Linear(1024,out) --------------
    for cp in dmas_mlp:
        cp.wait()
    z = (jnp.dot(h1f_last.astype(bf16), wm1f_v[...], preferred_element_type=f32)
         + jnp.dot(h1b_last.astype(bf16), wm1b_v[...], preferred_element_type=f32)
         + bm1_ref[...])
    z = jnp.maximum(z, 0.0)
    out_ref[...] = jnp.dot(z, wm2_ref[...], preferred_element_type=f32) + bm2_ref[...]


# ----------------------------------------------------------------------------
# Parameter packing (one-time): bf16 casts, concat-weight splits, W_hh stack.
# ----------------------------------------------------------------------------
def pack_params(params):
    bf16 = jnp.bfloat16
    H = params['w_hh_l0'].shape[0]
    w_ih1f, w_ih1r, wm1 = params['w_ih_l1'], params['w_ih_l1_rev'], params['mlp_w1']
    return dict(
        w_ih0f=params['w_ih_l0'].astype(bf16),
        w_ih0r=params['w_ih_l0_rev'].astype(bf16),
        w_hh0=jnp.concatenate([params['w_hh_l0'], params['w_hh_l0_rev']], axis=0).astype(bf16),
        b0f=params['b_l0'], b0r=params['b_l0_rev'],
        b1f=params['b_l1'], b1r=params['b_l1_rev'],
        bm1=params['mlp_b1'], bm2=params['mlp_b2'],
        wm2=params['mlp_w2'],
        # pre-split so the kernel never concatenates [fwd, rev] along lanes
        w_ih1ff=w_ih1f[:H].astype(bf16), w_ih1fb=w_ih1f[H:].astype(bf16),
        w_hh1f=params['w_hh_l1'].astype(bf16),
        w_ih1rf=w_ih1r[:H].astype(bf16), w_ih1rb=w_ih1r[H:].astype(bf16),
        wm1f=wm1[:H].astype(bf16), wm1b=wm1[H:].astype(bf16),
        # params['w_hh_l1_rev'] is unused: the reverse top-layer output at the
        # last time index comes from a zero hidden state (exact shortcut).
    )


# ----------------------------------------------------------------------------
# Wrapper: single pallas_call; weights resident in VMEM / streamed via DMA.
# ----------------------------------------------------------------------------
def my_lstm_forward(seq, pp):
    """seq: (B, T, input_size) f32, batch_first — matches the PyTorch module."""
    B, T, Din = seq.shape
    H = pp['w_hh1f'].shape[0]
    out_dim = pp['wm2'].shape[1]
    mlp_h = pp['wm1f'].shape[1]

    # time-major, flattened to 2-D (row = t*B + b) so all hoisted matmuls and
    # per-step slices operate on a lane/sublane-dense layout.
    x2d = jnp.transpose(seq, (1, 0, 2)).reshape(T * B, Din)

    args = (
        x2d,
        pp['w_ih0f'], pp['w_ih0r'], pp['w_hh0'],
        pp['b0f'], pp['b0r'], pp['b1f'], pp['b1r'], pp['bm1'], pp['bm2'],
        pp['wm2'],
        # HBM-resident, DMA'd inside the kernel under the layer-0 recurrence:
        pp['w_ih1ff'], pp['w_ih1fb'], pp['w_hh1f'],
        pp['w_ih1rf'], pp['w_ih1rb'], pp['wm1f'], pp['wm1b'],
    )

    vmem = pl.BlockSpec(memory_space=pltpu.MemorySpace.VMEM)
    hbm = pl.BlockSpec(memory_space=pl.ANY)
    kernel = functools.partial(fused_bilstm_mlp_kernel, T=T, B=B)

    return pl.pallas_call(
        kernel,
        out_shape=jax.ShapeDtypeStruct((B, out_dim), jnp.float32),
        in_specs=[vmem] * 11 + [hbm] * 7,
        out_specs=vmem,
        scratch_shapes=[
            pltpu.VMEM((H, 4 * H), jnp.bfloat16),    # w_ih1f (fwd half)
            pltpu.VMEM((H, 4 * H), jnp.bfloat16),    # w_ih1f (rev half)
            pltpu.VMEM((H, 4 * H), jnp.bfloat16),    # w_hh1f
            pltpu.VMEM((H, 4 * H), jnp.bfloat16),    # w_ih1r (fwd half)
            pltpu.VMEM((H, 4 * H), jnp.bfloat16),    # w_ih1r (rev half)
            pltpu.VMEM((H, mlp_h), jnp.bfloat16),    # wm1 (fwd half)
            pltpu.VMEM((H, mlp_h), jnp.bfloat16),    # wm1 (rev half)
            pltpu.SemaphoreType.DMA((7,)),
        ],
        compiler_params=pltpu.CompilerParams(vmem_limit_bytes=32 * 1024 * 1024),
    )(*args)
    # TODO(synk): on v7x, split the two layer-0 directions (or the batch) across
    # the 2 TensorCores via pltpu.create_tensorcore_mesh + pl.core_map.


# ----------------------------------------------------------------------------
# Parameter construction (deterministic, PyTorch-style uniform init, f32).
# ----------------------------------------------------------------------------
def _uniform(key, shape, bound):
    return jax.random.uniform(key, shape, jnp.float32, -bound, bound)


def init_params(key, input_size=4, hidden_size=128, output_size=4, mlp_hidden=1024):
    H = hidden_size
    k_lstm = 1.0 / math.sqrt(H)
    keys = iter(jax.random.split(key, 40))
    p = {}
    # layer 0 (input_size -> H), forward / reverse. Matrices stored [in, out];
    # biases stored as b_ih + b_hh, PyTorch gate order i, f, g, o.
    for sfx in ('', '_rev'):
        p[f'w_ih_l0{sfx}'] = _uniform(next(keys), (input_size, 4 * H), k_lstm)
        p[f'w_hh_l0{sfx}'] = _uniform(next(keys), (H, 4 * H), k_lstm)
        p[f'b_l0{sfx}'] = (_uniform(next(keys), (1, 4 * H), k_lstm)
                           + _uniform(next(keys), (1, 4 * H), k_lstm))
    # layer 1 (2H -> H), forward / reverse
    for sfx in ('', '_rev'):
        p[f'w_ih_l1{sfx}'] = _uniform(next(keys), (2 * H, 4 * H), k_lstm)
        p[f'w_hh_l1{sfx}'] = _uniform(next(keys), (H, 4 * H), k_lstm)
        p[f'b_l1{sfx}'] = (_uniform(next(keys), (1, 4 * H), k_lstm)
                           + _uniform(next(keys), (1, 4 * H), k_lstm))
    # MLP head: Linear(2H, mlp_hidden) -> ReLU -> Linear(mlp_hidden, output)
    k1 = 1.0 / math.sqrt(2 * H)
    k2 = 1.0 / math.sqrt(mlp_hidden)
    p['mlp_w1'] = _uniform(next(keys), (2 * H, mlp_hidden), k1)
    p['mlp_b1'] = _uniform(next(keys), (1, mlp_hidden), k1)
    p['mlp_w2'] = _uniform(next(keys), (mlp_hidden, output_size), k2)
    p['mlp_b2'] = _uniform(next(keys), (1, output_size), k2)
    return p


if __name__ == "__main__":
    key = jax.random.PRNGKey(0)
    pkey, xkey = jax.random.split(key)

    batch, seq_len, input_size = 2, 8, 4
    params = init_params(pkey, input_size=input_size, hidden_size=128,
                         output_size=4, mlp_hidden=1024)
    packed = pack_params(params)
    seq = jax.random.normal(xkey, (batch, seq_len, input_size), jnp.float32)

    fwd = jax.jit(my_lstm_forward)
    out = jax.block_until_ready(fwd(seq, packed))
    assert out.shape == (batch, 4), out.shape
    assert bool(jnp.all(jnp.isfinite(out)))
    print("KERNEL_OK")
</pallas_src>

<mosaic_0001>
module attributes {stable_mosaic.version = 11 : i64} {
  func.func @fused_bilstm_mlp_kernel(%arg0: memref<16x4xf32, #tpu.memory_space<vmem>>, %arg1: memref<4x512xbf16, #tpu.memory_space<vmem>>, %arg2: memref<4x512xbf16, #tpu.memory_space<vmem>>, %arg3: memref<256x512xbf16, #tpu.memory_space<vmem>>, %arg4: memref<1x512xf32, #tpu.memory_space<vmem>>, %arg5: memref<1x512xf32, #tpu.memory_space<vmem>>, %arg6: memref<1x512xf32, #tpu.memory_space<vmem>>, %arg7: memref<1x512xf32, #tpu.memory_space<vmem>>, %arg8: memref<1x1024xf32, #tpu.memory_space<vmem>>, %arg9: memref<1x4xf32, #tpu.memory_space<vmem>>, %arg10: memref<1024x4xf32, #tpu.memory_space<vmem>>, %arg11: memref<128x512xbf16, #tpu.memory_space<any>>, %arg12: memref<128x512xbf16, #tpu.memory_space<any>>, %arg13: memref<128x512xbf16, #tpu.memory_space<any>>, %arg14: memref<128x512xbf16, #tpu.memory_space<any>>, %arg15: memref<128x512xbf16, #tpu.memory_space<any>>, %arg16: memref<128x1024xbf16, #tpu.memory_space<any>>, %arg17: memref<128x1024xbf16, #tpu.memory_space<any>>, %arg18: memref<2x4xf32, #tpu.memory_space<vmem>>, %arg19: memref<128x512xbf16, #tpu.memory_space<vmem>>, %arg20: memref<128x512xbf16, #tpu.memory_space<vmem>>, %arg21: memref<128x512xbf16, #tpu.memory_space<vmem>>, %arg22: memref<128x512xbf16, #tpu.memory_space<vmem>>, %arg23: memref<128x512xbf16, #tpu.memory_space<vmem>>, %arg24: memref<128x1024xbf16, #tpu.memory_space<vmem>>, %arg25: memref<128x1024xbf16, #tpu.memory_space<vmem>>, %arg26: memref<7x!tpu.dma_semaphore, #tpu.memory_space<semaphore_mem>>) attributes {dimension_semantics = [], scalar_prefetch = 0 : i64, scratch_operands = 8 : i64, tpu.core_type = #tpu.core_type<tc>} {
    %c0_i32 = arith.constant 0 : i32
    %0 = tpu.memref_slice %arg26[%c0_i32] : memref<7x!tpu.dma_semaphore, #tpu.memory_space<semaphore_mem>> -> memref<1x!tpu.dma_semaphore, #tpu.memory_space<semaphore_mem>>
    %1 = tpu.memref_squeeze %0 : memref<1x!tpu.dma_semaphore, #tpu.memory_space<semaphore_mem>> -> memref<!tpu.dma_semaphore, #tpu.memory_space<semaphore_mem>>
    tpu.enqueue_dma source(%arg11 : memref<128x512xbf16, #tpu.memory_space<any>>) target(%arg19 : memref<128x512xbf16, #tpu.memory_space<vmem>>) target_semaphore(%1 : memref<!tpu.dma_semaphore, #tpu.memory_space<semaphore_mem>>)
    %c1_i32 = arith.constant 1 : i32
    %2 = tpu.memref_slice %arg26[%c1_i32] : memref<7x!tpu.dma_semaphore, #tpu.memory_space<semaphore_mem>> -> memref<1x!tpu.dma_semaphore, #tpu.memory_space<semaphore_mem>>
    %3 = tpu.memref_squeeze %2 : memref<1x!tpu.dma_semaphore, #tpu.memory_space<semaphore_mem>> -> memref<!tpu.dma_semaphore, #tpu.memory_space<semaphore_mem>>
    tpu.enqueue_dma source(%arg12 : memref<128x512xbf16, #tpu.memory_space<any>>) target(%arg20 : memref<128x512xbf16, #tpu.memory_space<vmem>>) target_semaphore(%3 : memref<!tpu.dma_semaphore, #tpu.memory_space<semaphore_mem>>)
    %c2_i32 = arith.constant 2 : i32
    %4 = tpu.memref_slice %arg26[%c2_i32] : memref<7x!tpu.dma_semaphore, #tpu.memory_space<semaphore_mem>> -> memref<1x!tpu.dma_semaphore, #tpu.memory_space<semaphore_mem>>
    %5 = tpu.memref_squeeze %4 : memref<1x!tpu.dma_semaphore, #tpu.memory_space<semaphore_mem>> -> memref<!tpu.dma_semaphore, #tpu.memory_space<semaphore_mem>>
    tpu.enqueue_dma source(%arg13 : memref<128x512xbf16, #tpu.memory_space<any>>) target(%arg21 : memref<128x512xbf16, #tpu.memory_space<vmem>>) target_semaphore(%5 : memref<!tpu.dma_semaphore, #tpu.memory_space<semaphore_mem>>)
    %c3_i32 = arith.constant 3 : i32
    %6 = tpu.memref_slice %arg26[%c3_i32] : memref<7x!tpu.dma_semaphore, #tpu.memory_space<semaphore_mem>> -> memref<1x!tpu.dma_semaphore, #tpu.memory_space<semaphore_mem>>
    %7 = tpu.memref_squeeze %6 : memref<1x!tpu.dma_semaphore, #tpu.memory_space<semaphore_mem>> -> memref<!tpu.dma_semaphore, #tpu.memory_space<semaphore_mem>>
    tpu.enqueue_dma source(%arg14 : memref<128x512xbf16, #tpu.memory_space<any>>) target(%arg22 : memref<128x512xbf16, #tpu.memory_space<vmem>>) target_semaphore(%7 : memref<!tpu.dma_semaphore, #tpu.memory_space<semaphore_mem>>)
    %c4_i32 = arith.constant 4 : i32
    %8 = tpu.memref_slice %arg26[%c4_i32] : memref<7x!tpu.dma_semaphore, #tpu.memory_space<semaphore_mem>> -> memref<1x!tpu.dma_semaphore, #tpu.memory_space<semaphore_mem>>
    %9 = tpu.memref_squeeze %8 : memref<1x!tpu.dma_semaphore, #tpu.memory_space<semaphore_mem>> -> memref<!tpu.dma_semaphore, #tpu.memory_space<semaphore_mem>>
    tpu.enqueue_dma source(%arg15 : memref<128x512xbf16, #tpu.memory_space<any>>) target(%arg23 : memref<128x512xbf16, #tpu.memory_space<vmem>>) target_semaphore(%9 : memref<!tpu.dma_semaphore, #tpu.memory_space<semaphore_mem>>)
    %c5_i32 = arith.constant 5 : i32
    %10 = tpu.memref_slice %arg26[%c5_i32] : memref<7x!tpu.dma_semaphore, #tpu.memory_space<semaphore_mem>> -> memref<1x!tpu.dma_semaphore, #tpu.memory_space<semaphore_mem>>
    %11 = tpu.memref_squeeze %10 : memref<1x!tpu.dma_semaphore, #tpu.memory_space<semaphore_mem>> -> memref<!tpu.dma_semaphore, #tpu.memory_space<semaphore_mem>>
    tpu.enqueue_dma source(%arg16 : memref<128x1024xbf16, #tpu.memory_space<any>>) target(%arg24 : memref<128x1024xbf16, #tpu.memory_space<vmem>>) target_semaphore(%11 : memref<!tpu.dma_semaphore, #tpu.memory_space<semaphore_mem>>)
    %c6_i32 = arith.constant 6 : i32
    %12 = tpu.memref_slice %arg26[%c6_i32] : memref<7x!tpu.dma_semaphore, #tpu.memory_space<semaphore_mem>> -> memref<1x!tpu.dma_semaphore, #tpu.memory_space<semaphore_mem>>
    %13 = tpu.memref_squeeze %12 : memref<1x!tpu.dma_semaphore, #tpu.memory_space<semaphore_mem>> -> memref<!tpu.dma_semaphore, #tpu.memory_space<semaphore_mem>>
    tpu.enqueue_dma source(%arg17 : memref<128x1024xbf16, #tpu.memory_space<any>>) target(%arg25 : memref<128x1024xbf16, #tpu.memory_space<vmem>>) target_semaphore(%13 : memref<!tpu.dma_semaphore, #tpu.memory_space<semaphore_mem>>)
    %c0 = arith.constant 0 : index
    %c0_0 = arith.constant 0 : index
    %14 = vector.load %arg0[%c0, %c0_0] : memref<16x4xf32, #tpu.memory_space<vmem>>, vector<16x4xf32>
    %15 = arith.truncf %14 : vector<16x4xf32> to vector<16x4xbf16>
    %c0_1 = arith.constant 0 : index
    %c0_2 = arith.constant 0 : index
    %16 = vector.load %arg1[%c0_1, %c0_2] : memref<4x512xbf16, #tpu.memory_space<vmem>>, vector<4x512xbf16>
    %cst = arith.constant dense<0.000000e+00> : vector<16x512xf32>
    %17 = tpu.matmul %15, %16, %cst {dimension_numbers = #tpu.dot_dimension_numbers<[1], [0], [0], [1], [0, 0, 1, 1], [], []>} : vector<16x4xbf16>, vector<4x512xbf16>, vector<16x512xf32> -> vector<16x512xf32>
    %c0_3 = arith.constant 0 : index
    %c0_4 = arith.constant 0 : index
    %18 = vector.load %arg4[%c0_3, %c0_4] : memref<1x512xf32, #tpu.memory_space<vmem>>, vector<1x512xf32>
    %19 = vector.broadcast %18 : vector<1x512xf32> to vector<16x512xf32>
    %20 = arith.addf %17, %19 : vector<16x512xf32>
    %c0_5 = arith.constant 0 : index
    %c0_6 = arith.constant 0 : index
    %21 = vector.load %arg2[%c0_5, %c0_6] : memref<4x512xbf16, #tpu.memory_space<vmem>>, vector<4x512xbf16>
    %cst_7 = arith.constant dense<0.000000e+00> : vector<16x512xf32>
    %22 = tpu.matmul %15, %21, %cst_7 {dimension_numbers = #tpu.dot_dimension_numbers<[1], [0], [0], [1], [0, 0, 1, 1], [], []>} : vector<16x4xbf16>, vector<4x512xbf16>, vector<16x512xf32> -> vector<16x512xf32>
    %c0_8 = arith.constant 0 : index
    %c0_9 = arith.constant 0 : index
    %23 = vector.load %arg5[%c0_8, %c0_9] : memref<1x512xf32, #tpu.memory_space<vmem>>, vector<1x512xf32>
    %24 = vector.broadcast %23 : vector<1x512xf32> to vector<16x512xf32>
    %25 = arith.addf %22, %24 : vector<16x512xf32>
    %c0_10 = arith.constant 0 : index
    %c0_11 = arith.constant 0 : index
    %26 = vector.load %arg3[%c0_10, %c0_11] : memref<256x512xbf16, #tpu.memory_space<vmem>>, vector<256x512xbf16>
    %27 = tpu.iota {dimensions = array<i32: 0>} : vector<4x256xi32>
    %28 = tpu.iota {dimensions = array<i32: 1>} : vector<4x256xi32>
    %c2_i32_12 = arith.constant 2 : i32
    %29 = vector.broadcast %c2_i32_12 : i32 to vector<4x256xi32>
    %30 = arith.cmpi slt, %27, %29 : vector<4x256xi32>
    %c128_i32 = arith.constant 128 : i32
    %31 = vector.broadcast %c128_i32 : i32 to vector<4x256xi32>
    %32 = arith.cmpi slt, %28, %31 : vector<4x256xi32>
    %33 = arith.xori %30, %32 : vector<4x256xi1>
    %cst_13 = arith.constant dense<true> : vector<4x256xi1>
    %34 = arith.xori %33, %cst_13 : vector<4x256xi1>
    %cst_14 = arith.constant 1.000000e+00 : f32
    %cst_15 = arith.constant 0.000000e+00 : f32
    %35 = vector.broadcast %cst_14 : f32 to vector<4x256xf32>
    %36 = vector.broadcast %cst_15 : f32 to vector<4x256xf32>
    %37 = arith.select %34, %35, %36 : vector<4x256xi1>, vector<4x256xf32>
    %38 = arith.truncf %37 : vector<4x256xf32> to vector<4x256xbf16>
    %cst_16 = arith.constant 0.000000e+00 : f32
    %39 = vector.broadcast %cst_16 : f32 to vector<4x128xf32>
    %40 = vector.extract_strided_slice %20 {offsets = [0, 0], sizes = [2, 512], strides = [1, 1]} : vector<16x512xf32> to vector<2x512xf32>
    %41 = vector.extract_strided_slice %25 {offsets = [14, 0], sizes = [2, 512], strides = [1, 1]} : vector<16x512xf32> to vector<2x512xf32>
    %42 = tpu.concatenate %40, %41 in 0 : vector<2x512xf32>, vector<2x512xf32> -> vector<4x512xf32>
    %43 = vector.extract_strided_slice %42 {offsets = [0, 0], sizes = [4, 128], strides = [1, 1]} : vector<4x512xf32> to vector<4x128xf32>
    %44 = arith.negf %43 : vector<4x128xf32>
    %45 = math.exp %44 : vector<4x128xf32>
    %cst_17 = arith.constant 1.000000e+00 : f32
    %46 = vector.broadcast %cst_17 : f32 to vector<4x128xf32>
    %47 = arith.addf %46, %45 : vector<4x128xf32>
    %48 = arith.divf %46, %47 : vector<4x128xf32>
    %49 = vector.extract_strided_slice %42 {offsets = [0, 128], sizes = [4, 128], strides = [1, 1]} : vector<4x512xf32> to vector<4x128xf32>
    %50 = arith.negf %49 : vector<4x128xf32>
    %51 = math.exp %50 : vector<4x128xf32>
    %cst_18 = arith.constant 1.000000e+00 : f32
    %52 = vector.broadcast %cst_18 : f32 to vector<4x128xf32>
    %53 = arith.addf %52, %51 : vector<4x128xf32>
    %54 = arith.divf %52, %53 : vector<4x128xf32>
    %55 = vector.extract_strided_slice %42 {offsets = [0, 256], sizes = [4, 128], strides = [1, 1]} : vector<4x512xf32> to vector<4x128xf32>
    %56 = math.tanh %55 : vector<4x128xf32>
    %57 = vector.extract_strided_slice %42 {offsets = [0, 384], sizes = [4, 128], strides = [1, 1]} : vector<4x512xf32> to vector<4x128xf32>
    %58 = arith.negf %57 : vector<4x128xf32>
    %59 = math.exp %58 : vector<4x128xf32>
    %cst_19 = arith.constant 1.000000e+00 : f32
    %60 = vector.broadcast %cst_19 : f32 to vector<4x128xf32>
    %61 = arith.addf %60, %59 : vector<4x128xf32>
    %62 = arith.divf %60, %61 : vector<4x128xf32>
    %63 = arith.mulf %54, %39 : vector<4x128xf32>
    %64 = arith.mulf %48, %56 : vector<4x128xf32>
    %65 = arith.addf %63, %64 : vector<4x128xf32>
    %66 = math.tanh %65 : vector<4x128xf32>
    %67 = arith.mulf %62, %66 : vector<4x128xf32>
    %68 = tpu.concatenate %67, %67 in 1 : vector<4x128xf32>, vector<4x128xf32> -> vector<4x256xf32>
    %69 = arith.truncf %68 : vector<4x256xf32> to vector<4x256xbf16>
    %70 = arith.mulf %69, %38 : vector<4x256xbf16>
    %71 = vector.extract_strided_slice %20 {offsets = [2, 0], sizes = [2, 512], strides = [1, 1]} : vector<16x512xf32> to vector<2x512xf32>
    %72 = vector.extract_strided_slice %25 {offsets = [12, 0], sizes = [2, 512], strides = [1, 1]} : vector<16x512xf32> to vector<2x512xf32>
    %73 = tpu.concatenate %71, %72 in 0 : vector<2x512xf32>, vector<2x512xf32> -> vector<4x512xf32>
    %cst_20 = arith.constant dense<0.000000e+00> : vector<4x512xf32>
    %74 = tpu.matmul %70, %26, %cst_20 {dimension_numbers = #tpu.dot_dimension_numbers<[1], [0], [0], [1], [0, 0, 1, 1], [], []>} : vector<4x256xbf16>, vector<256x512xbf16>, vector<4x512xf32> -> vector<4x512xf32>
    %75 = arith.addf %73, %74 : vector<4x512xf32>
    %76 = vector.extract_strided_slice %75 {offsets = [0, 0], sizes = [4, 128], strides = [1, 1]} : vector<4x512xf32> to vector<4x128xf32>
    %77 = arith.negf %76 : vector<4x128xf32>
    %78 = math.exp %77 : vector<4x128xf32>
    %cst_21 = arith.constant 1.000000e+00 : f32
    %79 = vector.broadcast %cst_21 : f32 to vector<4x128xf32>
    %80 = arith.addf %79, %78 : vector<4x128xf32>
    %81 = arith.divf %79, %80 : vector<4x128xf32>
    %82 = vector.extract_strided_slice %75 {offsets = [0, 128], sizes = [4, 128], strides = [1, 1]} : vector<4x512xf32> to vector<4x128xf32>
    %83 = arith.negf %82 : vector<4x128xf32>
    %84 = math.exp %83 : vector<4x128xf32>
    %cst_22 = arith.constant 1.000000e+00 : f32
    %85 = vector.broadcast %cst_22 : f32 to vector<4x128xf32>
    %86 = arith.addf %85, %84 : vector<4x128xf32>
    %87 = arith.divf %85, %86 : vector<4x128xf32>
    %88 = vector.extract_strided_slice %75 {offsets = [0, 256], sizes = [4, 128], strides = [1, 1]} : vector<4x512xf32> to vector<4x128xf32>
    %89 = math.tanh %88 : vector<4x128xf32>
    %90 = vector.extract_strided_slice %75 {offsets = [0, 384], sizes = [4, 128], strides = [1, 1]} : vector<4x512xf32> to vector<4x128xf32>
    %91 = arith.negf %90 : vector<4x128xf32>
    %92 = math.exp %91 : vector<4x128xf32>
    %cst_23 = arith.constant 1.000000e+00 : f32
    %93 = vector.broadcast %cst_23 : f32 to vector<4x128xf32>
    %94 = arith.addf %93, %92 : vector<4x128xf32>
    %95 = arith.divf %93, %94 : vector<4x128xf32>
    %96 = arith.mulf %87, %65 : vector<4x128xf32>
    %97 = arith.mulf %81, %89 : vector<4x128xf32>
    %98 = arith.addf %96, %97 : vector<4x128xf32>
    %99 = math.tanh %98 : vector<4x128xf32>
    %100 = arith.mulf %95, %99 : vector<4x128xf32>
    %101 = tpu.concatenate %100, %100 in 1 : vector<4x128xf32>, vector<4x128xf32> -> vector<4x256xf32>
    %102 = arith.truncf %101 : vector<4x256xf32> to vector<4x256xbf16>
    %103 = arith.mulf %102, %38 : vector<4x256xbf16>
    %104 = vector.extract_strided_slice %20 {offsets = [4, 0], sizes = [2, 512], strides = [1, 1]} : vector<16x512xf32> to vector<2x512xf32>
    %105 = vector.extract_strided_slice %25 {offsets = [10, 0], sizes = [2, 512], strides = [1, 1]} : vector<16x512xf32> to vector<2x512xf32>
    %106 = tpu.concatenate %104, %105 in 0 : vector<2x512xf32>, vector<2x512xf32> -> vector<4x512xf32>
    %cst_24 = arith.constant dense<0.000000e+00> : vector<4x512xf32>
    %107 = tpu.matmul %103, %26, %cst_24 {dimension_numbers = #tpu.dot_dimension_numbers<[1], [0], [0], [1], [0, 0, 1, 1], [], []>} : vector<4x256xbf16>, vector<256x512xbf16>, vector<4x512xf32> -> vector<4x512xf32>
    %108 = arith.addf %106, %107 : vector<4x512xf32>
    %109 = vector.extract_strided_slice %108 {offsets = [0, 0], sizes = [4, 128], strides = [1, 1]} : vector<4x512xf32> to vector<4x128xf32>
    %110 = arith.negf %109 : vector<4x128xf32>
    %111 = math.exp %110 : vector<4x128xf32>
    %cst_25 = arith.constant 1.000000e+00 : f32
    %112 = vector.broadcast %cst_25 : f32 to vector<4x128xf32>
    %113 = arith.addf %112, %111 : vector<4x128xf32>
    %114 = arith.divf %112, %113 : vector<4x128xf32>
    %115 = vector.extract_strided_slice %108 {offsets = [0, 128], sizes = [4, 128], strides = [1, 1]} : vector<4x512xf32> to vector<4x128xf32>
    %116 = arith.negf %115 : vector<4x128xf32>
    %117 = math.exp %116 : vector<4x128xf32>
    %cst_26 = arith.constant 1.000000e+00 : f32
    %118 = vector.broadcast %cst_26 : f32 to vector<4x128xf32>
    %119 = arith.addf %118, %117 : vector<4x128xf32>
    %120 = arith.divf %118, %119 : vector<4x128xf32>
    %121 = vector.extract_strided_slice %108 {offsets = [0, 256], sizes = [4, 128], strides = [1, 1]} : vector<4x512xf32> to vector<4x128xf32>
    %122 = math.tanh %121 : vector<4x128xf32>
    %123 = vector.extract_strided_slice %108 {offsets = [0, 384], sizes = [4, 128], strides = [1, 1]} : vector<4x512xf32> to vector<4x128xf32>
    %124 = arith.negf %123 : vector<4x128xf32>
    %125 = math.exp %124 : vector<4x128xf32>
    %cst_27 = arith.constant 1.000000e+00 : f32
    %126 = vector.broadcast %cst_27 : f32 to vector<4x128xf32>
    %127 = arith.addf %126, %125 : vector<4x128xf32>
    %128 = arith.divf %126, %127 : vector<4x128xf32>
    %129 = arith.mulf %120, %98 : vector<4x128xf32>
    %130 = arith.mulf %114, %122 : vector<4x128xf32>
    %131 = arith.addf %129, %130 : vector<4x128xf32>
    %132 = math.tanh %131 : vector<4x128xf32>
    %133 = arith.mulf %128, %132 : vector<4x128xf32>
    %134 = tpu.concatenate %133, %133 in 1 : vector<4x128xf32>, vector<4x128xf32> -> vector<4x256xf32>
    %135 = arith.truncf %134 : vector<4x256xf32> to vector<4x256xbf16>
    %136 = arith.mulf %135, %38 : vector<4x256xbf16>
    %137 = vector.extract_strided_slice %20 {offsets = [6, 0], sizes = [2, 512], strides = [1, 1]} : vector<16x512xf32> to vector<2x512xf32>
    %138 = vector.extract_strided_slice %25 {offsets = [8, 0], sizes = [2, 512], strides = [1, 1]} : vector<16x512xf32> to vector<2x512xf32>
    %139 = tpu.concatenate %137, %138 in 0 : vector<2x512xf32>, vector<2x512xf32> -> vector<4x512xf32>
    %cst_28 = arith.constant dense<0.000000e+00> : vector<4x512xf32>
    %140 = tpu.matmul %136, %26, %cst_28 {dimension_numbers = #tpu.dot_dimension_numbers<[1], [0], [0], [1], [0, 0, 1, 1], [], []>} : vector<4x256xbf16>, vector<256x512xbf16>, vector<4x512xf32> -> vector<4x512xf32>
    %141 = arith.addf %139, %140 : vector<4x512xf32>
    %142 = vector.extract_strided_slice %141 {offsets = [0, 0], sizes = [4, 128], strides = [1, 1]} : vector<4x512xf32> to vector<4x128xf32>
    %143 = arith.negf %142 : vector<4x128xf32>
    %144 = math.exp %143 : vector<4x128xf32>
    %cst_29 = arith.constant 1.000000e+00 : f32
    %145 = vector.broadcast %cst_29 : f32 to vector<4x128xf32>
    %146 = arith.addf %145, %144 : vector<4x128xf32>
    %147 = arith.divf %145, %146 : vector<4x128xf32>
    %148 = vector.extract_strided_slice %141 {offsets = [0, 128], sizes = [4, 128], strides = [1, 1]} : vector<4x512xf32> to vector<4x128xf32>
    %149 = arith.negf %148 : vector<4x128xf32>
    %150 = math.exp %149 : vector<4x128xf32>
    %cst_30 = arith.constant 1.000000e+00 : f32
    %151 = vector.broadcast %cst_30 : f32 to vector<4x128xf32>
    %152 = arith.addf %151, %150 : vector<4x128xf32>
    %153 = arith.divf %151, %152 : vector<4x128xf32>
    %154 = vector.extract_strided_slice %141 {offsets = [0, 256], sizes = [4, 128], strides = [1, 1]} : vector<4x512xf32> to vector<4x128xf32>
    %155 = math.tanh %154 : vector<4x128xf32>
    %156 = vector.extract_strided_slice %141 {offsets = [0, 384], sizes = [4, 128], strides = [1, 1]} : vector<4x512xf32> to vector<4x128xf32>
    %157 = arith.negf %156 : vector<4x128xf32>
    %158 = math.exp %157 : vector<4x128xf32>
    %cst_31 = arith.constant 1.000000e+00 : f32
    %159 = vector.broadcast %cst_31 : f32 to vector<4x128xf32>
    %160 = arith.addf %159, %158 : vector<4x128xf32>
    %161 = arith.divf %159, %160 : vector<4x128xf32>
    %162 = arith.mulf %153, %131 : vector<4x128xf32>
    %163 = arith.mulf %147, %155 : vector<4x128xf32>
    %164 = arith.addf %162, %163 : vector<4x128xf32>
    %165 = math.tanh %164 : vector<4x128xf32>
    %166 = arith.mulf %161, %165 : vector<4x128xf32>
    %167 = tpu.concatenate %166, %166 in 1 : vector<4x128xf32>, vector<4x128xf32> -> vector<4x256xf32>
    %168 = arith.truncf %167 : vector<4x256xf32> to vector<4x256xbf16>
    %169 = arith.mulf %168, %38 : vector<4x256xbf16>
    %170 = vector.extract_strided_slice %20 {offsets = [8, 0], sizes = [2, 512], strides = [1, 1]} : vector<16x512xf32> to vector<2x512xf32>
    %171 = vector.extract_strided_slice %25 {offsets = [6, 0], sizes = [2, 512], strides = [1, 1]} : vector<16x512xf32> to vector<2x512xf32>
    %172 = tpu.concatenate %170, %171 in 0 : vector<2x512xf32>, vector<2x512xf32> -> vector<4x512xf32>
    %cst_32 = arith.constant dense<0.000000e+00> : vector<4x512xf32>
    %173 = tpu.matmul %169, %26, %cst_32 {dimension_numbers = #tpu.dot_dimension_numbers<[1], [0], [0], [1], [0, 0, 1, 1], [], []>} : vector<4x256xbf16>, vector<256x512xbf16>, vector<4x512xf32> -> vector<4x512xf32>
    %174 = arith.addf %172, %173 : vector<4x512xf32>
    %175 = vector.extract_strided_slice %174 {offsets = [0, 0], sizes = [4, 128], strides = [1, 1]} : vector<4x512xf32> to vector<4x128xf32>
    %176 = arith.negf %175 : vector<4x128xf32>
    %177 = math.exp %176 : vector<4x128xf32>
    %cst_33 = arith.constant 1.000000e+00 : f32
    %178 = vector.broadcast %cst_33 : f32 to vector<4x128xf32>
    %179 = arith.addf %178, %177 : vector<4x128xf32>
    %180 = arith.divf %178, %179 : vector<4x128xf32>
    %181 = vector.extract_strided_slice %174 {offsets = [0, 128], sizes = [4, 128], strides = [1, 1]} : vector<4x512xf32> to vector<4x128xf32>
    %182 = arith.negf %181 : vector<4x128xf32>
    %183 = math.exp %182 : vector<4x128xf32>
    %cst_34 = arith.constant 1.000000e+00 : f32
    %184 = vector.broadcast %cst_34 : f32 to vector<4x128xf32>
    %185 = arith.addf %184, %183 : vector<4x128xf32>
    %186 = arith.divf %184, %185 : vector<4x128xf32>
    %187 = vector.extract_strided_slice %174 {offsets = [0, 256], sizes = [4, 128], strides = [1, 1]} : vector<4x512xf32> to vector<4x128xf32>
    %188 = math.tanh %187 : vector<4x128xf32>
    %189 = vector.extract_strided_slice %174 {offsets = [0, 384], sizes = [4, 128], strides = [1, 1]} : vector<4x512xf32> to vector<4x128xf32>
    %190 = arith.negf %189 : vector<4x128xf32>
    %191 = math.exp %190 : vector<4x128xf32>
    %cst_35 = arith.constant 1.000000e+00 : f32
    %192 = vector.broadcast %cst_35 : f32 to vector<4x128xf32>
    %193 = arith.addf %192, %191 : vector<4x128xf32>
    %194 = arith.divf %192, %193 : vector<4x128xf32>
    %195 = arith.mulf %186, %164 : vector<4x128xf32>
    %196 = arith.mulf %180, %188 : vector<4x128xf32>
    %197 = arith.addf %195, %196 : vector<4x128xf32>
    %198 = math.tanh %197 : vector<4x128xf32>
    %199 = arith.mulf %194, %198 : vector<4x128xf32>
    %200 = tpu.concatenate %199, %199 in 1 : vector<4x128xf32>, vector<4x128xf32> -> vector<4x256xf32>
    %201 = arith.truncf %200 : vector<4x256xf32> to vector<4x256xbf16>
    %202 = arith.mulf %201, %38 : vector<4x256xbf16>
    %203 = vector.extract_strided_slice %20 {offsets = [10, 0], sizes = [2, 512], strides = [1, 1]} : vector<16x512xf32> to vector<2x512xf32>
    %204 = vector.extract_strided_slice %25 {offsets = [4, 0], sizes = [2, 512], strides = [1, 1]} : vector<16x512xf32> to vector<2x512xf32>
    %205 = tpu.concatenate %203, %204 in 0 : vector<2x512xf32>, vector<2x512xf32> -> vector<4x512xf32>
    %cst_36 = arith.constant dense<0.000000e+00> : vector<4x512xf32>
    %206 = tpu.matmul %202, %26, %cst_36 {dimension_numbers = #tpu.dot_dimension_numbers<[1], [0], [0], [1], [0, 0, 1, 1], [], []>} : vector<4x256xbf16>, vector<256x512xbf16>, vector<4x512xf32> -> vector<4x512xf32>
    %207 = arith.addf %205, %206 : vector<4x512xf32>
    %208 = vector.extract_strided_slice %207 {offsets = [0, 0], sizes = [4, 128], strides = [1, 1]} : vector<4x512xf32> to vector<4x128xf32>
    %209 = arith.negf %208 : vector<4x128xf32>
    %210 = math.exp %209 : vector<4x128xf32>
    %cst_37 = arith.constant 1.000000e+00 : f32
    %211 = vector.broadcast %cst_37 : f32 to vector<4x128xf32>
    %212 = arith.addf %211, %210 : vector<4x128xf32>
    %213 = arith.divf %211, %212 : vector<4x128xf32>
    %214 = vector.extract_strided_slice %207 {offsets = [0, 128], sizes = [4, 128], strides = [1, 1]} : vector<4x512xf32> to vector<4x128xf32>
    %215 = arith.negf %214 : vector<4x128xf32>
    %216 = math.exp %215 : vector<4x128xf32>
    %cst_38 = arith.constant 1.000000e+00 : f32
    %217 = vector.broadcast %cst_38 : f32 to vector<4x128xf32>
    %218 = arith.addf %217, %216 : vector<4x128xf32>
    %219 = arith.divf %217, %218 : vector<4x128xf32>
    %220 = vector.extract_strided_slice %207 {offsets = [0, 256], sizes = [4, 128], strides = [1, 1]} : vector<4x512xf32> to vector<4x128xf32>
    %221 = math.tanh %220 : vector<4x128xf32>
    %222 = vector.extract_strided_slice %207 {offsets = [0, 384], sizes = [4, 128], strides = [1, 1]} : vector<4x512xf32> to vector<4x128xf32>
    %223 = arith.negf %222 : vector<4x128xf32>
    %224 = math.exp %223 : vector<4x128xf32>
    %cst_39 = arith.constant 1.000000e+00 : f32
    %225 = vector.broadcast %cst_39 : f32 to vector<4x128xf32>
    %226 = arith.addf %225, %224 : vector<4x128xf32>
    %227 = arith.divf %225, %226 : vector<4x128xf32>
    %228 = arith.mulf %219, %197 : vector<4x128xf32>
    %229 = arith.mulf %213, %221 : vector<4x128xf32>
    %230 = arith.addf %228, %229 : vector<4x128xf32>
    %231 = math.tanh %230 : vector<4x128xf32>
    %232 = arith.mulf %227, %231 : vector<4x128xf32>
    %233 = tpu.concatenate %232, %232 in 1 : vector<4x128xf32>, vector<4x128xf32> -> vector<4x256xf32>
    %234 = arith.truncf %233 : vector<4x256xf32> to vector<4x256xbf16>
    %235 = arith.mulf %234, %38 : vector<4x256xbf16>
    %236 = vector.extract_strided_slice %20 {offsets = [12, 0], sizes = [2, 512], strides = [1, 1]} : vector<16x512xf32> to vector<2x512xf32>
    %237 = vector.extract_strided_slice %25 {offsets = [2, 0], sizes = [2, 512], strides = [1, 1]} : vector<16x512xf32> to vector<2x512xf32>
    %238 = tpu.concatenate %236, %237 in 0 : vector<2x512xf32>, vector<2x512xf32> -> vector<4x512xf32>
    %cst_40 = arith.constant dense<0.000000e+00> : vector<4x512xf32>
    %239 = tpu.matmul %235, %26, %cst_40 {dimension_numbers = #tpu.dot_dimension_numbers<[1], [0], [0], [1], [0, 0, 1, 1], [], []>} : vector<4x256xbf16>, vector<256x512xbf16>, vector<4x512xf32> -> vector<4x512xf32>
    %240 = arith.addf %238, %239 : vector<4x512xf32>
    %241 = vector.extract_strided_slice %240 {offsets = [0, 0], sizes = [4, 128], strides = [1, 1]} : vector<4x512xf32> to vector<4x128xf32>
    %242 = arith.negf %241 : vector<4x128xf32>
    %243 = math.exp %242 : vector<4x128xf32>
    %cst_41 = arith.constant 1.000000e+00 : f32
    %244 = vector.broadcast %cst_41 : f32 to vector<4x128xf32>
    %245 = arith.addf %244, %243 : vector<4x128xf32>
    %246 = arith.divf %244, %245 : vector<4x128xf32>
    %247 = vector.extract_strided_slice %240 {offsets = [0, 128], sizes = [4, 128], strides = [1, 1]} : vector<4x512xf32> to vector<4x128xf32>
    %248 = arith.negf %247 : vector<4x128xf32>
    %249 = math.exp %248 : vector<4x128xf32>
    %cst_42 = arith.constant 1.000000e+00 : f32
    %250 = vector.broadcast %cst_42 : f32 to vector<4x128xf32>
    %251 = arith.addf %250, %249 : vector<4x128xf32>
    %252 = arith.divf %250, %251 : vector<4x128xf32>
    %253 = vector.extract_strided_slice %240 {offsets = [0, 256], sizes = [4, 128], strides = [1, 1]} : vector<4x512xf32> to vector<4x128xf32>
    %254 = math.tanh %253 : vector<4x128xf32>
    %255 = vector.extract_strided_slice %240 {offsets = [0, 384], sizes = [4, 128], strides = [1, 1]} : vector<4x512xf32> to vector<4x128xf32>
    %256 = arith.negf %255 : vector<4x128xf32>
    %257 = math.exp %256 : vector<4x128xf32>
    %cst_43 = arith.constant 1.000000e+00 : f32
    %258 = vector.broadcast %cst_43 : f32 to vector<4x128xf32>
    %259 = arith.addf %258, %257 : vector<4x128xf32>
    %260 = arith.divf %258, %259 : vector<4x128xf32>
    %261 = arith.mulf %252, %230 : vector<4x128xf32>
    %262 = arith.mulf %246, %254 : vector<4x128xf32>
    %263 = arith.addf %261, %262 : vector<4x128xf32>
    %264 = math.tanh %263 : vector<4x128xf32>
    %265 = arith.mulf %260, %264 : vector<4x128xf32>
    %266 = tpu.concatenate %265, %265 in 1 : vector<4x128xf32>, vector<4x128xf32> -> vector<4x256xf32>
    %267 = arith.truncf %266 : vector<4x256xf32> to vector<4x256xbf16>
    %268 = arith.mulf %267, %38 : vector<4x256xbf16>
    %269 = vector.extract_strided_slice %20 {offsets = [14, 0], sizes = [2, 512], strides = [1, 1]} : vector<16x512xf32> to vector<2x512xf32>
    %270 = vector.extract_strided_slice %25 {offsets = [0, 0], sizes = [2, 512], strides = [1, 1]} : vector<16x512xf32> to vector<2x512xf32>
    %271 = tpu.concatenate %269, %270 in 0 : vector<2x512xf32>, vector<2x512xf32> -> vector<4x512xf32>
    %cst_44 = arith.constant dense<0.000000e+00> : vector<4x512xf32>
    %272 = tpu.matmul %268, %26, %cst_44 {dimension_numbers = #tpu.dot_dimension_numbers<[1], [0], [0], [1], [0, 0, 1, 1], [], []>} : vector<4x256xbf16>, vector<256x512xbf16>, vector<4x512xf32> -> vector<4x512xf32>
    %273 = arith.addf %271, %272 : vector<4x512xf32>
    %274 = vector.extract_strided_slice %273 {offsets = [0, 0], sizes = [4, 128], strides = [1, 1]} : vector<4x512xf32> to vector<4x128xf32>
    %275 = arith.negf %274 : vector<4x128xf32>
    %276 = math.exp %275 : vector<4x128xf32>
    %cst_45 = arith.constant 1.000000e+00 : f32
    %277 = vector.broadcast %cst_45 : f32 to vector<4x128xf32>
    %278 = arith.addf %277, %276 : vector<4x128xf32>
    %279 = arith.divf %277, %278 : vector<4x128xf32>
    %280 = vector.extract_strided_slice %273 {offsets = [0, 128], sizes = [4, 128], strides = [1, 1]} : vector<4x512xf32> to vector<4x128xf32>
    %281 = arith.negf %280 : vector<4x128xf32>
    %282 = math.exp %281 : vector<4x128xf32>
    %cst_46 = arith.constant 1.000000e+00 : f32
    %283 = vector.broadcast %cst_46 : f32 to vector<4x128xf32>
    %284 = arith.addf %283, %282 : vector<4x128xf32>
    %285 = arith.divf %283, %284 : vector<4x128xf32>
    %286 = vector.extract_strided_slice %273 {offsets = [0, 256], sizes = [4, 128], strides = [1, 1]} : vector<4x512xf32> to vector<4x128xf32>
    %287 = math.tanh %286 : vector<4x128xf32>
    %288 = vector.extract_strided_slice %273 {offsets = [0, 384], sizes = [4, 128], strides = [1, 1]} : vector<4x512xf32> to vector<4x128xf32>
    %289 = arith.negf %288 : vector<4x128xf32>
    %290 = math.exp %289 : vector<4x128xf32>
    %cst_47 = arith.constant 1.000000e+00 : f32
    %291 = vector.broadcast %cst_47 : f32 to vector<4x128xf32>
    %292 = arith.addf %291, %290 : vector<4x128xf32>
    %293 = arith.divf %291, %292 : vector<4x128xf32>
    %294 = arith.mulf %285, %263 : vector<4x128xf32>
    %295 = arith.mulf %279, %287 : vector<4x128xf32>
    %296 = arith.addf %294, %295 : vector<4x128xf32>
    %297 = math.tanh %296 : vector<4x128xf32>
    %298 = arith.mulf %293, %297 : vector<4x128xf32>
    %299 = vector.extract_strided_slice %67 {offsets = [0, 0], sizes = [2, 128], strides = [1, 1]} : vector<4x128xf32> to vector<2x128xf32>
    %300 = vector.extract_strided_slice %100 {offsets = [0, 0], sizes = [2, 128], strides = [1, 1]} : vector<4x128xf32> to vector<2x128xf32>
    %301 = vector.extract_strided_slice %133 {offsets = [0, 0], sizes = [2, 128], strides = [1, 1]} : vector<4x128xf32> to vector<2x128xf32>
    %302 = vector.extract_strided_slice %166 {offsets = [0, 0], sizes = [2, 128], strides = [1, 1]} : vector<4x128xf32> to vector<2x128xf32>
    %303 = vector.extract_strided_slice %199 {offsets = [0, 0], sizes = [2, 128], strides = [1, 1]} : vector<4x128xf32> to vector<2x128xf32>
    %304 = vector.extract_strided_slice %232 {offsets = [0, 0], sizes = [2, 128], strides = [1, 1]} : vector<4x128xf32> to vector<2x128xf32>
    %305 = vector.extract_strided_slice %265 {offsets = [0, 0], sizes = [2, 128], strides = [1, 1]} : vector<4x128xf32> to vector<2x128xf32>
    %306 = vector.extract_strided_slice %298 {offsets = [0, 0], sizes = [2, 128], strides = [1, 1]} : vector<4x128xf32> to vector<2x128xf32>
    %307 = tpu.concatenate %299, %300, %301, %302, %303, %304, %305, %306 in 0 : vector<2x128xf32>, vector<2x128xf32>, vector<2x128xf32>, vector<2x128xf32>, vector<2x128xf32>, vector<2x128xf32>, vector<2x128xf32>, vector<2x128xf32> -> vector<16x128xf32>
    %308 = arith.truncf %307 : vector<16x128xf32> to vector<16x128xbf16>
    %309 = vector.extract_strided_slice %298 {offsets = [2, 0], sizes = [2, 128], strides = [1, 1]} : vector<4x128xf32> to vector<2x128xf32>
    %310 = vector.extract_strided_slice %265 {offsets = [2, 0], sizes = [2, 128], strides = [1, 1]} : vector<4x128xf32> to vector<2x128xf32>
    %311 = vector.extract_strided_slice %232 {offsets = [2, 0], sizes = [2, 128], strides = [1, 1]} : vector<4x128xf32> to vector<2x128xf32>
    %312 = vector.extract_strided_slice %199 {offsets = [2, 0], sizes = [2, 128], strides = [1, 1]} : vector<4x128xf32> to vector<2x128xf32>
    %313 = vector.extract_strided_slice %166 {offsets = [2, 0], sizes = [2, 128], strides = [1, 1]} : vector<4x128xf32> to vector<2x128xf32>
    %314 = vector.extract_strided_slice %133 {offsets = [2, 0], sizes = [2, 128], strides = [1, 1]} : vector<4x128xf32> to vector<2x128xf32>
    %315 = vector.extract_strided_slice %100 {offsets = [2, 0], sizes = [2, 128], strides = [1, 1]} : vector<4x128xf32> to vector<2x128xf32>
    %316 = vector.extract_strided_slice %67 {offsets = [2, 0], sizes = [2, 128], strides = [1, 1]} : vector<4x128xf32> to vector<2x128xf32>
    %317 = tpu.concatenate %309, %310, %311, %312, %313, %314, %315, %316 in 0 : vector<2x128xf32>, vector<2x128xf32>, vector<2x128xf32>, vector<2x128xf32>, vector<2x128xf32>, vector<2x128xf32>, vector<2x128xf32>, vector<2x128xf32> -> vector<16x128xf32>
    %318 = arith.truncf %317 : vector<16x128xf32> to vector<16x128xbf16>
    %319 = vector.extract_strided_slice %298 {offsets = [0, 0], sizes = [2, 128], strides = [1, 1]} : vector<4x128xf32> to vector<2x128xf32>
    %320 = vector.extract_strided_slice %67 {offsets = [2, 0], sizes = [2, 128], strides = [1, 1]} : vector<4x128xf32> to vector<2x128xf32>
    %c0_i32_48 = arith.constant 0 : i32
    %321 = tpu.memref_slice %arg26[%c0_i32_48] : memref<7x!tpu.dma_semaphore, #tpu.memory_space<semaphore_mem>> -> memref<1x!tpu.dma_semaphore, #tpu.memory_space<semaphore_mem>>
    %322 = tpu.memref_squeeze %321 : memref<1x!tpu.dma_semaphore, #tpu.memory_space<semaphore_mem>> -> memref<!tpu.dma_semaphore, #tpu.memory_space<semaphore_mem>>
    tpu.wait_dma2 semaphore(%322 : memref<!tpu.dma_semaphore, #tpu.memory_space<semaphore_mem>>) src(%arg11 : memref<128x512xbf16, #tpu.memory_space<any>>) dst(%arg19 : memref<128x512xbf16, #tpu.memory_space<vmem>>)
    %c1_i32_49 = arith.constant 1 : i32
    %323 = tpu.memref_slice %arg26[%c1_i32_49] : memref<7x!tpu.dma_semaphore, #tpu.memory_space<semaphore_mem>> -> memref<1x!tpu.dma_semaphore, #tpu.memory_space<semaphore_mem>>
    %324 = tpu.memref_squeeze %323 : memref<1x!tpu.dma_semaphore, #tpu.memory_space<semaphore_mem>> -> memref<!tpu.dma_semaphore, #tpu.memory_space<semaphore_mem>>
    tpu.wait_dma2 semaphore(%324 : memref<!tpu.dma_semaphore, #tpu.memory_space<semaphore_mem>>) src(%arg12 : memref<128x512xbf16, #tpu.memory_space<any>>) dst(%arg20 : memref<128x512xbf16, #tpu.memory_space<vmem>>)
    %c2_i32_50 = arith.constant 2 : i32
    %325 = tpu.memref_slice %arg26[%c2_i32_50] : memref<7x!tpu.dma_semaphore, #tpu.memory_space<semaphore_mem>> -> memref<1x!tpu.dma_semaphore, #tpu.memory_space<semaphore_mem>>
    %326 = tpu.memref_squeeze %325 : memref<1x!tpu.dma_semaphore, #tpu.memory_space<semaphore_mem>> -> memref<!tpu.dma_semaphore, #tpu.memory_space<semaphore_mem>>
    tpu.wait_dma2 semaphore(%326 : memref<!tpu.dma_semaphore, #tpu.memory_space<semaphore_mem>>) src(%arg13 : memref<128x512xbf16, #tpu.memory_space<any>>) dst(%arg21 : memref<128x512xbf16, #tpu.memory_space<vmem>>)
    %c3_i32_51 = arith.constant 3 : i32
    %327 = tpu.memref_slice %arg26[%c3_i32_51] : memref<7x!tpu.dma_semaphore, #tpu.memory_space<semaphore_mem>> -> memref<1x!tpu.dma_semaphore, #tpu.memory_space<semaphore_mem>>
    %328 = tpu.memref_squeeze %327 : memref<1x!tpu.dma_semaphore, #tpu.memory_space<semaphore_mem>> -> memref<!tpu.dma_semaphore, #tpu.memory_space<semaphore_mem>>
    tpu.wait_dma2 semaphore(%328 : memref<!tpu.dma_semaphore, #tpu.memory_space<semaphore_mem>>) src(%arg14 : memref<128x512xbf16, #tpu.memory_space<any>>) dst(%arg22 : memref<128x512xbf16, #tpu.memory_space<vmem>>)
    %c4_i32_52 = arith.constant 4 : i32
    %329 = tpu.memref_slice %arg26[%c4_i32_52] : memref<7x!tpu.dma_semaphore, #tpu.memory_space<semaphore_mem>> -> memref<1x!tpu.dma_semaphore, #tpu.memory_space<semaphore_mem>>
    %330 = tpu.memref_squeeze %329 : memref<1x!tpu.dma_semaphore, #tpu.memory_space<semaphore_mem>> -> memref<!tpu.dma_semaphore, #tpu.memory_space<semaphore_mem>>
    tpu.wait_dma2 semaphore(%330 : memref<!tpu.dma_semaphore, #tpu.memory_space<semaphore_mem>>) src(%arg15 : memref<128x512xbf16, #tpu.memory_space<any>>) dst(%arg23 : memref<128x512xbf16, #tpu.memory_space<vmem>>)
    %c0_53 = arith.constant 0 : index
    %c0_54 = arith.constant 0 : index
    %331 = vector.load %arg19[%c0_53, %c0_54] : memref<128x512xbf16, #tpu.memory_space<vmem>>, vector<128x512xbf16>
    %cst_55 = arith.constant dense<0.000000e+00> : vector<16x512xf32>
    %332 = tpu.matmul %308, %331, %cst_55 {dimension_numbers = #tpu.dot_dimension_numbers<[1], [0], [0], [1], [0, 0, 1, 1], [], []>} : vector<16x128xbf16>, vector<128x512xbf16>, vector<16x512xf32> -> vector<16x512xf32>
    %c0_56 = arith.constant 0 : index
    %c0_57 = arith.constant 0 : index
    %333 = vector.load %arg20[%c0_56, %c0_57] : memref<128x512xbf16, #tpu.memory_space<vmem>>, vector<128x512xbf16>
    %cst_58 = arith.constant dense<0.000000e+00> : vector<16x512xf32>
    %334 = tpu.matmul %318, %333, %cst_58 {dimension_numbers = #tpu.dot_dimension_numbers<[1], [0], [0], [1], [0, 0, 1, 1], [], []>} : vector<16x128xbf16>, vector<128x512xbf16>, vector<16x512xf32> -> vector<16x512xf32>
    %335 = arith.addf %332, %334 : vector<16x512xf32>
    %c0_59 = arith.constant 0 : index
    %c0_60 = arith.constant 0 : index
    %336 = vector.load %arg6[%c0_59, %c0_60] : memref<1x512xf32, #tpu.memory_space<vmem>>, vector<1x512xf32>
    %337 = vector.broadcast %336 : vector<1x512xf32> to vector<16x512xf32>
    %338 = arith.addf %335, %337 : vector<16x512xf32>
    %c0_61 = arith.constant 0 : index
    %c0_62 = arith.constant 0 : index
    %339 = vector.load %arg21[%c0_61, %c0_62] : memref<128x512xbf16, #tpu.memory_space<vmem>>, vector<128x512xbf16>
    %cst_63 = arith.constant 0.000000e+00 : f32
    %340 = vector.broadcast %cst_63 : f32 to vector<2x128xf32>
    %341 = vector.extract_strided_slice %338 {offsets = [0, 0], sizes = [2, 512], strides = [1, 1]} : vector<16x512xf32> to vector<2x512xf32>
    %342 = vector.extract_strided_slice %341 {offsets = [0, 0], sizes = [2, 128], strides = [1, 1]} : vector<2x512xf32> to vector<2x128xf32>
    %343 = arith.negf %342 : vector<2x128xf32>
    %344 = math.exp %343 : vector<2x128xf32>
    %cst_64 = arith.constant 1.000000e+00 : f32
    %345 = vector.broadcast %cst_64 : f32 to vector<2x128xf32>
    %346 = arith.addf %345, %344 : vector<2x128xf32>
    %347 = arith.divf %345, %346 : vector<2x128xf32>
    %348 = vector.extract_strided_slice %341 {offsets = [0, 128], sizes = [2, 128], strides = [1, 1]} : vector<2x512xf32> to vector<2x128xf32>
    %349 = arith.negf %348 : vector<2x128xf32>
    %350 = math.exp %349 : vector<2x128xf32>
    %cst_65 = arith.constant 1.000000e+00 : f32
    %351 = vector.broadcast %cst_65 : f32 to vector<2x128xf32>
    %352 = arith.addf %351, %350 : vector<2x128xf32>
    %353 = arith.divf %351, %352 : vector<2x128xf32>
    %354 = vector.extract_strided_slice %341 {offsets = [0, 256], sizes = [2, 128], strides = [1, 1]} : vector<2x512xf32> to vector<2x128xf32>
    %355 = math.tanh %354 : vector<2x128xf32>
    %356 = vector.extract_strided_slice %341 {offsets = [0, 384], sizes = [2, 128], strides = [1, 1]} : vector<2x512xf32> to vector<2x128xf32>
    %357 = arith.negf %356 : vector<2x128xf32>
    %358 = math.exp %357 : vector<2x128xf32>
    %cst_66 = arith.constant 1.000000e+00 : f32
    %359 = vector.broadcast %cst_66 : f32 to vector<2x128xf32>
    %360 = arith.addf %359, %358 : vector<2x128xf32>
    %361 = arith.divf %359, %360 : vector<2x128xf32>
    %362 = arith.mulf %353, %340 : vector<2x128xf32>
    %363 = arith.mulf %347, %355 : vector<2x128xf32>
    %364 = arith.addf %362, %363 : vector<2x128xf32>
    %365 = math.tanh %364 : vector<2x128xf32>
    %366 = arith.mulf %361, %365 : vector<2x128xf32>
    %367 = vector.extract_strided_slice %338 {offsets = [2, 0], sizes = [2, 512], strides = [1, 1]} : vector<16x512xf32> to vector<2x512xf32>
    %368 = arith.truncf %366 : vector<2x128xf32> to vector<2x128xbf16>
    %cst_67 = arith.constant dense<0.000000e+00> : vector<2x512xf32>
    %369 = tpu.matmul %368, %339, %cst_67 {dimension_numbers = #tpu.dot_dimension_numbers<[1], [0], [0], [1], [0, 0, 1, 1], [], []>} : vector<2x128xbf16>, vector<128x512xbf16>, vector<2x512xf32> -> vector<2x512xf32>
    %370 = arith.addf %367, %369 : vector<2x512xf32>
    %371 = vector.extract_strided_slice %370 {offsets = [0, 0], sizes = [2, 128], strides = [1, 1]} : vector<2x512xf32> to vector<2x128xf32>
    %372 = arith.negf %371 : vector<2x128xf32>
    %373 = math.exp %372 : vector<2x128xf32>
    %cst_68 = arith.constant 1.000000e+00 : f32
    %374 = vector.broadcast %cst_68 : f32 to vector<2x128xf32>
    %375 = arith.addf %374, %373 : vector<2x128xf32>
    %376 = arith.divf %374, %375 : vector<2x128xf32>
    %377 = vector.extract_strided_slice %370 {offsets = [0, 128], sizes = [2, 128], strides = [1, 1]} : vector<2x512xf32> to vector<2x128xf32>
    %378 = arith.negf %377 : vector<2x128xf32>
    %379 = math.exp %378 : vector<2x128xf32>
    %cst_69 = arith.constant 1.000000e+00 : f32
    %380 = vector.broadcast %cst_69 : f32 to vector<2x128xf32>
    %381 = arith.addf %380, %379 : vector<2x128xf32>
    %382 = arith.divf %380, %381 : vector<2x128xf32>
    %383 = vector.extract_strided_slice %370 {offsets = [0, 256], sizes = [2, 128], strides = [1, 1]} : vector<2x512xf32> to vector<2x128xf32>
    %384 = math.tanh %383 : vector<2x128xf32>
    %385 = vector.extract_strided_slice %370 {offsets = [0, 384], sizes = [2, 128], strides = [1, 1]} : vector<2x512xf32> to vector<2x128xf32>
    %386 = arith.negf %385 : vector<2x128xf32>
    %387 = math.exp %386 : vector<2x128xf32>
    %cst_70 = arith.constant 1.000000e+00 : f32
    %388 = vector.broadcast %cst_70 : f32 to vector<2x128xf32>
    %389 = arith.addf %388, %387 : vector<2x128xf32>
    %390 = arith.divf %388, %389 : vector<2x128xf32>
    %391 = arith.mulf %382, %364 : vector<2x128xf32>
    %392 = arith.mulf %376, %384 : vector<2x128xf32>
    %393 = arith.addf %391, %392 : vector<2x128xf32>
    %394 = math.tanh %393 : vector<2x128xf32>
    %395 = arith.mulf %390, %394 : vector<2x128xf32>
    %396 = vector.extract_strided_slice %338 {offsets = [4, 0], sizes = [2, 512], strides = [1, 1]} : vector<16x512xf32> to vector<2x512xf32>
    %397 = arith.truncf %395 : vector<2x128xf32> to vector<2x128xbf16>
    %cst_71 = arith.constant dense<0.000000e+00> : vector<2x512xf32>
    %398 = tpu.matmul %397, %339, %cst_71 {dimension_numbers = #tpu.dot_dimension_numbers<[1], [0], [0], [1], [0, 0, 1, 1], [], []>} : vector<2x128xbf16>, vector<128x512xbf16>, vector<2x512xf32> -> vector<2x512xf32>
    %399 = arith.addf %396, %398 : vector<2x512xf32>
    %400 = vector.extract_strided_slice %399 {offsets = [0, 0], sizes = [2, 128], strides = [1, 1]} : vector<2x512xf32> to vector<2x128xf32>
    %401 = arith.negf %400 : vector<2x128xf32>
    %402 = math.exp %401 : vector<2x128xf32>
    %cst_72 = arith.constant 1.000000e+00 : f32
    %403 = vector.broadcast %cst_72 : f32 to vector<2x128xf32>
    %404 = arith.addf %403, %402 : vector<2x128xf32>
    %405 = arith.divf %403, %404 : vector<2x128xf32>
    %406 = vector.extract_strided_slice %399 {offsets = [0, 128], sizes = [2, 128], strides = [1, 1]} : vector<2x512xf32> to vector<2x128xf32>
    %407 = arith.negf %406 : vector<2x128xf32>
    %408 = math.exp %407 : vector<2x128xf32>
    %cst_73 = arith.constant 1.000000e+00 : f32
    %409 = vector.broadcast %cst_73 : f32 to vector<2x128xf32>
    %410 = arith.addf %409, %408 : vector<2x128xf32>
    %411 = arith.divf %409, %410 : vector<2x128xf32>
    %412 = vector.extract_strided_slice %399 {offsets = [0, 256], sizes = [2, 128], strides = [1, 1]} : vector<2x512xf32> to vector<2x128xf32>
    %413 = math.tanh %412 : vector<2x128xf32>
    %414 = vector.extract_strided_slice %399 {offsets = [0, 384], sizes = [2, 128], strides = [1, 1]} : vector<2x512xf32> to vector<2x128xf32>
    %415 = arith.negf %414 : vector<2x128xf32>
    %416 = math.exp %415 : vector<2x128xf32>
    %cst_74 = arith.constant 1.000000e+00 : f32
    %417 = vector.broadcast %cst_74 : f32 to vector<2x128xf32>
    %418 = arith.addf %417, %416 : vector<2x128xf32>
    %419 = arith.divf %417, %418 : vector<2x128xf32>
    %420 = arith.mulf %411, %393 : vector<2x128xf32>
    %421 = arith.mulf %405, %413 : vector<2x128xf32>
    %422 = arith.addf %420, %421 : vector<2x128xf32>
    %423 = math.tanh %422 : vector<2x128xf32>
    %424 = arith.mulf %419, %423 : vector<2x128xf32>
    %425 = vector.extract_strided_slice %338 {offsets = [6, 0], sizes = [2, 512], strides = [1, 1]} : vector<16x512xf32> to vector<2x512xf32>
    %426 = arith.truncf %424 : vector<2x128xf32> to vector<2x128xbf16>
    %cst_75 = arith.constant dense<0.000000e+00> : vector<2x512xf32>
    %427 = tpu.matmul %426, %339, %cst_75 {dimension_numbers = #tpu.dot_dimension_numbers<[1], [0], [0], [1], [0, 0, 1, 1], [], []>} : vector<2x128xbf16>, vector<128x512xbf16>, vector<2x512xf32> -> vector<2x512xf32>
    %428 = arith.addf %425, %427 : vector<2x512xf32>
    %429 = vector.extract_strided_slice %428 {offsets = [0, 0], sizes = [2, 128], strides = [1, 1]} : vector<2x512xf32> to vector<2x128xf32>
    %430 = arith.negf %429 : vector<2x128xf32>
    %431 = math.exp %430 : vector<2x128xf32>
    %cst_76 = arith.constant 1.000000e+00 : f32
    %432 = vector.broadcast %cst_76 : f32 to vector<2x128xf32>
    %433 = arith.addf %432, %431 : vector<2x128xf32>
    %434 = arith.divf %432, %433 : vector<2x128xf32>
    %435 = vector.extract_strided_slice %428 {offsets = [0, 128], sizes = [2, 128], strides = [1, 1]} : vector<2x512xf32> to vector<2x128xf32>
    %436 = arith.negf %435 : vector<2x128xf32>
    %437 = math.exp %436 : vector<2x128xf32>
    %cst_77 = arith.constant 1.000000e+00 : f32
    %438 = vector.broadcast %cst_77 : f32 to vector<2x128xf32>
    %439 = arith.addf %438, %437 : vector<2x128xf32>
    %440 = arith.divf %438, %439 : vector<2x128xf32>
    %441 = vector.extract_strided_slice %428 {offsets = [0, 256], sizes = [2, 128], strides = [1, 1]} : vector<2x512xf32> to vector<2x128xf32>
    %442 = math.tanh %441 : vector<2x128xf32>
    %443 = vector.extract_strided_slice %428 {offsets = [0, 384], sizes = [2, 128], strides = [1, 1]} : vector<2x512xf32> to vector<2x128xf32>
    %444 = arith.negf %443 : vector<2x128xf32>
    %445 = math.exp %444 : vector<2x128xf32>
    %cst_78 = arith.constant 1.000000e+00 : f32
    %446 = vector.broadcast %cst_78 : f32 to vector<2x128xf32>
    %447 = arith.addf %446, %445 : vector<2x128xf32>
    %448 = arith.divf %446, %447 : vector<2x128xf32>
    %449 = arith.mulf %440, %422 : vector<2x128xf32>
    %450 = arith.mulf %434, %442 : vector<2x128xf32>
    %451 = arith.addf %449, %450 : vector<2x128xf32>
    %452 = math.tanh %451 : vector<2x128xf32>
    %453 = arith.mulf %448, %452 : vector<2x128xf32>
    %454 = vector.extract_strided_slice %338 {offsets = [8, 0], sizes = [2, 512], strides = [1, 1]} : vector<16x512xf32> to vector<2x512xf32>
    %455 = arith.truncf %453 : vector<2x128xf32> to vector<2x128xbf16>
    %cst_79 = arith.constant dense<0.000000e+00> : vector<2x512xf32>
    %456 = tpu.matmul %455, %339, %cst_79 {dimension_numbers = #tpu.dot_dimension_numbers<[1], [0], [0], [1], [0, 0, 1, 1], [], []>} : vector<2x128xbf16>, vector<128x512xbf16>, vector<2x512xf32> -> vector<2x512xf32>
    %457 = arith.addf %454, %456 : vector<2x512xf32>
    %458 = vector.extract_strided_slice %457 {offsets = [0, 0], sizes = [2, 128], strides = [1, 1]} : vector<2x512xf32> to vector<2x128xf32>
    %459 = arith.negf %458 : vector<2x128xf32>
    %460 = math.exp %459 : vector<2x128xf32>
    %cst_80 = arith.constant 1.000000e+00 : f32
    %461 = vector.broadcast %cst_80 : f32 to vector<2x128xf32>
    %462 = arith.addf %461, %460 : vector<2x128xf32>
    %463 = arith.divf %461, %462 : vector<2x128xf32>
    %464 = vector.extract_strided_slice %457 {offsets = [0, 128], sizes = [2, 128], strides = [1, 1]} : vector<2x512xf32> to vector<2x128xf32>
    %465 = arith.negf %464 : vector<2x128xf32>
    %466 = math.exp %465 : vector<2x128xf32>
    %cst_81 = arith.constant 1.000000e+00 : f32
    %467 = vector.broadcast %cst_81 : f32 to vector<2x128xf32>
    %468 = arith.addf %467, %466 : vector<2x128xf32>
    %469 = arith.divf %467, %468 : vector<2x128xf32>
    %470 = vector.extract_strided_slice %457 {offsets = [0, 256], sizes = [2, 128], strides = [1, 1]} : vector<2x512xf32> to vector<2x128xf32>
    %471 = math.tanh %470 : vector<2x128xf32>
    %472 = vector.extract_strided_slice %457 {offsets = [0, 384], sizes = [2, 128], strides = [1, 1]} : vector<2x512xf32> to vector<2x128xf32>
    %473 = arith.negf %472 : vector<2x128xf32>
    %474 = math.exp %473 : vector<2x128xf32>
    %cst_82 = arith.constant 1.000000e+00 : f32
    %475 = vector.broadcast %cst_82 : f32 to vector<2x128xf32>
    %476 = arith.addf %475, %474 : vector<2x128xf32>
    %477 = arith.divf %475, %476 : vector<2x128xf32>
    %478 = arith.mulf %469, %451 : vector<2x128xf32>
    %479 = arith.mulf %463, %471 : vector<2x128xf32>
    %480 = arith.addf %478, %479 : vector<2x128xf32>
    %481 = math.tanh %480 : vector<2x128xf32>
    %482 = arith.mulf %477, %481 : vector<2x128xf32>
    %483 = vector.extract_strided_slice %338 {offsets = [10, 0], sizes = [2, 512], strides = [1, 1]} : vector<16x512xf32> to vector<2x512xf32>
    %484 = arith.truncf %482 : vector<2x128xf32> to vector<2x128xbf16>
    %cst_83 = arith.constant dense<0.000000e+00> : vector<2x512xf32>
    %485 = tpu.matmul %484, %339, %cst_83 {dimension_numbers = #tpu.dot_dimension_numbers<[1], [0], [0], [1], [0, 0, 1, 1], [], []>} : vector<2x128xbf16>, vector<128x512xbf16>, vector<2x512xf32> -> vector<2x512xf32>
    %486 = arith.addf %483, %485 : vector<2x512xf32>
    %487 = vector.extract_strided_slice %486 {offsets = [0, 0], sizes = [2, 128], strides = [1, 1]} : vector<2x512xf32> to vector<2x128xf32>
    %488 = arith.negf %487 : vector<2x128xf32>
    %489 = math.exp %488 : vector<2x128xf32>
    %cst_84 = arith.constant 1.000000e+00 : f32
    %490 = vector.broadcast %cst_84 : f32 to vector<2x128xf32>
    %491 = arith.addf %490, %489 : vector<2x128xf32>
    %492 = arith.divf %490, %491 : vector<2x128xf32>
    %493 = vector.extract_strided_slice %486 {offsets = [0, 128], sizes = [2, 128], strides = [1, 1]} : vector<2x512xf32> to vector<2x128xf32>
    %494 = arith.negf %493 : vector<2x128xf32>
    %495 = math.exp %494 : vector<2x128xf32>
    %cst_85 = arith.constant 1.000000e+00 : f32
    %496 = vector.broadcast %cst_85 : f32 to vector<2x128xf32>
    %497 = arith.addf %496, %495 : vector<2x128xf32>
    %498 = arith.divf %496, %497 : vector<2x128xf32>
    %499 = vector.extract_strided_slice %486 {offsets = [0, 256], sizes = [2, 128], strides = [1, 1]} : vector<2x512xf32> to vector<2x128xf32>
    %500 = math.tanh %499 : vector<2x128xf32>
    %501 = vector.extract_strided_slice %486 {offsets = [0, 384], sizes = [2, 128], strides = [1, 1]} : vector<2x512xf32> to vector<2x128xf32>
    %502 = arith.negf %501 : vector<2x128xf32>
    %503 = math.exp %502 : vector<2x128xf32>
    %cst_86 = arith.constant 1.000000e+00 : f32
    %504 = vector.broadcast %cst_86 : f32 to vector<2x128xf32>
    %505 = arith.addf %504, %503 : vector<2x128xf32>
    %506 = arith.divf %504, %505 : vector<2x128xf32>
    %507 = arith.mulf %498, %480 : vector<2x128xf32>
    %508 = arith.mulf %492, %500 : vector<2x128xf32>
    %509 = arith.addf %507, %508 : vector<2x128xf32>
    %510 = math.tanh %509 : vector<2x128xf32>
    %511 = arith.mulf %506, %510 : vector<2x128xf32>
    %512 = vector.extract_strided_slice %338 {offsets = [12, 0], sizes = [2, 512], strides = [1, 1]} : vector<16x512xf32> to vector<2x512xf32>
    %513 = arith.truncf %511 : vector<2x128xf32> to vector<2x128xbf16>
    %cst_87 = arith.constant dense<0.000000e+00> : vector<2x512xf32>
    %514 = tpu.matmul %513, %339, %cst_87 {dimension_numbers = #tpu.dot_dimension_numbers<[1], [0], [0], [1], [0, 0, 1, 1], [], []>} : vector<2x128xbf16>, vector<128x512xbf16>, vector<2x512xf32> -> vector<2x512xf32>
    %515 = arith.addf %512, %514 : vector<2x512xf32>
    %516 = vector.extract_strided_slice %515 {offsets = [0, 0], sizes = [2, 128], strides = [1, 1]} : vector<2x512xf32> to vector<2x128xf32>
    %517 = arith.negf %516 : vector<2x128xf32>
    %518 = math.exp %517 : vector<2x128xf32>
    %cst_88 = arith.constant 1.000000e+00 : f32
    %519 = vector.broadcast %cst_88 : f32 to vector<2x128xf32>
    %520 = arith.addf %519, %518 : vector<2x128xf32>
    %521 = arith.divf %519, %520 : vector<2x128xf32>
    %522 = vector.extract_strided_slice %515 {offsets = [0, 128], sizes = [2, 128], strides = [1, 1]} : vector<2x512xf32> to vector<2x128xf32>
    %523 = arith.negf %522 : vector<2x128xf32>
    %524 = math.exp %523 : vector<2x128xf32>
    %cst_89 = arith.constant 1.000000e+00 : f32
    %525 = vector.broadcast %cst_89 : f32 to vector<2x128xf32>
    %526 = arith.addf %525, %524 : vector<2x128xf32>
    %527 = arith.divf %525, %526 : vector<2x128xf32>
    %528 = vector.extract_strided_slice %515 {offsets = [0, 256], sizes = [2, 128], strides = [1, 1]} : vector<2x512xf32> to vector<2x128xf32>
    %529 = math.tanh %528 : vector<2x128xf32>
    %530 = vector.extract_strided_slice %515 {offsets = [0, 384], sizes = [2, 128], strides = [1, 1]} : vector<2x512xf32> to vector<2x128xf32>
    %531 = arith.negf %530 : vector<2x128xf32>
    %532 = math.exp %531 : vector<2x128xf32>
    %cst_90 = arith.constant 1.000000e+00 : f32
    %533 = vector.broadcast %cst_90 : f32 to vector<2x128xf32>
    %534 = arith.addf %533, %532 : vector<2x128xf32>
    %535 = arith.divf %533, %534 : vector<2x128xf32>
    %536 = arith.mulf %527, %509 : vector<2x128xf32>
    %537 = arith.mulf %521, %529 : vector<2x128xf32>
    %538 = arith.addf %536, %537 : vector<2x128xf32>
    %539 = math.tanh %538 : vector<2x128xf32>
    %540 = arith.mulf %535, %539 : vector<2x128xf32>
    %541 = vector.extract_strided_slice %338 {offsets = [14, 0], sizes = [2, 512], strides = [1, 1]} : vector<16x512xf32> to vector<2x512xf32>
    %542 = arith.truncf %540 : vector<2x128xf32> to vector<2x128xbf16>
    %cst_91 = arith.constant dense<0.000000e+00> : vector<2x512xf32>
    %543 = tpu.matmul %542, %339, %cst_91 {dimension_numbers = #tpu.dot_dimension_numbers<[1], [0], [0], [1], [0, 0, 1, 1], [], []>} : vector<2x128xbf16>, vector<128x512xbf16>, vector<2x512xf32> -> vector<2x512xf32>
    %544 = arith.addf %541, %543 : vector<2x512xf32>
    %545 = vector.extract_strided_slice %544 {offsets = [0, 0], sizes = [2, 128], strides = [1, 1]} : vector<2x512xf32> to vector<2x128xf32>
    %546 = arith.negf %545 : vector<2x128xf32>
    %547 = math.exp %546 : vector<2x128xf32>
    %cst_92 = arith.constant 1.000000e+00 : f32
    %548 = vector.broadcast %cst_92 : f32 to vector<2x128xf32>
    %549 = arith.addf %548, %547 : vector<2x128xf32>
    %550 = arith.divf %548, %549 : vector<2x128xf32>
    %551 = vector.extract_strided_slice %544 {offsets = [0, 128], sizes = [2, 128], strides = [1, 1]} : vector<2x512xf32> to vector<2x128xf32>
    %552 = arith.negf %551 : vector<2x128xf32>
    %553 = math.exp %552 : vector<2x128xf32>
    %cst_93 = arith.constant 1.000000e+00 : f32
    %554 = vector.broadcast %cst_93 : f32 to vector<2x128xf32>
    %555 = arith.addf %554, %553 : vector<2x128xf32>
    %556 = arith.divf %554, %555 : vector<2x128xf32>
    %557 = vector.extract_strided_slice %544 {offsets = [0, 256], sizes = [2, 128], strides = [1, 1]} : vector<2x512xf32> to vector<2x128xf32>
    %558 = math.tanh %557 : vector<2x128xf32>
    %559 = vector.extract_strided_slice %544 {offsets = [0, 384], sizes = [2, 128], strides = [1, 1]} : vector<2x512xf32> to vector<2x128xf32>
    %560 = arith.negf %559 : vector<2x128xf32>
    %561 = math.exp %560 : vector<2x128xf32>
    %cst_94 = arith.constant 1.000000e+00 : f32
    %562 = vector.broadcast %cst_94 : f32 to vector<2x128xf32>
    %563 = arith.addf %562, %561 : vector<2x128xf32>
    %564 = arith.divf %562, %563 : vector<2x128xf32>
    %565 = arith.mulf %556, %538 : vector<2x128xf32>
    %566 = arith.mulf %550, %558 : vector<2x128xf32>
    %567 = arith.addf %565, %566 : vector<2x128xf32>
    %568 = math.tanh %567 : vector<2x128xf32>
    %569 = arith.mulf %564, %568 : vector<2x128xf32>
    %570 = arith.truncf %319 : vector<2x128xf32> to vector<2x128xbf16>
    %c0_95 = arith.constant 0 : index
    %c0_96 = arith.constant 0 : index
    %571 = vector.load %arg22[%c0_95, %c0_96] : memref<128x512xbf16, #tpu.memory_space<vmem>>, vector<128x512xbf16>
    %cst_97 = arith.constant dense<0.000000e+00> : vector<2x512xf32>
    %572 = tpu.matmul %570, %571, %cst_97 {dimension_numbers = #tpu.dot_dimension_numbers<[1], [0], [0], [1], [0, 0, 1, 1], [], []>} : vector<2x128xbf16>, vector<128x512xbf16>, vector<2x512xf32> -> vector<2x512xf32>
    %573 = arith.truncf %320 : vector<2x128xf32> to vector<2x128xbf16>
    %c0_98 = arith.constant 0 : index
    %c0_99 = arith.constant 0 : index
    %574 = vector.load %arg23[%c0_98, %c0_99] : memref<128x512xbf16, #tpu.memory_space<vmem>>, vector<128x512xbf16>
    %cst_100 = arith.constant dense<0.000000e+00> : vector<2x512xf32>
    %575 = tpu.matmul %573, %574, %cst_100 {dimension_numbers = #tpu.dot_dimension_numbers<[1], [0], [0], [1], [0, 0, 1, 1], [], []>} : vector<2x128xbf16>, vector<128x512xbf16>, vector<2x512xf32> -> vector<2x512xf32>
    %576 = arith.addf %572, %575 : vector<2x512xf32>
    %c0_101 = arith.constant 0 : index
    %c0_102 = arith.constant 0 : index
    %577 = vector.load %arg7[%c0_101, %c0_102] : memref<1x512xf32, #tpu.memory_space<vmem>>, vector<1x512xf32>
    %578 = vector.broadcast %577 : vector<1x512xf32> to vector<2x512xf32>
    %579 = arith.addf %576, %578 : vector<2x512xf32>
    %580 = vector.extract_strided_slice %579 {offsets = [0, 0], sizes = [2, 128], strides = [1, 1]} : vector<2x512xf32> to vector<2x128xf32>
    %581 = arith.negf %580 : vector<2x128xf32>
    %582 = math.exp %581 : vector<2x128xf32>
    %cst_103 = arith.constant 1.000000e+00 : f32
    %583 = vector.broadcast %cst_103 : f32 to vector<2x128xf32>
    %584 = arith.addf %583, %582 : vector<2x128xf32>
    %585 = arith.divf %583, %584 : vector<2x128xf32>
    %586 = vector.extract_strided_slice %579 {offsets = [0, 256], sizes = [2, 128], strides = [1, 1]} : vector<2x512xf32> to vector<2x128xf32>
    %587 = math.tanh %586 : vector<2x128xf32>
    %588 = vector.extract_strided_slice %579 {offsets = [0, 384], sizes = [2, 128], strides = [1, 1]} : vector<2x512xf32> to vector<2x128xf32>
    %589 = arith.negf %588 : vector<2x128xf32>
    %590 = math.exp %589 : vector<2x128xf32>
    %cst_104 = arith.constant 1.000000e+00 : f32
    %591 = vector.broadcast %cst_104 : f32 to vector<2x128xf32>
    %592 = arith.addf %591, %590 : vector<2x128xf32>
    %593 = arith.divf %591, %592 : vector<2x128xf32>
    %594 = arith.mulf %585, %587 : vector<2x128xf32>
    %595 = math.tanh %594 : vector<2x128xf32>
    %596 = arith.mulf %593, %595 : vector<2x128xf32>
    %c5_i32_105 = arith.constant 5 : i32
    %597 = tpu.memref_slice %arg26[%c5_i32_105] : memref<7x!tpu.dma_semaphore, #tpu.memory_space<semaphore_mem>> -> memref<1x!tpu.dma_semaphore, #tpu.memory_space<semaphore_mem>>
    %598 = tpu.memref_squeeze %597 : memref<1x!tpu.dma_semaphore, #tpu.memory_space<semaphore_mem>> -> memref<!tpu.dma_semaphore, #tpu.memory_space<semaphore_mem>>
    tpu.wait_dma2 semaphore(%598 : memref<!tpu.dma_semaphore, #tpu.memory_space<semaphore_mem>>) src(%arg16 : memref<128x1024xbf16, #tpu.memory_space<any>>) dst(%arg24 : memref<128x1024xbf16, #tpu.memory_space<vmem>>)
    %c6_i32_106 = arith.constant 6 : i32
    %599 = tpu.memref_slice %arg26[%c6_i32_106] : memref<7x!tpu.dma_semaphore, #tpu.memory_space<semaphore_mem>> -> memref<1x!tpu.dma_semaphore, #tpu.memory_space<semaphore_mem>>
    %600 = tpu.memref_squeeze %599 : memref<1x!tpu.dma_semaphore, #tpu.memory_space<semaphore_mem>> -> memref<!tpu.dma_semaphore, #tpu.memory_space<semaphore_mem>>
    tpu.wait_dma2 semaphore(%600 : memref<!tpu.dma_semaphore, #tpu.memory_space<semaphore_mem>>) src(%arg17 : memref<128x1024xbf16, #tpu.memory_space<any>>) dst(%arg25 : memref<128x1024xbf16, #tpu.memory_space<vmem>>)
    %601 = arith.truncf %569 : vector<2x128xf32> to vector<2x128xbf16>
    %c0_107 = arith.constant 0 : index
    %c0_108 = arith.constant 0 : index
    %602 = vector.load %arg24[%c0_107, %c0_108] : memref<128x1024xbf16, #tpu.memory_space<vmem>>, vector<128x1024xbf16>
    %cst_109 = arith.constant dense<0.000000e+00> : vector<2x1024xf32>
    %603 = tpu.matmul %601, %602, %cst_109 {dimension_numbers = #tpu.dot_dimension_numbers<[1], [0], [0], [1], [0, 0, 1, 1], [], []>} : vector<2x128xbf16>, vector<128x1024xbf16>, vector<2x1024xf32> -> vector<2x1024xf32>
    %604 = arith.truncf %596 : vector<2x128xf32> to vector<2x128xbf16>
    %c0_110 = arith.constant 0 : index
    %c0_111 = arith.constant 0 : index
    %605 = vector.load %arg25[%c0_110, %c0_111] : memref<128x1024xbf16, #tpu.memory_space<vmem>>, vector<128x1024xbf16>
    %cst_112 = arith.constant dense<0.000000e+00> : vector<2x1024xf32>
    %606 = tpu.matmul %604, %605, %cst_112 {dimension_numbers = #tpu.dot_dimension_numbers<[1], [0], [0], [1], [0, 0, 1, 1], [], []>} : vector<2x128xbf16>, vector<128x1024xbf16>, vector<2x1024xf32> -> vector<2x1024xf32>
    %607 = arith.addf %603, %606 : vector<2x1024xf32>
    %c0_113 = arith.constant 0 : index
    %c0_114 = arith.constant 0 : index
    %608 = vector.load %arg8[%c0_113, %c0_114] : memref<1x1024xf32, #tpu.memory_space<vmem>>, vector<1x1024xf32>
    %609 = vector.broadcast %608 : vector<1x1024xf32> to vector<2x1024xf32>
    %610 = arith.addf %607, %609 : vector<2x1024xf32>
    %cst_115 = arith.constant 0.000000e+00 : f32
    %611 = vector.broadcast %cst_115 : f32 to vector<2x1024xf32>
    %612 = arith.maximumf %610, %611 : vector<2x1024xf32>
    %c0_116 = arith.constant 0 : index
    %c0_117 = arith.constant 0 : index
    %613 = vector.load %arg10[%c0_116, %c0_117] : memref<1024x4xf32, #tpu.memory_space<vmem>>, vector<1024x4xf32>
    %cst_118 = arith.constant dense<0.000000e+00> : vector<2x4xf32>
    %614 = tpu.matmul %612, %613, %cst_118 {dimension_numbers = #tpu.dot_dimension_numbers<[1], [0], [0], [1], [0, 0, 1, 1], [], []>} : vector<2x1024xf32>, vector<1024x4xf32>, vector<2x4xf32> -> vector<2x4xf32>
    %c0_119 = arith.constant 0 : index
    %c0_120 = arith.constant 0 : index
    %615 = vector.load %arg9[%c0_119, %c0_120] : memref<1x4xf32, #tpu.memory_space<vmem>>, vector<1x4xf32>
    %616 = vector.broadcast %615 : vector<1x4xf32> to vector<2x4xf32>
    %617 = arith.addf %614, %616 : vector<2x4xf32>
    %c0_121 = arith.constant 0 : index
    %c0_122 = arith.constant 0 : index
    %618 = vector.load %arg18[%c0_121, %c0_122] : memref<2x4xf32, #tpu.memory_space<vmem>>, vector<2x4xf32>
    tpu.vector_store %arg18[%c0_121, %c0_122], %617 {strides = array<i32>} : memref<2x4xf32, #tpu.memory_space<vmem>>, vector<2x4xf32>,
    return
  }
}

</mosaic_0001>

<llo_original>
// kernel: my_lstm_forward.1
$region0: #{my_lstm_forward.1}
  #allocation0 [shape = 'u32[]', space=smem, size = 0x4, offset = 0x4, fixed_abs, tag = 'smem constant byte address 0x4 - core index']
  #allocation1 [shape = 'u32[144,128]{1,0:T(1,128)}', space=vmem, size = 0x12000, scoped, tag = 'internal scratch']
  #allocation2 [shape = 'bf16[128,512]{1,0:T(16,128)(2,1)}', space=vmem, size = 0x20000, scoped, tag = 'scratch operand']
  #allocation3 [shape = 'bf16[128,512]{1,0:T(16,128)(2,1)}', space=vmem, size = 0x20000, scoped, tag = 'scratch operand']
  #allocation4 [shape = 'bf16[128,512]{1,0:T(16,128)(2,1)}', space=vmem, size = 0x20000, scoped, tag = 'scratch operand']
  #allocation5 [shape = 'bf16[128,512]{1,0:T(16,128)(2,1)}', space=vmem, size = 0x20000, scoped, tag = 'scratch operand']
  #allocation6 [shape = 'bf16[128,512]{1,0:T(16,128)(2,1)}', space=vmem, size = 0x20000, scoped, tag = 'scratch operand']
  #allocation7 [shape = 'bf16[128,1024]{1,0:T(16,128)(2,1)}', space=vmem, size = 0x40000, scoped, tag = 'scratch operand']
  #allocation8 [shape = 'bf16[128,1024]{1,0:T(16,128)(2,1)}', space=vmem, size = 0x40000, scoped, tag = 'scratch operand']
  #allocation9 [shape = 's32[7]{0}', space=sflag, size = 0x1c, scoped, tag = 'scratch operand']
  #allocation12 [shape = 's32[]', space=sflag, size = 0x4, offset = 0, fixed_abs, tag = 'sflag constant byte address 0x0 - dummy sync flag']
  #allocation14 [shape = 's32[]', space=sflag, size = 0x4, offset = 0, fixed_abs, tag = 'sflag constant byte address 0x0 - dummy sync flag']
  #allocation16 [shape = 's32[]', space=sflag, size = 0x4, offset = 0, fixed_abs, tag = 'sflag constant byte address 0x0 - dummy sync flag']
  #allocation18 [shape = 's32[]', space=sflag, size = 0x4, offset = 0, fixed_abs, tag = 'sflag constant byte address 0x0 - dummy sync flag']
  #allocation20 [shape = 's32[]', space=sflag, size = 0x4, offset = 0, fixed_abs, tag = 'sflag constant byte address 0x0 - dummy sync flag']
  #allocation22 [shape = 's32[]', space=sflag, size = 0x4, offset = 0, fixed_abs, tag = 'sflag constant byte address 0x0 - dummy sync flag']
  #allocation23 [shape = 's32[]', space=sflag, size = 0x4, offset = 0, fixed_abs, tag = 'sflag constant byte address 0x0 - dummy sync flag']
  %s0 = inlined_call_operand.vmem [shape: f32[16,4], index: 0, kind: input, shape index: {}]
  %s1 = inlined_call_operand.vmem [shape: bf16[4,512], index: 1, kind: input, shape index: {}]
  %s2 = inlined_call_operand.vmem [shape: bf16[4,512], index: 2, kind: input, shape index: {}]
  %s3 = inlined_call_operand.vmem [shape: bf16[256,512], index: 3, kind: input, shape index: {}]
  %s4 = inlined_call_operand.vmem [shape: f32[1,512], index: 4, kind: input, shape index: {}]
  %s5 = inlined_call_operand.vmem [shape: f32[1,512], index: 5, kind: input, shape index: {}]
  %s6 = inlined_call_operand.vmem [shape: f32[1,512], index: 6, kind: input, shape index: {}]
  %s7 = inlined_call_operand.vmem [shape: f32[1,512], index: 7, kind: input, shape index: {}]
  %s8 = inlined_call_operand.vmem [shape: f32[1,1024], index: 8, kind: input, shape index: {}]
  %s9 = inlined_call_operand.vmem [shape: f32[1,4], index: 9, kind: input, shape index: {}]
  %s10 = inlined_call_operand.vmem [shape: f32[1024,4], index: 10, kind: input, shape index: {}]
  %s11 = inlined_call_operand.hbm [shape: bf16[128,512], index: 11, kind: input, shape index: {}]
  %s12 = inlined_call_operand.hbm [shape: bf16[128,512], index: 12, kind: input, shape index: {}]
  %s13 = inlined_call_operand.hbm [shape: bf16[128,512], index: 13, kind: input, shape index: {}]
  %s14 = inlined_call_operand.hbm [shape: bf16[128,512], index: 14, kind: input, shape index: {}]
  %s15 = inlined_call_operand.hbm [shape: bf16[128,512], index: 15, kind: input, shape index: {}]
  %s16 = inlined_call_operand.vmem [shape: bf16[128,1024], index: 16, kind: input, shape index: {}]
  %s17 = inlined_call_operand.hbm [shape: bf16[128,1024], index: 17, kind: input, shape index: {}]
  %s18 = inlined_call_operand.hbm [shape: f32[2,4], index: 18, kind: output, shape index: {}]
  %s19 = sld [smem:[#allocation0]]
  $region91: #{my_lstm_forward.1} parent=0
    _
  %s21 = ssub.s32 1, %s19
  %s22 = scalar_select 0, %s21, %s19
  $region1: #{my_lstm_forward.1} parent=0
    #allocation10 [shape = 'u8[1024]{0}', space=vmem, size = 0x400, scoped, tag = 'output window, operand 0, single buffered']
    #allocation11 [shape = 's32[1]{0}', space=sflag, size = 0x4, scoped, tag = 'scoped memory for my_lstm_forward.1']
    #allocation13 [shape = 'u32[9]{0}', space=smem, size = 0x24, scoped, tag = 'DMA stride descriptor']
    #allocation15 [shape = 'u32[9]{0}', space=smem, size = 0x24, scoped, tag = 'DMA stride descriptor']
    #allocation17 [shape = 'u32[9]{0}', space=smem, size = 0x24, scoped, tag = 'DMA stride descriptor']
    #allocation19 [shape = 'u32[9]{0}', space=smem, size = 0x24, scoped, tag = 'DMA stride descriptor']
    #allocation21 [shape = 'u32[9]{0}', space=smem, size = 0x24, scoped, tag = 'DMA stride descriptor']
    #allocation24 [shape = 'u32[9]{0}', space=smem, size = 0x24, scoped, tag = 'DMA stride descriptor']
    %23 = vsyncpa [#allocation11], 0
    // Predicated region
    $region2: #{my_lstm_forward.1} parent=1 // pred_check
      _
    $region3: #{my_lstm_forward.1} parent=1 // pred_check_branch
      %25 = sbr.rel (0) target = $region5
    $region4: #{my_lstm_forward.1} parent=1 // pred_region
      _
    $region5: #{my_lstm_forward.1} parent=1 // pred_fallthru
      _
    // Predicated region
    $region6: #{my_lstm_forward.1} parent=1 // pred_check
      _
    $region7: #{my_lstm_forward.1} parent=1 // pred_check_branch
      %27 = sbr.rel (0) target = $region9
    $region8: #{my_lstm_forward.1} parent=1 // pred_region
      _
    $region9: #{my_lstm_forward.1} parent=1 // pred_fallthru
      _
    // Predicated region
    $region10: #{my_lstm_forward.1} parent=1 // pred_check
      _
    $region11: #{my_lstm_forward.1} parent=1 // pred_check_branch
      %29 = sbr.rel (0) target = $region13
    $region12: #{my_lstm_forward.1} parent=1 // pred_region
      _
    $region13: #{my_lstm_forward.1} parent=1 // pred_fallthru
      _
    // Predicated region
    $region14: #{my_lstm_forward.1} parent=1 // pred_check
      _
    $region15: #{my_lstm_forward.1} parent=1 // pred_check_branch
      %31 = sbr.rel (0) target = $region17
    $region16: #{my_lstm_forward.1} parent=1 // pred_region
      _
    $region17: #{my_lstm_forward.1} parent=1 // pred_fallthru
      _
    // Predicated region
    $region18: #{my_lstm_forward.1} parent=1 // pred_check
      _
    $region19: #{my_lstm_forward.1} parent=1 // pred_check_branch
      %33 = sbr.rel (0) target = $region21
    $region20: #{my_lstm_forward.1} parent=1 // pred_region
      _
    $region21: #{my_lstm_forward.1} parent=1 // pred_fallthru
      _
    // Predicated region
    $region22: #{my_lstm_forward.1} parent=1 // pred_check
      _
    $region23: #{my_lstm_forward.1} parent=1 // pred_check_branch
      %35 = sbr.rel (0) target = $region25
    $region24: #{my_lstm_forward.1} parent=1 // pred_region
      _
    $region25: #{my_lstm_forward.1} parent=1 // pred_fallthru
      _
    // Predicated region
    $region26: #{my_lstm_forward.1} parent=1 // pred_check
      _
    $region27: #{my_lstm_forward.1} parent=1 // pred_check_branch
      %37 = sbr.rel (0) target = $region29
    $region28: #{my_lstm_forward.1} parent=1 // pred_region
      _
    $region29: #{my_lstm_forward.1} parent=1 // pred_fallthru
      _
    // Predicated region
    $region30: #{my_lstm_forward.1} parent=1 // pred_check
      _
    $region31: #{my_lstm_forward.1} parent=1 // pred_check_branch
      %39 = sbr.rel (0) target = $region33
    $region32: #{my_lstm_forward.1} parent=1 // pred_region
      _
    $region33: #{my_lstm_forward.1} parent=1 // pred_fallthru
      _
    // Predicated region
    $region34: #{my_lstm_forward.1} parent=1 // pred_check
      _
    $region35: #{my_lstm_forward.1} parent=1 // pred_check_branch
      %41 = sbr.rel (0) target = $region37
    $region36: #{my_lstm_forward.1} parent=1 // pred_region
      _
    $region37: #{my_lstm_forward.1} parent=1 // pred_fallthru
      _
    // Predicated region
    $region38: #{my_lstm_forward.1} parent=1 // pred_check
      _
    $region39: #{my_lstm_forward.1} parent=1 // pred_check_branch
      %43 = sbr.rel (0) target = $region41
    $region40: #{my_lstm_forward.1} parent=1 // pred_region
      _
    $region41: #{my_lstm_forward.1} parent=1 // pred_fallthru
      _
    // Predicated region
    $region42: #{my_lstm_forward.1} parent=1 // pred_check
      _
    $region43: #{my_lstm_forward.1} parent=1 // pred_check_branch
      %45 = sbr.rel (0) target = $region45
    $region44: #{my_lstm_forward.1} parent=1 // pred_region
      _
    $region45: #{my_lstm_forward.1} parent=1 // pred_fallthru
      _
    %s48 = sshll.u32 1, 14
    %s49 = sxor.u32 4294967295, %s48
    %s51 = sld [smem:[#allocation0]]
    %s52 = sadd.s32 2, %s51
    %s54 = sshll.u32 7, 26
    %s55 = sxor.u32 4294967295, %s54
    %s56 = sand.u32 0, %s55
    %s57 = sshll.u32 %s52, 26
    %s58 = sor.u32 %s56, %s57
    %s59 = sshll.u32 [#allocation2], 4
    %s60 = int_to_ptr.vmem [resolvable:$true] %s59
    %63 = sst [smem:[#allocation13]] 512
    %s64 = scalar_lea.smem [#allocation13], 1
    %65 = sst [smem:[%s64]] 512
    %s66 = scalar_lea.smem [#allocation13], 2
    %67 = sst [smem:[%s66]] 4
    %s68 = scalar_lea.smem [#allocation13], 3
    %69 = sst [smem:[%s68]] 64
    %s70 = scalar_lea.smem [#allocation13], 4
    %71 = sst [smem:[%s70]] 128
    %s72 = scalar_lea.smem [#allocation13], 5
    %73 = sst [smem:[%s72]] 2
    %s74 = scalar_lea.smem [#allocation13], 6
    %75 = sst [smem:[%s74]] 256
    %s76 = scalar_lea.smem [#allocation13], 7
    %77 = sst [smem:[%s76]] 64
    %s78 = scalar_lea.smem [#allocation13], 8
    %79 = sst [smem:[%s78]] 4
    %81 = dma.general %s11, 4096, %s60, [#allocation9], [#allocation12], [#allocation13], %s58, 0
    %s82 = scalar_lea.sflag [#allocation9], 1
    %s84 = sshll.u32 1, 14
    %s85 = sxor.u32 4294967295, %s84
    %s87 = sadd.s32 2, %s51
    %s89 = sshll.u32 7, 26
    %s90 = sxor.u32 4294967295, %s89
    %s91 = sand.u32 0, %s90
    %s92 = sshll.u32 %s87, 26
    %s93 = sor.u32 %s91, %s92
    %s94 = sshll.u32 [#allocation3], 4
    %s95 = int_to_ptr.vmem [resolvable:$true] %s94
    %98 = sst [smem:[#allocation15]] 512
    %s99 = scalar_lea.smem [#allocation15], 1
    %100 = sst [smem:[%s99]] 512
    %s101 = scalar_lea.smem [#allocation15], 2
    %102 = sst [smem:[%s101]] 4
    %s103 = scalar_lea.smem [#allocation15], 3
    %104 = sst [smem:[%s103]] 64
    %s105 = scalar_lea.smem [#allocation15], 4
    %106 = sst [smem:[%s105]] 128
    %s107 = scalar_lea.smem [#allocation15], 5
    %108 = sst [smem:[%s107]] 2
    %s109 = scalar_lea.smem [#allocation15], 6
    %110 = sst [smem:[%s109]] 256
    %s111 = scalar_lea.smem [#allocation15], 7
    %112 = sst [smem:[%s111]] 64
    %s113 = scalar_lea.smem [#allocation15], 8
    %114 = sst [smem:[%s113]] 4
    %116 = dma.general %s12, 4096, %s95, %s82, [#allocation14], [#allocation15], %s93, 0
    %s117 = scalar_lea.sflag [#allocation9], 2
    %s119 = sshll.u32 1, 14
    %s120 = sxor.u32 4294967295, %s119
    %s122 = sadd.s32 2, %s51
    %s124 = sshll.u32 7, 26
    %s125 = sxor.u32 4294967295, %s124
    %s126 = sand.u32 0, %s125
    %s127 = sshll.u32 %s122, 26
    %s128 = sor.u32 %s126, %s127
    %s129 = sshll.u32 [#allocation4], 4
    %s130 = int_to_ptr.vmem [resolvable:$true] %s129
    %133 = sst [smem:[#allocation17]] 512
    %s134 = scalar_lea.smem [#allocation17], 1
    %135 = sst [smem:[%s134]] 512
    %s136 = scalar_lea.smem [#allocation17], 2
    %137 = sst [smem:[%s136]] 4
    %s138 = scalar_lea.smem [#allocation17], 3
    %139 = sst [smem:[%s138]] 64
    %s140 = scalar_lea.smem [#allocation17], 4
    %141 = sst [smem:[%s140]] 128
    %s142 = scalar_lea.smem [#allocation17], 5
    %143 = sst [smem:[%s142]] 2
    %s144 = scalar_lea.smem [#allocation17], 6
    %145 = sst [smem:[%s144]] 256
    %s146 = scalar_lea.smem [#allocation17], 7
    %147 = sst [smem:[%s146]] 64
    %s148 = scalar_lea.smem [#allocation17], 8
    %149 = sst [smem:[%s148]] 4
    %151 = dma.general %s13, 4096, %s130, %s117, [#allocation16], [#allocation17], %s128, 0
    %s152 = scalar_lea.sflag [#allocation9], 3
    %s154 = sshll.u32 1, 14
    %s155 = sxor.u32 4294967295, %s154
    %s157 = sadd.s32 2, %s51
    %s159 = sshll.u32 7, 26
    %s160 = sxor.u32 4294967295, %s159
    %s161 = sand.u32 0, %s160
    %s162 = sshll.u32 %s157, 26
    %s163 = sor.u32 %s161, %s162
    %s164 = sshll.u32 [#allocation5], 4
    %s165 = int_to_ptr.vmem [resolvable:$true] %s164
    %168 = sst [smem:[#allocation19]] 512
    %s169 = scalar_lea.smem [#allocation19], 1
    %170 = sst [smem:[%s169]] 512
    %s171 = scalar_lea.smem [#allocation19], 2
    %172 = sst [smem:[%s171]] 4
    %s173 = scalar_lea.smem [#allocation19], 3
    %174 = sst [smem:[%s173]] 64
    %s175 = scalar_lea.smem [#allocation19], 4
    %176 = sst [smem:[%s175]] 128
    %s177 = scalar_lea.smem [#allocation19], 5
    %178 = sst [smem:[%s177]] 2
    %s179 = scalar_lea.smem [#allocation19], 6
    %180 = sst [smem:[%s179]] 256
    %s181 = scalar_lea.smem [#allocation19], 7
    %182 = sst [smem:[%s181]] 64
    %s183 = scalar_lea.smem [#allocation19], 8
    %184 = sst [smem:[%s183]] 4
    %186 = dma.general %s14, 4096, %s165, %s152, [#allocation18], [#allocation19], %s163, 0
    %s187 = scalar_lea.sflag [#allocation9], 4
    %s189 = sshll.u32 1, 14
    %s190 = sxor.u32 4294967295, %s189
    %s192 = sadd.s32 2, %s51
    %s194 = sshll.u32 7, 26
    %s195 = sxor.u32 4294967295, %s194
    %s196 = sand.u32 0, %s195
    %s197 = sshll.u32 %s192, 26
    %s198 = sor.u32 %s196, %s197
    %s199 = sshll.u32 [#allocation6], 4
    %s200 = int_to_ptr.vmem [resolvable:$true] %s199
    %203 = sst [smem:[#allocation21]] 512
    %s204 = scalar_lea.smem [#allocation21], 1
    %205 = sst [smem:[%s204]] 512
    %s206 = scalar_lea.smem [#allocation21], 2
    %207 = sst [smem:[%s206]] 4
    %s208 = scalar_lea.smem [#allocation21], 3
    %209 = sst [smem:[%s208]] 64
    %s210 = scalar_lea.smem [#allocation21], 4
    %211 = sst [smem:[%s210]] 128
    %s212 = scalar_lea.smem [#allocation21], 5
    %213 = sst [smem:[%s212]] 2
    %s214 = scalar_lea.smem [#allocation21], 6
    %215 = sst [smem:[%s214]] 256
    %s216 = scalar_lea.smem [#allocation21], 7
    %217 = sst [smem:[%s216]] 64
    %s218 = scalar_lea.smem [#allocation21], 8
    %219 = sst [smem:[%s218]] 4
    %221 = dma.general %s15, 4096, %s200, %s187, [#allocation20], [#allocation21], %s198, 0
    %s222 = scalar_lea.sflag [#allocation9], 5
    %p224 = scmp.lt.u32.totalorder 4, 8
    %p225 = pneg %p224
    // Predicated region
    $region46: #{my_lstm_forward.1} parent=1 // pred_check
      _
    $region47: #{my_lstm_forward.1} parent=1 // pred_check_branch
      %227 = sbr.rel (%p224) target = $region49
    $region48: #{my_lstm_forward.1} parent=1 // pred_region
      %s496 = sand.u32 4, 7
      %p497 = scmp.eq.s32.totalorder %s496, 0
      %p498 = pneg %p497
      // Predicated region
      $region61: #{my_lstm_forward.1} parent=48 // pred_check
        _
      $region62: #{my_lstm_forward.1} parent=48 // pred_check_branch
        %500 = sbr.rel (%p497) target = $region64
      $region63: #{my_lstm_forward.1} parent=48 // pred_region
        %s501 = sand.u32 4, 7
        %s502 = ssub.s32 4, %s501
        %s503 = scalar_lea.vmem %s16, %s502
        %s504 = ssub.s32 4, %s501
        %s505 = scalar_lea.vmem [#allocation7], %s504
        loop: start=0, step=1, limit=1
        $region65: #{my_lstm_forward.1} parent=63 // loop_pre_header
          _
        $region66: #{my_lstm_forward.1} parent=63 // loop_header
          %s507 = sphi 0, %s511
          %p508 = scmp.ge.s32.totalorder %s507, 1
          %s512 = sphi %s16, %s16
          %s513 = sphi [#allocation7], [#allocation7]
        $region67: #{my_lstm_forward.1} parent=63 // loop_header_branch
          %510 = sbr.rel (%p508) target = $region71
        $region68: #{my_lstm_forward.1} parent=63 // loop_body
          _
        $region69: #{my_lstm_forward.1} parent=63 // loop_footer
          %s511 = sadd.s32 1, %s507
        $region70: #{my_lstm_forward.1} parent=63 // loop_footer_branch
          %506 = sbr.rel target = $region66
        $region71: #{my_lstm_forward.1} parent=63 // loop_exit
          _
        %s514 = sshllo.u32 0, %s501
        loop: start=0, step=1, limit=1
        $region72: #{my_lstm_forward.1} parent=63 // loop_pre_header
          _
        $region73: #{my_lstm_forward.1} parent=63 // loop_header
          %s516 = sphi 0, %s520
          %p517 = scmp.ge.s32.totalorder %s516, 1
          %s521 = sphi %s503, %s503
          %s522 = sphi %s505, %s505
        $region74: #{my_lstm_forward.1} parent=63 // loop_header_branch
          %519 = sbr.rel (%p517) target = $region78
        $region75: #{my_lstm_forward.1} parent=63 // loop_body
          %v523 = vld [vmem:[%s521] sm:%s514]
          %524 = vst [vmem:[%s522] sm:%s514] %v523
          %v525 = vld [vmem:[%s521 + $0x20] sm:%s514]
          %526 = vst [vmem:[%s522 + $0x4] sm:%s514] %v525
          %v527 = vld [vmem:[%s521 + $0x4] sm:%s514]
          %528 = vst [vmem:[%s522 + $0x8] sm:%s514] %v527
          %v529 = vld [vmem:[%s521 + $0x24] sm:%s514]
          %530 = vst [vmem:[%s522 + $0xc] sm:%s514] %v529
          %v531 = vld [vmem:[%s521 + $0x8] sm:%s514]
          %532 = vst [vmem:[%s522 + $0x10] sm:%s514] %v531
          %v533 = vld [vmem:[%s521 + $0x28] sm:%s514]
          %534 = vst [vmem:[%s522 + $0x14] sm:%s514] %v533
          %v535 = vld [vmem:[%s521 + $0xc] sm:%s514]
          %536 = vst [vmem:[%s522 + $0x18] sm:%s514] %v535
          %v537 = vld [vmem:[%s521 + $0x2c] sm:%s514]
          %538 = vst [vmem:[%s522 + $0x1c] sm:%s514] %v537
          %v539 = vld [vmem:[%s521 + $0x10] sm:%s514]
          %540 = vst [vmem:[%s522 + $0x20] sm:%s514] %v539
          %v541 = vld [vmem:[%s521 + $0x30] sm:%s514]
          %542 = vst [vmem:[%s522 + $0x24] sm:%s514] %v541
          %v543 = vld [vmem:[%s521 + $0x14] sm:%s514]
          %544 = vst [vmem:[%s522 + $0x28] sm:%s514] %v543
          %v545 = vld [vmem:[%s521 + $0x34] sm:%s514]
          %546 = vst [vmem:[%s522 + $0x2c] sm:%s514] %v545
          %v547 = vld [vmem:[%s521 + $0x18] sm:%s514]
          %548 = vst [vmem:[%s522 + $0x30] sm:%s514] %v547
          %v549 = vld [vmem:[%s521 + $0x38] sm:%s514]
          %550 = vst [vmem:[%s522 + $0x34] sm:%s514] %v549
          %v551 = vld [vmem:[%s521 + $0x1c] sm:%s514]
          %552 = vst [vmem:[%s522 + $0x38] sm:%s514] %v551
          %v553 = vld [vmem:[%s521 + $0x3c] sm:%s514]
          %554 = vst [vmem:[%s522 + $0x3c] sm:%s514] %v553
          %v555 = vld [vmem:[%s521 + $0x40] sm:%s514]
          %556 = vst [vmem:[%s522 + $0x40] sm:%s514] %v555
          %v557 = vld [vmem:[%s521 + $0x60] sm:%s514]
          %558 = vst [vmem:[%s522 + $0x44] sm:%s514] %v557
          %v559 = vld [vmem:[%s521 + $0x44] sm:%s514]
          %560 = vst [vmem:[%s522 + $0x48] sm:%s514] %v559
          %v561 = vld [vmem:[%s521 + $0x64] sm:%s514]
          %562 = vst [vmem:[%s522 + $0x4c] sm:%s514] %v561
          %v563 = vld [vmem:[%s521 + $0x48] sm:%s514]
          %564 = vst [vmem:[%s522 + $0x50] sm:%s514] %v563
          %v565 = vld [vmem:[%s521 + $0x68] sm:%s514]
          %566 = vst [vmem:[%s522 + $0x54] sm:%s514] %v565
          %v567 = vld [vmem:[%s521 + $0x4c] sm:%s514]
          %568 = vst [vmem:[%s522 + $0x58] sm:%s514] %v567
          %v569 = vld [vmem:[%s521 + $0x6c] sm:%s514]
          %570 = vst [vmem:[%s522 + $0x5c] sm:%s514] %v569
          %v571 = vld [vmem:[%s521 + $0x50] sm:%s514]
          %572 = vst [vmem:[%s522 + $0x60] sm:%s514] %v571
          %v573 = vld [vmem:[%s521 + $0x70] sm:%s514]
          %574 = vst [vmem:[%s522 + $0x64] sm:%s514] %v573
          %v575 = vld [vmem:[%s521 + $0x54] sm:%s514]
          %576 = vst [vmem:[%s522 + $0x68] sm:%s514] %v575
          %v577 = vld [vmem:[%s521 + $0x74] sm:%s514]
          %578 = vst [vmem:[%s522 + $0x6c] sm:%s514] %v577
          %v579 = vld [vmem:[%s521 + $0x58] sm:%s514]
          %580 = vst [vmem:[%s522 + $0x70] sm:%s514] %v579
          %v581 = vld [vmem:[%s521 + $0x78] sm:%s514]
          %582 = vst [vmem:[%s522 + $0x74] sm:%s514] %v581
          %v583 = vld [vmem:[%s521 + $0x5c] sm:%s514]
          %584 = vst [vmem:[%s522 + $0x78] sm:%s514] %v583
          %v585 = vld [vmem:[%s521 + $0x7c] sm:%s514]
          %586 = vst [vmem:[%s522 + $0x7c] sm:%s514] %v585
          %v587 = vld [vmem:[%s521 + $0x80] sm:%s514]
          %588 = vst [vmem:[%s522 + $0x80] sm:%s514] %v587
          %v589 = vld [vmem:[%s521 + $0xa0] sm:%s514]
          %590 = vst [vmem:[%s522 + $0x84] sm:%s514] %v589
          %v591 = vld [vmem:[%s521 + $0x84] sm:%s514]
          %592 = vst [vmem:[%s522 + $0x88] sm:%s514] %v591
          %v593 = vld [vmem:[%s521 + $0xa4] sm:%s514]
          %594 = vst [vmem:[%s522 + $0x8c] sm:%s514] %v593
          %v595 = vld [vmem:[%s521 + $0x88] sm:%s514]
          %596 = vst [vmem:[%s522 + $0x90] sm:%s514] %v595
          %v597 = vld [vmem:[%s521 + $0xa8] sm:%s514]
          %598 = vst [vmem:[%s522 + $0x94] sm:%s514] %v597
          %v599 = vld [vmem:[%s521 + $0x8c] sm:%s514]
          %600 = vst [vmem:[%s522 + $0x98] sm:%s514] %v599
          %v601 = vld [vmem:[%s521 + $0xac] sm:%s514]
          %602 = vst [vmem:[%s522 + $0x9c] sm:%s514] %v601
          %v603 = vld [vmem:[%s521 + $0x90] sm:%s514]
          %604 = vst [vmem:[%s522 + $0xa0] sm:%s514] %v603
          %v605 = vld [vmem:[%s521 + $0xb0] sm:%s514]
          %606 = vst [vmem:[%s522 + $0xa4] sm:%s514] %v605
          %v607 = vld [vmem:[%s521 + $0x94] sm:%s514]
          %608 = vst [vmem:[%s522 + $0xa8] sm:%s514] %v607
          %v609 = vld [vmem:[%s521 + $0xb4] sm:%s514]
          %610 = vst [vmem:[%s522 + $0xac] sm:%s514] %v609
          %v611 = vld [vmem:[%s521 + $0x98] sm:%s514]
          %612 = vst [vmem:[%s522 + $0xb0] sm:%s514] %v611
          %v613 = vld [vmem:[%s521 + $0xb8] sm:%s514]
          %614 = vst [vmem:[%s522 + $0xb4] sm:%s514] %v613
          %v615 = vld [vmem:[%s521 + $0x9c] sm:%s514]
          %616 = vst [vmem:[%s522 + $0xb8] sm:%s514] %v615
          %v617 = vld [vmem:[%s521 + $0xbc] sm:%s514]
          %618 = vst [vmem:[%s522 + $0xbc] sm:%s514] %v617
          %v619 = vld [vmem:[%s521 + $0xc0] sm:%s514]
          %620 = vst [vmem:[%s522 + $0xc0] sm:%s514] %v619
          %v621 = vld [vmem:[%s521 + $0xe0] sm:%s514]
          %622 = vst [vmem:[%s522 + $0xc4] sm:%s514] %v621
          %v623 = vld [vmem:[%s521 + $0xc4] sm:%s514]
          %624 = vst [vmem:[%s522 + $0xc8] sm:%s514] %v623
          %v625 = vld [vmem:[%s521 + $0xe4] sm:%s514]
          %626 = vst [vmem:[%s522 + $0xcc] sm:%s514] %v625
          %v627 = vld [vmem:[%s521 + $0xc8] sm:%s514]
          %628 = vst [vmem:[%s522 + $0xd0] sm:%s514] %v627
          %v629 = vld [vmem:[%s521 + $0xe8] sm:%s514]
          %630 = vst [vmem:[%s522 + $0xd4] sm:%s514] %v629
          %v631 = vld [vmem:[%s521 + $0xcc] sm:%s514]
          %632 = vst [vmem:[%s522 + $0xd8] sm:%s514] %v631
          %v633 = vld [vmem:[%s521 + $0xec] sm:%s514]
          %634 = vst [vmem:[%s522 + $0xdc] sm:%s514] %v633
          %v635 = vld [vmem:[%s521 + $0xd0] sm:%s514]
          %636 = vst [vmem:[%s522 + $0xe0] sm:%s514] %v635
          %v637 = vld [vmem:[%s521 + $0xf0] sm:%s514]
          %638 = vst [vmem:[%s522 + $0xe4] sm:%s514] %v637
          %v639 = vld [vmem:[%s521 + $0xd4] sm:%s514]
          %640 = vst [vmem:[%s522 + $0xe8] sm:%s514] %v639
          %v641 = vld [vmem:[%s521 + $0xf4] sm:%s514]
          %642 = vst [vmem:[%s522 + $0xec] sm:%s514] %v641
          %v643 = vld [vmem:[%s521 + $0xd8] sm:%s514]
          %644 = vst [vmem:[%s522 + $0xf0] sm:%s514] %v643
          %v645 = vld [vmem:[%s521 + $0xf8] sm:%s514]
          %646 = vst [vmem:[%s522 + $0xf4] sm:%s514] %v645
          %v647 = vld [vmem:[%s521 + $0xdc] sm:%s514]
          %648 = vst [vmem:[%s522 + $0xf8] sm:%s514] %v647
          %v649 = vld [vmem:[%s521 + $0xfc] sm:%s514]
          %650 = vst [vmem:[%s522 + $0xfc] sm:%s514] %v649
          %v651 = vld [vmem:[%s521 + $0x100] sm:%s514]
          %652 = vst [vmem:[%s522 + $0x100] sm:%s514] %v651
          %v653 = vld [vmem:[%s521 + $0x120] sm:%s514]
          %654 = vst [vmem:[%s522 + $0x104] sm:%s514] %v653
          %v655 = vld [vmem:[%s521 + $0x104] sm:%s514]
          %656 = vst [vmem:[%s522 + $0x108] sm:%s514] %v655
          %v657 = vld [vmem:[%s521 + $0x124] sm:%s514]
          %658 = vst [vmem:[%s522 + $0x10c] sm:%s514] %v657
          %v659 = vld [vmem:[%s521 + $0x108] sm:%s514]
          %660 = vst [vmem:[%s522 + $0x110] sm:%s514] %v659
          %v661 = vld [vmem:[%s521 + $0x128] sm:%s514]
          %662 = vst [vmem:[%s522 + $0x114] sm:%s514] %v661
          %v663 = vld [vmem:[%s521 + $0x10c] sm:%s514]
          %664 = vst [vmem:[%s522 + $0x118] sm:%s514] %v663
          %v665 = vld [vmem:[%s521 + $0x12c] sm:%s514]
          %666 = vst [vmem:[%s522 + $0x11c] sm:%s514] %v665
          %v667 = vld [vmem:[%s521 + $0x110] sm:%s514]
          %668 = vst [vmem:[%s522 + $0x120] sm:%s514] %v667
          %v669 = vld [vmem:[%s521 + $0x130] sm:%s514]
          %670 = vst [vmem:[%s522 + $0x124] sm:%s514] %v669
          %v671 = vld [vmem:[%s521 + $0x114] sm:%s514]
          %672 = vst [vmem:[%s522 + $0x128] sm:%s514] %v671
          %v673 = vld [vmem:[%s521 + $0x134] sm:%s514]
          %674 = vst [vmem:[%s522 + $0x12c] sm:%s514] %v673
          %v675 = vld [vmem:[%s521 + $0x118] sm:%s514]
          %676 = vst [vmem:[%s522 + $0x130] sm:%s514] %v675
          %v677 = vld [vmem:[%s521 + $0x138] sm:%s514]
          %678 = vst [vmem:[%s522 + $0x134] sm:%s514] %v677
          %v679 = vld [vmem:[%s521 + $0x11c] sm:%s514]
          %680 = vst [vmem:[%s522 + $0x138] sm:%s514] %v679
          %v681 = vld [vmem:[%s521 + $0x13c] sm:%s514]
          %682 = vst [vmem:[%s522 + $0x13c] sm:%s514] %v681
          %v683 = vld [vmem:[%s521 + $0x140] sm:%s514]
          %684 = vst [vmem:[%s522 + $0x140] sm:%s514] %v683
          %v685 = vld [vmem:[%s521 + $0x160] sm:%s514]
          %686 = vst [vmem:[%s522 + $0x144] sm:%s514] %v685
          %v687 = vld [vmem:[%s521 + $0x144] sm:%s514]
          %688 = vst [vmem:[%s522 + $0x148] sm:%s514] %v687
          %v689 = vld [vmem:[%s521 + $0x164] sm:%s514]
          %690 = vst [vmem:[%s522 + $0x14c] sm:%s514] %v689
          %v691 = vld [vmem:[%s521 + $0x148] sm:%s514]
          %692 = vst [vmem:[%s522 + $0x150] sm:%s514] %v691
          %v693 = vld [vmem:[%s521 + $0x168] sm:%s514]
          %694 = vst [vmem:[%s522 + $0x154] sm:%s514] %v693
          %v695 = vld [vmem:[%s521 + $0x14c] sm:%s514]
          %696 = vst [vmem:[%s522 + $0x158] sm:%s514] %v695
          %v697 = vld [vmem:[%s521 + $0x16c] sm:%s514]
          %698 = vst [vmem:[%s522 + $0x15c] sm:%s514] %v697
          %v699 = vld [vmem:[%s521 + $0x150] sm:%s514]
          %700 = vst [vmem:[%s522 + $0x160] sm:%s514] %v699
          %v701 = vld [vmem:[%s521 + $0x170] sm:%s514]
          %702 = vst [vmem:[%s522 + $0x164] sm:%s514] %v701
          %v703 = vld [vmem:[%s521 + $0x154] sm:%s514]
          %704 = vst [vmem:[%s522 + $0x168] sm:%s514] %v703
          %v705 = vld [vmem:[%s521 + $0x174] sm:%s514]
          %706 = vst [vmem:[%s522 + $0x16c] sm:%s514] %v705
          %v707 = vld [vmem:[%s521 + $0x158] sm:%s514]
          %708 = vst [vmem:[%s522 + $0x170] sm:%s514] %v707
          %v709 = vld [vmem:[%s521 + $0x178] sm:%s514]
          %710 = vst [vmem:[%s522 + $0x174] sm:%s514] %v709
          %v711 = vld [vmem:[%s521 + $0x15c] sm:%s514]
          %712 = vst [vmem:[%s522 + $0x178] sm:%s514] %v711
          %v713 = vld [vmem:[%s521 + $0x17c] sm:%s514]
          %714 = vst [vmem:[%s522 + $0x17c] sm:%s514] %v713
          %v715 = vld [vmem:[%s521 + $0x180] sm:%s514]
          %716 = vst [vmem:[%s522 + $0x180] sm:%s514] %v715
          %v717 = vld [vmem:[%s521 + $0x1a0] sm:%s514]
          %718 = vst [vmem:[%s522 + $0x184] sm:%s514] %v717
          %v719 = vld [vmem:[%s521 + $0x184] sm:%s514]
          %720 = vst [vmem:[%s522 + $0x188] sm:%s514] %v719
          %v721 = vld [vmem:[%s521 + $0x1a4] sm:%s514]
          %722 = vst [vmem:[%s522 + $0x18c] sm:%s514] %v721
          %v723 = vld [vmem:[%s521 + $0x188] sm:%s514]
          %724 = vst [vmem:[%s522 + $0x190] sm:%s514] %v723
          %v725 = vld [vmem:[%s521 + $0x1a8] sm:%s514]
          %726 = vst [vmem:[%s522 + $0x194] sm:%s514] %v725
          %v727 = vld [vmem:[%s521 + $0x18c] sm:%s514]
          %728 = vst [vmem:[%s522 + $0x198] sm:%s514] %v727
          %v729 = vld [vmem:[%s521 + $0x1ac] sm:%s514]
          %730 = vst [vmem:[%s522 + $0x19c] sm:%s514] %v729
          %v731 = vld [vmem:[%s521 + $0x190] sm:%s514]
          %732 = vst [vmem:[%s522 + $0x1a0] sm:%s514] %v731
          %v733 = vld [vmem:[%s521 + $0x1b0] sm:%s514]
          %734 = vst [vmem:[%s522 + $0x1a4] sm:%s514] %v733
          %v735 = vld [vmem:[%s521 + $0x194] sm:%s514]
          %736 = vst [vmem:[%s522 + $0x1a8] sm:%s514] %v735
          %v737 = vld [vmem:[%s521 + $0x1b4] sm:%s514]
          %738 = vst [vmem:[%s522 + $0x1ac] sm:%s514] %v737
          %v739 = vld [vmem:[%s521 + $0x198] sm:%s514]
          %740 = vst [vmem:[%s522 + $0x1b0] sm:%s514] %v739
          %v741 = vld [vmem:[%s521 + $0x1b8] sm:%s514]
          %742 = vst [vmem:[%s522 + $0x1b4] sm:%s514] %v741
          %v743 = vld [vmem:[%s521 + $0x19c] sm:%s514]
          %744 = vst [vmem:[%s522 + $0x1b8] sm:%s514] %v743
          %v745 = vld [vmem:[%s521 + $0x1bc] sm:%s514]
          %746 = vst [vmem:[%s522 + $0x1bc] sm:%s514] %v745
          %v747 = vld [vmem:[%s521 + $0x1c0] sm:%s514]
          %748 = vst [vmem:[%s522 + $0x1c0] sm:%s514] %v747
          %v749 = vld [vmem:[%s521 + $0x1e0] sm:%s514]
          %750 = vst [vmem:[%s522 + $0x1c4] sm:%s514] %v749
          %v751 = vld [vmem:[%s521 + $0x1c4] sm:%s514]
          %752 = vst [vmem:[%s522 + $0x1c8] sm:%s514] %v751
          %v753 = vld [vmem:[%s521 + $0x1e4] sm:%s514]
          %754 = vst [vmem:[%s522 + $0x1cc] sm:%s514] %v753
          %v755 = vld [vmem:[%s521 + $0x1c8] sm:%s514]
          %756 = vst [vmem:[%s522 + $0x1d0] sm:%s514] %v755
          %v757 = vld [vmem:[%s521 + $0x1e8] sm:%s514]
          %758 = vst [vmem:[%s522 + $0x1d4] sm:%s514] %v757
          %v759 = vld [vmem:[%s521 + $0x1cc] sm:%s514]
          %760 = vst [vmem:[%s522 + $0x1d8] sm:%s514] %v759
          %v761 = vld [vmem:[%s521 + $0x1ec] sm:%s514]
          %762 = vst [vmem:[%s522 + $0x1dc] sm:%s514] %v761
          %v763 = vld [vmem:[%s521 + $0x1d0] sm:%s514]
          %764 = vst [vmem:[%s522 + $0x1e0] sm:%s514] %v763
          %v765 = vld [vmem:[%s521 + $0x1f0] sm:%s514]
          %766 = vst [vmem:[%s522 + $0x1e4] sm:%s514] %v765
          %v767 = vld [vmem:[%s521 + $0x1d4] sm:%s514]
          %768 = vst [vmem:[%s522 + $0x1e8] sm:%s514] %v767
          %v769 = vld [vmem:[%s521 + $0x1f4] sm:%s514]
          %770 = vst [vmem:[%s522 + $0x1ec] sm:%s514] %v769
          %v771 = vld [vmem:[%s521 + $0x1d8] sm:%s514]
          %772 = vst [vmem:[%s522 + $0x1f0] sm:%s514] %v771
          %v773 = vld [vmem:[%s521 + $0x1f8] sm:%s514]
          %774 = vst [vmem:[%s522 + $0x1f4] sm:%s514] %v773
          %v775 = vld [vmem:[%s521 + $0x1dc] sm:%s514]
          %776 = vst [vmem:[%s522 + $0x1f8] sm:%s514] %v775
          %v777 = vld [vmem:[%s521 + $0x1fc] sm:%s514]
          %778 = vst [vmem:[%s522 + $0x1fc] sm:%s514] %v777
        $region76: #{my_lstm_forward.1} parent=63 // loop_footer
          %s520 = sadd.s32 1, %s516
        $region77: #{my_lstm_forward.1} parent=63 // loop_footer_branch
          %515 = sbr.rel target = $region73
        $region78: #{my_lstm_forward.1} parent=63 // loop_exit
          _
      $region64: #{my_lstm_forward.1} parent=48 // pred_fallthru
        _
    $region49: #{my_lstm_forward.1} parent=1 // pred_fallthru
      _
    // Predicated region
    $region50: #{my_lstm_forward.1} parent=1 // pred_check
      %p228 = pneg %p224
    $region51: #{my_lstm_forward.1} parent=1 // pred_check_branch
      %230 = sbr.rel (%p228) target = $region53
    $region52: #{my_lstm_forward.1} parent=1 // pred_region
      %s231 = sshllo.u32 0, 4
      loop: start=0, step=1, limit=1
      $region54: #{my_lstm_forward.1} parent=52 // loop_pre_header
        _
      $region55: #{my_lstm_forward.1} parent=52 // loop_header
        %s233 = sphi 0, %s237
        %p234 = scmp.ge.s32.totalorder %s233, 1
        %s238 = sphi %s16, %s16
        %s239 = sphi [#allocation7], [#allocation7]
      $region56: #{my_lstm_forward.1} parent=52 // loop_header_branch
        %236 = sbr.rel (%p234) target = $region60
      $region57: #{my_lstm_forward.1} parent=52 // loop_body
        %v240 = vld [vmem:[%s238] sm:%s231]
        %241 = vst [vmem:[%s239] sm:%s231] %v240
        %v242 = vld [vmem:[%s238 + $0x20] sm:%s231]
        %243 = vst [vmem:[%s239 + $0x4] sm:%s231] %v242
        %v244 = vld [vmem:[%s238 + $0x4] sm:%s231]
        %245 = vst [vmem:[%s239 + $0x8] sm:%s231] %v244
        %v246 = vld [vmem:[%s238 + $0x24] sm:%s231]
        %247 = vst [vmem:[%s239 + $0xc] sm:%s231] %v246
        %v248 = vld [vmem:[%s238 + $0x8] sm:%s231]
        %249 = vst [vmem:[%s239 + $0x10] sm:%s231] %v248
        %v250 = vld [vmem:[%s238 + $0x28] sm:%s231]
        %251 = vst [vmem:[%s239 + $0x14] sm:%s231] %v250
        %v252 = vld [vmem:[%s238 + $0xc] sm:%s231]
        %253 = vst [vmem:[%s239 + $0x18] sm:%s231] %v252
        %v254 = vld [vmem:[%s238 + $0x2c] sm:%s231]
        %255 = vst [vmem:[%s239 + $0x1c] sm:%s231] %v254
        %v256 = vld [vmem:[%s238 + $0x10] sm:%s231]
        %257 = vst [vmem:[%s239 + $0x20] sm:%s231] %v256
        %v258 = vld [vmem:[%s238 + $0x30] sm:%s231]
        %259 = vst [vmem:[%s239 + $0x24] sm:%s231] %v258
        %v260 = vld [vmem:[%s238 + $0x14] sm:%s231]
        %261 = vst [vmem:[%s239 + $0x28] sm:%s231] %v260
        %v262 = vld [vmem:[%s238 + $0x34] sm:%s231]
        %263 = vst [vmem:[%s239 + $0x2c] sm:%s231] %v262
        %v264 = vld [vmem:[%s238 + $0x18] sm:%s231]
        %265 = vst [vmem:[%s239 + $0x30] sm:%s231] %v264
        %v266 = vld [vmem:[%s238 + $0x38] sm:%s231]
        %267 = vst [vmem:[%s239 + $0x34] sm:%s231] %v266
        %v268 = vld [vmem:[%s238 + $0x1c] sm:%s231]
        %269 = vst [vmem:[%s239 + $0x38] sm:%s231] %v268
        %v270 = vld [vmem:[%s238 + $0x3c] sm:%s231]
        %271 = vst [vmem:[%s239 + $0x3c] sm:%s231] %v270
        %v272 = vld [vmem:[%s238 + $0x40] sm:%s231]
        %273 = vst [vmem:[%s239 + $0x40] sm:%s231] %v272
        %v274 = vld [vmem:[%s238 + $0x60] sm:%s231]
        %275 = vst [vmem:[%s239 + $0x44] sm:%s231] %v274
        %v276 = vld [vmem:[%s238 + $0x44] sm:%s231]
        %277 = vst [vmem:[%s239 + $0x48] sm:%s231] %v276
        %v278 = vld [vmem:[%s238 + $0x64] sm:%s231]
        %279 = vst [vmem:[%s239 + $0x4c] sm:%s231] %v278
        %v280 = vld [vmem:[%s238 + $0x48] sm:%s231]
        %281 = vst [vmem:[%s239 + $0x50] sm:%s231] %v280
        %v282 = vld [vmem:[%s238 + $0x68] sm:%s231]
        %283 = vst [vmem:[%s239 + $0x54] sm:%s231] %v282
        %v284 = vld [vmem:[%s238 + $0x4c] sm:%s231]
        %285 = vst [vmem:[%s239 + $0x58] sm:%s231] %v284
        %v286 = vld [vmem:[%s238 + $0x6c] sm:%s231]
        %287 = vst [vmem:[%s239 + $0x5c] sm:%s231] %v286
        %v288 = vld [vmem:[%s238 + $0x50] sm:%s231]
        %289 = vst [vmem:[%s239 + $0x60] sm:%s231] %v288
        %v290 = vld [vmem:[%s238 + $0x70] sm:%s231]
        %291 = vst [vmem:[%s239 + $0x64] sm:%s231] %v290
        %v292 = vld [vmem:[%s238 + $0x54] sm:%s231]
        %293 = vst [vmem:[%s239 + $0x68] sm:%s231] %v292
        %v294 = vld [vmem:[%s238 + $0x74] sm:%s231]
        %295 = vst [vmem:[%s239 + $0x6c] sm:%s231] %v294
        %v296 = vld [vmem:[%s238 + $0x58] sm:%s231]
        %297 = vst [vmem:[%s239 + $0x70] sm:%s231] %v296
        %v298 = vld [vmem:[%s238 + $0x78] sm:%s231]
        %299 = vst [vmem:[%s239 + $0x74] sm:%s231] %v298
        %v300 = vld [vmem:[%s238 + $0x5c] sm:%s231]
        %301 = vst [vmem:[%s239 + $0x78] sm:%s231] %v300
        %v302 = vld [vmem:[%s238 + $0x7c] sm:%s231]
        %303 = vst [vmem:[%s239 + $0x7c] sm:%s231] %v302
        %v304 = vld [vmem:[%s238 + $0x80] sm:%s231]
        %305 = vst [vmem:[%s239 + $0x80] sm:%s231] %v304
        %v306 = vld [vmem:[%s238 + $0xa0] sm:%s231]
        %307 = vst [vmem:[%s239 + $0x84] sm:%s231] %v306
        %v308 = vld [vmem:[%s238 + $0x84] sm:%s231]
        %309 = vst [vmem:[%s239 + $0x88] sm:%s231] %v308
        %v310 = vld [vmem:[%s238 + $0xa4] sm:%s231]
        %311 = vst [vmem:[%s239 + $0x8c] sm:%s231] %v310
        %v312 = vld [vmem:[%s238 + $0x88] sm:%s231]
        %313 = vst [vmem:[%s239 + $0x90] sm:%s231] %v312
        %v314 = vld [vmem:[%s238 + $0xa8] sm:%s231]
        %315 = vst [vmem:[%s239 + $0x94] sm:%s231] %v314
        %v316 = vld [vmem:[%s238 + $0x8c] sm:%s231]
        %317 = vst [vmem:[%s239 + $0x98] sm:%s231] %v316
        %v318 = vld [vmem:[%s238 + $0xac] sm:%s231]
        %319 = vst [vmem:[%s239 + $0x9c] sm:%s231] %v318
        %v320 = vld [vmem:[%s238 + $0x90] sm:%s231]
        %321 = vst [vmem:[%s239 + $0xa0] sm:%s231] %v320
        %v322 = vld [vmem:[%s238 + $0xb0] sm:%s231]
        %323 = vst [vmem:[%s239 + $0xa4] sm:%s231] %v322
        %v324 = vld [vmem:[%s238 + $0x94] sm:%s231]
        %325 = vst [vmem:[%s239 + $0xa8] sm:%s231] %v324
        %v326 = vld [vmem:[%s238 + $0xb4] sm:%s231]
        %327 = vst [vmem:[%s239 + $0xac] sm:%s231] %v326
        %v328 = vld [vmem:[%s238 + $0x98] sm:%s231]
        %329 = vst [vmem:[%s239 + $0xb0] sm:%s231] %v328
        %v330 = vld [vmem:[%s238 + $0xb8] sm:%s231]
        %331 = vst [vmem:[%s239 + $0xb4] sm:%s231] %v330
        %v332 = vld [vmem:[%s238 + $0x9c] sm:%s231]
        %333 = vst [vmem:[%s239 + $0xb8] sm:%s231] %v332
        %v334 = vld [vmem:[%s238 + $0xbc] sm:%s231]
        %335 = vst [vmem:[%s239 + $0xbc] sm:%s231] %v334
        %v336 = vld [vmem:[%s238 + $0xc0] sm:%s231]
        %337 = vst [vmem:[%s239 + $0xc0] sm:%s231] %v336
        %v338 = vld [vmem:[%s238 + $0xe0] sm:%s231]
        %339 = vst [vmem:[%s239 + $0xc4] sm:%s231] %v338
        %v340 = vld [vmem:[%s238 + $0xc4] sm:%s231]
        %341 = vst [vmem:[%s239 + $0xc8] sm:%s231] %v340
        %v342 = vld [vmem:[%s238 + $0xe4] sm:%s231]
        %343 = vst [vmem:[%s239 + $0xcc] sm:%s231] %v342
        %v344 = vld [vmem:[%s238 + $0xc8] sm:%s231]
        %345 = vst [vmem:[%s239 + $0xd0] sm:%s231] %v344
        %v346 = vld [vmem:[%s238 + $0xe8] sm:%s231]
        %347 = vst [vmem:[%s239 + $0xd4] sm:%s231] %v346
        %v348 = vld [vmem:[%s238 + $0xcc] sm:%s231]
        %349 = vst [vmem:[%s239 + $0xd8] sm:%s231] %v348
        %v350 = vld [vmem:[%s238 + $0xec] sm:%s231]
        %351 = vst [vmem:[%s239 + $0xdc] sm:%s231] %v350
        %v352 = vld [vmem:[%s238 + $0xd0] sm:%s231]
        %353 = vst [vmem:[%s239 + $0xe0] sm:%s231] %v352
        %v354 = vld [vmem:[%s238 + $0xf0] sm:%s231]
        %355 = vst [vmem:[%s239 + $0xe4] sm:%s231] %v354
        %v356 = vld [vmem:[%s238 + $0xd4] sm:%s231]
        %357 = vst [vmem:[%s239 + $0xe8] sm:%s231] %v356
        %v358 = vld [vmem:[%s238 + $0xf4] sm:%s231]
        %359 = vst [vmem:[%s239 + $0xec] sm:%s231] %v358
        %v360 = vld [vmem:[%s238 + $0xd8] sm:%s231]
        %361 = vst [vmem:[%s239 + $0xf0] sm:%s231] %v360
        %v362 = vld [vmem:[%s238 + $0xf8] sm:%s231]
        %363 = vst [vmem:[%s239 + $0xf4] sm:%s231] %v362
        %v364 = vld [vmem:[%s238 + $0xdc] sm:%s231]
        %365 = vst [vmem:[%s239 + $0xf8] sm:%s231] %v364
        %v366 = vld [vmem:[%s238 + $0xfc] sm:%s231]
        %367 = vst [vmem:[%s239 + $0xfc] sm:%s231] %v366
        %v368 = vld [vmem:[%s238 + $0x100] sm:%s231]
        %369 = vst [vmem:[%s239 + $0x100] sm:%s231] %v368
        %v370 = vld [vmem:[%s238 + $0x120] sm:%s231]
        %371 = vst [vmem:[%s239 + $0x104] sm:%s231] %v370
        %v372 = vld [vmem:[%s238 + $0x104] sm:%s231]
        %373 = vst [vmem:[%s239 + $0x108] sm:%s231] %v372
        %v374 = vld [vmem:[%s238 + $0x124] sm:%s231]
        %375 = vst [vmem:[%s239 + $0x10c] sm:%s231] %v374
        %v376 = vld [vmem:[%s238 + $0x108] sm:%s231]
        %377 = vst [vmem:[%s239 + $0x110] sm:%s231] %v376
        %v378 = vld [vmem:[%s238 + $0x128] sm:%s231]
        %379 = vst [vmem:[%s239 + $0x114] sm:%s231] %v378
        %v380 = vld [vmem:[%s238 + $0x10c] sm:%s231]
        %381 = vst [vmem:[%s239 + $0x118] sm:%s231] %v380
        %v382 = vld [vmem:[%s238 + $0x12c] sm:%s231]
        %383 = vst [vmem:[%s239 + $0x11c] sm:%s231] %v382
        %v384 = vld [vmem:[%s238 + $0x110] sm:%s231]
        %385 = vst [vmem:[%s239 + $0x120] sm:%s231] %v384
        %v386 = vld [vmem:[%s238 + $0x130] sm:%s231]
        %387 = vst [vmem:[%s239 + $0x124] sm:%s231] %v386
        %v388 = vld [vmem:[%s238 + $0x114] sm:%s231]
        %389 = vst [vmem:[%s239 + $0x128] sm:%s231] %v388
        %v390 = vld [vmem:[%s238 + $0x134] sm:%s231]
        %391 = vst [vmem:[%s239 + $0x12c] sm:%s231] %v390
        %v392 = vld [vmem:[%s238 + $0x118] sm:%s231]
        %393 = vst [vmem:[%s239 + $0x130] sm:%s231] %v392
        %v394 = vld [vmem:[%s238 + $0x138] sm:%s231]
        %395 = vst [vmem:[%s239 + $0x134] sm:%s231] %v394
        %v396 = vld [vmem:[%s238 + $0x11c] sm:%s231]
        %397 = vst [vmem:[%s239 + $0x138] sm:%s231] %v396
        %v398 = vld [vmem:[%s238 + $0x13c] sm:%s231]
        %399 = vst [vmem:[%s239 + $0x13c] sm:%s231] %v398
        %v400 = vld [vmem:[%s238 + $0x140] sm:%s231]
        %401 = vst [vmem:[%s239 + $0x140] sm:%s231] %v400
        %v402 = vld [vmem:[%s238 + $0x160] sm:%s231]
        %403 = vst [vmem:[%s239 + $0x144] sm:%s231] %v402
        %v404 = vld [vmem:[%s238 + $0x144] sm:%s231]
        %405 = vst [vmem:[%s239 + $0x148] sm:%s231] %v404
        %v406 = vld [vmem:[%s238 + $0x164] sm:%s231]
        %407 = vst [vmem:[%s239 + $0x14c] sm:%s231] %v406
        %v408 = vld [vmem:[%s238 + $0x148] sm:%s231]
        %409 = vst [vmem:[%s239 + $0x150] sm:%s231] %v408
        %v410 = vld [vmem:[%s238 + $0x168] sm:%s231]
        %411 = vst [vmem:[%s239 + $0x154] sm:%s231] %v410
        %v412 = vld [vmem:[%s238 + $0x14c] sm:%s231]
        %413 = vst [vmem:[%s239 + $0x158] sm:%s231] %v412
        %v414 = vld [vmem:[%s238 + $0x16c] sm:%s231]
        %415 = vst [vmem:[%s239 + $0x15c] sm:%s231] %v414
        %v416 = vld [vmem:[%s238 + $0x150] sm:%s231]
        %417 = vst [vmem:[%s239 + $0x160] sm:%s231] %v416
        %v418 = vld [vmem:[%s238 + $0x170] sm:%s231]
        %419 = vst [vmem:[%s239 + $0x164] sm:%s231] %v418
        %v420 = vld [vmem:[%s238 + $0x154] sm:%s231]
        %421 = vst [vmem:[%s239 + $0x168] sm:%s231] %v420
        %v422 = vld [vmem:[%s238 + $0x174] sm:%s231]
        %423 = vst [vmem:[%s239 + $0x16c] sm:%s231] %v422
        %v424 = vld [vmem:[%s238 + $0x158] sm:%s231]
        %425 = vst [vmem:[%s239 + $0x170] sm:%s231] %v424
        %v426 = vld [vmem:[%s238 + $0x178] sm:%s231]
        %427 = vst [vmem:[%s239 + $0x174] sm:%s231] %v426
        %v428 = vld [vmem:[%s238 + $0x15c] sm:%s231]
        %429 = vst [vmem:[%s239 + $0x178] sm:%s231] %v428
        %v430 = vld [vmem:[%s238 + $0x17c] sm:%s231]
        %431 = vst [vmem:[%s239 + $0x17c] sm:%s231] %v430
        %v432 = vld [vmem:[%s238 + $0x180] sm:%s231]
        %433 = vst [vmem:[%s239 + $0x180] sm:%s231] %v432
        %v434 = vld [vmem:[%s238 + $0x1a0] sm:%s231]
        %435 = vst [vmem:[%s239 + $0x184] sm:%s231] %v434
        %v436 = vld [vmem:[%s238 + $0x184] sm:%s231]
        %437 = vst [vmem:[%s239 + $0x188] sm:%s231] %v436
        %v438 = vld [vmem:[%s238 + $0x1a4] sm:%s231]
        %439 = vst [vmem:[%s239 + $0x18c] sm:%s231] %v438
        %v440 = vld [vmem:[%s238 + $0x188] sm:%s231]
        %441 = vst [vmem:[%s239 + $0x190] sm:%s231] %v440
        %v442 = vld [vmem:[%s238 + $0x1a8] sm:%s231]
        %443 = vst [vmem:[%s239 + $0x194] sm:%s231] %v442
        %v444 = vld [vmem:[%s238 + $0x18c] sm:%s231]
        %445 = vst [vmem:[%s239 + $0x198] sm:%s231] %v444
        %v446 = vld [vmem:[%s238 + $0x1ac] sm:%s231]
        %447 = vst [vmem:[%s239 + $0x19c] sm:%s231] %v446
        %v448 = vld [vmem:[%s238 + $0x190] sm:%s231]
        %449 = vst [vmem:[%s239 + $0x1a0] sm:%s231] %v448
        %v450 = vld [vmem:[%s238 + $0x1b0] sm:%s231]
        %451 = vst [vmem:[%s239 + $0x1a4] sm:%s231] %v450
        %v452 = vld [vmem:[%s238 + $0x194] sm:%s231]
        %453 = vst [vmem:[%s239 + $0x1a8] sm:%s231] %v452
        %v454 = vld [vmem:[%s238 + $0x1b4] sm:%s231]
        %455 = vst [vmem:[%s239 + $0x1ac] sm:%s231] %v454
        %v456 = vld [vmem:[%s238 + $0x198] sm:%s231]
        %457 = vst [vmem:[%s239 + $0x1b0] sm:%s231] %v456
        %v458 = vld [vmem:[%s238 + $0x1b8] sm:%s231]
        %459 = vst [vmem:[%s239 + $0x1b4] sm:%s231] %v458
        %v460 = vld [vmem:[%s238 + $0x19c] sm:%s231]
        %461 = vst [vmem:[%s239 + $0x1b8] sm:%s231] %v460
        %v462 = vld [vmem:[%s238 + $0x1bc] sm:%s231]
        %463 = vst [vmem:[%s239 + $0x1bc] sm:%s231] %v462
        %v464 = vld [vmem:[%s238 + $0x1c0] sm:%s231]
        %465 = vst [vmem:[%s239 + $0x1c0] sm:%s231] %v464
        %v466 = vld [vmem:[%s238 + $0x1e0] sm:%s231]
        %467 = vst [vmem:[%s239 + $0x1c4] sm:%s231] %v466
        %v468 = vld [vmem:[%s238 + $0x1c4] sm:%s231]
        %469 = vst [vmem:[%s239 + $0x1c8] sm:%s231] %v468
        %v470 = vld [vmem:[%s238 + $0x1e4] sm:%s231]
        %471 = vst [vmem:[%s239 + $0x1cc] sm:%s231] %v470
        %v472 = vld [vmem:[%s238 + $0x1c8] sm:%s231]
        %473 = vst [vmem:[%s239 + $0x1d0] sm:%s231] %v472
        %v474 = vld [vmem:[%s238 + $0x1e8] sm:%s231]
        %475 = vst [vmem:[%s239 + $0x1d4] sm:%s231] %v474
        %v476 = vld [vmem:[%s238 + $0x1cc] sm:%s231]
        %477 = vst [vmem:[%s239 + $0x1d8] sm:%s231] %v476
        %v478 = vld [vmem:[%s238 + $0x1ec] sm:%s231]
        %479 = vst [vmem:[%s239 + $0x1dc] sm:%s231] %v478
        %v480 = vld [vmem:[%s238 + $0x1d0] sm:%s231]
        %481 = vst [vmem:[%s239 + $0x1e0] sm:%s231] %v480
        %v482 = vld [vmem:[%s238 + $0x1f0] sm:%s231]
        %483 = vst [vmem:[%s239 + $0x1e4] sm:%s231] %v482
        %v484 = vld [vmem:[%s238 + $0x1d4] sm:%s231]
        %485 = vst [vmem:[%s239 + $0x1e8] sm:%s231] %v484
        %v486 = vld [vmem:[%s238 + $0x1f4] sm:%s231]
        %487 = vst [vmem:[%s239 + $0x1ec] sm:%s231] %v486
        %v488 = vld [vmem:[%s238 + $0x1d8] sm:%s231]
        %489 = vst [vmem:[%s239 + $0x1f0] sm:%s231] %v488
        %v490 = vld [vmem:[%s238 + $0x1f8] sm:%s231]
        %491 = vst [vmem:[%s239 + $0x1f4] sm:%s231] %v490
        %v492 = vld [vmem:[%s238 + $0x1dc] sm:%s231]
        %493 = vst [vmem:[%s239 + $0x1f8] sm:%s231] %v492
        %v494 = vld [vmem:[%s238 + $0x1fc] sm:%s231]
        %495 = vst [vmem:[%s239 + $0x1fc] sm:%s231] %v494
      $region58: #{my_lstm_forward.1} parent=52 // loop_footer
        %s237 = sadd.s32 1, %s233
      $region59: #{my_lstm_forward.1} parent=52 // loop_footer_branch
        %232 = sbr.rel target = $region55
      $region60: #{my_lstm_forward.1} parent=52 // loop_exit
        _
    $region53: #{my_lstm_forward.1} parent=1 // pred_fallthru
      _
    // Predicated region
    $region79: #{my_lstm_forward.1} parent=1 // pred_check
      _
    $region80: #{my_lstm_forward.1} parent=1 // pred_check_branch
      %781 = sbr.rel (0) target = $region82
    $region81: #{my_lstm_forward.1} parent=1 // pred_region
      %782 = vsyncadd %s222, 8192
    $region82: #{my_lstm_forward.1} parent=1 // pred_fallthru
      _
    %s783 = scalar_lea.sflag [#allocation9], 6
    %s785 = sshll.u32 1, 14
    %s786 = sxor.u32 4294967295, %s785
    %s788 = sadd.s32 2, %s51
    %s790 = sshll.u32 7, 26
    %s791 = sxor.u32 4294967295, %s790
    %s792 = sand.u32 0, %s791
    %s793 = sshll.u32 %s788, 26
    %s794 = sor.u32 %s792, %s793
    %s795 = sshll.u32 [#allocation8], 4
    %s796 = int_to_ptr.vmem [resolvable:$true] %s795
    %799 = sst [smem:[#allocation24]] 1024
    %s800 = scalar_lea.smem [#allocation24], 1
    %801 = sst [smem:[%s800]] 1024
    %s802 = scalar_lea.smem [#allocation24], 2
    %803 = sst [smem:[%s802]] 8
    %s804 = scalar_lea.smem [#allocation24], 3
    %805 = sst [smem:[%s804]] 64
    %s806 = scalar_lea.smem [#allocation24], 4
    %807 = sst [smem:[%s806]] 128
    %s808 = scalar_lea.smem [#allocation24], 5
    %809 = sst [smem:[%s808]] 2
    %s810 = scalar_lea.smem [#allocation24], 6
    %811 = sst [smem:[%s810]] 512
    %s812 = scalar_lea.smem [#allocation24], 7
    %813 = sst [smem:[%s812]] 64
    %s814 = scalar_lea.smem [#allocation24], 8
    %815 = sst [smem:[%s814]] 4
    %817 = dma.general %s17, 8192, %s796, %s783, [#allocation23], [#allocation24], %s794, 0
    %v818 = vld [vmem:[%s0] sm:$0xff]
    %v819 = vld [vmem:[%s0 + $0x8] sm:$0xff]
    %v820 = vpack.c.bf16 %v819, %v818
    %v821 = vld [vmem:[%s1] sm:$0xff]
    %v822 = vld [vmem:[%s4] sm:$0xf]
    %v824 = vlaneseq
    %v825 = vshrl.u32 %v824, 7
    %v826 = vsub.s32 0, %v825
    %v827 = vrot.slane %v822, %v826
    %v828 = vlaneseq
    %v829 = vshrl.u32 %v828, 7
    %v830 = vsub.s32 1, %v829
    %v831 = vrot.slane %v822, %v830
    %v832 = vlaneseq
    %v833 = vshrl.u32 %v832, 7
    %v834 = vsub.s32 2, %v833
    %v835 = vrot.slane %v822, %v834
    %v836 = vlaneseq
    %v837 = vshrl.u32 %v836, 7
    %v838 = vsub.s32 3, %v837
    %v839 = vrot.slane %v822, %v838
    %v845 = vcombine.high %v821, %v821
    %v847 = vunpack.c.l.s4 1983009808
    %v848 = vunpack.c.0.s8 %v847
    %v849 = vlaneseq
    %v850 = vshrl.u32 %v849, 7
    %v851 = vsub.s32 %v848, %v850
    %v852 = vrot.slane %v821, %v851
    %v854 = vunpack.c.l.s4 1983009808
    %v855 = vunpack.c.0.s8 %v854
    %v856 = vlaneseq
    %v857 = vshrl.u32 %v856, 7
    %v858 = vsub.s32 %v855, %v857
    %v859 = vrot.slane %v845, %v858
    %v860 = vcombine.high %v852, %v852
    %v861 = vcombine.high %v859, %v859
    %vm862 = vcmask 31744
    %v864 = vsel %vm862, %v820, 0
    %vm866 = vcmask 1041408
    %v868 = vsel %vm866, %v852, 0
    %v871 = vsel %vm866, %v860, 0
    %v874 = vsel %vm866, %v859, 0
    %v877 = vsel %vm866, %v861, 0
    %879 = vmatprep.subr.bf16.mxu0 %v871
    %880 = vmatpush1.bf16.msra.mxu0 %v868
    %881 = vmatprep.subr.bf16.mxu0 0
    %882 = vmatpush1.bf16.msra.mxu0 0
    %883 = vmatprep.subr.bf16.mxu0 0
    %884 = vmatpush1.bf16.msra.mxu0 0
    %885 = vmatprep.subr.bf16.mxu0 0
    %886 = vmatpush1.bf16.msra.mxu0 0
    %887 = vmatprep.subr.bf16.mxu0 0
    %888 = vmatpush1.bf16.msra.mxu0 0
    %889 = vmatprep.subr.bf16.mxu0 0
    %890 = vmatpush1.bf16.msra.mxu0 0
    %891 = vmatprep.subr.bf16.mxu0 0
    %892 = vmatpush1.bf16.msra.mxu0 0
    %893 = vmatprep.subr.bf16.mxu0 0
    %894 = vmatpush1.bf16.msra.mxu0 0
    %895 = vmatprep.subr.bf16.mxu0 0
    %896 = vmatpush1.bf16.msra.mxu0 0
    %897 = vmatprep.subr.bf16.mxu0 0
    %898 = vmatpush1.bf16.msra.mxu0 0
    %899 = vmatprep.subr.bf16.mxu0 0
    %900 = vmatpush1.bf16.msra.mxu0 0
    %901 = vmatprep.subr.bf16.mxu0 0
    %902 = vmatpush1.bf16.msra.mxu0 0
    %903 = vmatprep.subr.bf16.mxu0 0
    %904 = vmatpush1.bf16.msra.mxu0 0
    %905 = vmatprep.subr.bf16.mxu0 0
    %906 = vmatpush1.bf16.msra.mxu0 0
    %907 = vmatprep.subr.bf16.mxu0 0
    %908 = vmatpush1.bf16.msra.mxu0 0
    %909 = vmatprep.subr.bf16.mxu0 0
    %910 = vmatpush1.bf16.msra.mxu0 0
    %911 = vmatprep.mubr.bf16.mxu0 0
    %912 = vmatmul.mubr.bf16.gmra.mrb[0].mxu0 %v864
    %v913 = vpop.f32.mrb[0].mxu0
    %v914 = vadd.f32 %v827, %v913
    %v915 = vpop.f32.mrb[0].mxu0
    %v916 = vadd.f32 %v831, %v915
    %v917 = vpop.f32.mrb[0].mxu0
    %v918 = vadd.f32 %v827, %v917
    %v919 = vpop.f32.mrb[0].mxu0
    %v920 = vadd.f32 %v831, %v919
    %921 = vdwg.mxu0
    %922 = vmatprep.subr.bf16.mxu0 %v877
    %923 = vmatpush1.bf16.msra.mxu0 %v874
    %924 = vmatprep.subr.bf16.mxu0 0
    %925 = vmatpush1.bf16.msra.mxu0 0
    %926 = vmatprep.subr.bf16.mxu0 0
    %927 = vmatpush1.bf16.msra.mxu0 0
    %928 = vmatprep.subr.bf16.mxu0 0
    %929 = vmatpush1.bf16.msra.mxu0 0
    %930 = vmatprep.subr.bf16.mxu0 0
    %931 = vmatpush1.bf16.msra.mxu0 0
    %932 = vmatprep.subr.bf16.mxu0 0
    %933 = vmatpush1.bf16.msra.mxu0 0
    %934 = vmatprep.subr.bf16.mxu0 0
    %935 = vmatpush1.bf16.msra.mxu0 0
    %936 = vmatprep.subr.bf16.mxu0 0
    %937 = vmatpush1.bf16.msra.mxu0 0
    %938 = vmatprep.subr.bf16.mxu0 0
    %939 = vmatpush1.bf16.msra.mxu0 0
    %940 = vmatprep.subr.bf16.mxu0 0
    %941 = vmatpush1.bf16.msra.mxu0 0
    %942 = vmatprep.subr.bf16.mxu0 0
    %943 = vmatpush1.bf16.msra.mxu0 0
    %944 = vmatprep.subr.bf16.mxu0 0
    %945 = vmatpush1.bf16.msra.mxu0 0
    %946 = vmatprep.subr.bf16.mxu0 0
    %947 = vmatpush1.bf16.msra.mxu0 0
    %948 = vmatprep.subr.bf16.mxu0 0
    %949 = vmatpush1.bf16.msra.mxu0 0
    %950 = vmatprep.subr.bf16.mxu0 0
    %951 = vmatpush1.bf16.msra.mxu0 0
    %952 = vmatprep.subr.bf16.mxu0 0
    %953 = vmatpush1.bf16.msra.mxu0 0
    %954 = vmatprep.mubr.bf16.mxu0 0
    %955 = vmatmul.mubr.bf16.gmra.mrb[0].mxu0 %v864
    %v956 = vpop.f32.mrb[0].mxu0
    %v957 = vadd.f32 %v835, %v956
    %v958 = vpop.f32.mrb[0].mxu0
    %v959 = vadd.f32 %v839, %v958
    %v960 = vpop.f32.mrb[0].mxu0
    %v961 = vadd.f32 %v835, %v960
    %v962 = vpop.f32.mrb[0].mxu0
    %v963 = vadd.f32 %v839, %v962
    %964 = vdwg.mxu0
    %v965 = vld [vmem:[%s2] sm:$0xff]
    %v966 = vld [vmem:[%s5] sm:$0xf]
    %v968 = vlaneseq
    %v969 = vshrl.u32 %v968, 7
    %v970 = vsub.s32 0, %v969
    %v971 = vrot.slane %v966, %v970
    %v972 = vlaneseq
    %v973 = vshrl.u32 %v972, 7
    %v974 = vsub.s32 1, %v973
    %v975 = vrot.slane %v966, %v974
    %v976 = vlaneseq
    %v977 = vshrl.u32 %v976, 7
    %v978 = vsub.s32 2, %v977
    %v979 = vrot.slane %v966, %v978
    %v980 = vlaneseq
    %v981 = vshrl.u32 %v980, 7
    %v982 = vsub.s32 3, %v981
    %v983 = vrot.slane %v966, %v982
    %v989 = vcombine.high %v965, %v965
    %v991 = vunpack.c.l.s4 1983009808
    %v992 = vunpack.c.0.s8 %v991
    %v993 = vlaneseq
    %v994 = vshrl.u32 %v993, 7
    %v995 = vsub.s32 %v992, %v994
    %v996 = vrot.slane %v965, %v995
    %v998 = vunpack.c.l.s4 1983009808
    %v999 = vunpack.c.0.s8 %v998
    %v1000 = vlaneseq
    %v1001 = vshrl.u32 %v1000, 7
    %v1002 = vsub.s32 %v999, %v1001
    %v1003 = vrot.slane %v989, %v1002
    %v1004 = vcombine.high %v996, %v996
    %v1005 = vcombine.high %v1003, %v1003
    %v1007 = vsel %vm866, %v996, 0
    %v1010 = vsel %vm866, %v1004, 0
    %v1013 = vsel %vm866, %v1003, 0
    %v1016 = vsel %vm866, %v1005, 0
    %1018 = vmatprep.subr.bf16.mxu0 %v1010
    %1019 = vmatpush1.bf16.msra.mxu0 %v1007
    %1020 = vmatprep.subr.bf16.mxu0 0
    %1021 = vmatpush1.bf16.msra.mxu0 0
    %1022 = vmatprep.subr.bf16.mxu0 0
    %1023 = vmatpush1.bf16.msra.mxu0 0
    %1024 = vmatprep.subr.bf16.mxu0 0
    %1025 = vmatpush1.bf16.msra.mxu0 0
    %1026 = vmatprep.subr.bf16.mxu0 0
    %1027 = vmatpush1.bf16.msra.mxu0 0
    %1028 = vmatprep.subr.bf16.mxu0 0
    %1029 = vmatpush1.bf16.msra.mxu0 0
    %1030 = vmatprep.subr.bf16.mxu0 0
    %1031 = vmatpush1.bf16.msra.mxu0 0
    %1032 = vmatprep.subr.bf16.mxu0 0
    %1033 = vmatpush1.bf16.msra.mxu0 0
    %1034 = vmatprep.subr.bf16.mxu0 0
    %1035 = vmatpush1.bf16.msra.mxu0 0
    %1036 = vmatprep.subr.bf16.mxu0 0
    %1037 = vmatpush1.bf16.msra.mxu0 0
    %1038 = vmatprep.subr.bf16.mxu0 0
    %1039 = vmatpush1.bf16.msra.mxu0 0
    %1040 = vmatprep.subr.bf16.mxu0 0
    %1041 = vmatpush1.bf16.msra.mxu0 0
    %1042 = vmatprep.subr.bf16.mxu0 0
    %1043 = vmatpush1.bf16.msra.mxu0 0
    %1044 = vmatprep.subr.bf16.mxu0 0
    %1045 = vmatpush1.bf16.msra.mxu0 0
    %1046 = vmatprep.subr.bf16.mxu0 0
    %1047 = vmatpush1.bf16.msra.mxu0 0
    %1048 = vmatprep.subr.bf16.mxu0 0
    %1049 = vmatpush1.bf16.msra.mxu0 0
    %1050 = vmatprep.mubr.bf16.mxu0 0
    %1051 = vmatmul.mubr.bf16.gmra.mrb[0].mxu0 %v864
    %v1052 = vpop.f32.mrb[0].mxu0
    %v1053 = vadd.f32 %v971, %v1052
    %v1054 = vpop.f32.mrb[0].mxu0
    %v1055 = vadd.f32 %v975, %v1054
    %v1056 = vpop.f32.mrb[0].mxu0
    %v1057 = vadd.f32 %v971, %v1056
    %v1058 = vpop.f32.mrb[0].mxu0
    %v1059 = vadd.f32 %v975, %v1058
    %1060 = vdwg.mxu0
    %1061 = vmatprep.subr.bf16.mxu0 %v1016
    %1062 = vmatpush1.bf16.msra.mxu0 %v1013
    %1063 = vmatprep.subr.bf16.mxu0 0
    %1064 = vmatpush1.bf16.msra.mxu0 0
    %1065 = vmatprep.subr.bf16.mxu0 0
    %1066 = vmatpush1.bf16.msra.mxu0 0
    %1067 = vmatprep.subr.bf16.mxu0 0
    %1068 = vmatpush1.bf16.msra.mxu0 0
    %1069 = vmatprep.subr.bf16.mxu0 0
    %1070 = vmatpush1.bf16.msra.mxu0 0
    %1071 = vmatprep.subr.bf16.mxu0 0
    %1072 = vmatpush1.bf16.msra.mxu0 0
    %1073 = vmatprep.subr.bf16.mxu0 0
    %1074 = vmatpush1.bf16.msra.mxu0 0
    %1075 = vmatprep.subr.bf16.mxu0 0
    %1076 = vmatpush1.bf16.msra.mxu0 0
    %1077 = vmatprep.subr.bf16.mxu0 0
    %1078 = vmatpush1.bf16.msra.mxu0 0
    %1079 = vmatprep.subr.bf16.mxu0 0
    %1080 = vmatpush1.bf16.msra.mxu0 0
    %1081 = vmatprep.subr.bf16.mxu0 0
    %1082 = vmatpush1.bf16.msra.mxu0 0
    %1083 = vmatprep.subr.bf16.mxu0 0
    %1084 = vmatpush1.bf16.msra.mxu0 0
    %1085 = vmatprep.subr.bf16.mxu0 0
    %1086 = vmatpush1.bf16.msra.mxu0 0
    %1087 = vmatprep.subr.bf16.mxu0 0
    %1088 = vmatpush1.bf16.msra.mxu0 0
    %1089 = vmatprep.subr.bf16.mxu0 0
    %1090 = vmatpush1.bf16.msra.mxu0 0
    %1091 = vmatprep.subr.bf16.mxu0 0
    %1092 = vmatpush1.bf16.msra.mxu0 0
    %1093 = vmatprep.mubr.bf16.mxu0 0
    %1094 = vmatmul.mubr.bf16.gmra.mrb[0].mxu0 %v864
    %v1095 = vpop.f32.mrb[0].mxu0
    %v1096 = vadd.f32 %v979, %v1095
    %v1097 = vpop.f32.mrb[0].mxu0
    %v1098 = vadd.f32 %v983, %v1097
    %v1099 = vpop.f32.mrb[0].mxu0
    %v1100 = vadd.f32 %v979, %v1099
    %v1101 = vpop.f32.mrb[0].mxu0
    %v1102 = vadd.f32 %v983, %v1101
    %1103 = vdwg.mxu0
    %v1104 = vld [vmem:[%s3] sm:$0xff]
    %v1105 = vld [vmem:[%s3 + $0x8] sm:$0xff]
    %v1106 = vld [vmem:[%s3 + $0x10] sm:$0xff]
    %v1107 = vld [vmem:[%s3 + $0x18] sm:$0xff]
    %v1108 = vld [vmem:[%s3 + $0x20] sm:$0xff]
    %v1109 = vld [vmem:[%s3 + $0x28] sm:$0xff]
    %v1110 = vld [vmem:[%s3 + $0x30] sm:$0xff]
    %v1111 = vld [vmem:[%s3 + $0x38] sm:$0xff]
    %v1112 = vld [vmem:[%s3 + $0x40] sm:$0xff]
    %v1113 = vld [vmem:[%s3 + $0x48] sm:$0xff]
    %v1114 = vld [vmem:[%s3 + $0x50] sm:$0xff]
    %v1115 = vld [vmem:[%s3 + $0x58] sm:$0xff]
    %v1116 = vld [vmem:[%s3 + $0x60] sm:$0xff]
    %v1117 = vld [vmem:[%s3 + $0x68] sm:$0xff]
    %v1118 = vld [vmem:[%s3 + $0x70] sm:$0xff]
    %v1119 = vld [vmem:[%s3 + $0x78] sm:$0xff]
    %v1120 = vld [vmem:[%s3 + $0x80] sm:$0xff]
    %v1121 = vld [vmem:[%s3 + $0x88] sm:$0xff]
    %v1122 = vld [vmem:[%s3 + $0x90] sm:$0xff]
    %v1123 = vld [vmem:[%s3 + $0x98] sm:$0xff]
    %v1124 = vld [vmem:[%s3 + $0xa0] sm:$0xff]
    %v1125 = vld [vmem:[%s3 + $0xa8] sm:$0xff]
    %v1126 = vld [vmem:[%s3 + $0xb0] sm:$0xff]
    %v1127 = vld [vmem:[%s3 + $0xb8] sm:$0xff]
    %v1128 = vld [vmem:[%s3 + $0xc0] sm:$0xff]
    %v1129 = vld [vmem:[%s3 + $0xc8] sm:$0xff]
    %v1130 = vld [vmem:[%s3 + $0xd0] sm:$0xff]
    %v1131 = vld [vmem:[%s3 + $0xd8] sm:$0xff]
    %v1132 = vld [vmem:[%s3 + $0xe0] sm:$0xff]
    %v1133 = vld [vmem:[%s3 + $0xe8] sm:$0xff]
    %v1134 = vld [vmem:[%s3 + $0xf0] sm:$0xff]
    %v1135 = vld [vmem:[%s3 + $0xf8] sm:$0xff]
    %v1136 = vld [vmem:[%s3 + $0x100] sm:$0xff]
    %v1137 = vld [vmem:[%s3 + $0x108] sm:$0xff]
    %v1138 = vld [vmem:[%s3 + $0x110] sm:$0xff]
    %v1139 = vld [vmem:[%s3 + $0x118] sm:$0xff]
    %v1140 = vld [vmem:[%s3 + $0x120] sm:$0xff]
    %v1141 = vld [vmem:[%s3 + $0x128] sm:$0xff]
    %v1142 = vld [vmem:[%s3 + $0x130] sm:$0xff]
    %v1143 = vld [vmem:[%s3 + $0x138] sm:$0xff]
    %v1144 = vld [vmem:[%s3 + $0x140] sm:$0xff]
    %v1145 = vld [vmem:[%s3 + $0x148] sm:$0xff]
    %v1146 = vld [vmem:[%s3 + $0x150] sm:$0xff]
    %v1147 = vld [vmem:[%s3 + $0x158] sm:$0xff]
    %v1148 = vld [vmem:[%s3 + $0x160] sm:$0xff]
    %v1149 = vld [vmem:[%s3 + $0x168] sm:$0xff]
    %v1150 = vld [vmem:[%s3 + $0x170] sm:$0xff]
    %v1151 = vld [vmem:[%s3 + $0x178] sm:$0xff]
    %v1152 = vld [vmem:[%s3 + $0x180] sm:$0xff]
    %v1153 = vld [vmem:[%s3 + $0x188] sm:$0xff]
    %v1154 = vld [vmem:[%s3 + $0x190] sm:$0xff]
    %v1155 = vld [vmem:[%s3 + $0x198] sm:$0xff]
    %v1156 = vld [vmem:[%s3 + $0x1a0] sm:$0xff]
    %v1157 = vld [vmem:[%s3 + $0x1a8] sm:$0xff]
    %v1158 = vld [vmem:[%s3 + $0x1b0] sm:$0xff]
    %v1159 = vld [vmem:[%s3 + $0x1b8] sm:$0xff]
    %v1160 = vld [vmem:[%s3 + $0x1c0] sm:$0xff]
    %v1161 = vld [vmem:[%s3 + $0x1c8] sm:$0xff]
    %v1162 = vld [vmem:[%s3 + $0x1d0] sm:$0xff]
    %v1163 = vld [vmem:[%s3 + $0x1d8] sm:$0xff]
    %v1164 = vld [vmem:[%s3 + $0x1e0] sm:$0xff]
    %v1165 = vld [vmem:[%s3 + $0x1e8] sm:$0xff]
    %v1166 = vld [vmem:[%s3 + $0x1f0] sm:$0xff]
    %v1167 = vld [vmem:[%s3 + $0x1f8] sm:$0xff]
    %v1168 = vlaneseq
    %v1169 = vshrl.u32 %v1168, 7
    %v1170 = vlaneseq
    %v1171 = vand.u32 %v1170, 127
    %v1172 = vadd.s32 %v1171, 128
    %vm1173 = vcmp.lt.s32.totalorder %v1169, 2
    %vm1174 = vcmp.lt.s32.totalorder %v1171, 128
    %vm1175 = vcmp.lt.s32.totalorder %v1172, 128
    %vm1176 = vmxor %vm1173, %vm1174
    %vm1177 = vmxor %vm1173, %vm1175
    %vm1178 = vmxor %vm1176, 1
    %vm1179 = vmxor %vm1177, 1
    %v1180 = vsel %vm1178, 1.0, 0.0
    %v1181 = vsel %vm1179, 1.0, 0.0
    %v1182 = vpack.c.bf16 %v1180, %v1180
    %v1183 = vpack.c.bf16 %v1181, %v1181
    %v1188 = vrot.slane %v1057, 4
    %v1189 = vrot.slane %v1059, 4
    %v1190 = vrot.slane %v1100, 4
    %v1191 = vrot.slane %v1102, 4
    %v1196 = vsel %vm866, %v914, %v1188
    %v1197 = vsel %vm866, %v916, %v1189
    %v1198 = vsel %vm866, %v957, %v1190
    %v1199 = vsel %vm866, %v959, %v1191
    %v1200 = vxor.u32 %v1196, 2147483648
    %v1201 = vmul.f32 %v1200, 1.442695
    %v1202 = vpow.pop %v1201
    %v1203 = vadd.f32 %v1202, 1.0
    %v1204 = vrcp.pop %v1203
    %v1205 = vmul.f32 1.0, %v1204
    %v1206 = vxor.u32 %v1197, 2147483648
    %v1207 = vmul.f32 %v1206, 1.442695
    %v1208 = vpow.pop %v1207
    %v1209 = vadd.f32 %v1208, 1.0
    %v1210 = vrcp.pop %v1209
    %v1211 = vmul.f32 1.0, %v1210
    %v1212 = vtanh.pop %v1198
    %v1213 = vxor.u32 %v1199, 2147483648
    %v1214 = vmul.f32 %v1213, 1.442695
    %v1215 = vpow.pop %v1214
    %v1216 = vadd.f32 %v1215, 1.0
    %v1217 = vrcp.pop %v1216
    %v1218 = vmul.f32 1.0, %v1217
    %v1219 = vmul.f32 %v1211, 0.0
    %v1220 = vmul.f32 %v1205, %v1212
    %v1221 = vadd.f32 %v1219, %v1220
    %v1222 = vtanh.pop %v1221
    %v1223 = vmul.f32 %v1218, %v1222
    %v1224 = vpack.c.bf16 %v1223, %v1223
    %v1225 = vmul.bf16 %v1224, %v1182
    %v1226 = vmul.bf16 %v1224, %v1183
    %v1231 = vrot.slane %v914, 2
    %v1232 = vrot.slane %v916, 2
    %v1233 = vrot.slane %v957, 2
    %v1234 = vrot.slane %v959, 2
    %v1239 = vrot.slane %v1057, 2
    %v1240 = vrot.slane %v1059, 2
    %v1241 = vrot.slane %v1100, 2
    %v1242 = vrot.slane %v1102, 2
    %v1247 = vsel %vm866, %v1231, %v1239
    %v1248 = vsel %vm866, %v1232, %v1240
    %v1249 = vsel %vm866, %v1233, %v1241
    %v1250 = vsel %vm866, %v1234, %v1242
    %v1315 = vunpack.c.l.b16 %v1104
    %v1316 = vunpack.c.h.b16 %v1104
    %v1317 = vunpack.c.l.b16 %v1105
    %v1318 = vunpack.c.h.b16 %v1105
    %v1319 = vunpack.c.l.b16 %v1106
    %v1320 = vunpack.c.h.b16 %v1106
    %v1321 = vunpack.c.l.b16 %v1107
    %v1322 = vunpack.c.h.b16 %v1107
    %v1323 = vunpack.c.l.b16 %v1108
    %v1324 = vunpack.c.h.b16 %v1108
    %v1325 = vunpack.c.l.b16 %v1109
    %v1326 = vunpack.c.h.b16 %v1109
    %v1327 = vunpack.c.l.b16 %v1110
    %v1328 = vunpack.c.h.b16 %v1110
    %v1329 = vunpack.c.l.b16 %v1111
    %v1330 = vunpack.c.h.b16 %v1111
    %v1331 = vunpack.c.l.b16 %v1112
    %v1332 = vunpack.c.h.b16 %v1112
    %v1333 = vunpack.c.l.b16 %v1113
    %v1334 = vunpack.c.h.b16 %v1113
    %v1335 = vunpack.c.l.b16 %v1114
    %v1336 = vunpack.c.h.b16 %v1114
    %v1337 = vunpack.c.l.b16 %v1115
    %v1338 = vunpack.c.h.b16 %v1115
    %v1339 = vunpack.c.l.b16 %v1116
    %v1340 = vunpack.c.h.b16 %v1116
    %v1341 = vunpack.c.l.b16 %v1117
    %v1342 = vunpack.c.h.b16 %v1117
    %v1343 = vunpack.c.l.b16 %v1118
    %v1344 = vunpack.c.h.b16 %v1118
    %v1345 = vunpack.c.l.b16 %v1119
    %v1346 = vunpack.c.h.b16 %v1119
    %v1347 = vunpack.c.l.b16 %v1120
    %v1348 = vunpack.c.h.b16 %v1120
    %v1349 = vunpack.c.l.b16 %v1121
    %v1350 = vunpack.c.h.b16 %v1121
    %v1351 = vunpack.c.l.b16 %v1122
    %v1352 = vunpack.c.h.b16 %v1122
    %v1353 = vunpack.c.l.b16 %v1123
    %v1354 = vunpack.c.h.b16 %v1123
    %v1355 = vunpack.c.l.b16 %v1124
    %v1356 = vunpack.c.h.b16 %v1124
    %v1357 = vunpack.c.l.b16 %v1125
    %v1358 = vunpack.c.h.b16 %v1125
    %v1359 = vunpack.c.l.b16 %v1126
    %v1360 = vunpack.c.h.b16 %v1126
    %v1361 = vunpack.c.l.b16 %v1127
    %v1362 = vunpack.c.h.b16 %v1127
    %v1363 = vunpack.c.l.b16 %v1128
    %v1364 = vunpack.c.h.b16 %v1128
    %v1365 = vunpack.c.l.b16 %v1129
    %v1366 = vunpack.c.h.b16 %v1129
    %v1367 = vunpack.c.l.b16 %v1130
    %v1368 = vunpack.c.h.b16 %v1130
    %v1369 = vunpack.c.l.b16 %v1131
    %v1370 = vunpack.c.h.b16 %v1131
    %v1371 = vunpack.c.l.b16 %v1132
    %v1372 = vunpack.c.h.b16 %v1132
    %v1373 = vunpack.c.l.b16 %v1133
    %v1374 = vunpack.c.h.b16 %v1133
    %v1375 = vunpack.c.l.b16 %v1134
    %v1376 = vunpack.c.h.b16 %v1134
    %v1377 = vunpack.c.l.b16 %v1135
    %v1378 = vunpack.c.h.b16 %v1135
    %v1379 = vunpack.c.l.b16 %v1136
    %v1380 = vunpack.c.h.b16 %v1136
    %v1381 = vunpack.c.l.b16 %v1137
    %v1382 = vunpack.c.h.b16 %v1137
    %v1383 = vunpack.c.l.b16 %v1138
    %v1384 = vunpack.c.h.b16 %v1138
    %v1385 = vunpack.c.l.b16 %v1139
    %v1386 = vunpack.c.h.b16 %v1139
    %v1387 = vunpack.c.l.b16 %v1140
    %v1388 = vunpack.c.h.b16 %v1140
    %v1389 = vunpack.c.l.b16 %v1141
    %v1390 = vunpack.c.h.b16 %v1141
    %v1391 = vunpack.c.l.b16 %v1142
    %v1392 = vunpack.c.h.b16 %v1142
    %v1393 = vunpack.c.l.b16 %v1143
    %v1394 = vunpack.c.h.b16 %v1143
    %v1395 = vunpack.c.l.b16 %v1144
    %v1396 = vunpack.c.h.b16 %v1144
    %v1397 = vunpack.c.l.b16 %v1145
    %v1398 = vunpack.c.h.b16 %v1145
    %v1399 = vunpack.c.l.b16 %v1146
    %v1400 = vunpack.c.h.b16 %v1146
    %v1401 = vunpack.c.l.b16 %v1147
    %v1402 = vunpack.c.h.b16 %v1147
    %v1403 = vunpack.c.l.b16 %v1148
    %v1404 = vunpack.c.h.b16 %v1148
    %v1405 = vunpack.c.l.b16 %v1149
    %v1406 = vunpack.c.h.b16 %v1149
    %v1407 = vunpack.c.l.b16 %v1150
    %v1408 = vunpack.c.h.b16 %v1150
    %v1409 = vunpack.c.l.b16 %v1151
    %v1410 = vunpack.c.h.b16 %v1151
    %v1411 = vunpack.c.l.b16 %v1152
    %v1412 = vunpack.c.h.b16 %v1152
    %v1413 = vunpack.c.l.b16 %v1153
    %v1414 = vunpack.c.h.b16 %v1153
    %v1415 = vunpack.c.l.b16 %v1154
    %v1416 = vunpack.c.h.b16 %v1154
    %v1417 = vunpack.c.l.b16 %v1155
    %v1418 = vunpack.c.h.b16 %v1155
    %v1419 = vunpack.c.l.b16 %v1156
    %v1420 = vunpack.c.h.b16 %v1156
    %v1421 = vunpack.c.l.b16 %v1157
    %v1422 = vunpack.c.h.b16 %v1157
    %v1423 = vunpack.c.l.b16 %v1158
    %v1424 = vunpack.c.h.b16 %v1158
    %v1425 = vunpack.c.l.b16 %v1159
    %v1426 = vunpack.c.h.b16 %v1159
    %v1427 = vunpack.c.l.b16 %v1160
    %v1428 = vunpack.c.h.b16 %v1160
    %v1429 = vunpack.c.l.b16 %v1161
    %v1430 = vunpack.c.h.b16 %v1161
    %v1431 = vunpack.c.l.b16 %v1162
    %v1432 = vunpack.c.h.b16 %v1162
    %v1433 = vunpack.c.l.b16 %v1163
    %v1434 = vunpack.c.h.b16 %v1163
    %v1435 = vunpack.c.l.b16 %v1164
    %v1436 = vunpack.c.h.b16 %v1164
    %v1437 = vunpack.c.l.b16 %v1165
    %v1438 = vunpack.c.h.b16 %v1165
    %v1439 = vunpack.c.l.b16 %v1166
    %v1440 = vunpack.c.h.b16 %v1166
    %v1441 = vunpack.c.l.b16 %v1167
    %v1442 = vunpack.c.h.b16 %v1167
    %v1443 = vpack.c.b16 %v1319, %v1315
    %v1444 = vpack.c.b16 %v1320, %v1316
    %v1445 = vpack.c.b16 %v1321, %v1317
    %v1446 = vpack.c.b16 %v1322, %v1318
    %v1447 = vpack.c.b16 %v1327, %v1323
    %v1448 = vpack.c.b16 %v1328, %v1324
    %v1449 = vpack.c.b16 %v1329, %v1325
    %v1450 = vpack.c.b16 %v1330, %v1326
    %v1451 = vpack.c.b16 %v1335, %v1331
    %v1452 = vpack.c.b16 %v1336, %v1332
    %v1453 = vpack.c.b16 %v1337, %v1333
    %v1454 = vpack.c.b16 %v1338, %v1334
    %v1455 = vpack.c.b16 %v1343, %v1339
    %v1456 = vpack.c.b16 %v1344, %v1340
    %v1457 = vpack.c.b16 %v1345, %v1341
    %v1458 = vpack.c.b16 %v1346, %v1342
    %v1459 = vpack.c.b16 %v1351, %v1347
    %v1460 = vpack.c.b16 %v1352, %v1348
    %v1461 = vpack.c.b16 %v1353, %v1349
    %v1462 = vpack.c.b16 %v1354, %v1350
    %v1463 = vpack.c.b16 %v1359, %v1355
    %v1464 = vpack.c.b16 %v1360, %v1356
    %v1465 = vpack.c.b16 %v1361, %v1357
    %v1466 = vpack.c.b16 %v1362, %v1358
    %v1467 = vpack.c.b16 %v1367, %v1363
    %v1468 = vpack.c.b16 %v1368, %v1364
    %v1469 = vpack.c.b16 %v1369, %v1365
    %v1470 = vpack.c.b16 %v1370, %v1366
    %v1471 = vpack.c.b16 %v1375, %v1371
    %v1472 = vpack.c.b16 %v1376, %v1372
    %v1473 = vpack.c.b16 %v1377, %v1373
    %v1474 = vpack.c.b16 %v1378, %v1374
    %v1475 = vpack.c.b16 %v1383, %v1379
    %v1476 = vpack.c.b16 %v1384, %v1380
    %v1477 = vpack.c.b16 %v1385, %v1381
    %v1478 = vpack.c.b16 %v1386, %v1382
    %v1479 = vpack.c.b16 %v1391, %v1387
    %v1480 = vpack.c.b16 %v1392, %v1388
    %v1481 = vpack.c.b16 %v1393, %v1389
    %v1482 = vpack.c.b16 %v1394, %v1390
    %v1483 = vpack.c.b16 %v1399, %v1395
    %v1484 = vpack.c.b16 %v1400, %v1396
    %v1485 = vpack.c.b16 %v1401, %v1397
    %v1486 = vpack.c.b16 %v1402, %v1398
    %v1487 = vpack.c.b16 %v1407, %v1403
    %v1488 = vpack.c.b16 %v1408, %v1404
    %v1489 = vpack.c.b16 %v1409, %v1405
    %v1490 = vpack.c.b16 %v1410, %v1406
    %v1491 = vpack.c.b16 %v1415, %v1411
    %v1492 = vpack.c.b16 %v1416, %v1412
    %v1493 = vpack.c.b16 %v1417, %v1413
    %v1494 = vpack.c.b16 %v1418, %v1414
    %v1495 = vpack.c.b16 %v1423, %v1419
    %v1496 = vpack.c.b16 %v1424, %v1420
    %v1497 = vpack.c.b16 %v1425, %v1421
    %v1498 = vpack.c.b16 %v1426, %v1422
    %v1499 = vpack.c.b16 %v1431, %v1427
    %v1500 = vpack.c.b16 %v1432, %v1428
    %v1501 = vpack.c.b16 %v1433, %v1429
    %v1502 = vpack.c.b16 %v1434, %v1430
    %v1503 = vpack.c.b16 %v1439, %v1435
    %v1504 = vpack.c.b16 %v1440, %v1436
    %v1505 = vpack.c.b16 %v1441, %v1437
    %v1506 = vpack.c.b16 %v1442, %v1438
    %1571 = vmatprep.subr.bf16.mxu0 %v1444
    %1572 = vmatpush1.bf16.msra.mxu0 %v1443
    %1573 = vmatprep.subr.bf16.mxu0 %v1448
    %1574 = vmatpush1.bf16.msra.mxu0 %v1447
    %1575 = vmatprep.subr.bf16.mxu0 %v1452
    %1576 = vmatpush1.bf16.msra.mxu0 %v1451
    %1577 = vmatprep.subr.bf16.mxu0 %v1456
    %1578 = vmatpush1.bf16.msra.mxu0 %v1455
    %1579 = vmatprep.subr.bf16.mxu0 %v1460
    %1580 = vmatpush1.bf16.msra.mxu0 %v1459
    %1581 = vmatprep.subr.bf16.mxu0 %v1464
    %1582 = vmatpush1.bf16.msra.mxu0 %v1463
    %1583 = vmatprep.subr.bf16.mxu0 %v1468
    %1584 = vmatpush1.bf16.msra.mxu0 %v1467
    %1585 = vmatprep.subr.bf16.mxu0 %v1472
    %1586 = vmatpush1.bf16.msra.mxu0 %v1471
    %1587 = vmatprep.subr.bf16.mxu0 %v1476
    %1588 = vmatpush1.bf16.msra.mxu0 %v1475
    %1589 = vmatprep.subr.bf16.mxu0 %v1480
    %1590 = vmatpush1.bf16.msra.mxu0 %v1479
    %1591 = vmatprep.subr.bf16.mxu0 %v1484
    %1592 = vmatpush1.bf16.msra.mxu0 %v1483
    %1593 = vmatprep.subr.bf16.mxu0 %v1488
    %1594 = vmatpush1.bf16.msra.mxu0 %v1487
    %1595 = vmatprep.subr.bf16.mxu0 %v1492
    %1596 = vmatpush1.bf16.msra.mxu0 %v1491
    %1597 = vmatprep.subr.bf16.mxu0 %v1496
    %1598 = vmatpush1.bf16.msra.mxu0 %v1495
    %1599 = vmatprep.subr.bf16.mxu0 %v1500
    %1600 = vmatpush1.bf16.msra.mxu0 %v1499
    %1601 = vmatprep.subr.bf16.mxu0 %v1504
    %1602 = vmatpush1.bf16.msra.mxu0 %v1503
    %1603 = vmatprep.mubr.bf16.mxu0 %v1226
    %1604 = vmatmul.mubr.bf16.gmra.mrb[0].mxu0 %v1225
    %v1605 = vpop.f32.mrb[0].mxu0
    %v1606 = vadd.f32 0.0, %v1605
    %v1607 = vpop.f32.mrb[0].mxu0
    %v1608 = vadd.f32 0.0, %v1607
    %v1609 = vpop.f32.mrb[0].mxu0
    %v1610 = vpop.f32.mrb[0].mxu0
    %1611 = vdwg.mxu0
    %1612 = vmatprep.subr.bf16.mxu0 %v1446
    %1613 = vmatpush1.bf16.msra.mxu0 %v1445
    %1614 = vmatprep.subr.bf16.mxu0 %v1450
    %1615 = vmatpush1.bf16.msra.mxu0 %v1449
    %1616 = vmatprep.subr.bf16.mxu0 %v1454
    %1617 = vmatpush1.bf16.msra.mxu0 %v1453
    %1618 = vmatprep.subr.bf16.mxu0 %v1458
    %1619 = vmatpush1.bf16.msra.mxu0 %v1457
    %1620 = vmatprep.subr.bf16.mxu0 %v1462
    %1621 = vmatpush1.bf16.msra.mxu0 %v1461
    %1622 = vmatprep.subr.bf16.mxu0 %v1466
    %1623 = vmatpush1.bf16.msra.mxu0 %v1465
    %1624 = vmatprep.subr.bf16.mxu0 %v1470
    %1625 = vmatpush1.bf16.msra.mxu0 %v1469
    %1626 = vmatprep.subr.bf16.mxu0 %v1474
    %1627 = vmatpush1.bf16.msra.mxu0 %v1473
    %1628 = vmatprep.subr.bf16.mxu0 %v1478
    %1629 = vmatpush1.bf16.msra.mxu0 %v1477
    %1630 = vmatprep.subr.bf16.mxu0 %v1482
    %1631 = vmatpush1.bf16.msra.mxu0 %v1481
    %1632 = vmatprep.subr.bf16.mxu0 %v1486
    %1633 = vmatpush1.bf16.msra.mxu0 %v1485
    %1634 = vmatprep.subr.bf16.mxu0 %v1490
    %1635 = vmatpush1.bf16.msra.mxu0 %v1489
    %1636 = vmatprep.subr.bf16.mxu0 %v1494
    %1637 = vmatpush1.bf16.msra.mxu0 %v1493
    %1638 = vmatprep.subr.bf16.mxu0 %v1498
    %1639 = vmatpush1.bf16.msra.mxu0 %v1497
    %1640 = vmatprep.subr.bf16.mxu0 %v1502
    %1641 = vmatpush1.bf16.msra.mxu0 %v1501
    %1642 = vmatprep.subr.bf16.mxu0 %v1506
    %1643 = vmatpush1.bf16.msra.mxu0 %v1505
    %1644 = vmatprep.mubr.bf16.mxu0 %v1226
    %1645 = vmatmul.mubr.bf16.gmra.mrb[0].mxu0 %v1225
    %v1646 = vpop.f32.mrb[0].mxu0
    %v1647 = vadd.f32 0.0, %v1646
    %v1648 = vpop.f32.mrb[0].mxu0
    %v1649 = vadd.f32 0.0, %v1648
    %v1650 = vpop.f32.mrb[0].mxu0
    %v1651 = vpop.f32.mrb[0].mxu0
    %1652 = vdwg.mxu0
    %v1653 = vadd.f32 %v1247, %v1606
    %v1654 = vadd.f32 %v1248, %v1608
    %v1655 = vadd.f32 %v1249, %v1647
    %v1656 = vadd.f32 %v1250, %v1649
    %v1657 = vxor.u32 %v1653, 2147483648
    %v1658 = vmul.f32 %v1657, 1.442695
    %v1659 = vpow.pop %v1658
    %v1660 = vadd.f32 %v1659, 1.0
    %v1661 = vrcp.pop %v1660
    %v1662 = vmul.f32 1.0, %v1661
    %v1663 = vxor.u32 %v1654, 2147483648
    %v1664 = vmul.f32 %v1663, 1.442695
    %v1665 = vpow.pop %v1664
    %v1666 = vadd.f32 %v1665, 1.0
    %v1667 = vrcp.pop %v1666
    %v1668 = vmul.f32 1.0, %v1667
    %v1669 = vtanh.pop %v1655
    %v1670 = vxor.u32 %v1656, 2147483648
    %v1671 = vmul.f32 %v1670, 1.442695
    %v1672 = vpow.pop %v1671
    %v1673 = vadd.f32 %v1672, 1.0
    %v1674 = vrcp.pop %v1673
    %v1675 = vmul.f32 1.0, %v1674
    %v1676 = vmul.f32 %v1668, %v1221
    %v1677 = vmul.f32 %v1662, %v1669
    %v1678 = vadd.f32 %v1676, %v1677
    %v1679 = vtanh.pop %v1678
    %v1680 = vmul.f32 %v1675, %v1679
    %v1681 = vpack.c.bf16 %v1680, %v1680
    %v1682 = vmul.bf16 %v1681, %v1182
    %v1683 = vmul.bf16 %v1681, %v1183
    %v1684 = vrot.slane %v914, 4
    %v1685 = vrot.slane %v916, 4
    %v1686 = vrot.slane %v957, 4
    %v1687 = vrot.slane %v959, 4
    %v1692 = vsel %vm866, %v1684, %v1057
    %v1693 = vsel %vm866, %v1685, %v1059
    %v1694 = vsel %vm866, %v1686, %v1100
    %v1695 = vsel %vm866, %v1687, %v1102
    %1696 = vmatprep.subr.bf16.mxu0 %v1444
    %1697 = vmatpush1.bf16.msra.mxu0 %v1443
    %1698 = vmatprep.subr.bf16.mxu0 %v1448
    %1699 = vmatpush1.bf16.msra.mxu0 %v1447
    %1700 = vmatprep.subr.bf16.mxu0 %v1452
    %1701 = vmatpush1.bf16.msra.mxu0 %v1451
    %1702 = vmatprep.subr.bf16.mxu0 %v1456
    %1703 = vmatpush1.bf16.msra.mxu0 %v1455
    %1704 = vmatprep.subr.bf16.mxu0 %v1460
    %1705 = vmatpush1.bf16.msra.mxu0 %v1459
    %1706 = vmatprep.subr.bf16.mxu0 %v1464
    %1707 = vmatpush1.bf16.msra.mxu0 %v1463
    %1708 = vmatprep.subr.bf16.mxu0 %v1468
    %1709 = vmatpush1.bf16.msra.mxu0 %v1467
    %1710 = vmatprep.subr.bf16.mxu0 %v1472
    %1711 = vmatpush1.bf16.msra.mxu0 %v1471
    %1712 = vmatprep.subr.bf16.mxu0 %v1476
    %1713 = vmatpush1.bf16.msra.mxu0 %v1475
    %1714 = vmatprep.subr.bf16.mxu0 %v1480
    %1715 = vmatpush1.bf16.msra.mxu0 %v1479
    %1716 = vmatprep.subr.bf16.mxu0 %v1484
    %1717 = vmatpush1.bf16.msra.mxu0 %v1483
    %1718 = vmatprep.subr.bf16.mxu0 %v1488
    %1719 = vmatpush1.bf16.msra.mxu0 %v1487
    %1720 = vmatprep.subr.bf16.mxu0 %v1492
    %1721 = vmatpush1.bf16.msra.mxu0 %v1491
    %1722 = vmatprep.subr.bf16.mxu0 %v1496
    %1723 = vmatpush1.bf16.msra.mxu0 %v1495
    %1724 = vmatprep.subr.bf16.mxu0 %v1500
    %1725 = vmatpush1.bf16.msra.mxu0 %v1499
    %1726 = vmatprep.subr.bf16.mxu0 %v1504
    %1727 = vmatpush1.bf16.msra.mxu0 %v1503
    %1728 = vmatprep.mubr.bf16.mxu0 %v1683
    %1729 = vmatmul.mubr.bf16.gmra.mrb[0].mxu0 %v1682
    %v1730 = vpop.f32.mrb[0].mxu0
    %v1731 = vadd.f32 0.0, %v1730
    %v1732 = vpop.f32.mrb[0].mxu0
    %v1733 = vadd.f32 0.0, %v1732
    %v1734 = vpop.f32.mrb[0].mxu0
    %v1735 = vpop.f32.mrb[0].mxu0
    %1736 = vdwg.mxu0
    %1737 = vmatprep.subr.bf16.mxu0 %v1446
    %1738 = vmatpush1.bf16.msra.mxu0 %v1445
    %1739 = vmatprep.subr.bf16.mxu0 %v1450
    %1740 = vmatpush1.bf16.msra.mxu0 %v1449
    %1741 = vmatprep.subr.bf16.mxu0 %v1454
    %1742 = vmatpush1.bf16.msra.mxu0 %v1453
    %1743 = vmatprep.subr.bf16.mxu0 %v1458
    %1744 = vmatpush1.bf16.msra.mxu0 %v1457
    %1745 = vmatprep.subr.bf16.mxu0 %v1462
    %1746 = vmatpush1.bf16.msra.mxu0 %v1461
    %1747 = vmatprep.subr.bf16.mxu0 %v1466
    %1748 = vmatpush1.bf16.msra.mxu0 %v1465
    %1749 = vmatprep.subr.bf16.mxu0 %v1470
    %1750 = vmatpush1.bf16.msra.mxu0 %v1469
    %1751 = vmatprep.subr.bf16.mxu0 %v1474
    %1752 = vmatpush1.bf16.msra.mxu0 %v1473
    %1753 = vmatprep.subr.bf16.mxu0 %v1478
    %1754 = vmatpush1.bf16.msra.mxu0 %v1477
    %1755 = vmatprep.subr.bf16.mxu0 %v1482
    %1756 = vmatpush1.bf16.msra.mxu0 %v1481
    %1757 = vmatprep.subr.bf16.mxu0 %v1486
    %1758 = vmatpush1.bf16.msra.mxu0 %v1485
    %1759 = vmatprep.subr.bf16.mxu0 %v1490
    %1760 = vmatpush1.bf16.msra.mxu0 %v1489
    %1761 = vmatprep.subr.bf16.mxu0 %v1494
    %1762 = vmatpush1.bf16.msra.mxu0 %v1493
    %1763 = vmatprep.subr.bf16.mxu0 %v1498
    %1764 = vmatpush1.bf16.msra.mxu0 %v1497
    %1765 = vmatprep.subr.bf16.mxu0 %v1502
    %1766 = vmatpush1.bf16.msra.mxu0 %v1501
    %1767 = vmatprep.subr.bf16.mxu0 %v1506
    %1768 = vmatpush1.bf16.msra.mxu0 %v1505
    %1769 = vmatprep.mubr.bf16.mxu0 %v1683
    %1770 = vmatmul.mubr.bf16.gmra.mrb[0].mxu0 %v1682
    %v1771 = vpop.f32.mrb[0].mxu0
    %v1772 = vadd.f32 0.0, %v1771
    %v1773 = vpop.f32.mrb[0].mxu0
    %v1774 = vadd.f32 0.0, %v1773
    %v1775 = vpop.f32.mrb[0].mxu0
    %v1776 = vpop.f32.mrb[0].mxu0
    %1777 = vdwg.mxu0
    %v1778 = vadd.f32 %v1692, %v1731
    %v1779 = vadd.f32 %v1693, %v1733
    %v1780 = vadd.f32 %v1694, %v1772
    %v1781 = vadd.f32 %v1695, %v1774
    %v1782 = vxor.u32 %v1778, 2147483648
    %v1783 = vmul.f32 %v1782, 1.442695
    %v1784 = vpow.pop %v1783
    %v1785 = vadd.f32 %v1784, 1.0
    %v1786 = vrcp.pop %v1785
    %v1787 = vmul.f32 1.0, %v1786
    %v1788 = vxor.u32 %v1779, 2147483648
    %v1789 = vmul.f32 %v1788, 1.442695
    %v1790 = vpow.pop %v1789
    %v1791 = vadd.f32 %v1790, 1.0
    %v1792 = vrcp.pop %v1791
    %v1793 = vmul.f32 1.0, %v1792
    %v1794 = vtanh.pop %v1780
    %v1795 = vxor.u32 %v1781, 2147483648
    %v1796 = vmul.f32 %v1795, 1.442695
    %v1797 = vpow.pop %v1796
    %v1798 = vadd.f32 %v1797, 1.0
    %v1799 = vrcp.pop %v1798
    %v1800 = vmul.f32 1.0, %v1799
    %v1801 = vmul.f32 %v1793, %v1678
    %v1802 = vmul.f32 %v1787, %v1794
    %v1803 = vadd.f32 %v1801, %v1802
    %v1804 = vtanh.pop %v1803
    %v1805 = vmul.f32 %v1800, %v1804
    %v1806 = vpack.c.bf16 %v1805, %v1805
    %v1807 = vmul.bf16 %v1806, %v1182
    %v1808 = vmul.bf16 %v1806, %v1183
    %v1809 = vrot.slane %v914, 6
    %v1810 = vrot.slane %v916, 6
    %v1811 = vrot.slane %v957, 6
    %v1812 = vrot.slane %v959, 6
    %v1817 = vrot.slane %v1057, 6
    %v1818 = vrot.slane %v1059, 6
    %v1819 = vrot.slane %v1100, 6
    %v1820 = vrot.slane %v1102, 6
    %v1825 = vsel %vm866, %v1809, %v1817
    %v1826 = vsel %vm866, %v1810, %v1818
    %v1827 = vsel %vm866, %v1811, %v1819
    %v1828 = vsel %vm866, %v1812, %v1820
    %1829 = vmatprep.subr.bf16.mxu0 %v1444
    %1830 = vmatpush1.bf16.msra.mxu0 %v1443
    %1831 = vmatprep.subr.bf16.mxu0 %v1448
    %1832 = vmatpush1.bf16.msra.mxu0 %v1447
    %1833 = vmatprep.subr.bf16.mxu0 %v1452
    %1834 = vmatpush1.bf16.msra.mxu0 %v1451
    %1835 = vmatprep.subr.bf16.mxu0 %v1456
    %1836 = vmatpush1.bf16.msra.mxu0 %v1455
    %1837 = vmatprep.subr.bf16.mxu0 %v1460
    %1838 = vmatpush1.bf16.msra.mxu0 %v1459
    %1839 = vmatprep.subr.bf16.mxu0 %v1464
    %1840 = vmatpush1.bf16.msra.mxu0 %v1463
    %1841 = vmatprep.subr.bf16.mxu0 %v1468
    %1842 = vmatpush1.bf16.msra.mxu0 %v1467
    %1843 = vmatprep.subr.bf16.mxu0 %v1472
    %1844 = vmatpush1.bf16.msra.mxu0 %v1471
    %1845 = vmatprep.subr.bf16.mxu0 %v1476
    %1846 = vmatpush1.bf16.msra.mxu0 %v1475
    %1847 = vmatprep.subr.bf16.mxu0 %v1480
    %1848 = vmatpush1.bf16.msra.mxu0 %v1479
    %1849 = vmatprep.subr.bf16.mxu0 %v1484
    %1850 = vmatpush1.bf16.msra.mxu0 %v1483
    %1851 = vmatprep.subr.bf16.mxu0 %v1488
    %1852 = vmatpush1.bf16.msra.mxu0 %v1487
    %1853 = vmatprep.subr.bf16.mxu0 %v1492
    %1854 = vmatpush1.bf16.msra.mxu0 %v1491
    %1855 = vmatprep.subr.bf16.mxu0 %v1496
    %1856 = vmatpush1.bf16.msra.mxu0 %v1495
    %1857 = vmatprep.subr.bf16.mxu0 %v1500
    %1858 = vmatpush1.bf16.msra.mxu0 %v1499
    %1859 = vmatprep.subr.bf16.mxu0 %v1504
    %1860 = vmatpush1.bf16.msra.mxu0 %v1503
    %1861 = vmatprep.mubr.bf16.mxu0 %v1808
    %1862 = vmatmul.mubr.bf16.gmra.mrb[0].mxu0 %v1807
    %v1863 = vpop.f32.mrb[0].mxu0
    %v1864 = vadd.f32 0.0, %v1863
    %v1865 = vpop.f32.mrb[0].mxu0
    %v1866 = vadd.f32 0.0, %v1865
    %v1867 = vpop.f32.mrb[0].mxu0
    %v1868 = vpop.f32.mrb[0].mxu0
    %1869 = vdwg.mxu0
    %1870 = vmatprep.subr.bf16.mxu0 %v1446
    %1871 = vmatpush1.bf16.msra.mxu0 %v1445
    %1872 = vmatprep.subr.bf16.mxu0 %v1450
    %1873 = vmatpush1.bf16.msra.mxu0 %v1449
    %1874 = vmatprep.subr.bf16.mxu0 %v1454
    %1875 = vmatpush1.bf16.msra.mxu0 %v1453
    %1876 = vmatprep.subr.bf16.mxu0 %v1458
    %1877 = vmatpush1.bf16.msra.mxu0 %v1457
    %1878 = vmatprep.subr.bf16.mxu0 %v1462
    %1879 = vmatpush1.bf16.msra.mxu0 %v1461
    %1880 = vmatprep.subr.bf16.mxu0 %v1466
    %1881 = vmatpush1.bf16.msra.mxu0 %v1465
    %1882 = vmatprep.subr.bf16.mxu0 %v1470
    %1883 = vmatpush1.bf16.msra.mxu0 %v1469
    %1884 = vmatprep.subr.bf16.mxu0 %v1474
    %1885 = vmatpush1.bf16.msra.mxu0 %v1473
    %1886 = vmatprep.subr.bf16.mxu0 %v1478
    %1887 = vmatpush1.bf16.msra.mxu0 %v1477
    %1888 = vmatprep.subr.bf16.mxu0 %v1482
    %1889 = vmatpush1.bf16.msra.mxu0 %v1481
    %1890 = vmatprep.subr.bf16.mxu0 %v1486
    %1891 = vmatpush1.bf16.msra.mxu0 %v1485
    %1892 = vmatprep.subr.bf16.mxu0 %v1490
    %1893 = vmatpush1.bf16.msra.mxu0 %v1489
    %1894 = vmatprep.subr.bf16.mxu0 %v1494
    %1895 = vmatpush1.bf16.msra.mxu0 %v1493
    %1896 = vmatprep.subr.bf16.mxu0 %v1498
    %1897 = vmatpush1.bf16.msra.mxu0 %v1497
    %1898 = vmatprep.subr.bf16.mxu0 %v1502
    %1899 = vmatpush1.bf16.msra.mxu0 %v1501
    %1900 = vmatprep.subr.bf16.mxu0 %v1506
    %1901 = vmatpush1.bf16.msra.mxu0 %v1505
    %1902 = vmatprep.mubr.bf16.mxu0 %v1808
    %1903 = vmatmul.mubr.bf16.gmra.mrb[0].mxu0 %v1807
    %v1904 = vpop.f32.mrb[0].mxu0
    %v1905 = vadd.f32 0.0, %v1904
    %v1906 = vpop.f32.mrb[0].mxu0
    %v1907 = vadd.f32 0.0, %v1906
    %v1908 = vpop.f32.mrb[0].mxu0
    %v1909 = vpop.f32.mrb[0].mxu0
    %1910 = vdwg.mxu0
    %v1911 = vadd.f32 %v1825, %v1864
    %v1912 = vadd.f32 %v1826, %v1866
    %v1913 = vadd.f32 %v1827, %v1905
    %v1914 = vadd.f32 %v1828, %v1907
    %v1915 = vxor.u32 %v1911, 2147483648
    %v1916 = vmul.f32 %v1915, 1.442695
    %v1917 = vpow.pop %v1916
    %v1918 = vadd.f32 %v1917, 1.0
    %v1919 = vrcp.pop %v1918
    %v1920 = vmul.f32 1.0, %v1919
    %v1921 = vxor.u32 %v1912, 2147483648
    %v1922 = vmul.f32 %v1921, 1.442695
    %v1923 = vpow.pop %v1922
    %v1924 = vadd.f32 %v1923, 1.0
    %v1925 = vrcp.pop %v1924
    %v1926 = vmul.f32 1.0, %v1925
    %v1927 = vtanh.pop %v1913
    %v1928 = vxor.u32 %v1914, 2147483648
    %v1929 = vmul.f32 %v1928, 1.442695
    %v1930 = vpow.pop %v1929
    %v1931 = vadd.f32 %v1930, 1.0
    %v1932 = vrcp.pop %v1931
    %v1933 = vmul.f32 1.0, %v1932
    %v1934 = vmul.f32 %v1926, %v1803
    %v1935 = vmul.f32 %v1920, %v1927
    %v1936 = vadd.f32 %v1934, %v1935
    %v1937 = vtanh.pop %v1936
    %v1938 = vmul.f32 %v1933, %v1937
    %v1939 = vpack.c.bf16 %v1938, %v1938
    %v1940 = vmul.bf16 %v1939, %v1182
    %v1941 = vmul.bf16 %v1939, %v1183
    %v1946 = vrot.slane %v1053, 4
    %v1947 = vrot.slane %v1055, 4
    %v1948 = vrot.slane %v1096, 4
    %v1949 = vrot.slane %v1098, 4
    %v1954 = vsel %vm866, %v918, %v1946
    %v1955 = vsel %vm866, %v920, %v1947
    %v1956 = vsel %vm866, %v961, %v1948
    %v1957 = vsel %vm866, %v963, %v1949
    %1958 = vmatprep.subr.bf16.mxu0 %v1444
    %1959 = vmatpush1.bf16.msra.mxu0 %v1443
    %1960 = vmatprep.subr.bf16.mxu0 %v1448
    %1961 = vmatpush1.bf16.msra.mxu0 %v1447
    %1962 = vmatprep.subr.bf16.mxu0 %v1452
    %1963 = vmatpush1.bf16.msra.mxu0 %v1451
    %1964 = vmatprep.subr.bf16.mxu0 %v1456
    %1965 = vmatpush1.bf16.msra.mxu0 %v1455
    %1966 = vmatprep.subr.bf16.mxu0 %v1460
    %1967 = vmatpush1.bf16.msra.mxu0 %v1459
    %1968 = vmatprep.subr.bf16.mxu0 %v1464
    %1969 = vmatpush1.bf16.msra.mxu0 %v1463
    %1970 = vmatprep.subr.bf16.mxu0 %v1468
    %1971 = vmatpush1.bf16.msra.mxu0 %v1467
    %1972 = vmatprep.subr.bf16.mxu0 %v1472
    %1973 = vmatpush1.bf16.msra.mxu0 %v1471
    %1974 = vmatprep.subr.bf16.mxu0 %v1476
    %1975 = vmatpush1.bf16.msra.mxu0 %v1475
    %1976 = vmatprep.subr.bf16.mxu0 %v1480
    %1977 = vmatpush1.bf16.msra.mxu0 %v1479
    %1978 = vmatprep.subr.bf16.mxu0 %v1484
    %1979 = vmatpush1.bf16.msra.mxu0 %v1483
    %1980 = vmatprep.subr.bf16.mxu0 %v1488
    %1981 = vmatpush1.bf16.msra.mxu0 %v1487
    %1982 = vmatprep.subr.bf16.mxu0 %v1492
    %1983 = vmatpush1.bf16.msra.mxu0 %v1491
    %1984 = vmatprep.subr.bf16.mxu0 %v1496
    %1985 = vmatpush1.bf16.msra.mxu0 %v1495
    %1986 = vmatprep.subr.bf16.mxu0 %v1500
    %1987 = vmatpush1.bf16.msra.mxu0 %v1499
    %1988 = vmatprep.subr.bf16.mxu0 %v1504
    %1989 = vmatpush1.bf16.msra.mxu0 %v1503
    %1990 = vmatprep.mubr.bf16.mxu0 %v1941
    %1991 = vmatmul.mubr.bf16.gmra.mrb[0].mxu0 %v1940
    %v1992 = vpop.f32.mrb[0].mxu0
    %v1993 = vadd.f32 0.0, %v1992
    %v1994 = vpop.f32.mrb[0].mxu0
    %v1995 = vadd.f32 0.0, %v1994
    %v1996 = vpop.f32.mrb[0].mxu0
    %v1997 = vpop.f32.mrb[0].mxu0
    %1998 = vdwg.mxu0
    %1999 = vmatprep.subr.bf16.mxu0 %v1446
    %2000 = vmatpush1.bf16.msra.mxu0 %v1445
    %2001 = vmatprep.subr.bf16.mxu0 %v1450
    %2002 = vmatpush1.bf16.msra.mxu0 %v1449
    %2003 = vmatprep.subr.bf16.mxu0 %v1454
    %2004 = vmatpush1.bf16.msra.mxu0 %v1453
    %2005 = vmatprep.subr.bf16.mxu0 %v1458
    %2006 = vmatpush1.bf16.msra.mxu0 %v1457
    %2007 = vmatprep.subr.bf16.mxu0 %v1462
    %2008 = vmatpush1.bf16.msra.mxu0 %v1461
    %2009 = vmatprep.subr.bf16.mxu0 %v1466
    %2010 = vmatpush1.bf16.msra.mxu0 %v1465
    %2011 = vmatprep.subr.bf16.mxu0 %v1470
    %2012 = vmatpush1.bf16.msra.mxu0 %v1469
    %2013 = vmatprep.subr.bf16.mxu0 %v1474
    %2014 = vmatpush1.bf16.msra.mxu0 %v1473
    %2015 = vmatprep.subr.bf16.mxu0 %v1478
    %2016 = vmatpush1.bf16.msra.mxu0 %v1477
    %2017 = vmatprep.subr.bf16.mxu0 %v1482
    %2018 = vmatpush1.bf16.msra.mxu0 %v1481
    %2019 = vmatprep.subr.bf16.mxu0 %v1486
    %2020 = vmatpush1.bf16.msra.mxu0 %v1485
    %2021 = vmatprep.subr.bf16.mxu0 %v1490
    %2022 = vmatpush1.bf16.msra.mxu0 %v1489
    %2023 = vmatprep.subr.bf16.mxu0 %v1494
    %2024 = vmatpush1.bf16.msra.mxu0 %v1493
    %2025 = vmatprep.subr.bf16.mxu0 %v1498
    %2026 = vmatpush1.bf16.msra.mxu0 %v1497
    %2027 = vmatprep.subr.bf16.mxu0 %v1502
    %2028 = vmatpush1.bf16.msra.mxu0 %v1501
    %2029 = vmatprep.subr.bf16.mxu0 %v1506
    %2030 = vmatpush1.bf16.msra.mxu0 %v1505
    %2031 = vmatprep.mubr.bf16.mxu0 %v1941
    %2032 = vmatmul.mubr.bf16.gmra.mrb[0].mxu0 %v1940
    %v2033 = vpop.f32.mrb[0].mxu0
    %v2034 = vadd.f32 0.0, %v2033
    %v2035 = vpop.f32.mrb[0].mxu0
    %v2036 = vadd.f32 0.0, %v2035
    %v2037 = vpop.f32.mrb[0].mxu0
    %v2038 = vpop.f32.mrb[0].mxu0
    %2039 = vdwg.mxu0
    %v2040 = vadd.f32 %v1954, %v1993
    %v2041 = vadd.f32 %v1955, %v1995
    %v2042 = vadd.f32 %v1956, %v2034
    %v2043 = vadd.f32 %v1957, %v2036
    %v2044 = vxor.u32 %v2040, 2147483648
    %v2045 = vmul.f32 %v2044, 1.442695
    %v2046 = vpow.pop %v2045
    %v2047 = vadd.f32 %v2046, 1.0
    %v2048 = vrcp.pop %v2047
    %v2049 = vmul.f32 1.0, %v2048
    %v2050 = vxor.u32 %v2041, 2147483648
    %v2051 = vmul.f32 %v2050, 1.442695
    %v2052 = vpow.pop %v2051
    %v2053 = vadd.f32 %v2052, 1.0
    %v2054 = vrcp.pop %v2053
    %v2055 = vmul.f32 1.0, %v2054
    %v2056 = vtanh.pop %v2042
    %v2057 = vxor.u32 %v2043, 2147483648
    %v2058 = vmul.f32 %v2057, 1.442695
    %v2059 = vpow.pop %v2058
    %v2060 = vadd.f32 %v2059, 1.0
    %v2061 = vrcp.pop %v2060
    %v2062 = vmul.f32 1.0, %v2061
    %v2063 = vmul.f32 %v2055, %v1936
    %v2064 = vmul.f32 %v2049, %v2056
    %v2065 = vadd.f32 %v2063, %v2064
    %v2066 = vtanh.pop %v2065
    %v2067 = vmul.f32 %v2062, %v2066
    %v2068 = vpack.c.bf16 %v2067, %v2067
    %v2069 = vmul.bf16 %v2068, %v1182
    %v2070 = vmul.bf16 %v2068, %v1183
    %v2075 = vrot.slane %v918, 2
    %v2076 = vrot.slane %v920, 2
    %v2077 = vrot.slane %v961, 2
    %v2078 = vrot.slane %v963, 2
    %v2083 = vrot.slane %v1053, 2
    %v2084 = vrot.slane %v1055, 2
    %v2085 = vrot.slane %v1096, 2
    %v2086 = vrot.slane %v1098, 2
    %v2091 = vsel %vm866, %v2075, %v2083
    %v2092 = vsel %vm866, %v2076, %v2084
    %v2093 = vsel %vm866, %v2077, %v2085
    %v2094 = vsel %vm866, %v2078, %v2086
    %2095 = vmatprep.subr.bf16.mxu0 %v1444
    %2096 = vmatpush1.bf16.msra.mxu0 %v1443
    %2097 = vmatprep.subr.bf16.mxu0 %v1448
    %2098 = vmatpush1.bf16.msra.mxu0 %v1447
    %2099 = vmatprep.subr.bf16.mxu0 %v1452
    %2100 = vmatpush1.bf16.msra.mxu0 %v1451
    %2101 = vmatprep.subr.bf16.mxu0 %v1456
    %2102 = vmatpush1.bf16.msra.mxu0 %v1455
    %2103 = vmatprep.subr.bf16.mxu0 %v1460
    %2104 = vmatpush1.bf16.msra.mxu0 %v1459
    %2105 = vmatprep.subr.bf16.mxu0 %v1464
    %2106 = vmatpush1.bf16.msra.mxu0 %v1463
    %2107 = vmatprep.subr.bf16.mxu0 %v1468
    %2108 = vmatpush1.bf16.msra.mxu0 %v1467
    %2109 = vmatprep.subr.bf16.mxu0 %v1472
    %2110 = vmatpush1.bf16.msra.mxu0 %v1471
    %2111 = vmatprep.subr.bf16.mxu0 %v1476
    %2112 = vmatpush1.bf16.msra.mxu0 %v1475
    %2113 = vmatprep.subr.bf16.mxu0 %v1480
    %2114 = vmatpush1.bf16.msra.mxu0 %v1479
    %2115 = vmatprep.subr.bf16.mxu0 %v1484
    %2116 = vmatpush1.bf16.msra.mxu0 %v1483
    %2117 = vmatprep.subr.bf16.mxu0 %v1488
    %2118 = vmatpush1.bf16.msra.mxu0 %v1487
    %2119 = vmatprep.subr.bf16.mxu0 %v1492
    %2120 = vmatpush1.bf16.msra.mxu0 %v1491
    %2121 = vmatprep.subr.bf16.mxu0 %v1496
    %2122 = vmatpush1.bf16.msra.mxu0 %v1495
    %2123 = vmatprep.subr.bf16.mxu0 %v1500
    %2124 = vmatpush1.bf16.msra.mxu0 %v1499
    %2125 = vmatprep.subr.bf16.mxu0 %v1504
    %2126 = vmatpush1.bf16.msra.mxu0 %v1503
    %2127 = vmatprep.mubr.bf16.mxu0 %v2070
    %2128 = vmatmul.mubr.bf16.gmra.mrb[0].mxu0 %v2069
    %v2129 = vpop.f32.mrb[0].mxu0
    %v2130 = vadd.f32 0.0, %v2129
    %v2131 = vpop.f32.mrb[0].mxu0
    %v2132 = vadd.f32 0.0, %v2131
    %v2133 = vpop.f32.mrb[0].mxu0
    %v2134 = vpop.f32.mrb[0].mxu0
    %2135 = vdwg.mxu0
    %2136 = vmatprep.subr.bf16.mxu0 %v1446
    %2137 = vmatpush1.bf16.msra.mxu0 %v1445
    %2138 = vmatprep.subr.bf16.mxu0 %v1450
    %2139 = vmatpush1.bf16.msra.mxu0 %v1449
    %2140 = vmatprep.subr.bf16.mxu0 %v1454
    %2141 = vmatpush1.bf16.msra.mxu0 %v1453
    %2142 = vmatprep.subr.bf16.mxu0 %v1458
    %2143 = vmatpush1.bf16.msra.mxu0 %v1457
    %2144 = vmatprep.subr.bf16.mxu0 %v1462
    %2145 = vmatpush1.bf16.msra.mxu0 %v1461
    %2146 = vmatprep.subr.bf16.mxu0 %v1466
    %2147 = vmatpush1.bf16.msra.mxu0 %v1465
    %2148 = vmatprep.subr.bf16.mxu0 %v1470
    %2149 = vmatpush1.bf16.msra.mxu0 %v1469
    %2150 = vmatprep.subr.bf16.mxu0 %v1474
    %2151 = vmatpush1.bf16.msra.mxu0 %v1473
    %2152 = vmatprep.subr.bf16.mxu0 %v1478
    %2153 = vmatpush1.bf16.msra.mxu0 %v1477
    %2154 = vmatprep.subr.bf16.mxu0 %v1482
    %2155 = vmatpush1.bf16.msra.mxu0 %v1481
    %2156 = vmatprep.subr.bf16.mxu0 %v1486
    %2157 = vmatpush1.bf16.msra.mxu0 %v1485
    %2158 = vmatprep.subr.bf16.mxu0 %v1490
    %2159 = vmatpush1.bf16.msra.mxu0 %v1489
    %2160 = vmatprep.subr.bf16.mxu0 %v1494
    %2161 = vmatpush1.bf16.msra.mxu0 %v1493
    %2162 = vmatprep.subr.bf16.mxu0 %v1498
    %2163 = vmatpush1.bf16.msra.mxu0 %v1497
    %2164 = vmatprep.subr.bf16.mxu0 %v1502
    %2165 = vmatpush1.bf16.msra.mxu0 %v1501
    %2166 = vmatprep.subr.bf16.mxu0 %v1506
    %2167 = vmatpush1.bf16.msra.mxu0 %v1505
    %2168 = vmatprep.mubr.bf16.mxu0 %v2070
    %2169 = vmatmul.mubr.bf16.gmra.mrb[0].mxu0 %v2069
    %v2170 = vpop.f32.mrb[0].mxu0
    %v2171 = vadd.f32 0.0, %v2170
    %v2172 = vpop.f32.mrb[0].mxu0
    %v2173 = vadd.f32 0.0, %v2172
    %v2174 = vpop.f32.mrb[0].mxu0
    %v2175 = vpop.f32.mrb[0].mxu0
    %2176 = vdwg.mxu0
    %v2177 = vadd.f32 %v2091, %v2130
    %v2178 = vadd.f32 %v2092, %v2132
    %v2179 = vadd.f32 %v2093, %v2171
    %v2180 = vadd.f32 %v2094, %v2173
    %v2181 = vxor.u32 %v2177, 2147483648
    %v2182 = vmul.f32 %v2181, 1.442695
    %v2183 = vpow.pop %v2182
    %v2184 = vadd.f32 %v2183, 1.0
    %v2185 = vrcp.pop %v2184
    %v2186 = vmul.f32 1.0, %v2185
    %v2187 = vxor.u32 %v2178, 2147483648
    %v2188 = vmul.f32 %v2187, 1.442695
    %v2189 = vpow.pop %v2188
    %v2190 = vadd.f32 %v2189, 1.0
    %v2191 = vrcp.pop %v2190
    %v2192 = vmul.f32 1.0, %v2191
    %v2193 = vtanh.pop %v2179
    %v2194 = vxor.u32 %v2180, 2147483648
    %v2195 = vmul.f32 %v2194, 1.442695
    %v2196 = vpow.pop %v2195
    %v2197 = vadd.f32 %v2196, 1.0
    %v2198 = vrcp.pop %v2197
    %v2199 = vmul.f32 1.0, %v2198
    %v2200 = vmul.f32 %v2192, %v2065
    %v2201 = vmul.f32 %v2186, %v2193
    %v2202 = vadd.f32 %v2200, %v2201
    %v2203 = vtanh.pop %v2202
    %v2204 = vmul.f32 %v2199, %v2203
    %v2205 = vpack.c.bf16 %v2204, %v2204
    %v2206 = vmul.bf16 %v2205, %v1182
    %v2207 = vmul.bf16 %v2205, %v1183
    %v2208 = vrot.slane %v918, 4
    %v2209 = vrot.slane %v920, 4
    %v2210 = vrot.slane %v961, 4
    %v2211 = vrot.slane %v963, 4
    %v2216 = vsel %vm866, %v2208, %v1053
    %v2217 = vsel %vm866, %v2209, %v1055
    %v2218 = vsel %vm866, %v2210, %v1096
    %v2219 = vsel %vm866, %v2211, %v1098
    %2220 = vmatprep.subr.bf16.mxu0 %v1444
    %2221 = vmatpush1.bf16.msra.mxu0 %v1443
    %2222 = vmatprep.subr.bf16.mxu0 %v1448
    %2223 = vmatpush1.bf16.msra.mxu0 %v1447
    %2224 = vmatprep.subr.bf16.mxu0 %v1452
    %2225 = vmatpush1.bf16.msra.mxu0 %v1451
    %2226 = vmatprep.subr.bf16.mxu0 %v1456
    %2227 = vmatpush1.bf16.msra.mxu0 %v1455
    %2228 = vmatprep.subr.bf16.mxu0 %v1460
    %2229 = vmatpush1.bf16.msra.mxu0 %v1459
    %2230 = vmatprep.subr.bf16.mxu0 %v1464
    %2231 = vmatpush1.bf16.msra.mxu0 %v1463
    %2232 = vmatprep.subr.bf16.mxu0 %v1468
    %2233 = vmatpush1.bf16.msra.mxu0 %v1467
    %2234 = vmatprep.subr.bf16.mxu0 %v1472
    %2235 = vmatpush1.bf16.msra.mxu0 %v1471
    %2236 = vmatprep.subr.bf16.mxu0 %v1476
    %2237 = vmatpush1.bf16.msra.mxu0 %v1475
    %2238 = vmatprep.subr.bf16.mxu0 %v1480
    %2239 = vmatpush1.bf16.msra.mxu0 %v1479
    %2240 = vmatprep.subr.bf16.mxu0 %v1484
    %2241 = vmatpush1.bf16.msra.mxu0 %v1483
    %2242 = vmatprep.subr.bf16.mxu0 %v1488
    %2243 = vmatpush1.bf16.msra.mxu0 %v1487
    %2244 = vmatprep.subr.bf16.mxu0 %v1492
    %2245 = vmatpush1.bf16.msra.mxu0 %v1491
    %2246 = vmatprep.subr.bf16.mxu0 %v1496
    %2247 = vmatpush1.bf16.msra.mxu0 %v1495
    %2248 = vmatprep.subr.bf16.mxu0 %v1500
    %2249 = vmatpush1.bf16.msra.mxu0 %v1499
    %2250 = vmatprep.subr.bf16.mxu0 %v1504
    %2251 = vmatpush1.bf16.msra.mxu0 %v1503
    %2252 = vmatprep.mubr.bf16.mxu0 %v2207
    %2253 = vmatmul.mubr.bf16.gmra.mrb[0].mxu0 %v2206
    %v2254 = vpop.f32.mrb[0].mxu0
    %v2255 = vadd.f32 0.0, %v2254
    %v2256 = vpop.f32.mrb[0].mxu0
    %v2257 = vadd.f32 0.0, %v2256
    %v2258 = vpop.f32.mrb[0].mxu0
    %v2259 = vpop.f32.mrb[0].mxu0
    %2260 = vdwg.mxu0
    %2261 = vmatprep.subr.bf16.mxu0 %v1446
    %2262 = vmatpush1.bf16.msra.mxu0 %v1445
    %2263 = vmatprep.subr.bf16.mxu0 %v1450
    %2264 = vmatpush1.bf16.msra.mxu0 %v1449
    %2265 = vmatprep.subr.bf16.mxu0 %v1454
    %2266 = vmatpush1.bf16.msra.mxu0 %v1453
    %2267 = vmatprep.subr.bf16.mxu0 %v1458
    %2268 = vmatpush1.bf16.msra.mxu0 %v1457
    %2269 = vmatprep.subr.bf16.mxu0 %v1462
    %2270 = vmatpush1.bf16.msra.mxu0 %v1461
    %2271 = vmatprep.subr.bf16.mxu0 %v1466
    %2272 = vmatpush1.bf16.msra.mxu0 %v1465
    %2273 = vmatprep.subr.bf16.mxu0 %v1470
    %2274 = vmatpush1.bf16.msra.mxu0 %v1469
    %2275 = vmatprep.subr.bf16.mxu0 %v1474
    %2276 = vmatpush1.bf16.msra.mxu0 %v1473
    %2277 = vmatprep.subr.bf16.mxu0 %v1478
    %2278 = vmatpush1.bf16.msra.mxu0 %v1477
    %2279 = vmatprep.subr.bf16.mxu0 %v1482
    %2280 = vmatpush1.bf16.msra.mxu0 %v1481
    %2281 = vmatprep.subr.bf16.mxu0 %v1486
    %2282 = vmatpush1.bf16.msra.mxu0 %v1485
    %2283 = vmatprep.subr.bf16.mxu0 %v1490
    %2284 = vmatpush1.bf16.msra.mxu0 %v1489
    %2285 = vmatprep.subr.bf16.mxu0 %v1494
    %2286 = vmatpush1.bf16.msra.mxu0 %v1493
    %2287 = vmatprep.subr.bf16.mxu0 %v1498
    %2288 = vmatpush1.bf16.msra.mxu0 %v1497
    %2289 = vmatprep.subr.bf16.mxu0 %v1502
    %2290 = vmatpush1.bf16.msra.mxu0 %v1501
    %2291 = vmatprep.subr.bf16.mxu0 %v1506
    %2292 = vmatpush1.bf16.msra.mxu0 %v1505
    %2293 = vmatprep.mubr.bf16.mxu0 %v2207
    %2294 = vmatmul.mubr.bf16.gmra.mrb[0].mxu0 %v2206
    %v2295 = vpop.f32.mrb[0].mxu0
    %v2296 = vadd.f32 0.0, %v2295
    %v2297 = vpop.f32.mrb[0].mxu0
    %v2298 = vadd.f32 0.0, %v2297
    %v2299 = vpop.f32.mrb[0].mxu0
    %v2300 = vpop.f32.mrb[0].mxu0
    %2301 = vdwg.mxu0
    %v2302 = vadd.f32 %v2216, %v2255
    %v2303 = vadd.f32 %v2217, %v2257
    %v2304 = vadd.f32 %v2218, %v2296
    %v2305 = vadd.f32 %v2219, %v2298
    %v2306 = vxor.u32 %v2302, 2147483648
    %v2307 = vmul.f32 %v2306, 1.442695
    %v2308 = vpow.pop %v2307
    %v2309 = vadd.f32 %v2308, 1.0
    %v2310 = vrcp.pop %v2309
    %v2311 = vmul.f32 1.0, %v2310
    %v2312 = vxor.u32 %v2303, 2147483648
    %v2313 = vmul.f32 %v2312, 1.442695
    %v2314 = vpow.pop %v2313
    %v2315 = vadd.f32 %v2314, 1.0
    %v2316 = vrcp.pop %v2315
    %v2317 = vmul.f32 1.0, %v2316
    %v2318 = vtanh.pop %v2304
    %v2319 = vxor.u32 %v2305, 2147483648
    %v2320 = vmul.f32 %v2319, 1.442695
    %v2321 = vpow.pop %v2320
    %v2322 = vadd.f32 %v2321, 1.0
    %v2323 = vrcp.pop %v2322
    %v2324 = vmul.f32 1.0, %v2323
    %v2325 = vmul.f32 %v2317, %v2202
    %v2326 = vmul.f32 %v2311, %v2318
    %v2327 = vadd.f32 %v2325, %v2326
    %v2328 = vtanh.pop %v2327
    %v2329 = vmul.f32 %v2324, %v2328
    %v2330 = vpack.c.bf16 %v2329, %v2329
    %v2331 = vmul.bf16 %v2330, %v1182
    %v2332 = vmul.bf16 %v2330, %v1183
    %v2333 = vrot.slane %v918, 6
    %v2334 = vrot.slane %v920, 6
    %v2335 = vrot.slane %v961, 6
    %v2336 = vrot.slane %v963, 6
    %v2341 = vrot.slane %v1053, 6
    %v2342 = vrot.slane %v1055, 6
    %v2343 = vrot.slane %v1096, 6
    %v2344 = vrot.slane %v1098, 6
    %v2349 = vsel %vm866, %v2333, %v2341
    %v2350 = vsel %vm866, %v2334, %v2342
    %v2351 = vsel %vm866, %v2335, %v2343
    %v2352 = vsel %vm866, %v2336, %v2344
    %2353 = vmatprep.subr.bf16.mxu0 %v1444
    %2354 = vmatpush1.bf16.msra.mxu0 %v1443
    %2355 = vmatprep.subr.bf16.mxu0 %v1448
    %2356 = vmatpush1.bf16.msra.mxu0 %v1447
    %2357 = vmatprep.subr.bf16.mxu0 %v1452
    %2358 = vmatpush1.bf16.msra.mxu0 %v1451
    %2359 = vmatprep.subr.bf16.mxu0 %v1456
    %2360 = vmatpush1.bf16.msra.mxu0 %v1455
    %2361 = vmatprep.subr.bf16.mxu0 %v1460
    %2362 = vmatpush1.bf16.msra.mxu0 %v1459
    %2363 = vmatprep.subr.bf16.mxu0 %v1464
    %2364 = vmatpush1.bf16.msra.mxu0 %v1463
    %2365 = vmatprep.subr.bf16.mxu0 %v1468
    %2366 = vmatpush1.bf16.msra.mxu0 %v1467
    %2367 = vmatprep.subr.bf16.mxu0 %v1472
    %2368 = vmatpush1.bf16.msra.mxu0 %v1471
    %2369 = vmatprep.subr.bf16.mxu0 %v1476
    %2370 = vmatpush1.bf16.msra.mxu0 %v1475
    %2371 = vmatprep.subr.bf16.mxu0 %v1480
    %2372 = vmatpush1.bf16.msra.mxu0 %v1479
    %2373 = vmatprep.subr.bf16.mxu0 %v1484
    %2374 = vmatpush1.bf16.msra.mxu0 %v1483
    %2375 = vmatprep.subr.bf16.mxu0 %v1488
    %2376 = vmatpush1.bf16.msra.mxu0 %v1487
    %2377 = vmatprep.subr.bf16.mxu0 %v1492
    %2378 = vmatpush1.bf16.msra.mxu0 %v1491
    %2379 = vmatprep.subr.bf16.mxu0 %v1496
    %2380 = vmatpush1.bf16.msra.mxu0 %v1495
    %2381 = vmatprep.subr.bf16.mxu0 %v1500
    %2382 = vmatpush1.bf16.msra.mxu0 %v1499
    %2383 = vmatprep.subr.bf16.mxu0 %v1504
    %2384 = vmatpush1.bf16.msra.mxu0 %v1503
    %2385 = vmatprep.mubr.bf16.mxu0 %v2332
    %2386 = vmatmul.mubr.bf16.gmra.mrb[0].mxu0 %v2331
    %v2387 = vpop.f32.mrb[0].mxu0
    %v2388 = vadd.f32 0.0, %v2387
    %v2389 = vpop.f32.mrb[0].mxu0
    %v2390 = vadd.f32 0.0, %v2389
    %v2391 = vpop.f32.mrb[0].mxu0
    %v2392 = vpop.f32.mrb[0].mxu0
    %2393 = vdwg.mxu0
    %2394 = vmatprep.subr.bf16.mxu0 %v1446
    %2395 = vmatpush1.bf16.msra.mxu0 %v1445
    %2396 = vmatprep.subr.bf16.mxu0 %v1450
    %2397 = vmatpush1.bf16.msra.mxu0 %v1449
    %2398 = vmatprep.subr.bf16.mxu0 %v1454
    %2399 = vmatpush1.bf16.msra.mxu0 %v1453
    %2400 = vmatprep.subr.bf16.mxu0 %v1458
    %2401 = vmatpush1.bf16.msra.mxu0 %v1457
    %2402 = vmatprep.subr.bf16.mxu0 %v1462
    %2403 = vmatpush1.bf16.msra.mxu0 %v1461
    %2404 = vmatprep.subr.bf16.mxu0 %v1466
    %2405 = vmatpush1.bf16.msra.mxu0 %v1465
    %2406 = vmatprep.subr.bf16.mxu0 %v1470
    %2407 = vmatpush1.bf16.msra.mxu0 %v1469
    %2408 = vmatprep.subr.bf16.mxu0 %v1474
    %2409 = vmatpush1.bf16.msra.mxu0 %v1473
    %2410 = vmatprep.subr.bf16.mxu0 %v1478
    %2411 = vmatpush1.bf16.msra.mxu0 %v1477
    %2412 = vmatprep.subr.bf16.mxu0 %v1482
    %2413 = vmatpush1.bf16.msra.mxu0 %v1481
    %2414 = vmatprep.subr.bf16.mxu0 %v1486
    %2415 = vmatpush1.bf16.msra.mxu0 %v1485
    %2416 = vmatprep.subr.bf16.mxu0 %v1490
    %2417 = vmatpush1.bf16.msra.mxu0 %v1489
    %2418 = vmatprep.subr.bf16.mxu0 %v1494
    %2419 = vmatpush1.bf16.msra.mxu0 %v1493
    %2420 = vmatprep.subr.bf16.mxu0 %v1498
    %2421 = vmatpush1.bf16.msra.mxu0 %v1497
    %2422 = vmatprep.subr.bf16.mxu0 %v1502
    %2423 = vmatpush1.bf16.msra.mxu0 %v1501
    %2424 = vmatprep.subr.bf16.mxu0 %v1506
    %2425 = vmatpush1.bf16.msra.mxu0 %v1505
    %2426 = vmatprep.mubr.bf16.mxu0 %v2332
    %2427 = vmatmul.mubr.bf16.gmra.mrb[0].mxu0 %v2331
    %v2428 = vpop.f32.mrb[0].mxu0
    %v2429 = vadd.f32 0.0, %v2428
    %v2430 = vpop.f32.mrb[0].mxu0
    %v2431 = vadd.f32 0.0, %v2430
    %v2432 = vpop.f32.mrb[0].mxu0
    %v2433 = vpop.f32.mrb[0].mxu0
    %2434 = vdwg.mxu0
    %v2435 = vadd.f32 %v2349, %v2388
    %v2436 = vadd.f32 %v2350, %v2390
    %v2437 = vadd.f32 %v2351, %v2429
    %v2438 = vadd.f32 %v2352, %v2431
    %v2439 = vxor.u32 %v2435, 2147483648
    %v2440 = vmul.f32 %v2439, 1.442695
    %v2441 = vpow.pop %v2440
    %v2442 = vadd.f32 %v2441, 1.0
    %v2443 = vrcp.pop %v2442
    %v2444 = vmul.f32 1.0, %v2443
    %v2445 = vxor.u32 %v2436, 2147483648
    %v2446 = vmul.f32 %v2445, 1.442695
    %v2447 = vpow.pop %v2446
    %v2448 = vadd.f32 %v2447, 1.0
    %v2449 = vrcp.pop %v2448
    %v2450 = vmul.f32 1.0, %v2449
    %v2451 = vtanh.pop %v2437
    %v2452 = vxor.u32 %v2438, 2147483648
    %v2453 = vmul.f32 %v2452, 1.442695
    %v2454 = vpow.pop %v2453
    %v2455 = vadd.f32 %v2454, 1.0
    %v2456 = vrcp.pop %v2455
    %v2457 = vmul.f32 1.0, %v2456
    %v2458 = vmul.f32 %v2450, %v2327
    %v2459 = vmul.f32 %v2444, %v2451
    %v2460 = vadd.f32 %v2458, %v2459
    %v2461 = vtanh.pop %v2460
    %v2462 = vmul.f32 %v2457, %v2461
    %v2464 = vrot.slane %v1680, 6
    %v2467 = vrot.slane %v1805, 4
    %v2470 = vrot.slane %v1938, 2
    %v2473 = vrot.slane %v2204, 6
    %v2476 = vrot.slane %v2329, 4
    %v2479 = vrot.slane %v2462, 2
    %v2481 = vsel %vm866, %v1223, %v2464
    %vm2482 = vcmask 1043456
    %v2483 = vsel %vm2482, %v2481, %v2467
    %vm2484 = vcmask 1045504
    %v2485 = vsel %vm2484, %v2483, %v2470
    %v2486 = vsel %vm866, %v2067, %v2473
    %v2487 = vsel %vm2482, %v2486, %v2476
    %v2488 = vsel %vm2484, %v2487, %v2479
    %v2489 = vpack.c.bf16 %v2488, %v2485
    %v2491 = vrot.slane %v2067, 4
    %v2494 = vrot.slane %v1223, 4
    %v2496 = vsel %vm866, %v2479, %v2329
    %v2497 = vsel %vm2482, %v2496, %v2473
    %v2498 = vsel %vm2484, %v2497, %v2491
    %v2499 = vsel %vm866, %v2470, %v1805
    %v2500 = vsel %vm2482, %v2499, %v2464
    %v2501 = vsel %vm2484, %v2500, %v2494
    %v2502 = vpack.c.bf16 %v2501, %v2498
    %s2503 = smul.u32 4, 16
    %s2504 = smul.u32 %s2503, 4
    %s2505 = sshll.u32 %s2504, 4
    %2506 = dma.done [#allocation9], %s2505
    %s2507 = sshll.u32 %s2504, 4
    %2508 = dma.done %s82, %s2507
    %s2509 = sshll.u32 %s2504, 4
    %2510 = dma.done %s117, %s2509
    %s2511 = sshll.u32 %s2504, 4
    %2512 = dma.done %s152, %s2511
    %s2513 = sshll.u32 %s2504, 4
    %2514 = dma.done %s187, %s2513
    %v2515 = vld [vmem:[#allocation2] sm:$0xff]
    %v2516 = vld [vmem:[#allocation2 + $0x8] sm:$0xff]
    %v2517 = vld [vmem:[#allocation2 + $0x10] sm:$0xff]
    %v2518 = vld [vmem:[#allocation2 + $0x18] sm:$0xff]
    %v2519 = vld [vmem:[#allocation2 + $0x20] sm:$0xff]
    %v2520 = vld [vmem:[#allocation2 + $0x28] sm:$0xff]
    %v2521 = vld [vmem:[#allocation2 + $0x30] sm:$0xff]
    %v2522 = vld [vmem:[#allocation2 + $0x38] sm:$0xff]
    %v2523 = vld [vmem:[#allocation2 + $0x40] sm:$0xff]
    %v2524 = vld [vmem:[#allocation2 + $0x48] sm:$0xff]
    %v2525 = vld [vmem:[#allocation2 + $0x50] sm:$0xff]
    %v2526 = vld [vmem:[#allocation2 + $0x58] sm:$0xff]
    %v2527 = vld [vmem:[#allocation2 + $0x60] sm:$0xff]
    %v2528 = vld [vmem:[#allocation2 + $0x68] sm:$0xff]
    %v2529 = vld [vmem:[#allocation2 + $0x70] sm:$0xff]
    %v2530 = vld [vmem:[#allocation2 + $0x78] sm:$0xff]
    %v2531 = vld [vmem:[#allocation2 + $0x80] sm:$0xff]
    %v2532 = vld [vmem:[#allocation2 + $0x88] sm:$0xff]
    %v2533 = vld [vmem:[#allocation2 + $0x90] sm:$0xff]
    %v2534 = vld [vmem:[#allocation2 + $0x98] sm:$0xff]
    %v2535 = vld [vmem:[#allocation2 + $0xa0] sm:$0xff]
    %v2536 = vld [vmem:[#allocation2 + $0xa8] sm:$0xff]
    %v2537 = vld [vmem:[#allocation2 + $0xb0] sm:$0xff]
    %v2538 = vld [vmem:[#allocation2 + $0xb8] sm:$0xff]
    %v2539 = vld [vmem:[#allocation2 + $0xc0] sm:$0xff]
    %v2540 = vld [vmem:[#allocation2 + $0xc8] sm:$0xff]
    %v2541 = vld [vmem:[#allocation2 + $0xd0] sm:$0xff]
    %v2542 = vld [vmem:[#allocation2 + $0xd8] sm:$0xff]
    %v2543 = vld [vmem:[#allocation2 + $0xe0] sm:$0xff]
    %v2544 = vld [vmem:[#allocation2 + $0xe8] sm:$0xff]
    %v2545 = vld [vmem:[#allocation2 + $0xf0] sm:$0xff]
    %v2546 = vld [vmem:[#allocation2 + $0xf8] sm:$0xff]
    %v2547 = vld [vmem:[#allocation3] sm:$0xff]
    %v2548 = vld [vmem:[#allocation3 + $0x8] sm:$0xff]
    %v2549 = vld [vmem:[#allocation3 + $0x10] sm:$0xff]
    %v2550 = vld [vmem:[#allocation3 + $0x18] sm:$0xff]
    %v2551 = vld [vmem:[#allocation3 + $0x20] sm:$0xff]
    %v2552 = vld [vmem:[#allocation3 + $0x28] sm:$0xff]
    %v2553 = vld [vmem:[#allocation3 + $0x30] sm:$0xff]
    %v2554 = vld [vmem:[#allocation3 + $0x38] sm:$0xff]
    %v2555 = vld [vmem:[#allocation3 + $0x40] sm:$0xff]
    %v2556 = vld [vmem:[#allocation3 + $0x48] sm:$0xff]
    %v2557 = vld [vmem:[#allocation3 + $0x50] sm:$0xff]
    %v2558 = vld [vmem:[#allocation3 + $0x58] sm:$0xff]
    %v2559 = vld [vmem:[#allocation3 + $0x60] sm:$0xff]
    %v2560 = vld [vmem:[#allocation3 + $0x68] sm:$0xff]
    %v2561 = vld [vmem:[#allocation3 + $0x70] sm:$0xff]
    %v2562 = vld [vmem:[#allocation3 + $0x78] sm:$0xff]
    %v2563 = vld [vmem:[#allocation3 + $0x80] sm:$0xff]
    %v2564 = vld [vmem:[#allocation3 + $0x88] sm:$0xff]
    %v2565 = vld [vmem:[#allocation3 + $0x90] sm:$0xff]
    %v2566 = vld [vmem:[#allocation3 + $0x98] sm:$0xff]
    %v2567 = vld [vmem:[#allocation3 + $0xa0] sm:$0xff]
    %v2568 = vld [vmem:[#allocation3 + $0xa8] sm:$0xff]
    %v2569 = vld [vmem:[#allocation3 + $0xb0] sm:$0xff]
    %v2570 = vld [vmem:[#allocation3 + $0xb8] sm:$0xff]
    %v2571 = vld [vmem:[#allocation3 + $0xc0] sm:$0xff]
    %v2572 = vld [vmem:[#allocation3 + $0xc8] sm:$0xff]
    %v2573 = vld [vmem:[#allocation3 + $0xd0] sm:$0xff]
    %v2574 = vld [vmem:[#allocation3 + $0xd8] sm:$0xff]
    %v2575 = vld [vmem:[#allocation3 + $0xe0] sm:$0xff]
    %v2576 = vld [vmem:[#allocation3 + $0xe8] sm:$0xff]
    %v2577 = vld [vmem:[#allocation3 + $0xf0] sm:$0xff]
    %v2578 = vld [vmem:[#allocation3 + $0xf8] sm:$0xff]
    %2579 = vmatprep.subr.bf16.mxu0 %v2548
    %2580 = vmatpush1.bf16.msra.mxu0 %v2547
    %2581 = vmatprep.subr.bf16.mxu0 %v2552
    %2582 = vmatpush1.bf16.msra.mxu0 %v2551
    %2583 = vmatprep.subr.bf16.mxu0 %v2556
    %2584 = vmatpush1.bf16.msra.mxu0 %v2555
    %2585 = vmatprep.subr.bf16.mxu0 %v2560
    %2586 = vmatpush1.bf16.msra.mxu0 %v2559
    %2587 = vmatprep.subr.bf16.mxu0 %v2564
    %2588 = vmatpush1.bf16.msra.mxu0 %v2563
    %2589 = vmatprep.subr.bf16.mxu0 %v2568
    %2590 = vmatpush1.bf16.msra.mxu0 %v2567
    %2591 = vmatprep.subr.bf16.mxu0 %v2572
    %2592 = vmatpush1.bf16.msra.mxu0 %v2571
    %2593 = vmatprep.subr.bf16.mxu0 %v2576
    %2594 = vmatpush1.bf16.msra.mxu0 %v2575
    %2595 = vmatprep.subr.bf16.mxu0 0
    %2596 = vmatpush1.bf16.msra.mxu0 0
    %2597 = vmatprep.subr.bf16.mxu0 0
    %2598 = vmatpush1.bf16.msra.mxu0 0
    %2599 = vmatprep.subr.bf16.mxu0 0
    %2600 = vmatpush1.bf16.msra.mxu0 0
    %2601 = vmatprep.subr.bf16.mxu0 0
    %2602 = vmatpush1.bf16.msra.mxu0 0
    %2603 = vmatprep.subr.bf16.mxu0 0
    %2604 = vmatpush1.bf16.msra.mxu0 0
    %2605 = vmatprep.subr.bf16.mxu0 0
    %2606 = vmatpush1.bf16.msra.mxu0 0
    %2607 = vmatprep.subr.bf16.mxu0 0
    %2608 = vmatpush1.bf16.msra.mxu0 0
    %2609 = vmatprep.subr.bf16.mxu0 0
    %2610 = vmatpush1.bf16.msra.mxu0 0
    %2611 = vmatprep.mubr.bf16.mxu0 0
    %2612 = vmatmul.mubr.bf16.gmra.mrb[0].mxu0 %v2502
    %v2613 = vpop.f32.mrb[0].mxu0
    %v2614 = vadd.f32 0.0, %v2613
    %v2615 = vpop.f32.mrb[0].mxu0
    %v2616 = vadd.f32 0.0, %v2615
    %v2617 = vpop.f32.mrb[0].mxu0
    %v2618 = vadd.f32 0.0, %v2617
    %v2619 = vpop.f32.mrb[0].mxu0
    %v2620 = vadd.f32 0.0, %v2619
    %2621 = vdwg.mxu0
    %2622 = vmatprep.subr.bf16.mxu0 %v2550
    %2623 = vmatpush1.bf16.msra.mxu0 %v2549
    %2624 = vmatprep.subr.bf16.mxu0 %v2554
    %2625 = vmatpush1.bf16.msra.mxu0 %v2553
    %2626 = vmatprep.subr.bf16.mxu0 %v2558
    %2627 = vmatpush1.bf16.msra.mxu0 %v2557
    %2628 = vmatprep.subr.bf16.mxu0 %v2562
    %2629 = vmatpush1.bf16.msra.mxu0 %v2561
    %2630 = vmatprep.subr.bf16.mxu0 %v2566
    %2631 = vmatpush1.bf16.msra.mxu0 %v2565
    %2632 = vmatprep.subr.bf16.mxu0 %v2570
    %2633 = vmatpush1.bf16.msra.mxu0 %v2569
    %2634 = vmatprep.subr.bf16.mxu0 %v2574
    %2635 = vmatpush1.bf16.msra.mxu0 %v2573
    %2636 = vmatprep.subr.bf16.mxu0 %v2578
    %2637 = vmatpush1.bf16.msra.mxu0 %v2577
    %2638 = vmatprep.subr.bf16.mxu0 0
    %2639 = vmatpush1.bf16.msra.mxu0 0
    %2640 = vmatprep.subr.bf16.mxu0 0
    %2641 = vmatpush1.bf16.msra.mxu0 0
    %2642 = vmatprep.subr.bf16.mxu0 0
    %2643 = vmatpush1.bf16.msra.mxu0 0
    %2644 = vmatprep.subr.bf16.mxu0 0
    %2645 = vmatpush1.bf16.msra.mxu0 0
    %2646 = vmatprep.subr.bf16.mxu0 0
    %2647 = vmatpush1.bf16.msra.mxu0 0
    %2648 = vmatprep.subr.bf16.mxu0 0
    %2649 = vmatpush1.bf16.msra.mxu0 0
    %2650 = vmatprep.subr.bf16.mxu0 0
    %2651 = vmatpush1.bf16.msra.mxu0 0
    %2652 = vmatprep.subr.bf16.mxu0 0
    %2653 = vmatpush1.bf16.msra.mxu0 0
    %2654 = vmatprep.mubr.bf16.mxu0 0
    %2655 = vmatmul.mubr.bf16.gmra.mrb[0].mxu0 %v2502
    %v2656 = vpop.f32.mrb[0].mxu0
    %v2657 = vadd.f32 0.0, %v2656
    %v2658 = vpop.f32.mrb[0].mxu0
    %v2659 = vadd.f32 0.0, %v2658
    %v2660 = vpop.f32.mrb[0].mxu0
    %v2661 = vadd.f32 0.0, %v2660
    %v2662 = vpop.f32.mrb[0].mxu0
    %v2663 = vadd.f32 0.0, %v2662
    %2664 = vdwg.mxu0
    %2665 = vmatprep.subr.bf16.mxu0 %v2516
    %2666 = vmatpush1.bf16.msra.mxu0 %v2515
    %2667 = vmatprep.subr.bf16.mxu0 %v2520
    %2668 = vmatpush1.bf16.msra.mxu0 %v2519
    %2669 = vmatprep.subr.bf16.mxu0 %v2524
    %2670 = vmatpush1.bf16.msra.mxu0 %v2523
    %2671 = vmatprep.subr.bf16.mxu0 %v2528
    %2672 = vmatpush1.bf16.msra.mxu0 %v2527
    %2673 = vmatprep.subr.bf16.mxu0 %v2532
    %2674 = vmatpush1.bf16.msra.mxu0 %v2531
    %2675 = vmatprep.subr.bf16.mxu0 %v2536
    %2676 = vmatpush1.bf16.msra.mxu0 %v2535
    %2677 = vmatprep.subr.bf16.mxu0 %v2540
    %2678 = vmatpush1.bf16.msra.mxu0 %v2539
    %2679 = vmatprep.subr.bf16.mxu0 %v2544
    %2680 = vmatpush1.bf16.msra.mxu0 %v2543
    %2681 = vmatprep.subr.bf16.mxu0 0
    %2682 = vmatpush1.bf16.msra.mxu0 0
    %2683 = vmatprep.subr.bf16.mxu0 0
    %2684 = vmatpush1.bf16.msra.mxu0 0
    %2685 = vmatprep.subr.bf16.mxu0 0
    %2686 = vmatpush1.bf16.msra.mxu0 0
    %2687 = vmatprep.subr.bf16.mxu0 0
    %2688 = vmatpush1.bf16.msra.mxu0 0
    %2689 = vmatprep.subr.bf16.mxu0 0
    %2690 = vmatpush1.bf16.msra.mxu0 0
    %2691 = vmatprep.subr.bf16.mxu0 0
    %2692 = vmatpush1.bf16.msra.mxu0 0
    %2693 = vmatprep.subr.bf16.mxu0 0
    %2694 = vmatpush1.bf16.msra.mxu0 0
    %2695 = vmatprep.subr.bf16.mxu0 0
    %2696 = vmatpush1.bf16.msra.mxu0 0
    %2697 = vmatprep.mubr.bf16.mxu0 0
    %2698 = vmatmul.mubr.bf16.gmra.mrb[0].mxu0 %v2489
    %v2699 = vpop.f32.mrb[0].mxu0
    %v2700 = vadd.f32 %v2614, %v2699
    %v2701 = vpop.f32.mrb[0].mxu0
    %v2702 = vadd.f32 %v2616, %v2701
    %v2703 = vpop.f32.mrb[0].mxu0
    %v2704 = vadd.f32 %v2618, %v2703
    %v2705 = vpop.f32.mrb[0].mxu0
    %v2706 = vadd.f32 %v2620, %v2705
    %2707 = vdwg.mxu0
    %2708 = vmatprep.subr.bf16.mxu0 %v2518
    %2709 = vmatpush1.bf16.msra.mxu0 %v2517
    %2710 = vmatprep.subr.bf16.mxu0 %v2522
    %2711 = vmatpush1.bf16.msra.mxu0 %v2521
    %2712 = vmatprep.subr.bf16.mxu0 %v2526
    %2713 = vmatpush1.bf16.msra.mxu0 %v2525
    %2714 = vmatprep.subr.bf16.mxu0 %v2530
    %2715 = vmatpush1.bf16.msra.mxu0 %v2529
    %2716 = vmatprep.subr.bf16.mxu0 %v2534
    %2717 = vmatpush1.bf16.msra.mxu0 %v2533
    %2718 = vmatprep.subr.bf16.mxu0 %v2538
    %2719 = vmatpush1.bf16.msra.mxu0 %v2537
    %2720 = vmatprep.subr.bf16.mxu0 %v2542
    %2721 = vmatpush1.bf16.msra.mxu0 %v2541
    %2722 = vmatprep.subr.bf16.mxu0 %v2546
    %2723 = vmatpush1.bf16.msra.mxu0 %v2545
    %2724 = vmatprep.subr.bf16.mxu0 0
    %2725 = vmatpush1.bf16.msra.mxu0 0
    %2726 = vmatprep.subr.bf16.mxu0 0
    %2727 = vmatpush1.bf16.msra.mxu0 0
    %2728 = vmatprep.subr.bf16.mxu0 0
    %2729 = vmatpush1.bf16.msra.mxu0 0
    %2730 = vmatprep.subr.bf16.mxu0 0
    %2731 = vmatpush1.bf16.msra.mxu0 0
    %2732 = vmatprep.subr.bf16.mxu0 0
    %2733 = vmatpush1.bf16.msra.mxu0 0
    %2734 = vmatprep.subr.bf16.mxu0 0
    %2735 = vmatpush1.bf16.msra.mxu0 0
    %2736 = vmatprep.subr.bf16.mxu0 0
    %2737 = vmatpush1.bf16.msra.mxu0 0
    %2738 = vmatprep.subr.bf16.mxu0 0
    %2739 = vmatpush1.bf16.msra.mxu0 0
    %2740 = vmatprep.mubr.bf16.mxu0 0
    %2741 = vmatmul.mubr.bf16.gmra.mrb[0].mxu0 %v2489
    %v2742 = vpop.f32.mrb[0].mxu0
    %v2743 = vadd.f32 %v2657, %v2742
    %v2744 = vpop.f32.mrb[0].mxu0
    %v2745 = vadd.f32 %v2659, %v2744
    %v2746 = vpop.f32.mrb[0].mxu0
    %v2747 = vadd.f32 %v2661, %v2746
    %v2748 = vpop.f32.mrb[0].mxu0
    %v2749 = vadd.f32 %v2663, %v2748
    %2750 = vdwg.mxu0
    %v2751 = vld [vmem:[%s6] sm:$0xf]
    %v2753 = vlaneseq
    %v2754 = vshrl.u32 %v2753, 7
    %v2755 = vsub.s32 0, %v2754
    %v2756 = vrot.slane %v2751, %v2755
    %v2757 = vlaneseq
    %v2758 = vshrl.u32 %v2757, 7
    %v2759 = vsub.s32 1, %v2758
    %v2760 = vrot.slane %v2751, %v2759
    %v2761 = vlaneseq
    %v2762 = vshrl.u32 %v2761, 7
    %v2763 = vsub.s32 2, %v2762
    %v2764 = vrot.slane %v2751, %v2763
    %v2765 = vlaneseq
    %v2766 = vshrl.u32 %v2765, 7
    %v2767 = vsub.s32 3, %v2766
    %v2768 = vrot.slane %v2751, %v2767
    %v2773 = vadd.f32 %v2700, %v2756
    %v2774 = vadd.f32 %v2702, %v2760
    %v2775 = vadd.f32 %v2743, %v2764
    %v2776 = vadd.f32 %v2745, %v2768
    %v2777 = vadd.f32 %v2704, %v2756
    %v2778 = vadd.f32 %v2706, %v2760
    %v2779 = vadd.f32 %v2747, %v2764
    %v2780 = vadd.f32 %v2749, %v2768
    %v2781 = vld [vmem:[#allocation4] sm:$0xff]
    %v2782 = vld [vmem:[#allocation4 + $0x8] sm:$0xff]
    %v2783 = vld [vmem:[#allocation4 + $0x10] sm:$0xff]
    %v2784 = vld [vmem:[#allocation4 + $0x18] sm:$0xff]
    %v2785 = vld [vmem:[#allocation4 + $0x20] sm:$0xff]
    %v2786 = vld [vmem:[#allocation4 + $0x28] sm:$0xff]
    %v2787 = vld [vmem:[#allocation4 + $0x30] sm:$0xff]
    %v2788 = vld [vmem:[#allocation4 + $0x38] sm:$0xff]
    %v2789 = vld [vmem:[#allocation4 + $0x40] sm:$0xff]
    %v2790 = vld [vmem:[#allocation4 + $0x48] sm:$0xff]
    %v2791 = vld [vmem:[#allocation4 + $0x50] sm:$0xff]
    %v2792 = vld [vmem:[#allocation4 + $0x58] sm:$0xff]
    %v2793 = vld [vmem:[#allocation4 + $0x60] sm:$0xff]
    %v2794 = vld [vmem:[#allocation4 + $0x68] sm:$0xff]
    %v2795 = vld [vmem:[#allocation4 + $0x70] sm:$0xff]
    %v2796 = vld [vmem:[#allocation4 + $0x78] sm:$0xff]
    %v2797 = vld [vmem:[#allocation4 + $0x80] sm:$0xff]
    %v2798 = vld [vmem:[#allocation4 + $0x88] sm:$0xff]
    %v2799 = vld [vmem:[#allocation4 + $0x90] sm:$0xff]
    %v2800 = vld [vmem:[#allocation4 + $0x98] sm:$0xff]
    %v2801 = vld [vmem:[#allocation4 + $0xa0] sm:$0xff]
    %v2802 = vld [vmem:[#allocation4 + $0xa8] sm:$0xff]
    %v2803 = vld [vmem:[#allocation4 + $0xb0] sm:$0xff]
    %v2804 = vld [vmem:[#allocation4 + $0xb8] sm:$0xff]
    %v2805 = vld [vmem:[#allocation4 + $0xc0] sm:$0xff]
    %v2806 = vld [vmem:[#allocation4 + $0xc8] sm:$0xff]
    %v2807 = vld [vmem:[#allocation4 + $0xd0] sm:$0xff]
    %v2808 = vld [vmem:[#allocation4 + $0xd8] sm:$0xff]
    %v2809 = vld [vmem:[#allocation4 + $0xe0] sm:$0xff]
    %v2810 = vld [vmem:[#allocation4 + $0xe8] sm:$0xff]
    %v2811 = vld [vmem:[#allocation4 + $0xf0] sm:$0xff]
    %v2812 = vld [vmem:[#allocation4 + $0xf8] sm:$0xff]
    %v2813 = vxor.u32 %v2773, 2147483648
    %v2814 = vmul.f32 %v2813, 1.442695
    %v2815 = vpow.pop %v2814
    %v2816 = vadd.f32 %v2815, 1.0
    %v2817 = vrcp.pop %v2816
    %v2818 = vmul.f32 1.0, %v2817
    %v2819 = vxor.u32 %v2774, 2147483648
    %v2820 = vmul.f32 %v2819, 1.442695
    %v2821 = vpow.pop %v2820
    %v2822 = vadd.f32 %v2821, 1.0
    %v2823 = vrcp.pop %v2822
    %v2824 = vmul.f32 1.0, %v2823
    %v2825 = vtanh.pop %v2775
    %v2826 = vxor.u32 %v2776, 2147483648
    %v2827 = vmul.f32 %v2826, 1.442695
    %v2828 = vpow.pop %v2827
    %v2829 = vadd.f32 %v2828, 1.0
    %v2830 = vrcp.pop %v2829
    %v2831 = vmul.f32 1.0, %v2830
    %v2832 = vmul.f32 %v2824, 0.0
    %v2833 = vmul.f32 %v2818, %v2825
    %v2834 = vadd.f32 %v2832, %v2833
    %v2835 = vtanh.pop %v2834
    %v2836 = vmul.f32 %v2831, %v2835
    %v2837 = vpack.c.bf16 %v2836, %v2836
    %2838 = vmatprep.subr.bf16.mxu0 %v2782
    %2839 = vmatpush1.bf16.msra.mxu0 %v2781
    %2840 = vmatprep.subr.bf16.mxu0 %v2786
    %2841 = vmatpush1.bf16.msra.mxu0 %v2785
    %2842 = vmatprep.subr.bf16.mxu0 %v2790
    %2843 = vmatpush1.bf16.msra.mxu0 %v2789
    %2844 = vmatprep.subr.bf16.mxu0 %v2794
    %2845 = vmatpush1.bf16.msra.mxu0 %v2793
    %2846 = vmatprep.subr.bf16.mxu0 %v2798
    %2847 = vmatpush1.bf16.msra.mxu0 %v2797
    %2848 = vmatprep.subr.bf16.mxu0 %v2802
    %2849 = vmatpush1.bf16.msra.mxu0 %v2801
    %2850 = vmatprep.subr.bf16.mxu0 %v2806
    %2851 = vmatpush1.bf16.msra.mxu0 %v2805
    %2852 = vmatprep.subr.bf16.mxu0 %v2810
    %2853 = vmatpush1.bf16.msra.mxu0 %v2809
    %2854 = vmatprep.subr.bf16.mxu0 0
    %2855 = vmatpush1.bf16.msra.mxu0 0
    %2856 = vmatprep.subr.bf16.mxu0 0
    %2857 = vmatpush1.bf16.msra.mxu0 0
    %2858 = vmatprep.subr.bf16.mxu0 0
    %2859 = vmatpush1.bf16.msra.mxu0 0
    %2860 = vmatprep.subr.bf16.mxu0 0
    %2861 = vmatpush1.bf16.msra.mxu0 0
    %2862 = vmatprep.subr.bf16.mxu0 0
    %2863 = vmatpush1.bf16.msra.mxu0 0
    %2864 = vmatprep.subr.bf16.mxu0 0
    %2865 = vmatpush1.bf16.msra.mxu0 0
    %2866 = vmatprep.subr.bf16.mxu0 0
    %2867 = vmatpush1.bf16.msra.mxu0 0
    %2868 = vmatprep.subr.bf16.mxu0 0
    %2869 = vmatpush1.bf16.msra.mxu0 0
    %2870 = vmatprep.mubr.bf16.mxu0 0
    %2871 = vmatmul.mubr.bf16.gmra.mrb[0].mxu0 %v2837
    %v2872 = vpop.f32.mrb[0].mxu0
    %v2873 = vadd.f32 0.0, %v2872
    %v2874 = vpop.f32.mrb[0].mxu0
    %v2875 = vadd.f32 0.0, %v2874
    %v2876 = vpop.f32.mrb[0].mxu0
    %v2877 = vpop.f32.mrb[0].mxu0
    %2878 = vdwg.mxu0
    %2879 = vmatprep.subr.bf16.mxu0 %v2784
    %2880 = vmatpush1.bf16.msra.mxu0 %v2783
    %2881 = vmatprep.subr.bf16.mxu0 %v2788
    %2882 = vmatpush1.bf16.msra.mxu0 %v2787
    %2883 = vmatprep.subr.bf16.mxu0 %v2792
    %2884 = vmatpush1.bf16.msra.mxu0 %v2791
    %2885 = vmatprep.subr.bf16.mxu0 %v2796
    %2886 = vmatpush1.bf16.msra.mxu0 %v2795
    %2887 = vmatprep.subr.bf16.mxu0 %v2800
    %2888 = vmatpush1.bf16.msra.mxu0 %v2799
    %2889 = vmatprep.subr.bf16.mxu0 %v2804
    %2890 = vmatpush1.bf16.msra.mxu0 %v2803
    %2891 = vmatprep.subr.bf16.mxu0 %v2808
    %2892 = vmatpush1.bf16.msra.mxu0 %v2807
    %2893 = vmatprep.subr.bf16.mxu0 %v2812
    %2894 = vmatpush1.bf16.msra.mxu0 %v2811
    %2895 = vmatprep.subr.bf16.mxu0 0
    %2896 = vmatpush1.bf16.msra.mxu0 0
    %2897 = vmatprep.subr.bf16.mxu0 0
    %2898 = vmatpush1.bf16.msra.mxu0 0
    %2899 = vmatprep.subr.bf16.mxu0 0
    %2900 = vmatpush1.bf16.msra.mxu0 0
    %2901 = vmatprep.subr.bf16.mxu0 0
    %2902 = vmatpush1.bf16.msra.mxu0 0
    %2903 = vmatprep.subr.bf16.mxu0 0
    %2904 = vmatpush1.bf16.msra.mxu0 0
    %2905 = vmatprep.subr.bf16.mxu0 0
    %2906 = vmatpush1.bf16.msra.mxu0 0
    %2907 = vmatprep.subr.bf16.mxu0 0
    %2908 = vmatpush1.bf16.msra.mxu0 0
    %2909 = vmatprep.subr.bf16.mxu0 0
    %2910 = vmatpush1.bf16.msra.mxu0 0
    %2911 = vmatprep.mubr.bf16.mxu0 0
    %2912 = vmatmul.mubr.bf16.gmra.mrb[0].mxu0 %v2837
    %v2913 = vpop.f32.mrb[0].mxu0
    %v2914 = vadd.f32 0.0, %v2913
    %v2915 = vpop.f32.mrb[0].mxu0
    %v2916 = vadd.f32 0.0, %v2915
    %v2917 = vpop.f32.mrb[0].mxu0
    %v2918 = vpop.f32.mrb[0].mxu0
    %2919 = vdwg.mxu0
    %v2924 = vrot.slane %v2873, 6
    %v2925 = vrot.slane %v2875, 6
    %v2926 = vrot.slane %v2914, 6
    %v2927 = vrot.slane %v2916, 6
    %v2932 = vadd.f32 %v2773, %v2924
    %v2933 = vadd.f32 %v2774, %v2925
    %v2934 = vadd.f32 %v2775, %v2926
    %v2935 = vadd.f32 %v2776, %v2927
    %v2936 = vxor.u32 %v2932, 2147483648
    %v2937 = vmul.f32 %v2936, 1.442695
    %v2938 = vpow.pop %v2937
    %v2939 = vadd.f32 %v2938, 1.0
    %v2940 = vrcp.pop %v2939
    %v2941 = vmul.f32 1.0, %v2940
    %v2942 = vxor.u32 %v2933, 2147483648
    %v2943 = vmul.f32 %v2942, 1.442695
    %v2944 = vpow.pop %v2943
    %v2945 = vadd.f32 %v2944, 1.0
    %v2946 = vrcp.pop %v2945
    %v2947 = vmul.f32 1.0, %v2946
    %v2948 = vtanh.pop %v2934
    %v2949 = vxor.u32 %v2935, 2147483648
    %v2950 = vmul.f32 %v2949, 1.442695
    %v2951 = vpow.pop %v2950
    %v2952 = vadd.f32 %v2951, 1.0
    %v2953 = vrcp.pop %v2952
    %v2954 = vmul.f32 1.0, %v2953
    %v2956 = vrot.slane %v2834, 6
    %v2958 = vmul.f32 %v2947, %v2956
    %v2959 = vmul.f32 %v2941, %v2948
    %v2960 = vadd.f32 %v2958, %v2959
    %v2961 = vtanh.pop %v2960
    %v2962 = vmul.f32 %v2954, %v2961
    %v2963 = vpack.c.bf16 %v2962, %v2962
    %v2965 = vrot.slane %v2963, 1
    %2967 = vmatprep.subr.bf16.mxu0 %v2782
    %2968 = vmatpush1.bf16.msra.mxu0 %v2781
    %2969 = vmatprep.subr.bf16.mxu0 %v2786
    %2970 = vmatpush1.bf16.msra.mxu0 %v2785
    %2971 = vmatprep.subr.bf16.mxu0 %v2790
    %2972 = vmatpush1.bf16.msra.mxu0 %v2789
    %2973 = vmatprep.subr.bf16.mxu0 %v2794
    %2974 = vmatpush1.bf16.msra.mxu0 %v2793
    %2975 = vmatprep.subr.bf16.mxu0 %v2798
    %2976 = vmatpush1.bf16.msra.mxu0 %v2797
    %2977 = vmatprep.subr.bf16.mxu0 %v2802
    %2978 = vmatpush1.bf16.msra.mxu0 %v2801
    %2979 = vmatprep.subr.bf16.mxu0 %v2806
    %2980 = vmatpush1.bf16.msra.mxu0 %v2805
    %2981 = vmatprep.subr.bf16.mxu0 %v2810
    %2982 = vmatpush1.bf16.msra.mxu0 %v2809
    %2983 = vmatprep.subr.bf16.mxu0 0
    %2984 = vmatpush1.bf16.msra.mxu0 0
    %2985 = vmatprep.subr.bf16.mxu0 0
    %2986 = vmatpush1.bf16.msra.mxu0 0
    %2987 = vmatprep.subr.bf16.mxu0 0
    %2988 = vmatpush1.bf16.msra.mxu0 0
    %2989 = vmatprep.subr.bf16.mxu0 0
    %2990 = vmatpush1.bf16.msra.mxu0 0
    %2991 = vmatprep.subr.bf16.mxu0 0
    %2992 = vmatpush1.bf16.msra.mxu0 0
    %2993 = vmatprep.subr.bf16.mxu0 0
    %2994 = vmatpush1.bf16.msra.mxu0 0
    %2995 = vmatprep.subr.bf16.mxu0 0
    %2996 = vmatpush1.bf16.msra.mxu0 0
    %2997 = vmatprep.subr.bf16.mxu0 0
    %2998 = vmatpush1.bf16.msra.mxu0 0
    %2999 = vmatprep.mubr.bf16.mxu0 0
    %3000 = vmatmul.mubr.bf16.gmra.mrb[0].mxu0 %v2965
    %v3001 = vpop.f32.mrb[0].mxu0
    %v3002 = vadd.f32 0.0, %v3001
    %v3003 = vpop.f32.mrb[0].mxu0
    %v3004 = vadd.f32 0.0, %v3003
    %v3005 = vpop.f32.mrb[0].mxu0
    %v3006 = vpop.f32.mrb[0].mxu0
    %3007 = vdwg.mxu0
    %3008 = vmatprep.subr.bf16.mxu0 %v2784
    %3009 = vmatpush1.bf16.msra.mxu0 %v2783
    %3010 = vmatprep.subr.bf16.mxu0 %v2788
    %3011 = vmatpush1.bf16.msra.mxu0 %v2787
    %3012 = vmatprep.subr.bf16.mxu0 %v2792
    %3013 = vmatpush1.bf16.msra.mxu0 %v2791
    %3014 = vmatprep.subr.bf16.mxu0 %v2796
    %3015 = vmatpush1.bf16.msra.mxu0 %v2795
    %3016 = vmatprep.subr.bf16.mxu0 %v2800
    %3017 = vmatpush1.bf16.msra.mxu0 %v2799
    %3018 = vmatprep.subr.bf16.mxu0 %v2804
    %3019 = vmatpush1.bf16.msra.mxu0 %v2803
    %3020 = vmatprep.subr.bf16.mxu0 %v2808
    %3021 = vmatpush1.bf16.msra.mxu0 %v2807
    %3022 = vmatprep.subr.bf16.mxu0 %v2812
    %3023 = vmatpush1.bf16.msra.mxu0 %v2811
    %3024 = vmatprep.subr.bf16.mxu0 0
    %3025 = vmatpush1.bf16.msra.mxu0 0
    %3026 = vmatprep.subr.bf16.mxu0 0
    %3027 = vmatpush1.bf16.msra.mxu0 0
    %3028 = vmatprep.subr.bf16.mxu0 0
    %3029 = vmatpush1.bf16.msra.mxu0 0
    %3030 = vmatprep.subr.bf16.mxu0 0
    %3031 = vmatpush1.bf16.msra.mxu0 0
    %3032 = vmatprep.subr.bf16.mxu0 0
    %3033 = vmatpush1.bf16.msra.mxu0 0
    %3034 = vmatprep.subr.bf16.mxu0 0
    %3035 = vmatpush1.bf16.msra.mxu0 0
    %3036 = vmatprep.subr.bf16.mxu0 0
    %3037 = vmatpush1.bf16.msra.mxu0 0
    %3038 = vmatprep.subr.bf16.mxu0 0
    %3039 = vmatpush1.bf16.msra.mxu0 0
    %3040 = vmatprep.mubr.bf16.mxu0 0
    %3041 = vmatmul.mubr.bf16.gmra.mrb[0].mxu0 %v2965
    %v3042 = vpop.f32.mrb[0].mxu0
    %v3043 = vadd.f32 0.0, %v3042
    %v3044 = vpop.f32.mrb[0].mxu0
    %v3045 = vadd.f32 0.0, %v3044
    %v3046 = vpop.f32.mrb[0].mxu0
    %v3047 = vpop.f32.mrb[0].mxu0
    %3048 = vdwg.mxu0
    %v3053 = vrot.slane %v3002, 4
    %v3054 = vrot.slane %v3004, 4
    %v3055 = vrot.slane %v3043, 4
    %v3056 = vrot.slane %v3045, 4
    %v3061 = vadd.f32 %v2773, %v3053
    %v3062 = vadd.f32 %v2774, %v3054
    %v3063 = vadd.f32 %v2775, %v3055
    %v3064 = vadd.f32 %v2776, %v3056
    %v3065 = vxor.u32 %v3061, 2147483648
    %v3066 = vmul.f32 %v3065, 1.442695
    %v3067 = vpow.pop %v3066
    %v3068 = vadd.f32 %v3067, 1.0
    %v3069 = vrcp.pop %v3068
    %v3070 = vmul.f32 1.0, %v3069
    %v3071 = vxor.u32 %v3062, 2147483648
    %v3072 = vmul.f32 %v3071, 1.442695
    %v3073 = vpow.pop %v3072
    %v3074 = vadd.f32 %v3073, 1.0
    %v3075 = vrcp.pop %v3074
    %v3076 = vmul.f32 1.0, %v3075
    %v3077 = vtanh.pop %v3063
    %v3078 = vxor.u32 %v3064, 2147483648
    %v3079 = vmul.f32 %v3078, 1.442695
    %v3080 = vpow.pop %v3079
    %v3081 = vadd.f32 %v3080, 1.0
    %v3082 = vrcp.pop %v3081
    %v3083 = vmul.f32 1.0, %v3082
    %v3085 = vrot.slane %v2960, 6
    %v3087 = vmul.f32 %v3076, %v3085
    %v3088 = vmul.f32 %v3070, %v3077
    %v3089 = vadd.f32 %v3087, %v3088
    %v3090 = vtanh.pop %v3089
    %v3091 = vmul.f32 %v3083, %v3090
    %v3092 = vpack.c.bf16 %v3091, %v3091
    %v3094 = vrot.slane %v3092, 2
    %3096 = vmatprep.subr.bf16.mxu0 %v2782
    %3097 = vmatpush1.bf16.msra.mxu0 %v2781
    %3098 = vmatprep.subr.bf16.mxu0 %v2786
    %3099 = vmatpush1.bf16.msra.mxu0 %v2785
    %3100 = vmatprep.subr.bf16.mxu0 %v2790
    %3101 = vmatpush1.bf16.msra.mxu0 %v2789
    %3102 = vmatprep.subr.bf16.mxu0 %v2794
    %3103 = vmatpush1.bf16.msra.mxu0 %v2793
    %3104 = vmatprep.subr.bf16.mxu0 %v2798
    %3105 = vmatpush1.bf16.msra.mxu0 %v2797
    %3106 = vmatprep.subr.bf16.mxu0 %v2802
    %3107 = vmatpush1.bf16.msra.mxu0 %v2801
    %3108 = vmatprep.subr.bf16.mxu0 %v2806
    %3109 = vmatpush1.bf16.msra.mxu0 %v2805
    %3110 = vmatprep.subr.bf16.mxu0 %v2810
    %3111 = vmatpush1.bf16.msra.mxu0 %v2809
    %3112 = vmatprep.subr.bf16.mxu0 0
    %3113 = vmatpush1.bf16.msra.mxu0 0
    %3114 = vmatprep.subr.bf16.mxu0 0
    %3115 = vmatpush1.bf16.msra.mxu0 0
    %3116 = vmatprep.subr.bf16.mxu0 0
    %3117 = vmatpush1.bf16.msra.mxu0 0
    %3118 = vmatprep.subr.bf16.mxu0 0
    %3119 = vmatpush1.bf16.msra.mxu0 0
    %3120 = vmatprep.subr.bf16.mxu0 0
    %3121 = vmatpush1.bf16.msra.mxu0 0
    %3122 = vmatprep.subr.bf16.mxu0 0
    %3123 = vmatpush1.bf16.msra.mxu0 0
    %3124 = vmatprep.subr.bf16.mxu0 0
    %3125 = vmatpush1.bf16.msra.mxu0 0
    %3126 = vmatprep.subr.bf16.mxu0 0
    %3127 = vmatpush1.bf16.msra.mxu0 0
    %3128 = vmatprep.mubr.bf16.mxu0 0
    %3129 = vmatmul.mubr.bf16.gmra.mrb[0].mxu0 %v3094
    %v3130 = vpop.f32.mrb[0].mxu0
    %v3131 = vadd.f32 0.0, %v3130
    %v3132 = vpop.f32.mrb[0].mxu0
    %v3133 = vadd.f32 0.0, %v3132
    %v3134 = vpop.f32.mrb[0].mxu0
    %v3135 = vpop.f32.mrb[0].mxu0
    %3136 = vdwg.mxu0
    %3137 = vmatprep.subr.bf16.mxu0 %v2784
    %3138 = vmatpush1.bf16.msra.mxu0 %v2783
    %3139 = vmatprep.subr.bf16.mxu0 %v2788
    %3140 = vmatpush1.bf16.msra.mxu0 %v2787
    %3141 = vmatprep.subr.bf16.mxu0 %v2792
    %3142 = vmatpush1.bf16.msra.mxu0 %v2791
    %3143 = vmatprep.subr.bf16.mxu0 %v2796
    %3144 = vmatpush1.bf16.msra.mxu0 %v2795
    %3145 = vmatprep.subr.bf16.mxu0 %v2800
    %3146 = vmatpush1.bf16.msra.mxu0 %v2799
    %3147 = vmatprep.subr.bf16.mxu0 %v2804
    %3148 = vmatpush1.bf16.msra.mxu0 %v2803
    %3149 = vmatprep.subr.bf16.mxu0 %v2808
    %3150 = vmatpush1.bf16.msra.mxu0 %v2807
    %3151 = vmatprep.subr.bf16.mxu0 %v2812
    %3152 = vmatpush1.bf16.msra.mxu0 %v2811
    %3153 = vmatprep.subr.bf16.mxu0 0
    %3154 = vmatpush1.bf16.msra.mxu0 0
    %3155 = vmatprep.subr.bf16.mxu0 0
    %3156 = vmatpush1.bf16.msra.mxu0 0
    %3157 = vmatprep.subr.bf16.mxu0 0
    %3158 = vmatpush1.bf16.msra.mxu0 0
    %3159 = vmatprep.subr.bf16.mxu0 0
    %3160 = vmatpush1.bf16.msra.mxu0 0
    %3161 = vmatprep.subr.bf16.mxu0 0
    %3162 = vmatpush1.bf16.msra.mxu0 0
    %3163 = vmatprep.subr.bf16.mxu0 0
    %3164 = vmatpush1.bf16.msra.mxu0 0
    %3165 = vmatprep.subr.bf16.mxu0 0
    %3166 = vmatpush1.bf16.msra.mxu0 0
    %3167 = vmatprep.subr.bf16.mxu0 0
    %3168 = vmatpush1.bf16.msra.mxu0 0
    %3169 = vmatprep.mubr.bf16.mxu0 0
    %3170 = vmatmul.mubr.bf16.gmra.mrb[0].mxu0 %v3094
    %v3171 = vpop.f32.mrb[0].mxu0
    %v3172 = vadd.f32 0.0, %v3171
    %v3173 = vpop.f32.mrb[0].mxu0
    %v3174 = vadd.f32 0.0, %v3173
    %v3175 = vpop.f32.mrb[0].mxu0
    %v3176 = vpop.f32.mrb[0].mxu0
    %3177 = vdwg.mxu0
    %v3182 = vrot.slane %v3131, 2
    %v3183 = vrot.slane %v3133, 2
    %v3184 = vrot.slane %v3172, 2
    %v3185 = vrot.slane %v3174, 2
    %v3190 = vadd.f32 %v2773, %v3182
    %v3191 = vadd.f32 %v2774, %v3183
    %v3192 = vadd.f32 %v2775, %v3184
    %v3193 = vadd.f32 %v2776, %v3185
    %v3194 = vxor.u32 %v3190, 2147483648
    %v3195 = vmul.f32 %v3194, 1.442695
    %v3196 = vpow.pop %v3195
    %v3197 = vadd.f32 %v3196, 1.0
    %v3198 = vrcp.pop %v3197
    %v3199 = vmul.f32 1.0, %v3198
    %v3200 = vxor.u32 %v3191, 2147483648
    %v3201 = vmul.f32 %v3200, 1.442695
    %v3202 = vpow.pop %v3201
    %v3203 = vadd.f32 %v3202, 1.0
    %v3204 = vrcp.pop %v3203
    %v3205 = vmul.f32 1.0, %v3204
    %v3206 = vtanh.pop %v3192
    %v3207 = vxor.u32 %v3193, 2147483648
    %v3208 = vmul.f32 %v3207, 1.442695
    %v3209 = vpow.pop %v3208
    %v3210 = vadd.f32 %v3209, 1.0
    %v3211 = vrcp.pop %v3210
    %v3212 = vmul.f32 1.0, %v3211
    %v3214 = vrot.slane %v3089, 6
    %v3216 = vmul.f32 %v3205, %v3214
    %v3217 = vmul.f32 %v3199, %v3206
    %v3218 = vadd.f32 %v3216, %v3217
    %v3219 = vtanh.pop %v3218
    %v3220 = vmul.f32 %v3212, %v3219
    %v3221 = vpack.c.bf16 %v3220, %v3220
    %v3223 = vrot.slane %v3221, 3
    %3225 = vmatprep.subr.bf16.mxu0 %v2782
    %3226 = vmatpush1.bf16.msra.mxu0 %v2781
    %3227 = vmatprep.subr.bf16.mxu0 %v2786
    %3228 = vmatpush1.bf16.msra.mxu0 %v2785
    %3229 = vmatprep.subr.bf16.mxu0 %v2790
    %3230 = vmatpush1.bf16.msra.mxu0 %v2789
    %3231 = vmatprep.subr.bf16.mxu0 %v2794
    %3232 = vmatpush1.bf16.msra.mxu0 %v2793
    %3233 = vmatprep.subr.bf16.mxu0 %v2798
    %3234 = vmatpush1.bf16.msra.mxu0 %v2797
    %3235 = vmatprep.subr.bf16.mxu0 %v2802
    %3236 = vmatpush1.bf16.msra.mxu0 %v2801
    %3237 = vmatprep.subr.bf16.mxu0 %v2806
    %3238 = vmatpush1.bf16.msra.mxu0 %v2805
    %3239 = vmatprep.subr.bf16.mxu0 %v2810
    %3240 = vmatpush1.bf16.msra.mxu0 %v2809
    %3241 = vmatprep.subr.bf16.mxu0 0
    %3242 = vmatpush1.bf16.msra.mxu0 0
    %3243 = vmatprep.subr.bf16.mxu0 0
    %3244 = vmatpush1.bf16.msra.mxu0 0
    %3245 = vmatprep.subr.bf16.mxu0 0
    %3246 = vmatpush1.bf16.msra.mxu0 0
    %3247 = vmatprep.subr.bf16.mxu0 0
    %3248 = vmatpush1.bf16.msra.mxu0 0
    %3249 = vmatprep.subr.bf16.mxu0 0
    %3250 = vmatpush1.bf16.msra.mxu0 0
    %3251 = vmatprep.subr.bf16.mxu0 0
    %3252 = vmatpush1.bf16.msra.mxu0 0
    %3253 = vmatprep.subr.bf16.mxu0 0
    %3254 = vmatpush1.bf16.msra.mxu0 0
    %3255 = vmatprep.subr.bf16.mxu0 0
    %3256 = vmatpush1.bf16.msra.mxu0 0
    %3257 = vmatprep.mubr.bf16.mxu0 0
    %3258 = vmatmul.mubr.bf16.gmra.mrb[0].mxu0 %v3223
    %v3259 = vpop.f32.mrb[0].mxu0
    %v3260 = vadd.f32 0.0, %v3259
    %v3261 = vpop.f32.mrb[0].mxu0
    %v3262 = vadd.f32 0.0, %v3261
    %v3263 = vpop.f32.mrb[0].mxu0
    %v3264 = vpop.f32.mrb[0].mxu0
    %3265 = vdwg.mxu0
    %3266 = vmatprep.subr.bf16.mxu0 %v2784
    %3267 = vmatpush1.bf16.msra.mxu0 %v2783
    %3268 = vmatprep.subr.bf16.mxu0 %v2788
    %3269 = vmatpush1.bf16.msra.mxu0 %v2787
    %3270 = vmatprep.subr.bf16.mxu0 %v2792
    %3271 = vmatpush1.bf16.msra.mxu0 %v2791
    %3272 = vmatprep.subr.bf16.mxu0 %v2796
    %3273 = vmatpush1.bf16.msra.mxu0 %v2795
    %3274 = vmatprep.subr.bf16.mxu0 %v2800
    %3275 = vmatpush1.bf16.msra.mxu0 %v2799
    %3276 = vmatprep.subr.bf16.mxu0 %v2804
    %3277 = vmatpush1.bf16.msra.mxu0 %v2803
    %3278 = vmatprep.subr.bf16.mxu0 %v2808
    %3279 = vmatpush1.bf16.msra.mxu0 %v2807
    %3280 = vmatprep.subr.bf16.mxu0 %v2812
    %3281 = vmatpush1.bf16.msra.mxu0 %v2811
    %3282 = vmatprep.subr.bf16.mxu0 0
    %3283 = vmatpush1.bf16.msra.mxu0 0
    %3284 = vmatprep.subr.bf16.mxu0 0
    %3285 = vmatpush1.bf16.msra.mxu0 0
    %3286 = vmatprep.subr.bf16.mxu0 0
    %3287 = vmatpush1.bf16.msra.mxu0 0
    %3288 = vmatprep.subr.bf16.mxu0 0
    %3289 = vmatpush1.bf16.msra.mxu0 0
    %3290 = vmatprep.subr.bf16.mxu0 0
    %3291 = vmatpush1.bf16.msra.mxu0 0
    %3292 = vmatprep.subr.bf16.mxu0 0
    %3293 = vmatpush1.bf16.msra.mxu0 0
    %3294 = vmatprep.subr.bf16.mxu0 0
    %3295 = vmatpush1.bf16.msra.mxu0 0
    %3296 = vmatprep.subr.bf16.mxu0 0
    %3297 = vmatpush1.bf16.msra.mxu0 0
    %3298 = vmatprep.mubr.bf16.mxu0 0
    %3299 = vmatmul.mubr.bf16.gmra.mrb[0].mxu0 %v3223
    %v3300 = vpop.f32.mrb[0].mxu0
    %v3301 = vadd.f32 0.0, %v3300
    %v3302 = vpop.f32.mrb[0].mxu0
    %v3303 = vadd.f32 0.0, %v3302
    %v3304 = vpop.f32.mrb[0].mxu0
    %v3305 = vpop.f32.mrb[0].mxu0
    %3306 = vdwg.mxu0
    %v3307 = vadd.f32 %v2777, %v3260
    %v3308 = vadd.f32 %v2778, %v3262
    %v3309 = vadd.f32 %v2779, %v3301
    %v3310 = vadd.f32 %v2780, %v3303
    %v3311 = vxor.u32 %v3307, 2147483648
    %v3312 = vmul.f32 %v3311, 1.442695
    %v3313 = vpow.pop %v3312
    %v3314 = vadd.f32 %v3313, 1.0
    %v3315 = vrcp.pop %v3314
    %v3316 = vmul.f32 1.0, %v3315
    %v3317 = vxor.u32 %v3308, 2147483648
    %v3318 = vmul.f32 %v3317, 1.442695
    %v3319 = vpow.pop %v3318
    %v3320 = vadd.f32 %v3319, 1.0
    %v3321 = vrcp.pop %v3320
    %v3322 = vmul.f32 1.0, %v3321
    %v3323 = vtanh.pop %v3309
    %v3324 = vxor.u32 %v3310, 2147483648
    %v3325 = vmul.f32 %v3324, 1.442695
    %v3326 = vpow.pop %v3325
    %v3327 = vadd.f32 %v3326, 1.0
    %v3328 = vrcp.pop %v3327
    %v3329 = vmul.f32 1.0, %v3328
    %v3331 = vrot.slane %v3218, 6
    %v3333 = vmul.f32 %v3322, %v3331
    %v3334 = vmul.f32 %v3316, %v3323
    %v3335 = vadd.f32 %v3333, %v3334
    %v3336 = vtanh.pop %v3335
    %v3337 = vmul.f32 %v3329, %v3336
    %v3338 = vpack.c.bf16 %v3337, %v3337
    %3339 = vmatprep.subr.bf16.mxu0 %v2782
    %3340 = vmatpush1.bf16.msra.mxu0 %v2781
    %3341 = vmatprep.subr.bf16.mxu0 %v2786
    %3342 = vmatpush1.bf16.msra.mxu0 %v2785
    %3343 = vmatprep.subr.bf16.mxu0 %v2790
    %3344 = vmatpush1.bf16.msra.mxu0 %v2789
    %3345 = vmatprep.subr.bf16.mxu0 %v2794
    %3346 = vmatpush1.bf16.msra.mxu0 %v2793
    %3347 = vmatprep.subr.bf16.mxu0 %v2798
    %3348 = vmatpush1.bf16.msra.mxu0 %v2797
    %3349 = vmatprep.subr.bf16.mxu0 %v2802
    %3350 = vmatpush1.bf16.msra.mxu0 %v2801
    %3351 = vmatprep.subr.bf16.mxu0 %v2806
    %3352 = vmatpush1.bf16.msra.mxu0 %v2805
    %3353 = vmatprep.subr.bf16.mxu0 %v2810
    %3354 = vmatpush1.bf16.msra.mxu0 %v2809
    %3355 = vmatprep.subr.bf16.mxu0 0
    %3356 = vmatpush1.bf16.msra.mxu0 0
    %3357 = vmatprep.subr.bf16.mxu0 0
    %3358 = vmatpush1.bf16.msra.mxu0 0
    %3359 = vmatprep.subr.bf16.mxu0 0
    %3360 = vmatpush1.bf16.msra.mxu0 0
    %3361 = vmatprep.subr.bf16.mxu0 0
    %3362 = vmatpush1.bf16.msra.mxu0 0
    %3363 = vmatprep.subr.bf16.mxu0 0
    %3364 = vmatpush1.bf16.msra.mxu0 0
    %3365 = vmatprep.subr.bf16.mxu0 0
    %3366 = vmatpush1.bf16.msra.mxu0 0
    %3367 = vmatprep.subr.bf16.mxu0 0
    %3368 = vmatpush1.bf16.msra.mxu0 0
    %3369 = vmatprep.subr.bf16.mxu0 0
    %3370 = vmatpush1.bf16.msra.mxu0 0
    %3371 = vmatprep.mubr.bf16.mxu0 0
    %3372 = vmatmul.mubr.bf16.gmra.mrb[0].mxu0 %v3338
    %v3373 = vpop.f32.mrb[0].mxu0
    %v3374 = vadd.f32 0.0, %v3373
    %v3375 = vpop.f32.mrb[0].mxu0
    %v3376 = vadd.f32 0.0, %v3375
    %v3377 = vpop.f32.mrb[0].mxu0
    %v3378 = vpop.f32.mrb[0].mxu0
    %3379 = vdwg.mxu0
    %3380 = vmatprep.subr.bf16.mxu0 %v2784
    %3381 = vmatpush1.bf16.msra.mxu0 %v2783
    %3382 = vmatprep.subr.bf16.mxu0 %v2788
    %3383 = vmatpush1.bf16.msra.mxu0 %v2787
    %3384 = vmatprep.subr.bf16.mxu0 %v2792
    %3385 = vmatpush1.bf16.msra.mxu0 %v2791
    %3386 = vmatprep.subr.bf16.mxu0 %v2796
    %3387 = vmatpush1.bf16.msra.mxu0 %v2795
    %3388 = vmatprep.subr.bf16.mxu0 %v2800
    %3389 = vmatpush1.bf16.msra.mxu0 %v2799
    %3390 = vmatprep.subr.bf16.mxu0 %v2804
    %3391 = vmatpush1.bf16.msra.mxu0 %v2803
    %3392 = vmatprep.subr.bf16.mxu0 %v2808
    %3393 = vmatpush1.bf16.msra.mxu0 %v2807
    %3394 = vmatprep.subr.bf16.mxu0 %v2812
    %3395 = vmatpush1.bf16.msra.mxu0 %v2811
    %3396 = vmatprep.subr.bf16.mxu0 0
    %3397 = vmatpush1.bf16.msra.mxu0 0
    %3398 = vmatprep.subr.bf16.mxu0 0
    %3399 = vmatpush1.bf16.msra.mxu0 0
    %3400 = vmatprep.subr.bf16.mxu0 0
    %3401 = vmatpush1.bf16.msra.mxu0 0
    %3402 = vmatprep.subr.bf16.mxu0 0
    %3403 = vmatpush1.bf16.msra.mxu0 0
    %3404 = vmatprep.subr.bf16.mxu0 0
    %3405 = vmatpush1.bf16.msra.mxu0 0
    %3406 = vmatprep.subr.bf16.mxu0 0
    %3407 = vmatpush1.bf16.msra.mxu0 0
    %3408 = vmatprep.subr.bf16.mxu0 0
    %3409 = vmatpush1.bf16.msra.mxu0 0
    %3410 = vmatprep.subr.bf16.mxu0 0
    %3411 = vmatpush1.bf16.msra.mxu0 0
    %3412 = vmatprep.mubr.bf16.mxu0 0
    %3413 = vmatmul.mubr.bf16.gmra.mrb[0].mxu0 %v3338
    %v3414 = vpop.f32.mrb[0].mxu0
    %v3415 = vadd.f32 0.0, %v3414
    %v3416 = vpop.f32.mrb[0].mxu0
    %v3417 = vadd.f32 0.0, %v3416
    %v3418 = vpop.f32.mrb[0].mxu0
    %v3419 = vpop.f32.mrb[0].mxu0
    %3420 = vdwg.mxu0
    %v3425 = vrot.slane %v3374, 6
    %v3426 = vrot.slane %v3376, 6
    %v3427 = vrot.slane %v3415, 6
    %v3428 = vrot.slane %v3417, 6
    %v3433 = vadd.f32 %v2777, %v3425
    %v3434 = vadd.f32 %v2778, %v3426
    %v3435 = vadd.f32 %v2779, %v3427
    %v3436 = vadd.f32 %v2780, %v3428
    %v3437 = vxor.u32 %v3433, 2147483648
    %v3438 = vmul.f32 %v3437, 1.442695
    %v3439 = vpow.pop %v3438
    %v3440 = vadd.f32 %v3439, 1.0
    %v3441 = vrcp.pop %v3440
    %v3442 = vmul.f32 1.0, %v3441
    %v3443 = vxor.u32 %v3434, 2147483648
    %v3444 = vmul.f32 %v3443, 1.442695
    %v3445 = vpow.pop %v3444
    %v3446 = vadd.f32 %v3445, 1.0
    %v3447 = vrcp.pop %v3446
    %v3448 = vmul.f32 1.0, %v3447
    %v3449 = vtanh.pop %v3435
    %v3450 = vxor.u32 %v3436, 2147483648
    %v3451 = vmul.f32 %v3450, 1.442695
    %v3452 = vpow.pop %v3451
    %v3453 = vadd.f32 %v3452, 1.0
    %v3454 = vrcp.pop %v3453
    %v3455 = vmul.f32 1.0, %v3454
    %v3457 = vrot.slane %v3335, 6
    %v3459 = vmul.f32 %v3448, %v3457
    %v3460 = vmul.f32 %v3442, %v3449
    %v3461 = vadd.f32 %v3459, %v3460
    %v3462 = vtanh.pop %v3461
    %v3463 = vmul.f32 %v3455, %v3462
    %v3464 = vpack.c.bf16 %v3463, %v3463
    %v3466 = vrot.slane %v3464, 1
    %3468 = vmatprep.subr.bf16.mxu0 %v2782
    %3469 = vmatpush1.bf16.msra.mxu0 %v2781
    %3470 = vmatprep.subr.bf16.mxu0 %v2786
    %3471 = vmatpush1.bf16.msra.mxu0 %v2785
    %3472 = vmatprep.subr.bf16.mxu0 %v2790
    %3473 = vmatpush1.bf16.msra.mxu0 %v2789
    %3474 = vmatprep.subr.bf16.mxu0 %v2794
    %3475 = vmatpush1.bf16.msra.mxu0 %v2793
    %3476 = vmatprep.subr.bf16.mxu0 %v2798
    %3477 = vmatpush1.bf16.msra.mxu0 %v2797
    %3478 = vmatprep.subr.bf16.mxu0 %v2802
    %3479 = vmatpush1.bf16.msra.mxu0 %v2801
    %3480 = vmatprep.subr.bf16.mxu0 %v2806
    %3481 = vmatpush1.bf16.msra.mxu0 %v2805
    %3482 = vmatprep.subr.bf16.mxu0 %v2810
    %3483 = vmatpush1.bf16.msra.mxu0 %v2809
    %3484 = vmatprep.subr.bf16.mxu0 0
    %3485 = vmatpush1.bf16.msra.mxu0 0
    %3486 = vmatprep.subr.bf16.mxu0 0
    %3487 = vmatpush1.bf16.msra.mxu0 0
    %3488 = vmatprep.subr.bf16.mxu0 0
    %3489 = vmatpush1.bf16.msra.mxu0 0
    %3490 = vmatprep.subr.bf16.mxu0 0
    %3491 = vmatpush1.bf16.msra.mxu0 0
    %3492 = vmatprep.subr.bf16.mxu0 0
    %3493 = vmatpush1.bf16.msra.mxu0 0
    %3494 = vmatprep.subr.bf16.mxu0 0
    %3495 = vmatpush1.bf16.msra.mxu0 0
    %3496 = vmatprep.subr.bf16.mxu0 0
    %3497 = vmatpush1.bf16.msra.mxu0 0
    %3498 = vmatprep.subr.bf16.mxu0 0
    %3499 = vmatpush1.bf16.msra.mxu0 0
    %3500 = vmatprep.mubr.bf16.mxu0 0
    %3501 = vmatmul.mubr.bf16.gmra.mrb[0].mxu0 %v3466
    %v3502 = vpop.f32.mrb[0].mxu0
    %v3503 = vadd.f32 0.0, %v3502
    %v3504 = vpop.f32.mrb[0].mxu0
    %v3505 = vadd.f32 0.0, %v3504
    %v3506 = vpop.f32.mrb[0].mxu0
    %v3507 = vpop.f32.mrb[0].mxu0
    %3508 = vdwg.mxu0
    %3509 = vmatprep.subr.bf16.mxu0 %v2784
    %3510 = vmatpush1.bf16.msra.mxu0 %v2783
    %3511 = vmatprep.subr.bf16.mxu0 %v2788
    %3512 = vmatpush1.bf16.msra.mxu0 %v2787
    %3513 = vmatprep.subr.bf16.mxu0 %v2792
    %3514 = vmatpush1.bf16.msra.mxu0 %v2791
    %3515 = vmatprep.subr.bf16.mxu0 %v2796
    %3516 = vmatpush1.bf16.msra.mxu0 %v2795
    %3517 = vmatprep.subr.bf16.mxu0 %v2800
    %3518 = vmatpush1.bf16.msra.mxu0 %v2799
    %3519 = vmatprep.subr.bf16.mxu0 %v2804
    %3520 = vmatpush1.bf16.msra.mxu0 %v2803
    %3521 = vmatprep.subr.bf16.mxu0 %v2808
    %3522 = vmatpush1.bf16.msra.mxu0 %v2807
    %3523 = vmatprep.subr.bf16.mxu0 %v2812
    %3524 = vmatpush1.bf16.msra.mxu0 %v2811
    %3525 = vmatprep.subr.bf16.mxu0 0
    %3526 = vmatpush1.bf16.msra.mxu0 0
    %3527 = vmatprep.subr.bf16.mxu0 0
    %3528 = vmatpush1.bf16.msra.mxu0 0
    %3529 = vmatprep.subr.bf16.mxu0 0
    %3530 = vmatpush1.bf16.msra.mxu0 0
    %3531 = vmatprep.subr.bf16.mxu0 0
    %3532 = vmatpush1.bf16.msra.mxu0 0
    %3533 = vmatprep.subr.bf16.mxu0 0
    %3534 = vmatpush1.bf16.msra.mxu0 0
    %3535 = vmatprep.subr.bf16.mxu0 0
    %3536 = vmatpush1.bf16.msra.mxu0 0
    %3537 = vmatprep.subr.bf16.mxu0 0
    %3538 = vmatpush1.bf16.msra.mxu0 0
    %3539 = vmatprep.subr.bf16.mxu0 0
    %3540 = vmatpush1.bf16.msra.mxu0 0
    %3541 = vmatprep.mubr.bf16.mxu0 0
    %3542 = vmatmul.mubr.bf16.gmra.mrb[0].mxu0 %v3466
    %v3543 = vpop.f32.mrb[0].mxu0
    %v3544 = vadd.f32 0.0, %v3543
    %v3545 = vpop.f32.mrb[0].mxu0
    %v3546 = vadd.f32 0.0, %v3545
    %v3547 = vpop.f32.mrb[0].mxu0
    %v3548 = vpop.f32.mrb[0].mxu0
    %3549 = vdwg.mxu0
    %v3554 = vrot.slane %v3503, 4
    %v3555 = vrot.slane %v3505, 4
    %v3556 = vrot.slane %v3544, 4
    %v3557 = vrot.slane %v3546, 4
    %v3562 = vadd.f32 %v2777, %v3554
    %v3563 = vadd.f32 %v2778, %v3555
    %v3564 = vadd.f32 %v2779, %v3556
    %v3565 = vadd.f32 %v2780, %v3557
    %v3566 = vxor.u32 %v3562, 2147483648
    %v3567 = vmul.f32 %v3566, 1.442695
    %v3568 = vpow.pop %v3567
    %v3569 = vadd.f32 %v3568, 1.0
    %v3570 = vrcp.pop %v3569
    %v3571 = vmul.f32 1.0, %v3570
    %v3572 = vxor.u32 %v3563, 2147483648
    %v3573 = vmul.f32 %v3572, 1.442695
    %v3574 = vpow.pop %v3573
    %v3575 = vadd.f32 %v3574, 1.0
    %v3576 = vrcp.pop %v3575
    %v3577 = vmul.f32 1.0, %v3576
    %v3578 = vtanh.pop %v3564
    %v3579 = vxor.u32 %v3565, 2147483648
    %v3580 = vmul.f32 %v3579, 1.442695
    %v3581 = vpow.pop %v3580
    %v3582 = vadd.f32 %v3581, 1.0
    %v3583 = vrcp.pop %v3582
    %v3584 = vmul.f32 1.0, %v3583
    %v3586 = vrot.slane %v3461, 6
    %v3588 = vmul.f32 %v3577, %v3586
    %v3589 = vmul.f32 %v3571, %v3578
    %v3590 = vadd.f32 %v3588, %v3589
    %v3591 = vtanh.pop %v3590
    %v3592 = vmul.f32 %v3584, %v3591
    %v3593 = vpack.c.bf16 %v3592, %v3592
    %v3595 = vrot.slane %v3593, 2
    %3597 = vmatprep.subr.bf16.mxu0 %v2782
    %3598 = vmatpush1.bf16.msra.mxu0 %v2781
    %3599 = vmatprep.subr.bf16.mxu0 %v2786
    %3600 = vmatpush1.bf16.msra.mxu0 %v2785
    %3601 = vmatprep.subr.bf16.mxu0 %v2790
    %3602 = vmatpush1.bf16.msra.mxu0 %v2789
    %3603 = vmatprep.subr.bf16.mxu0 %v2794
    %3604 = vmatpush1.bf16.msra.mxu0 %v2793
    %3605 = vmatprep.subr.bf16.mxu0 %v2798
    %3606 = vmatpush1.bf16.msra.mxu0 %v2797
    %3607 = vmatprep.subr.bf16.mxu0 %v2802
    %3608 = vmatpush1.bf16.msra.mxu0 %v2801
    %3609 = vmatprep.subr.bf16.mxu0 %v2806
    %3610 = vmatpush1.bf16.msra.mxu0 %v2805
    %3611 = vmatprep.subr.bf16.mxu0 %v2810
    %3612 = vmatpush1.bf16.msra.mxu0 %v2809
    %3613 = vmatprep.subr.bf16.mxu0 0
    %3614 = vmatpush1.bf16.msra.mxu0 0
    %3615 = vmatprep.subr.bf16.mxu0 0
    %3616 = vmatpush1.bf16.msra.mxu0 0
    %3617 = vmatprep.subr.bf16.mxu0 0
    %3618 = vmatpush1.bf16.msra.mxu0 0
    %3619 = vmatprep.subr.bf16.mxu0 0
    %3620 = vmatpush1.bf16.msra.mxu0 0
    %3621 = vmatprep.subr.bf16.mxu0 0
    %3622 = vmatpush1.bf16.msra.mxu0 0
    %3623 = vmatprep.subr.bf16.mxu0 0
    %3624 = vmatpush1.bf16.msra.mxu0 0
    %3625 = vmatprep.subr.bf16.mxu0 0
    %3626 = vmatpush1.bf16.msra.mxu0 0
    %3627 = vmatprep.subr.bf16.mxu0 0
    %3628 = vmatpush1.bf16.msra.mxu0 0
    %3629 = vmatprep.mubr.bf16.mxu0 0
    %3630 = vmatmul.mubr.bf16.gmra.mrb[0].mxu0 %v3595
    %v3631 = vpop.f32.mrb[0].mxu0
    %v3632 = vadd.f32 0.0, %v3631
    %v3633 = vpop.f32.mrb[0].mxu0
    %v3634 = vadd.f32 0.0, %v3633
    %v3635 = vpop.f32.mrb[0].mxu0
    %v3636 = vpop.f32.mrb[0].mxu0
    %3637 = vdwg.mxu0
    %3638 = vmatprep.subr.bf16.mxu0 %v2784
    %3639 = vmatpush1.bf16.msra.mxu0 %v2783
    %3640 = vmatprep.subr.bf16.mxu0 %v2788
    %3641 = vmatpush1.bf16.msra.mxu0 %v2787
    %3642 = vmatprep.subr.bf16.mxu0 %v2792
    %3643 = vmatpush1.bf16.msra.mxu0 %v2791
    %3644 = vmatprep.subr.bf16.mxu0 %v2796
    %3645 = vmatpush1.bf16.msra.mxu0 %v2795
    %3646 = vmatprep.subr.bf16.mxu0 %v2800
    %3647 = vmatpush1.bf16.msra.mxu0 %v2799
    %3648 = vmatprep.subr.bf16.mxu0 %v2804
    %3649 = vmatpush1.bf16.msra.mxu0 %v2803
    %3650 = vmatprep.subr.bf16.mxu0 %v2808
    %3651 = vmatpush1.bf16.msra.mxu0 %v2807
    %3652 = vmatprep.subr.bf16.mxu0 %v2812
    %3653 = vmatpush1.bf16.msra.mxu0 %v2811
    %3654 = vmatprep.subr.bf16.mxu0 0
    %3655 = vmatpush1.bf16.msra.mxu0 0
    %3656 = vmatprep.subr.bf16.mxu0 0
    %3657 = vmatpush1.bf16.msra.mxu0 0
    %3658 = vmatprep.subr.bf16.mxu0 0
    %3659 = vmatpush1.bf16.msra.mxu0 0
    %3660 = vmatprep.subr.bf16.mxu0 0
    %3661 = vmatpush1.bf16.msra.mxu0 0
    %3662 = vmatprep.subr.bf16.mxu0 0
    %3663 = vmatpush1.bf16.msra.mxu0 0
    %3664 = vmatprep.subr.bf16.mxu0 0
    %3665 = vmatpush1.bf16.msra.mxu0 0
    %3666 = vmatprep.subr.bf16.mxu0 0
    %3667 = vmatpush1.bf16.msra.mxu0 0
    %3668 = vmatprep.subr.bf16.mxu0 0
    %3669 = vmatpush1.bf16.msra.mxu0 0
    %3670 = vmatprep.mubr.bf16.mxu0 0
    %3671 = vmatmul.mubr.bf16.gmra.mrb[0].mxu0 %v3595
    %v3672 = vpop.f32.mrb[0].mxu0
    %v3673 = vadd.f32 0.0, %v3672
    %v3674 = vpop.f32.mrb[0].mxu0
    %v3675 = vadd.f32 0.0, %v3674
    %v3676 = vpop.f32.mrb[0].mxu0
    %v3677 = vpop.f32.mrb[0].mxu0
    %3678 = vdwg.mxu0
    %v3683 = vrot.slane %v3632, 2
    %v3684 = vrot.slane %v3634, 2
    %v3685 = vrot.slane %v3673, 2
    %v3686 = vrot.slane %v3675, 2
    %v3691 = vadd.f32 %v2777, %v3683
    %v3692 = vadd.f32 %v2778, %v3684
    %v3693 = vadd.f32 %v2779, %v3685
    %v3694 = vadd.f32 %v2780, %v3686
    %v3695 = vxor.u32 %v3691, 2147483648
    %v3696 = vmul.f32 %v3695, 1.442695
    %v3697 = vpow.pop %v3696
    %v3698 = vadd.f32 %v3697, 1.0
    %v3699 = vrcp.pop %v3698
    %v3700 = vmul.f32 1.0, %v3699
    %v3701 = vxor.u32 %v3692, 2147483648
    %v3702 = vmul.f32 %v3701, 1.442695
    %v3703 = vpow.pop %v3702
    %v3704 = vadd.f32 %v3703, 1.0
    %v3705 = vrcp.pop %v3704
    %v3706 = vmul.f32 1.0, %v3705
    %v3707 = vtanh.pop %v3693
    %v3708 = vxor.u32 %v3694, 2147483648
    %v3709 = vmul.f32 %v3708, 1.442695
    %v3710 = vpow.pop %v3709
    %v3711 = vadd.f32 %v3710, 1.0
    %v3712 = vrcp.pop %v3711
    %v3713 = vmul.f32 1.0, %v3712
    %v3715 = vrot.slane %v3590, 6
    %v3717 = vmul.f32 %v3706, %v3715
    %v3718 = vmul.f32 %v3700, %v3707
    %v3719 = vadd.f32 %v3717, %v3718
    %v3720 = vtanh.pop %v3719
    %v3721 = vmul.f32 %v3713, %v3720
    %v3722 = vpack.c.bf16 %v2462, %v2462
    %v3723 = vld [vmem:[#allocation5] sm:$0xff]
    %v3724 = vld [vmem:[#allocation5 + $0x8] sm:$0xff]
    %v3725 = vld [vmem:[#allocation5 + $0x10] sm:$0xff]
    %v3726 = vld [vmem:[#allocation5 + $0x18] sm:$0xff]
    %v3727 = vld [vmem:[#allocation5 + $0x20] sm:$0xff]
    %v3728 = vld [vmem:[#allocation5 + $0x28] sm:$0xff]
    %v3729 = vld [vmem:[#allocation5 + $0x30] sm:$0xff]
    %v3730 = vld [vmem:[#allocation5 + $0x38] sm:$0xff]
    %v3731 = vld [vmem:[#allocation5 + $0x40] sm:$0xff]
    %v3732 = vld [vmem:[#allocation5 + $0x48] sm:$0xff]
    %v3733 = vld [vmem:[#allocation5 + $0x50] sm:$0xff]
    %v3734 = vld [vmem:[#allocation5 + $0x58] sm:$0xff]
    %v3735 = vld [vmem:[#allocation5 + $0x60] sm:$0xff]
    %v3736 = vld [vmem:[#allocation5 + $0x68] sm:$0xff]
    %v3737 = vld [vmem:[#allocation5 + $0x70] sm:$0xff]
    %v3738 = vld [vmem:[#allocation5 + $0x78] sm:$0xff]
    %v3739 = vld [vmem:[#allocation5 + $0x80] sm:$0xff]
    %v3740 = vld [vmem:[#allocation5 + $0x88] sm:$0xff]
    %v3741 = vld [vmem:[#allocation5 + $0x90] sm:$0xff]
    %v3742 = vld [vmem:[#allocation5 + $0x98] sm:$0xff]
    %v3743 = vld [vmem:[#allocation5 + $0xa0] sm:$0xff]
    %v3744 = vld [vmem:[#allocation5 + $0xa8] sm:$0xff]
    %v3745 = vld [vmem:[#allocation5 + $0xb0] sm:$0xff]
    %v3746 = vld [vmem:[#allocation5 + $0xb8] sm:$0xff]
    %v3747 = vld [vmem:[#allocation5 + $0xc0] sm:$0xff]
    %v3748 = vld [vmem:[#allocation5 + $0xc8] sm:$0xff]
    %v3749 = vld [vmem:[#allocation5 + $0xd0] sm:$0xff]
    %v3750 = vld [vmem:[#allocation5 + $0xd8] sm:$0xff]
    %v3751 = vld [vmem:[#allocation5 + $0xe0] sm:$0xff]
    %v3752 = vld [vmem:[#allocation5 + $0xe8] sm:$0xff]
    %v3753 = vld [vmem:[#allocation5 + $0xf0] sm:$0xff]
    %v3754 = vld [vmem:[#allocation5 + $0xf8] sm:$0xff]
    %v3755 = vld [vmem:[#allocation6] sm:$0xff]
    %v3756 = vld [vmem:[#allocation6 + $0x8] sm:$0xff]
    %v3757 = vld [vmem:[#allocation6 + $0x10] sm:$0xff]
    %v3758 = vld [vmem:[#allocation6 + $0x18] sm:$0xff]
    %v3759 = vld [vmem:[#allocation6 + $0x20] sm:$0xff]
    %v3760 = vld [vmem:[#allocation6 + $0x28] sm:$0xff]
    %v3761 = vld [vmem:[#allocation6 + $0x30] sm:$0xff]
    %v3762 = vld [vmem:[#allocation6 + $0x38] sm:$0xff]
    %v3763 = vld [vmem:[#allocation6 + $0x40] sm:$0xff]
    %v3764 = vld [vmem:[#allocation6 + $0x48] sm:$0xff]
    %v3765 = vld [vmem:[#allocation6 + $0x50] sm:$0xff]
    %v3766 = vld [vmem:[#allocation6 + $0x58] sm:$0xff]
    %v3767 = vld [vmem:[#allocation6 + $0x60] sm:$0xff]
    %v3768 = vld [vmem:[#allocation6 + $0x68] sm:$0xff]
    %v3769 = vld [vmem:[#allocation6 + $0x70] sm:$0xff]
    %v3770 = vld [vmem:[#allocation6 + $0x78] sm:$0xff]
    %v3771 = vld [vmem:[#allocation6 + $0x80] sm:$0xff]
    %v3772 = vld [vmem:[#allocation6 + $0x88] sm:$0xff]
    %v3773 = vld [vmem:[#allocation6 + $0x90] sm:$0xff]
    %v3774 = vld [vmem:[#allocation6 + $0x98] sm:$0xff]
    %v3775 = vld [vmem:[#allocation6 + $0xa0] sm:$0xff]
    %v3776 = vld [vmem:[#allocation6 + $0xa8] sm:$0xff]
    %v3777 = vld [vmem:[#allocation6 + $0xb0] sm:$0xff]
    %v3778 = vld [vmem:[#allocation6 + $0xb8] sm:$0xff]
    %v3779 = vld [vmem:[#allocation6 + $0xc0] sm:$0xff]
    %v3780 = vld [vmem:[#allocation6 + $0xc8] sm:$0xff]
    %v3781 = vld [vmem:[#allocation6 + $0xd0] sm:$0xff]
    %v3782 = vld [vmem:[#allocation6 + $0xd8] sm:$0xff]
    %v3783 = vld [vmem:[#allocation6 + $0xe0] sm:$0xff]
    %v3784 = vld [vmem:[#allocation6 + $0xe8] sm:$0xff]
    %v3785 = vld [vmem:[#allocation6 + $0xf0] sm:$0xff]
    %v3786 = vld [vmem:[#allocation6 + $0xf8] sm:$0xff]
    %v3788 = vrot.slane %v1224, 1
    %3790 = vmatprep.subr.bf16.mxu0 %v3756
    %3791 = vmatpush1.bf16.msra.mxu0 %v3755
    %3792 = vmatprep.subr.bf16.mxu0 %v3760
    %3793 = vmatpush1.bf16.msra.mxu0 %v3759
    %3794 = vmatprep.subr.bf16.mxu0 %v3764
    %3795 = vmatpush1.bf16.msra.mxu0 %v3763
    %3796 = vmatprep.subr.bf16.mxu0 %v3768
    %3797 = vmatpush1.bf16.msra.mxu0 %v3767
    %3798 = vmatprep.subr.bf16.mxu0 %v3772
    %3799 = vmatpush1.bf16.msra.mxu0 %v3771
    %3800 = vmatprep.subr.bf16.mxu0 %v3776
    %3801 = vmatpush1.bf16.msra.mxu0 %v3775
    %3802 = vmatprep.subr.bf16.mxu0 %v3780
    %3803 = vmatpush1.bf16.msra.mxu0 %v3779
    %3804 = vmatprep.subr.bf16.mxu0 %v3784
    %3805 = vmatpush1.bf16.msra.mxu0 %v3783
    %3806 = vmatprep.subr.bf16.mxu0 0
    %3807 = vmatpush1.bf16.msra.mxu0 0
    %3808 = vmatprep.subr.bf16.mxu0 0
    %3809 = vmatpush1.bf16.msra.mxu0 0
    %3810 = vmatprep.subr.bf16.mxu0 0
    %3811 = vmatpush1.bf16.msra.mxu0 0
    %3812 = vmatprep.subr.bf16.mxu0 0
    %3813 = vmatpush1.bf16.msra.mxu0 0
    %3814 = vmatprep.subr.bf16.mxu0 0
    %3815 = vmatpush1.bf16.msra.mxu0 0
    %3816 = vmatprep.subr.bf16.mxu0 0
    %3817 = vmatpush1.bf16.msra.mxu0 0
    %3818 = vmatprep.subr.bf16.mxu0 0
    %3819 = vmatpush1.bf16.msra.mxu0 0
    %3820 = vmatprep.subr.bf16.mxu0 0
    %3821 = vmatpush1.bf16.msra.mxu0 0
    %3822 = vmatprep.mubr.bf16.mxu0 0
    %3823 = vmatmul.mubr.bf16.gmra.mrb[0].mxu0 %v3788
    %v3824 = vpop.f32.mrb[0].mxu0
    %v3825 = vadd.f32 0.0, %v3824
    %v3826 = vpop.f32.mrb[0].mxu0
    %v3827 = vpop.f32.mrb[0].mxu0
    %v3828 = vpop.f32.mrb[0].mxu0
    %3829 = vdwg.mxu0
    %3830 = vmatprep.subr.bf16.mxu0 %v3758
    %3831 = vmatpush1.bf16.msra.mxu0 %v3757
    %3832 = vmatprep.subr.bf16.mxu0 %v3762
    %3833 = vmatpush1.bf16.msra.mxu0 %v3761
    %3834 = vmatprep.subr.bf16.mxu0 %v3766
    %3835 = vmatpush1.bf16.msra.mxu0 %v3765
    %3836 = vmatprep.subr.bf16.mxu0 %v3770
    %3837 = vmatpush1.bf16.msra.mxu0 %v3769
    %3838 = vmatprep.subr.bf16.mxu0 %v3774
    %3839 = vmatpush1.bf16.msra.mxu0 %v3773
    %3840 = vmatprep.subr.bf16.mxu0 %v3778
    %3841 = vmatpush1.bf16.msra.mxu0 %v3777
    %3842 = vmatprep.subr.bf16.mxu0 %v3782
    %3843 = vmatpush1.bf16.msra.mxu0 %v3781
    %3844 = vmatprep.subr.bf16.mxu0 %v3786
    %3845 = vmatpush1.bf16.msra.mxu0 %v3785
    %3846 = vmatprep.subr.bf16.mxu0 0
    %3847 = vmatpush1.bf16.msra.mxu0 0
    %3848 = vmatprep.subr.bf16.mxu0 0
    %3849 = vmatpush1.bf16.msra.mxu0 0
    %3850 = vmatprep.subr.bf16.mxu0 0
    %3851 = vmatpush1.bf16.msra.mxu0 0
    %3852 = vmatprep.subr.bf16.mxu0 0
    %3853 = vmatpush1.bf16.msra.mxu0 0
    %3854 = vmatprep.subr.bf16.mxu0 0
    %3855 = vmatpush1.bf16.msra.mxu0 0
    %3856 = vmatprep.subr.bf16.mxu0 0
    %3857 = vmatpush1.bf16.msra.mxu0 0
    %3858 = vmatprep.subr.bf16.mxu0 0
    %3859 = vmatpush1.bf16.msra.mxu0 0
    %3860 = vmatprep.subr.bf16.mxu0 0
    %3861 = vmatpush1.bf16.msra.mxu0 0
    %3862 = vmatprep.mubr.bf16.mxu0 0
    %3863 = vmatmul.mubr.bf16.gmra.mrb[0].mxu0 %v3788
    %v3864 = vpop.f32.mrb[0].mxu0
    %v3865 = vadd.f32 0.0, %v3864
    %v3866 = vpop.f32.mrb[0].mxu0
    %v3867 = vadd.f32 0.0, %v3866
    %v3868 = vpop.f32.mrb[0].mxu0
    %v3869 = vpop.f32.mrb[0].mxu0
    %3870 = vdwg.mxu0
    %3871 = vmatprep.subr.bf16.mxu0 %v3724
    %3872 = vmatpush1.bf16.msra.mxu0 %v3723
    %3873 = vmatprep.subr.bf16.mxu0 %v3728
    %3874 = vmatpush1.bf16.msra.mxu0 %v3727
    %3875 = vmatprep.subr.bf16.mxu0 %v3732
    %3876 = vmatpush1.bf16.msra.mxu0 %v3731
    %3877 = vmatprep.subr.bf16.mxu0 %v3736
    %3878 = vmatpush1.bf16.msra.mxu0 %v3735
    %3879 = vmatprep.subr.bf16.mxu0 %v3740
    %3880 = vmatpush1.bf16.msra.mxu0 %v3739
    %3881 = vmatprep.subr.bf16.mxu0 %v3744
    %3882 = vmatpush1.bf16.msra.mxu0 %v3743
    %3883 = vmatprep.subr.bf16.mxu0 %v3748
    %3884 = vmatpush1.bf16.msra.mxu0 %v3747
    %3885 = vmatprep.subr.bf16.mxu0 %v3752
    %3886 = vmatpush1.bf16.msra.mxu0 %v3751
    %3887 = vmatprep.subr.bf16.mxu0 0
    %3888 = vmatpush1.bf16.msra.mxu0 0
    %3889 = vmatprep.subr.bf16.mxu0 0
    %3890 = vmatpush1.bf16.msra.mxu0 0
    %3891 = vmatprep.subr.bf16.mxu0 0
    %3892 = vmatpush1.bf16.msra.mxu0 0
    %3893 = vmatprep.subr.bf16.mxu0 0
    %3894 = vmatpush1.bf16.msra.mxu0 0
    %3895 = vmatprep.subr.bf16.mxu0 0
    %3896 = vmatpush1.bf16.msra.mxu0 0
    %3897 = vmatprep.subr.bf16.mxu0 0
    %3898 = vmatpush1.bf16.msra.mxu0 0
    %3899 = vmatprep.subr.bf16.mxu0 0
    %3900 = vmatpush1.bf16.msra.mxu0 0
    %3901 = vmatprep.subr.bf16.mxu0 0
    %3902 = vmatpush1.bf16.msra.mxu0 0
    %3903 = vmatprep.mubr.bf16.mxu0 0
    %3904 = vmatmul.mubr.bf16.gmra.mrb[0].mxu0 %v3722
    %v3905 = vpop.f32.mrb[0].mxu0
    %v3906 = vadd.f32 %v3825, %v3905
    %v3907 = vpop.f32.mrb[0].mxu0
    %v3908 = vpop.f32.mrb[0].mxu0
    %v3909 = vpop.f32.mrb[0].mxu0
    %3910 = vdwg.mxu0
    %3911 = vmatprep.subr.bf16.mxu0 %v3726
    %3912 = vmatpush1.bf16.msra.mxu0 %v3725
    %3913 = vmatprep.subr.bf16.mxu0 %v3730
    %3914 = vmatpush1.bf16.msra.mxu0 %v3729
    %3915 = vmatprep.subr.bf16.mxu0 %v3734
    %3916 = vmatpush1.bf16.msra.mxu0 %v3733
    %3917 = vmatprep.subr.bf16.mxu0 %v3738
    %3918 = vmatpush1.bf16.msra.mxu0 %v3737
    %3919 = vmatprep.subr.bf16.mxu0 %v3742
    %3920 = vmatpush1.bf16.msra.mxu0 %v3741
    %3921 = vmatprep.subr.bf16.mxu0 %v3746
    %3922 = vmatpush1.bf16.msra.mxu0 %v3745
    %3923 = vmatprep.subr.bf16.mxu0 %v3750
    %3924 = vmatpush1.bf16.msra.mxu0 %v3749
    %3925 = vmatprep.subr.bf16.mxu0 %v3754
    %3926 = vmatpush1.bf16.msra.mxu0 %v3753
    %3927 = vmatprep.subr.bf16.mxu0 0
    %3928 = vmatpush1.bf16.msra.mxu0 0
    %3929 = vmatprep.subr.bf16.mxu0 0
    %3930 = vmatpush1.bf16.msra.mxu0 0
    %3931 = vmatprep.subr.bf16.mxu0 0
    %3932 = vmatpush1.bf16.msra.mxu0 0
    %3933 = vmatprep.subr.bf16.mxu0 0
    %3934 = vmatpush1.bf16.msra.mxu0 0
    %3935 = vmatprep.subr.bf16.mxu0 0
    %3936 = vmatpush1.bf16.msra.mxu0 0
    %3937 = vmatprep.subr.bf16.mxu0 0
    %3938 = vmatpush1.bf16.msra.mxu0 0
    %3939 = vmatprep.subr.bf16.mxu0 0
    %3940 = vmatpush1.bf16.msra.mxu0 0
    %3941 = vmatprep.subr.bf16.mxu0 0
    %3942 = vmatpush1.bf16.msra.mxu0 0
    %3943 = vmatprep.mubr.bf16.mxu0 0
    %3944 = vmatmul.mubr.bf16.gmra.mrb[0].mxu0 %v3722
    %v3945 = vpop.f32.mrb[0].mxu0
    %v3946 = vadd.f32 %v3865, %v3945
    %v3947 = vpop.f32.mrb[0].mxu0
    %v3948 = vadd.f32 %v3867, %v3947
    %v3949 = vpop.f32.mrb[0].mxu0
    %v3950 = vpop.f32.mrb[0].mxu0
    %3951 = vdwg.mxu0
    %v3952 = vld [vmem:[%s7] sm:$0xf]
    %v3954 = vlaneseq
    %v3955 = vshrl.u32 %v3954, 7
    %v3956 = vsub.s32 0, %v3955
    %v3957 = vrot.slane %v3952, %v3956
    %v3958 = vlaneseq
    %v3959 = vshrl.u32 %v3958, 7
    %v3960 = vsub.s32 2, %v3959
    %v3961 = vrot.slane %v3952, %v3960
    %v3962 = vlaneseq
    %v3963 = vshrl.u32 %v3962, 7
    %v3964 = vsub.s32 3, %v3963
    %v3965 = vrot.slane %v3952, %v3964
    %v3969 = vadd.f32 %v3906, %v3957
    %v3970 = vadd.f32 %v3946, %v3961
    %v3971 = vadd.f32 %v3948, %v3965
    %v3972 = vxor.u32 %v3969, 2147483648
    %v3973 = vmul.f32 %v3972, 1.442695
    %v3974 = vpow.pop %v3973
    %v3975 = vadd.f32 %v3974, 1.0
    %v3976 = vrcp.pop %v3975
    %v3977 = vmul.f32 1.0, %v3976
    %v3978 = vtanh.pop %v3970
    %v3979 = vxor.u32 %v3971, 2147483648
    %v3980 = vmul.f32 %v3979, 1.442695
    %v3981 = vpow.pop %v3980
    %v3982 = vadd.f32 %v3981, 1.0
    %v3983 = vrcp.pop %v3982
    %v3984 = vmul.f32 1.0, %v3983
    %v3985 = vmul.f32 %v3977, %v3978
    %v3986 = vtanh.pop %v3985
    %v3987 = vmul.f32 %v3984, %v3986
    %s3988 = smul.u32 %s2503, 8
    %s3989 = sshll.u32 %s3988, 4
    %3990 = dma.done %s222, %s3989
    %s3991 = sshll.u32 %s3988, 4
    %3992 = dma.done %s783, %s3991
    %v3993 = vpack.c.bf16 %v3721, %v3721
    %v3994 = vld [vmem:[#allocation7] sm:$0xff]
    %v3995 = vld [vmem:[#allocation7 + $0x8] sm:$0xff]
    %v3996 = vld [vmem:[#allocation7 + $0x10] sm:$0xff]
    %v3997 = vld [vmem:[#allocation7 + $0x18] sm:$0xff]
    %v3998 = vld [vmem:[#allocation7 + $0x20] sm:$0xff]
    %v3999 = vld [vmem:[#allocation7 + $0x28] sm:$0xff]
    %v4000 = vld [vmem:[#allocation7 + $0x30] sm:$0xff]
    %v4001 = vld [vmem:[#allocation7 + $0x38] sm:$0xff]
    %v4002 = vld [vmem:[#allocation7 + $0x40] sm:$0xff]
    %v4003 = vld [vmem:[#allocation7 + $0x48] sm:$0xff]
    %v4004 = vld [vmem:[#allocation7 + $0x50] sm:$0xff]
    %v4005 = vld [vmem:[#allocation7 + $0x58] sm:$0xff]
    %v4006 = vld [vmem:[#allocation7 + $0x60] sm:$0xff]
    %v4007 = vld [vmem:[#allocation7 + $0x68] sm:$0xff]
    %v4008 = vld [vmem:[#allocation7 + $0x70] sm:$0xff]
    %v4009 = vld [vmem:[#allocation7 + $0x78] sm:$0xff]
    %v4010 = vld [vmem:[#allocation7 + $0x80] sm:$0xff]
    %v4011 = vld [vmem:[#allocation7 + $0x88] sm:$0xff]
    %v4012 = vld [vmem:[#allocation7 + $0x90] sm:$0xff]
    %v4013 = vld [vmem:[#allocation7 + $0x98] sm:$0xff]
    %v4014 = vld [vmem:[#allocation7 + $0xa0] sm:$0xff]
    %v4015 = vld [vmem:[#allocation7 + $0xa8] sm:$0xff]
    %v4016 = vld [vmem:[#allocation7 + $0xb0] sm:$0xff]
    %v4017 = vld [vmem:[#allocation7 + $0xb8] sm:$0xff]
    %v4018 = vld [vmem:[#allocation7 + $0xc0] sm:$0xff]
    %v4019 = vld [vmem:[#allocation7 + $0xc8] sm:$0xff]
    %v4020 = vld [vmem:[#allocation7 + $0xd0] sm:$0xff]
    %v4021 = vld [vmem:[#allocation7 + $0xd8] sm:$0xff]
    %v4022 = vld [vmem:[#allocation7 + $0xe0] sm:$0xff]
    %v4023 = vld [vmem:[#allocation7 + $0xe8] sm:$0xff]
    %v4024 = vld [vmem:[#allocation7 + $0xf0] sm:$0xff]
    %v4025 = vld [vmem:[#allocation7 + $0xf8] sm:$0xff]
    %v4026 = vld [vmem:[#allocation7 + $0x100] sm:$0xff]
    %v4027 = vld [vmem:[#allocation7 + $0x108] sm:$0xff]
    %v4028 = vld [vmem:[#allocation7 + $0x110] sm:$0xff]
    %v4029 = vld [vmem:[#allocation7 + $0x118] sm:$0xff]
    %v4030 = vld [vmem:[#allocation7 + $0x120] sm:$0xff]
    %v4031 = vld [vmem:[#allocation7 + $0x128] sm:$0xff]
    %v4032 = vld [vmem:[#allocation7 + $0x130] sm:$0xff]
    %v4033 = vld [vmem:[#allocation7 + $0x138] sm:$0xff]
    %v4034 = vld [vmem:[#allocation7 + $0x140] sm:$0xff]
    %v4035 = vld [vmem:[#allocation7 + $0x148] sm:$0xff]
    %v4036 = vld [vmem:[#allocation7 + $0x150] sm:$0xff]
    %v4037 = vld [vmem:[#allocation7 + $0x158] sm:$0xff]
    %v4038 = vld [vmem:[#allocation7 + $0x160] sm:$0xff]
    %v4039 = vld [vmem:[#allocation7 + $0x168] sm:$0xff]
    %v4040 = vld [vmem:[#allocation7 + $0x170] sm:$0xff]
    %v4041 = vld [vmem:[#allocation7 + $0x178] sm:$0xff]
    %v4042 = vld [vmem:[#allocation7 + $0x180] sm:$0xff]
    %v4043 = vld [vmem:[#allocation7 + $0x188] sm:$0xff]
    %v4044 = vld [vmem:[#allocation7 + $0x190] sm:$0xff]
    %v4045 = vld [vmem:[#allocation7 + $0x198] sm:$0xff]
    %v4046 = vld [vmem:[#allocation7 + $0x1a0] sm:$0xff]
    %v4047 = vld [vmem:[#allocation7 + $0x1a8] sm:$0xff]
    %v4048 = vld [vmem:[#allocation7 + $0x1b0] sm:$0xff]
    %v4049 = vld [vmem:[#allocation7 + $0x1b8] sm:$0xff]
    %v4050 = vld [vmem:[#allocation7 + $0x1c0] sm:$0xff]
    %v4051 = vld [vmem:[#allocation7 + $0x1c8] sm:$0xff]
    %v4052 = vld [vmem:[#allocation7 + $0x1d0] sm:$0xff]
    %v4053 = vld [vmem:[#allocation7 + $0x1d8] sm:$0xff]
    %v4054 = vld [vmem:[#allocation7 + $0x1e0] sm:$0xff]
    %v4055 = vld [vmem:[#allocation7 + $0x1e8] sm:$0xff]
    %v4056 = vld [vmem:[#allocation7 + $0x1f0] sm:$0xff]
    %v4057 = vld [vmem:[#allocation7 + $0x1f8] sm:$0xff]
    %v4058 = vpack.c.bf16 %v3987, %v3987
    %v4059 = vld [vmem:[#allocation8] sm:$0xff]
    %v4060 = vld [vmem:[#allocation8 + $0x8] sm:$0xff]
    %v4061 = vld [vmem:[#allocation8 + $0x10] sm:$0xff]
    %v4062 = vld [vmem:[#allocation8 + $0x18] sm:$0xff]
    %v4063 = vld [vmem:[#allocation8 + $0x20] sm:$0xff]
    %v4064 = vld [vmem:[#allocation8 + $0x28] sm:$0xff]
    %v4065 = vld [vmem:[#allocation8 + $0x30] sm:$0xff]
    %v4066 = vld [vmem:[#allocation8 + $0x38] sm:$0xff]
    %v4067 = vld [vmem:[#allocation8 + $0x40] sm:$0xff]
    %v4068 = vld [vmem:[#allocation8 + $0x48] sm:$0xff]
    %v4069 = vld [vmem:[#allocation8 + $0x50] sm:$0xff]
    %v4070 = vld [vmem:[#allocation8 + $0x58] sm:$0xff]
    %v4071 = vld [vmem:[#allocation8 + $0x60] sm:$0xff]
    %v4072 = vld [vmem:[#allocation8 + $0x68] sm:$0xff]
    %v4073 = vld [vmem:[#allocation8 + $0x70] sm:$0xff]
    %v4074 = vld [vmem:[#allocation8 + $0x78] sm:$0xff]
    %v4075 = vld [vmem:[#allocation8 + $0x80] sm:$0xff]
    %v4076 = vld [vmem:[#allocation8 + $0x88] sm:$0xff]
    %v4077 = vld [vmem:[#allocation8 + $0x90] sm:$0xff]
    %v4078 = vld [vmem:[#allocation8 + $0x98] sm:$0xff]
    %v4079 = vld [vmem:[#allocation8 + $0xa0] sm:$0xff]
    %v4080 = vld [vmem:[#allocation8 + $0xa8] sm:$0xff]
    %v4081 = vld [vmem:[#allocation8 + $0xb0] sm:$0xff]
    %v4082 = vld [vmem:[#allocation8 + $0xb8] sm:$0xff]
    %v4083 = vld [vmem:[#allocation8 + $0xc0] sm:$0xff]
    %v4084 = vld [vmem:[#allocation8 + $0xc8] sm:$0xff]
    %v4085 = vld [vmem:[#allocation8 + $0xd0] sm:$0xff]
    %v4086 = vld [vmem:[#allocation8 + $0xd8] sm:$0xff]
    %v4087 = vld [vmem:[#allocation8 + $0xe0] sm:$0xff]
    %v4088 = vld [vmem:[#allocation8 + $0xe8] sm:$0xff]
    %v4089 = vld [vmem:[#allocation8 + $0xf0] sm:$0xff]
    %v4090 = vld [vmem:[#allocation8 + $0xf8] sm:$0xff]
    %v4091 = vld [vmem:[#allocation8 + $0x100] sm:$0xff]
    %v4092 = vld [vmem:[#allocation8 + $0x108] sm:$0xff]
    %v4093 = vld [vmem:[#allocation8 + $0x110] sm:$0xff]
    %v4094 = vld [vmem:[#allocation8 + $0x118] sm:$0xff]
    %v4095 = vld [vmem:[#allocation8 + $0x120] sm:$0xff]
    %v4096 = vld [vmem:[#allocation8 + $0x128] sm:$0xff]
    %v4097 = vld [vmem:[#allocation8 + $0x130] sm:$0xff]
    %v4098 = vld [vmem:[#allocation8 + $0x138] sm:$0xff]
    %v4099 = vld [vmem:[#allocation8 + $0x140] sm:$0xff]
    %v4100 = vld [vmem:[#allocation8 + $0x148] sm:$0xff]
    %v4101 = vld [vmem:[#allocation8 + $0x150] sm:$0xff]
    %v4102 = vld [vmem:[#allocation8 + $0x158] sm:$0xff]
    %v4103 = vld [vmem:[#allocation8 + $0x160] sm:$0xff]
    %v4104 = vld [vmem:[#allocation8 + $0x168] sm:$0xff]
    %v4105 = vld [vmem:[#allocation8 + $0x170] sm:$0xff]
    %v4106 = vld [vmem:[#allocation8 + $0x178] sm:$0xff]
    %v4107 = vld [vmem:[#allocation8 + $0x180] sm:$0xff]
    %v4108 = vld [vmem:[#allocation8 + $0x188] sm:$0xff]
    %v4109 = vld [vmem:[#allocation8 + $0x190] sm:$0xff]
    %v4110 = vld [vmem:[#allocation8 + $0x198] sm:$0xff]
    %v4111 = vld [vmem:[#allocation8 + $0x1a0] sm:$0xff]
    %v4112 = vld [vmem:[#allocation8 + $0x1a8] sm:$0xff]
    %v4113 = vld [vmem:[#allocation8 + $0x1b0] sm:$0xff]
    %v4114 = vld [vmem:[#allocation8 + $0x1b8] sm:$0xff]
    %v4115 = vld [vmem:[#allocation8 + $0x1c0] sm:$0xff]
    %v4116 = vld [vmem:[#allocation8 + $0x1c8] sm:$0xff]
    %v4117 = vld [vmem:[#allocation8 + $0x1d0] sm:$0xff]
    %v4118 = vld [vmem:[#allocation8 + $0x1d8] sm:$0xff]
    %v4119 = vld [vmem:[#allocation8 + $0x1e0] sm:$0xff]
    %v4120 = vld [vmem:[#allocation8 + $0x1e8] sm:$0xff]
    %v4121 = vld [vmem:[#allocation8 + $0x1f0] sm:$0xff]
    %v4122 = vld [vmem:[#allocation8 + $0x1f8] sm:$0xff]
    %4123 = vmatprep.subr.bf16.mxu0 %v4060
    %4124 = vmatpush1.bf16.msra.mxu0 %v4059
    %4125 = vmatprep.subr.bf16.mxu0 %v4068
    %4126 = vmatpush1.bf16.msra.mxu0 %v4067
    %4127 = vmatprep.subr.bf16.mxu0 %v4076
    %4128 = vmatpush1.bf16.msra.mxu0 %v4075
    %4129 = vmatprep.subr.bf16.mxu0 %v4084
    %4130 = vmatpush1.bf16.msra.mxu0 %v4083
    %4131 = vmatprep.subr.bf16.mxu0 %v4092
    %4132 = vmatpush1.bf16.msra.mxu0 %v4091
    %4133 = vmatprep.subr.bf16.mxu0 %v4100
    %4134 = vmatpush1.bf16.msra.mxu0 %v4099
    %4135 = vmatprep.subr.bf16.mxu0 %v4108
    %4136 = vmatpush1.bf16.msra.mxu0 %v4107
    %4137 = vmatprep.subr.bf16.mxu0 %v4116
    %4138 = vmatpush1.bf16.msra.mxu0 %v4115
    %4139 = vmatprep.subr.bf16.mxu0 0
    %4140 = vmatpush1.bf16.msra.mxu0 0
    %4141 = vmatprep.subr.bf16.mxu0 0
    %4142 = vmatpush1.bf16.msra.mxu0 0
    %4143 = vmatprep.subr.bf16.mxu0 0
    %4144 = vmatpush1.bf16.msra.mxu0 0
    %4145 = vmatprep.subr.bf16.mxu0 0
    %4146 = vmatpush1.bf16.msra.mxu0 0
    %4147 = vmatprep.subr.bf16.mxu0 0
    %4148 = vmatpush1.bf16.msra.mxu0 0
    %4149 = vmatprep.subr.bf16.mxu0 0
    %4150 = vmatpush1.bf16.msra.mxu0 0
    %4151 = vmatprep.subr.bf16.mxu0 0
    %4152 = vmatpush1.bf16.msra.mxu0 0
    %4153 = vmatprep.subr.bf16.mxu0 0
    %4154 = vmatpush1.bf16.msra.mxu0 0
    %4155 = vmatprep.mubr.bf16.mxu0 0
    %4156 = vmatmul.mubr.bf16.gmra.mrb[0].mxu0 %v4058
    %v4157 = vpop.f32.mrb[0].mxu0
    %v4158 = vadd.f32 0.0, %v4157
    %v4159 = vpop.f32.mrb[0].mxu0
    %v4160 = vadd.f32 0.0, %v4159
    %v4161 = vpop.f32.mrb[0].mxu0
    %v4162 = vpop.f32.mrb[0].mxu0
    %4163 = vdwg.mxu0
    %4164 = vmatprep.subr.bf16.mxu0 %v4062
    %4165 = vmatpush1.bf16.msra.mxu0 %v4061
    %4166 = vmatprep.subr.bf16.mxu0 %v4070
    %4167 = vmatpush1.bf16.msra.mxu0 %v4069
    %4168 = vmatprep.subr.bf16.mxu0 %v4078
    %4169 = vmatpush1.bf16.msra.mxu0 %v4077
    %4170 = vmatprep.subr.bf16.mxu0 %v4086
    %4171 = vmatpush1.bf16.msra.mxu0 %v4085
    %4172 = vmatprep.subr.bf16.mxu0 %v4094
    %4173 = vmatpush1.bf16.msra.mxu0 %v4093
    %4174 = vmatprep.subr.bf16.mxu0 %v4102
    %4175 = vmatpush1.bf16.msra.mxu0 %v4101
    %4176 = vmatprep.subr.bf16.mxu0 %v4110
    %4177 = vmatpush1.bf16.msra.mxu0 %v4109
    %4178 = vmatprep.subr.bf16.mxu0 %v4118
    %4179 = vmatpush1.bf16.msra.mxu0 %v4117
    %4180 = vmatprep.subr.bf16.mxu0 0
    %4181 = vmatpush1.bf16.msra.mxu0 0
    %4182 = vmatprep.subr.bf16.mxu0 0
    %4183 = vmatpush1.bf16.msra.mxu0 0
    %4184 = vmatprep.subr.bf16.mxu0 0
    %4185 = vmatpush1.bf16.msra.mxu0 0
    %4186 = vmatprep.subr.bf16.mxu0 0
    %4187 = vmatpush1.bf16.msra.mxu0 0
    %4188 = vmatprep.subr.bf16.mxu0 0
    %4189 = vmatpush1.bf16.msra.mxu0 0
    %4190 = vmatprep.subr.bf16.mxu0 0
    %4191 = vmatpush1.bf16.msra.mxu0 0
    %4192 = vmatprep.subr.bf16.mxu0 0
    %4193 = vmatpush1.bf16.msra.mxu0 0
    %4194 = vmatprep.subr.bf16.mxu0 0
    %4195 = vmatpush1.bf16.msra.mxu0 0
    %4196 = vmatprep.mubr.bf16.mxu0 0
    %4197 = vmatmul.mubr.bf16.gmra.mrb[0].mxu0 %v4058
    %v4198 = vpop.f32.mrb[0].mxu0
    %v4199 = vadd.f32 0.0, %v4198
    %v4200 = vpop.f32.mrb[0].mxu0
    %v4201 = vadd.f32 0.0, %v4200
    %v4202 = vpop.f32.mrb[0].mxu0
    %v4203 = vpop.f32.mrb[0].mxu0
    %4204 = vdwg.mxu0
    %4205 = vmatprep.subr.bf16.mxu0 %v4064
    %4206 = vmatpush1.bf16.msra.mxu0 %v4063
    %4207 = vmatprep.subr.bf16.mxu0 %v4072
    %4208 = vmatpush1.bf16.msra.mxu0 %v4071
    %4209 = vmatprep.subr.bf16.mxu0 %v4080
    %4210 = vmatpush1.bf16.msra.mxu0 %v4079
    %4211 = vmatprep.subr.bf16.mxu0 %v4088
    %4212 = vmatpush1.bf16.msra.mxu0 %v4087
    %4213 = vmatprep.subr.bf16.mxu0 %v4096
    %4214 = vmatpush1.bf16.msra.mxu0 %v4095
    %4215 = vmatprep.subr.bf16.mxu0 %v4104
    %4216 = vmatpush1.bf16.msra.mxu0 %v4103
    %4217 = vmatprep.subr.bf16.mxu0 %v4112
    %4218 = vmatpush1.bf16.msra.mxu0 %v4111
    %4219 = vmatprep.subr.bf16.mxu0 %v4120
    %4220 = vmatpush1.bf16.msra.mxu0 %v4119
    %4221 = vmatprep.subr.bf16.mxu0 0
    %4222 = vmatpush1.bf16.msra.mxu0 0
    %4223 = vmatprep.subr.bf16.mxu0 0
    %4224 = vmatpush1.bf16.msra.mxu0 0
    %4225 = vmatprep.subr.bf16.mxu0 0
    %4226 = vmatpush1.bf16.msra.mxu0 0
    %4227 = vmatprep.subr.bf16.mxu0 0
    %4228 = vmatpush1.bf16.msra.mxu0 0
    %4229 = vmatprep.subr.bf16.mxu0 0
    %4230 = vmatpush1.bf16.msra.mxu0 0
    %4231 = vmatprep.subr.bf16.mxu0 0
    %4232 = vmatpush1.bf16.msra.mxu0 0
    %4233 = vmatprep.subr.bf16.mxu0 0
    %4234 = vmatpush1.bf16.msra.mxu0 0
    %4235 = vmatprep.subr.bf16.mxu0 0
    %4236 = vmatpush1.bf16.msra.mxu0 0
    %4237 = vmatprep.mubr.bf16.mxu0 0
    %4238 = vmatmul.mubr.bf16.gmra.mrb[0].mxu0 %v4058
    %v4239 = vpop.f32.mrb[0].mxu0
    %v4240 = vadd.f32 0.0, %v4239
    %v4241 = vpop.f32.mrb[0].mxu0
    %v4242 = vadd.f32 0.0, %v4241
    %v4243 = vpop.f32.mrb[0].mxu0
    %v4244 = vpop.f32.mrb[0].mxu0
    %4245 = vdwg.mxu0
    %4246 = vmatprep.subr.bf16.mxu0 %v4066
    %4247 = vmatpush1.bf16.msra.mxu0 %v4065
    %4248 = vmatprep.subr.bf16.mxu0 %v4074
    %4249 = vmatpush1.bf16.msra.mxu0 %v4073
    %4250 = vmatprep.subr.bf16.mxu0 %v4082
    %4251 = vmatpush1.bf16.msra.mxu0 %v4081
    %4252 = vmatprep.subr.bf16.mxu0 %v4090
    %4253 = vmatpush1.bf16.msra.mxu0 %v4089
    %4254 = vmatprep.subr.bf16.mxu0 %v4098
    %4255 = vmatpush1.bf16.msra.mxu0 %v4097
    %4256 = vmatprep.subr.bf16.mxu0 %v4106
    %4257 = vmatpush1.bf16.msra.mxu0 %v4105
    %4258 = vmatprep.subr.bf16.mxu0 %v4114
    %4259 = vmatpush1.bf16.msra.mxu0 %v4113
    %4260 = vmatprep.subr.bf16.mxu0 %v4122
    %4261 = vmatpush1.bf16.msra.mxu0 %v4121
    %4262 = vmatprep.subr.bf16.mxu0 0
    %4263 = vmatpush1.bf16.msra.mxu0 0
    %4264 = vmatprep.subr.bf16.mxu0 0
    %4265 = vmatpush1.bf16.msra.mxu0 0
    %4266 = vmatprep.subr.bf16.mxu0 0
    %4267 = vmatpush1.bf16.msra.mxu0 0
    %4268 = vmatprep.subr.bf16.mxu0 0
    %4269 = vmatpush1.bf16.msra.mxu0 0
    %4270 = vmatprep.subr.bf16.mxu0 0
    %4271 = vmatpush1.bf16.msra.mxu0 0
    %4272 = vmatprep.subr.bf16.mxu0 0
    %4273 = vmatpush1.bf16.msra.mxu0 0
    %4274 = vmatprep.subr.bf16.mxu0 0
    %4275 = vmatpush1.bf16.msra.mxu0 0
    %4276 = vmatprep.subr.bf16.mxu0 0
    %4277 = vmatpush1.bf16.msra.mxu0 0
    %4278 = vmatprep.mubr.bf16.mxu0 0
    %4279 = vmatmul.mubr.bf16.gmra.mrb[0].mxu0 %v4058
    %v4280 = vpop.f32.mrb[0].mxu0
    %v4281 = vadd.f32 0.0, %v4280
    %v4282 = vpop.f32.mrb[0].mxu0
    %v4283 = vadd.f32 0.0, %v4282
    %v4284 = vpop.f32.mrb[0].mxu0
    %v4285 = vpop.f32.mrb[0].mxu0
    %4286 = vdwg.mxu0
    %v4288 = vrot.slane %v3993, 3
    %4290 = vmatprep.subr.bf16.mxu0 %v3995
    %4291 = vmatpush1.bf16.msra.mxu0 %v3994
    %4292 = vmatprep.subr.bf16.mxu0 %v4003
    %4293 = vmatpush1.bf16.msra.mxu0 %v4002
    %4294 = vmatprep.subr.bf16.mxu0 %v4011
    %4295 = vmatpush1.bf16.msra.mxu0 %v4010
    %4296 = vmatprep.subr.bf16.mxu0 %v4019
    %4297 = vmatpush1.bf16.msra.mxu0 %v4018
    %4298 = vmatprep.subr.bf16.mxu0 %v4027
    %4299 = vmatpush1.bf16.msra.mxu0 %v4026
    %4300 = vmatprep.subr.bf16.mxu0 %v4035
    %4301 = vmatpush1.bf16.msra.mxu0 %v4034
    %4302 = vmatprep.subr.bf16.mxu0 %v4043
    %4303 = vmatpush1.bf16.msra.mxu0 %v4042
    %4304 = vmatprep.subr.bf16.mxu0 %v4051
    %4305 = vmatpush1.bf16.msra.mxu0 %v4050
    %4306 = vmatprep.subr.bf16.mxu0 0
    %4307 = vmatpush1.bf16.msra.mxu0 0
    %4308 = vmatprep.subr.bf16.mxu0 0
    %4309 = vmatpush1.bf16.msra.mxu0 0
    %4310 = vmatprep.subr.bf16.mxu0 0
    %4311 = vmatpush1.bf16.msra.mxu0 0
    %4312 = vmatprep.subr.bf16.mxu0 0
    %4313 = vmatpush1.bf16.msra.mxu0 0
    %4314 = vmatprep.subr.bf16.mxu0 0
    %4315 = vmatpush1.bf16.msra.mxu0 0
    %4316 = vmatprep.subr.bf16.mxu0 0
    %4317 = vmatpush1.bf16.msra.mxu0 0
    %4318 = vmatprep.subr.bf16.mxu0 0
    %4319 = vmatpush1.bf16.msra.mxu0 0
    %4320 = vmatprep.subr.bf16.mxu0 0
    %4321 = vmatpush1.bf16.msra.mxu0 0
    %4322 = vmatprep.mubr.bf16.mxu0 0
    %4323 = vmatmul.mubr.bf16.gmra.mrb[0].mxu0 %v4288
    %v4324 = vpop.f32.mrb[0].mxu0
    %v4325 = vadd.f32 %v4158, %v4324
    %v4326 = vpop.f32.mrb[0].mxu0
    %v4327 = vadd.f32 %v4160, %v4326
    %v4328 = vpop.f32.mrb[0].mxu0
    %v4329 = vpop.f32.mrb[0].mxu0
    %4330 = vdwg.mxu0
    %4331 = vmatprep.subr.bf16.mxu0 %v3997
    %4332 = vmatpush1.bf16.msra.mxu0 %v3996
    %4333 = vmatprep.subr.bf16.mxu0 %v4005
    %4334 = vmatpush1.bf16.msra.mxu0 %v4004
    %4335 = vmatprep.subr.bf16.mxu0 %v4013
    %4336 = vmatpush1.bf16.msra.mxu0 %v4012
    %4337 = vmatprep.subr.bf16.mxu0 %v4021
    %4338 = vmatpush1.bf16.msra.mxu0 %v4020
    %4339 = vmatprep.subr.bf16.mxu0 %v4029
    %4340 = vmatpush1.bf16.msra.mxu0 %v4028
    %4341 = vmatprep.subr.bf16.mxu0 %v4037
    %4342 = vmatpush1.bf16.msra.mxu0 %v4036
    %4343 = vmatprep.subr.bf16.mxu0 %v4045
    %4344 = vmatpush1.bf16.msra.mxu0 %v4044
    %4345 = vmatprep.subr.bf16.mxu0 %v4053
    %4346 = vmatpush1.bf16.msra.mxu0 %v4052
    %4347 = vmatprep.subr.bf16.mxu0 0
    %4348 = vmatpush1.bf16.msra.mxu0 0
    %4349 = vmatprep.subr.bf16.mxu0 0
    %4350 = vmatpush1.bf16.msra.mxu0 0
    %4351 = vmatprep.subr.bf16.mxu0 0
    %4352 = vmatpush1.bf16.msra.mxu0 0
    %4353 = vmatprep.subr.bf16.mxu0 0
    %4354 = vmatpush1.bf16.msra.mxu0 0
    %4355 = vmatprep.subr.bf16.mxu0 0
    %4356 = vmatpush1.bf16.msra.mxu0 0
    %4357 = vmatprep.subr.bf16.mxu0 0
    %4358 = vmatpush1.bf16.msra.mxu0 0
    %4359 = vmatprep.subr.bf16.mxu0 0
    %4360 = vmatpush1.bf16.msra.mxu0 0
    %4361 = vmatprep.subr.bf16.mxu0 0
    %4362 = vmatpush1.bf16.msra.mxu0 0
    %4363 = vmatprep.mubr.bf16.mxu0 0
    %4364 = vmatmul.mubr.bf16.gmra.mrb[0].mxu0 %v4288
    %v4365 = vpop.f32.mrb[0].mxu0
    %v4366 = vadd.f32 %v4199, %v4365
    %v4367 = vpop.f32.mrb[0].mxu0
    %v4368 = vadd.f32 %v4201, %v4367
    %v4369 = vpop.f32.mrb[0].mxu0
    %v4370 = vpop.f32.mrb[0].mxu0
    %4371 = vdwg.mxu0
    %4372 = vmatprep.subr.bf16.mxu0 %v3999
    %4373 = vmatpush1.bf16.msra.mxu0 %v3998
    %4374 = vmatprep.subr.bf16.mxu0 %v4007
    %4375 = vmatpush1.bf16.msra.mxu0 %v4006
    %4376 = vmatprep.subr.bf16.mxu0 %v4015
    %4377 = vmatpush1.bf16.msra.mxu0 %v4014
    %4378 = vmatprep.subr.bf16.mxu0 %v4023
    %4379 = vmatpush1.bf16.msra.mxu0 %v4022
    %4380 = vmatprep.subr.bf16.mxu0 %v4031
    %4381 = vmatpush1.bf16.msra.mxu0 %v4030
    %4382 = vmatprep.subr.bf16.mxu0 %v4039
    %4383 = vmatpush1.bf16.msra.mxu0 %v4038
    %4384 = vmatprep.subr.bf16.mxu0 %v4047
    %4385 = vmatpush1.bf16.msra.mxu0 %v4046
    %4386 = vmatprep.subr.bf16.mxu0 %v4055
    %4387 = vmatpush1.bf16.msra.mxu0 %v4054
    %4388 = vmatprep.subr.bf16.mxu0 0
    %4389 = vmatpush1.bf16.msra.mxu0 0
    %4390 = vmatprep.subr.bf16.mxu0 0
    %4391 = vmatpush1.bf16.msra.mxu0 0
    %4392 = vmatprep.subr.bf16.mxu0 0
    %4393 = vmatpush1.bf16.msra.mxu0 0
    %4394 = vmatprep.subr.bf16.mxu0 0
    %4395 = vmatpush1.bf16.msra.mxu0 0
    %4396 = vmatprep.subr.bf16.mxu0 0
    %4397 = vmatpush1.bf16.msra.mxu0 0
    %4398 = vmatprep.subr.bf16.mxu0 0
    %4399 = vmatpush1.bf16.msra.mxu0 0
    %4400 = vmatprep.subr.bf16.mxu0 0
    %4401 = vmatpush1.bf16.msra.mxu0 0
    %4402 = vmatprep.subr.bf16.mxu0 0
    %4403 = vmatpush1.bf16.msra.mxu0 0
    %4404 = vmatprep.mubr.bf16.mxu0 0
    %4405 = vmatmul.mubr.bf16.gmra.mrb[0].mxu0 %v4288
    %v4406 = vpop.f32.mrb[0].mxu0
    %v4407 = vadd.f32 %v4240, %v4406
    %v4408 = vpop.f32.mrb[0].mxu0
    %v4409 = vadd.f32 %v4242, %v4408
    %v4410 = vpop.f32.mrb[0].mxu0
    %v4411 = vpop.f32.mrb[0].mxu0
    %4412 = vdwg.mxu0
    %4413 = vmatprep.subr.bf16.mxu0 %v4001
    %4414 = vmatpush1.bf16.msra.mxu0 %v4000
    %4415 = vmatprep.subr.bf16.mxu0 %v4009
    %4416 = vmatpush1.bf16.msra.mxu0 %v4008
    %4417 = vmatprep.subr.bf16.mxu0 %v4017
    %4418 = vmatpush1.bf16.msra.mxu0 %v4016
    %4419 = vmatprep.subr.bf16.mxu0 %v4025
    %4420 = vmatpush1.bf16.msra.mxu0 %v4024
    %4421 = vmatprep.subr.bf16.mxu0 %v4033
    %4422 = vmatpush1.bf16.msra.mxu0 %v4032
    %4423 = vmatprep.subr.bf16.mxu0 %v4041
    %4424 = vmatpush1.bf16.msra.mxu0 %v4040
    %4425 = vmatprep.subr.bf16.mxu0 %v4049
    %4426 = vmatpush1.bf16.msra.mxu0 %v4048
    %4427 = vmatprep.subr.bf16.mxu0 %v4057
    %4428 = vmatpush1.bf16.msra.mxu0 %v4056
    %4429 = vmatprep.subr.bf16.mxu0 0
    %4430 = vmatpush1.bf16.msra.mxu0 0
    %4431 = vmatprep.subr.bf16.mxu0 0
    %4432 = vmatpush1.bf16.msra.mxu0 0
    %4433 = vmatprep.subr.bf16.mxu0 0
    %4434 = vmatpush1.bf16.msra.mxu0 0
    %4435 = vmatprep.subr.bf16.mxu0 0
    %4436 = vmatpush1.bf16.msra.mxu0 0
    %4437 = vmatprep.subr.bf16.mxu0 0
    %4438 = vmatpush1.bf16.msra.mxu0 0
    %4439 = vmatprep.subr.bf16.mxu0 0
    %4440 = vmatpush1.bf16.msra.mxu0 0
    %4441 = vmatprep.subr.bf16.mxu0 0
    %4442 = vmatpush1.bf16.msra.mxu0 0
    %4443 = vmatprep.subr.bf16.mxu0 0
    %4444 = vmatpush1.bf16.msra.mxu0 0
    %4445 = vmatprep.mubr.bf16.mxu0 0
    %4446 = vmatmul.mubr.bf16.gmra.mrb[0].mxu0 %v4288
    %v4447 = vpop.f32.mrb[0].mxu0
    %v4448 = vadd.f32 %v4281, %v4447
    %v4449 = vpop.f32.mrb[0].mxu0
    %v4450 = vadd.f32 %v4283, %v4449
    %v4451 = vpop.f32.mrb[0].mxu0
    %v4452 = vpop.f32.mrb[0].mxu0
    %4453 = vdwg.mxu0
    %v4454 = vld [vmem:[%s8] sm:$0xff]
    %v4456 = vlaneseq
    %v4457 = vshrl.u32 %v4456, 7
    %v4458 = vsub.s32 0, %v4457
    %v4459 = vrot.slane %v4454, %v4458
    %v4460 = vlaneseq
    %v4461 = vshrl.u32 %v4460, 7
    %v4462 = vsub.s32 1, %v4461
    %v4463 = vrot.slane %v4454, %v4462
    %v4464 = vlaneseq
    %v4465 = vshrl.u32 %v4464, 7
    %v4466 = vsub.s32 2, %v4465
    %v4467 = vrot.slane %v4454, %v4466
    %v4468 = vlaneseq
    %v4469 = vshrl.u32 %v4468, 7
    %v4470 = vsub.s32 3, %v4469
    %v4471 = vrot.slane %v4454, %v4470
    %v4472 = vlaneseq
    %v4473 = vshrl.u32 %v4472, 7
    %v4474 = vsub.s32 4, %v4473
    %v4475 = vrot.slane %v4454, %v4474
    %v4476 = vlaneseq
    %v4477 = vshrl.u32 %v4476, 7
    %v4478 = vsub.s32 5, %v4477
    %v4479 = vrot.slane %v4454, %v4478
    %v4480 = vlaneseq
    %v4481 = vshrl.u32 %v4480, 7
    %v4482 = vsub.s32 6, %v4481
    %v4483 = vrot.slane %v4454, %v4482
    %v4484 = vlaneseq
    %v4485 = vshrl.u32 %v4484, 7
    %v4486 = vsub.s32 7, %v4485
    %v4487 = vrot.slane %v4454, %v4486
    %v4496 = vadd.f32 %v4325, %v4459
    %v4497 = vadd.f32 %v4327, %v4463
    %v4498 = vadd.f32 %v4366, %v4467
    %v4499 = vadd.f32 %v4368, %v4471
    %v4500 = vadd.f32 %v4407, %v4475
    %v4501 = vadd.f32 %v4409, %v4479
    %v4502 = vadd.f32 %v4448, %v4483
    %v4503 = vadd.f32 %v4450, %v4487
    %v4504 = vmax.f32 %v4496, 0.0
    %v4505 = vmax.f32 %v4497, 0.0
    %v4506 = vmax.f32 %v4498, 0.0
    %v4507 = vmax.f32 %v4499, 0.0
    %v4508 = vmax.f32 %v4500, 0.0
    %v4509 = vmax.f32 %v4501, 0.0
    %v4510 = vmax.f32 %v4502, 0.0
    %v4511 = vmax.f32 %v4503, 0.0
    %v4512 = vld [vmem:[%s10] sm:$0xff]
    %v4513 = vld [vmem:[%s10 + $0x8] sm:$0xff]
    %v4514 = vld [vmem:[%s10 + $0x10] sm:$0xff]
    %v4515 = vld [vmem:[%s10 + $0x18] sm:$0xff]
    %v4516 = vld [vmem:[%s10 + $0x20] sm:$0xff]
    %v4517 = vld [vmem:[%s10 + $0x28] sm:$0xff]
    %v4518 = vld [vmem:[%s10 + $0x30] sm:$0xff]
    %v4519 = vld [vmem:[%s10 + $0x38] sm:$0xff]
    %v4520 = vld [vmem:[%s10 + $0x40] sm:$0xff]
    %v4521 = vld [vmem:[%s10 + $0x48] sm:$0xff]
    %v4522 = vld [vmem:[%s10 + $0x50] sm:$0xff]
    %v4523 = vld [vmem:[%s10 + $0x58] sm:$0xff]
    %v4524 = vld [vmem:[%s10 + $0x60] sm:$0xff]
    %v4525 = vld [vmem:[%s10 + $0x68] sm:$0xff]
    %v4526 = vld [vmem:[%s10 + $0x70] sm:$0xff]
    %v4527 = vld [vmem:[%s10 + $0x78] sm:$0xff]
    %v4528 = vld [vmem:[%s10 + $0x80] sm:$0xff]
    %v4529 = vld [vmem:[%s10 + $0x88] sm:$0xff]
    %v4530 = vld [vmem:[%s10 + $0x90] sm:$0xff]
    %v4531 = vld [vmem:[%s10 + $0x98] sm:$0xff]
    %v4532 = vld [vmem:[%s10 + $0xa0] sm:$0xff]
    %v4533 = vld [vmem:[%s10 + $0xa8] sm:$0xff]
    %v4534 = vld [vmem:[%s10 + $0xb0] sm:$0xff]
    %v4535 = vld [vmem:[%s10 + $0xb8] sm:$0xff]
    %v4536 = vld [vmem:[%s10 + $0xc0] sm:$0xff]
    %v4537 = vld [vmem:[%s10 + $0xc8] sm:$0xff]
    %v4538 = vld [vmem:[%s10 + $0xd0] sm:$0xff]
    %v4539 = vld [vmem:[%s10 + $0xd8] sm:$0xff]
    %v4540 = vld [vmem:[%s10 + $0xe0] sm:$0xff]
    %v4541 = vld [vmem:[%s10 + $0xe8] sm:$0xff]
    %v4542 = vld [vmem:[%s10 + $0xf0] sm:$0xff]
    %v4543 = vld [vmem:[%s10 + $0xf8] sm:$0xff]
    %v4544 = vld [vmem:[%s10 + $0x100] sm:$0xff]
    %v4545 = vld [vmem:[%s10 + $0x108] sm:$0xff]
    %v4546 = vld [vmem:[%s10 + $0x110] sm:$0xff]
    %v4547 = vld [vmem:[%s10 + $0x118] sm:$0xff]
    %v4548 = vld [vmem:[%s10 + $0x120] sm:$0xff]
    %v4549 = vld [vmem:[%s10 + $0x128] sm:$0xff]
    %v4550 = vld [vmem:[%s10 + $0x130] sm:$0xff]
    %v4551 = vld [vmem:[%s10 + $0x138] sm:$0xff]
    %v4552 = vld [vmem:[%s10 + $0x140] sm:$0xff]
    %v4553 = vld [vmem:[%s10 + $0x148] sm:$0xff]
    %v4554 = vld [vmem:[%s10 + $0x150] sm:$0xff]
    %v4555 = vld [vmem:[%s10 + $0x158] sm:$0xff]
    %v4556 = vld [vmem:[%s10 + $0x160] sm:$0xff]
    %v4557 = vld [vmem:[%s10 + $0x168] sm:$0xff]
    %v4558 = vld [vmem:[%s10 + $0x170] sm:$0xff]
    %v4559 = vld [vmem:[%s10 + $0x178] sm:$0xff]
    %v4560 = vld [vmem:[%s10 + $0x180] sm:$0xff]
    %v4561 = vld [vmem:[%s10 + $0x188] sm:$0xff]
    %v4562 = vld [vmem:[%s10 + $0x190] sm:$0xff]
    %v4563 = vld [vmem:[%s10 + $0x198] sm:$0xff]
    %v4564 = vld [vmem:[%s10 + $0x1a0] sm:$0xff]
    %v4565 = vld [vmem:[%s10 + $0x1a8] sm:$0xff]
    %v4566 = vld [vmem:[%s10 + $0x1b0] sm:$0xff]
    %v4567 = vld [vmem:[%s10 + $0x1b8] sm:$0xff]
    %v4568 = vld [vmem:[%s10 + $0x1c0] sm:$0xff]
    %v4569 = vld [vmem:[%s10 + $0x1c8] sm:$0xff]
    %v4570 = vld [vmem:[%s10 + $0x1d0] sm:$0xff]
    %v4571 = vld [vmem:[%s10 + $0x1d8] sm:$0xff]
    %v4572 = vld [vmem:[%s10 + $0x1e0] sm:$0xff]
    %v4573 = vld [vmem:[%s10 + $0x1e8] sm:$0xff]
    %v4574 = vld [vmem:[%s10 + $0x1f0] sm:$0xff]
    %v4575 = vld [vmem:[%s10 + $0x1f8] sm:$0xff]
    %v4576 = vld [vmem:[%s10 + $0x200] sm:$0xff]
    %v4577 = vld [vmem:[%s10 + $0x208] sm:$0xff]
    %v4578 = vld [vmem:[%s10 + $0x210] sm:$0xff]
    %v4579 = vld [vmem:[%s10 + $0x218] sm:$0xff]
    %v4580 = vld [vmem:[%s10 + $0x220] sm:$0xff]
    %v4581 = vld [vmem:[%s10 + $0x228] sm:$0xff]
    %v4582 = vld [vmem:[%s10 + $0x230] sm:$0xff]
    %v4583 = vld [vmem:[%s10 + $0x238] sm:$0xff]
    %v4584 = vld [vmem:[%s10 + $0x240] sm:$0xff]
    %v4585 = vld [vmem:[%s10 + $0x248] sm:$0xff]
    %v4586 = vld [vmem:[%s10 + $0x250] sm:$0xff]
    %v4587 = vld [vmem:[%s10 + $0x258] sm:$0xff]
    %v4588 = vld [vmem:[%s10 + $0x260] sm:$0xff]
    %v4589 = vld [vmem:[%s10 + $0x268] sm:$0xff]
    %v4590 = vld [vmem:[%s10 + $0x270] sm:$0xff]
    %v4591 = vld [vmem:[%s10 + $0x278] sm:$0xff]
    %v4592 = vld [vmem:[%s10 + $0x280] sm:$0xff]
    %v4593 = vld [vmem:[%s10 + $0x288] sm:$0xff]
    %v4594 = vld [vmem:[%s10 + $0x290] sm:$0xff]
    %v4595 = vld [vmem:[%s10 + $0x298] sm:$0xff]
    %v4596 = vld [vmem:[%s10 + $0x2a0] sm:$0xff]
    %v4597 = vld [vmem:[%s10 + $0x2a8] sm:$0xff]
    %v4598 = vld [vmem:[%s10 + $0x2b0] sm:$0xff]
    %v4599 = vld [vmem:[%s10 + $0x2b8] sm:$0xff]
    %v4600 = vld [vmem:[%s10 + $0x2c0] sm:$0xff]
    %v4601 = vld [vmem:[%s10 + $0x2c8] sm:$0xff]
    %v4602 = vld [vmem:[%s10 + $0x2d0] sm:$0xff]
    %v4603 = vld [vmem:[%s10 + $0x2d8] sm:$0xff]
    %v4604 = vld [vmem:[%s10 + $0x2e0] sm:$0xff]
    %v4605 = vld [vmem:[%s10 + $0x2e8] sm:$0xff]
    %v4606 = vld [vmem:[%s10 + $0x2f0] sm:$0xff]
    %v4607 = vld [vmem:[%s10 + $0x2f8] sm:$0xff]
    %v4608 = vld [vmem:[%s10 + $0x300] sm:$0xff]
    %v4609 = vld [vmem:[%s10 + $0x308] sm:$0xff]
    %v4610 = vld [vmem:[%s10 + $0x310] sm:$0xff]
    %v4611 = vld [vmem:[%s10 + $0x318] sm:$0xff]
    %v4612 = vld [vmem:[%s10 + $0x320] sm:$0xff]
    %v4613 = vld [vmem:[%s10 + $0x328] sm:$0xff]
    %v4614 = vld [vmem:[%s10 + $0x330] sm:$0xff]
    %v4615 = vld [vmem:[%s10 + $0x338] sm:$0xff]
    %v4616 = vld [vmem:[%s10 + $0x340] sm:$0xff]
    %v4617 = vld [vmem:[%s10 + $0x348] sm:$0xff]
    %v4618 = vld [vmem:[%s10 + $0x350] sm:$0xff]
    %v4619 = vld [vmem:[%s10 + $0x358] sm:$0xff]
    %v4620 = vld [vmem:[%s10 + $0x360] sm:$0xff]
    %v4621 = vld [vmem:[%s10 + $0x368] sm:$0xff]
    %v4622 = vld [vmem:[%s10 + $0x370] sm:$0xff]
    %v4623 = vld [vmem:[%s10 + $0x378] sm:$0xff]
    %v4624 = vld [vmem:[%s10 + $0x380] sm:$0xff]
    %v4625 = vld [vmem:[%s10 + $0x388] sm:$0xff]
    %v4626 = vld [vmem:[%s10 + $0x390] sm:$0xff]
    %v4627 = vld [vmem:[%s10 + $0x398] sm:$0xff]
    %v4628 = vld [vmem:[%s10 + $0x3a0] sm:$0xff]
    %v4629 = vld [vmem:[%s10 + $0x3a8] sm:$0xff]
    %v4630 = vld [vmem:[%s10 + $0x3b0] sm:$0xff]
    %v4631 = vld [vmem:[%s10 + $0x3b8] sm:$0xff]
    %v4632 = vld [vmem:[%s10 + $0x3c0] sm:$0xff]
    %v4633 = vld [vmem:[%s10 + $0x3c8] sm:$0xff]
    %v4634 = vld [vmem:[%s10 + $0x3d0] sm:$0xff]
    %v4635 = vld [vmem:[%s10 + $0x3d8] sm:$0xff]
    %v4636 = vld [vmem:[%s10 + $0x3e0] sm:$0xff]
    %v4637 = vld [vmem:[%s10 + $0x3e8] sm:$0xff]
    %v4638 = vld [vmem:[%s10 + $0x3f0] sm:$0xff]
    %v4639 = vld [vmem:[%s10 + $0x3f8] sm:$0xff]
    %v4640 = vld [vmem:[%s9] sm:$0x1]
    %v4642 = vlaneseq
    %v4643 = vshrl.u32 %v4642, 7
    %v4644 = vsub.s32 0, %v4643
    %v4645 = vrot.slane %v4640, %v4644
    %4647 = vmatprep.subr.mxu0 0.0
    %4648 = vmatpush1.msra.mxu0 %v4512
    %4649 = vmatprep.subr.mxu0 0.0
    %4650 = vmatpush1.msra.mxu0 %v4513
    %4651 = vmatprep.subr.mxu0 0.0
    %4652 = vmatpush1.msra.mxu0 %v4514
    %4653 = vmatprep.subr.mxu0 0.0
    %4654 = vmatpush1.msra.mxu0 %v4515
    %4655 = vmatprep.subr.mxu0 0.0
    %4656 = vmatpush1.msra.mxu0 %v4516
    %4657 = vmatprep.subr.mxu0 0.0
    %4658 = vmatpush1.msra.mxu0 %v4517
    %4659 = vmatprep.subr.mxu0 0.0
    %4660 = vmatpush1.msra.mxu0 %v4518
    %4661 = vmatprep.subr.mxu0 0.0
    %4662 = vmatpush1.msra.mxu0 %v4519
    %4663 = vmatprep.subr.mxu0 0.0
    %4664 = vmatpush1.msra.mxu0 %v4520
    %4665 = vmatprep.subr.mxu0 0.0
    %4666 = vmatpush1.msra.mxu0 %v4521
    %4667 = vmatprep.subr.mxu0 0.0
    %4668 = vmatpush1.msra.mxu0 %v4522
    %4669 = vmatprep.subr.mxu0 0.0
    %4670 = vmatpush1.msra.mxu0 %v4523
    %4671 = vmatprep.subr.mxu0 0.0
    %4672 = vmatpush1.msra.mxu0 %v4524
    %4673 = vmatprep.subr.mxu0 0.0
    %4674 = vmatpush1.msra.mxu0 %v4525
    %4675 = vmatprep.subr.mxu0 0.0
    %4676 = vmatpush1.msra.mxu0 %v4526
    %4677 = vmatprep.subr.mxu0 0.0
    %4678 = vmatpush1.msra.mxu0 %v4527
    %4679 = vmatprep.subr.mxu0 0.0
    %4680 = vmatpush1.msra.mxu0 %v4528
    %4681 = vmatprep.subr.mxu0 0.0
    %4682 = vmatpush1.msra.mxu0 %v4529
    %4683 = vmatprep.subr.mxu0 0.0
    %4684 = vmatpush1.msra.mxu0 %v4530
    %4685 = vmatprep.subr.mxu0 0.0
    %4686 = vmatpush1.msra.mxu0 %v4531
    %4687 = vmatprep.subr.mxu0 0.0
    %4688 = vmatpush1.msra.mxu0 %v4532
    %4689 = vmatprep.subr.mxu0 0.0
    %4690 = vmatpush1.msra.mxu0 %v4533
    %4691 = vmatprep.subr.mxu0 0.0
    %4692 = vmatpush1.msra.mxu0 %v4534
    %4693 = vmatprep.subr.mxu0 0.0
    %4694 = vmatpush1.msra.mxu0 %v4535
    %4695 = vmatprep.subr.mxu0 0.0
    %4696 = vmatpush1.msra.mxu0 %v4536
    %4697 = vmatprep.subr.mxu0 0.0
    %4698 = vmatpush1.msra.mxu0 %v4537
    %4699 = vmatprep.subr.mxu0 0.0
    %4700 = vmatpush1.msra.mxu0 %v4538
    %4701 = vmatprep.subr.mxu0 0.0
    %4702 = vmatpush1.msra.mxu0 %v4539
    %4703 = vmatprep.subr.mxu0 0.0
    %4704 = vmatpush1.msra.mxu0 %v4540
    %4705 = vmatprep.subr.mxu0 0.0
    %4706 = vmatpush1.msra.mxu0 %v4541
    %4707 = vmatprep.subr.mxu0 0.0
    %4708 = vmatpush1.msra.mxu0 %v4542
    %4709 = vmatprep.subr.mxu0 0.0
    %4710 = vmatpush1.msra.mxu0 %v4543
    %4711 = vmatprep.mubr.f32.mxu0 %v4505
    %4712 = vmatmul.mubr.f32.gmra.mrb[0].mxu0 %v4504
    %v4713 = vpop.f32.mrb[0].mxu0
    %v4714 = vadd.f32 %v4645, %v4713
    %v4715 = vpop.f32.mrb[0].mxu0
    %4716 = vdwg.mxu0
    %4717 = vmatprep.subr.mxu0 0.0
    %4718 = vmatpush1.msra.mxu0 %v4544
    %4719 = vmatprep.subr.mxu0 0.0
    %4720 = vmatpush1.msra.mxu0 %v4545
    %4721 = vmatprep.subr.mxu0 0.0
    %4722 = vmatpush1.msra.mxu0 %v4546
    %4723 = vmatprep.subr.mxu0 0.0
    %4724 = vmatpush1.msra.mxu0 %v4547
    %4725 = vmatprep.subr.mxu0 0.0
    %4726 = vmatpush1.msra.mxu0 %v4548
    %4727 = vmatprep.subr.mxu0 0.0
    %4728 = vmatpush1.msra.mxu0 %v4549
    %4729 = vmatprep.subr.mxu0 0.0
    %4730 = vmatpush1.msra.mxu0 %v4550
    %4731 = vmatprep.subr.mxu0 0.0
    %4732 = vmatpush1.msra.mxu0 %v4551
    %4733 = vmatprep.subr.mxu0 0.0
    %4734 = vmatpush1.msra.mxu0 %v4552
    %4735 = vmatprep.subr.mxu0 0.0
    %4736 = vmatpush1.msra.mxu0 %v4553
    %4737 = vmatprep.subr.mxu0 0.0
    %4738 = vmatpush1.msra.mxu0 %v4554
    %4739 = vmatprep.subr.mxu0 0.0
    %4740 = vmatpush1.msra.mxu0 %v4555
    %4741 = vmatprep.subr.mxu0 0.0
    %4742 = vmatpush1.msra.mxu0 %v4556
    %4743 = vmatprep.subr.mxu0 0.0
    %4744 = vmatpush1.msra.mxu0 %v4557
    %4745 = vmatprep.subr.mxu0 0.0
    %4746 = vmatpush1.msra.mxu0 %v4558
    %4747 = vmatprep.subr.mxu0 0.0
    %4748 = vmatpush1.msra.mxu0 %v4559
    %4749 = vmatprep.subr.mxu0 0.0
    %4750 = vmatpush1.msra.mxu0 %v4560
    %4751 = vmatprep.subr.mxu0 0.0
    %4752 = vmatpush1.msra.mxu0 %v4561
    %4753 = vmatprep.subr.mxu0 0.0
    %4754 = vmatpush1.msra.mxu0 %v4562
    %4755 = vmatprep.subr.mxu0 0.0
    %4756 = vmatpush1.msra.mxu0 %v4563
    %4757 = vmatprep.subr.mxu0 0.0
    %4758 = vmatpush1.msra.mxu0 %v4564
    %4759 = vmatprep.subr.mxu0 0.0
    %4760 = vmatpush1.msra.mxu0 %v4565
    %4761 = vmatprep.subr.mxu0 0.0
    %4762 = vmatpush1.msra.mxu0 %v4566
    %4763 = vmatprep.subr.mxu0 0.0
    %4764 = vmatpush1.msra.mxu0 %v4567
    %4765 = vmatprep.subr.mxu0 0.0
    %4766 = vmatpush1.msra.mxu0 %v4568
    %4767 = vmatprep.subr.mxu0 0.0
    %4768 = vmatpush1.msra.mxu0 %v4569
    %4769 = vmatprep.subr.mxu0 0.0
    %4770 = vmatpush1.msra.mxu0 %v4570
    %4771 = vmatprep.subr.mxu0 0.0
    %4772 = vmatpush1.msra.mxu0 %v4571
    %4773 = vmatprep.subr.mxu0 0.0
    %4774 = vmatpush1.msra.mxu0 %v4572
    %4775 = vmatprep.subr.mxu0 0.0
    %4776 = vmatpush1.msra.mxu0 %v4573
    %4777 = vmatprep.subr.mxu0 0.0
    %4778 = vmatpush1.msra.mxu0 %v4574
    %4779 = vmatprep.subr.mxu0 0.0
    %4780 = vmatpush1.msra.mxu0 %v4575
    %4781 = vmatprep.mubr.f32.mxu0 %v4507
    %4782 = vmatmul.mubr.f32.gmra.mrb[0].mxu0 %v4506
    %v4783 = vpop.f32.mrb[0].mxu0
    %v4784 = vadd.f32 %v4714, %v4783
    %v4785 = vpop.f32.mrb[0].mxu0
    %4786 = vdwg.mxu0
    %4787 = vmatprep.subr.mxu0 0.0
    %4788 = vmatpush1.msra.mxu0 %v4576
    %4789 = vmatprep.subr.mxu0 0.0
    %4790 = vmatpush1.msra.mxu0 %v4577
    %4791 = vmatprep.subr.mxu0 0.0
    %4792 = vmatpush1.msra.mxu0 %v4578
    %4793 = vmatprep.subr.mxu0 0.0
    %4794 = vmatpush1.msra.mxu0 %v4579
    %4795 = vmatprep.subr.mxu0 0.0
    %4796 = vmatpush1.msra.mxu0 %v4580
    %4797 = vmatprep.subr.mxu0 0.0
    %4798 = vmatpush1.msra.mxu0 %v4581
    %4799 = vmatprep.subr.mxu0 0.0
    %4800 = vmatpush1.msra.mxu0 %v4582
    %4801 = vmatprep.subr.mxu0 0.0
    %4802 = vmatpush1.msra.mxu0 %v4583
    %4803 = vmatprep.subr.mxu0 0.0
    %4804 = vmatpush1.msra.mxu0 %v4584
    %4805 = vmatprep.subr.mxu0 0.0
    %4806 = vmatpush1.msra.mxu0 %v4585
    %4807 = vmatprep.subr.mxu0 0.0
    %4808 = vmatpush1.msra.mxu0 %v4586
    %4809 = vmatprep.subr.mxu0 0.0
    %4810 = vmatpush1.msra.mxu0 %v4587
    %4811 = vmatprep.subr.mxu0 0.0
    %4812 = vmatpush1.msra.mxu0 %v4588
    %4813 = vmatprep.subr.mxu0 0.0
    %4814 = vmatpush1.msra.mxu0 %v4589
    %4815 = vmatprep.subr.mxu0 0.0
    %4816 = vmatpush1.msra.mxu0 %v4590
    %4817 = vmatprep.subr.mxu0 0.0
    %4818 = vmatpush1.msra.mxu0 %v4591
    %4819 = vmatprep.subr.mxu0 0.0
    %4820 = vmatpush1.msra.mxu0 %v4592
    %4821 = vmatprep.subr.mxu0 0.0
    %4822 = vmatpush1.msra.mxu0 %v4593
    %4823 = vmatprep.subr.mxu0 0.0
    %4824 = vmatpush1.msra.mxu0 %v4594
    %4825 = vmatprep.subr.mxu0 0.0
    %4826 = vmatpush1.msra.mxu0 %v4595
    %4827 = vmatprep.subr.mxu0 0.0
    %4828 = vmatpush1.msra.mxu0 %v4596
    %4829 = vmatprep.subr.mxu0 0.0
    %4830 = vmatpush1.msra.mxu0 %v4597
    %4831 = vmatprep.subr.mxu0 0.0
    %4832 = vmatpush1.msra.mxu0 %v4598
    %4833 = vmatprep.subr.mxu0 0.0
    %4834 = vmatpush1.msra.mxu0 %v4599
    %4835 = vmatprep.subr.mxu0 0.0
    %4836 = vmatpush1.msra.mxu0 %v4600
    %4837 = vmatprep.subr.mxu0 0.0
    %4838 = vmatpush1.msra.mxu0 %v4601
    %4839 = vmatprep.subr.mxu0 0.0
    %4840 = vmatpush1.msra.mxu0 %v4602
    %4841 = vmatprep.subr.mxu0 0.0
    %4842 = vmatpush1.msra.mxu0 %v4603
    %4843 = vmatprep.subr.mxu0 0.0
    %4844 = vmatpush1.msra.mxu0 %v4604
    %4845 = vmatprep.subr.mxu0 0.0
    %4846 = vmatpush1.msra.mxu0 %v4605
    %4847 = vmatprep.subr.mxu0 0.0
    %4848 = vmatpush1.msra.mxu0 %v4606
    %4849 = vmatprep.subr.mxu0 0.0
    %4850 = vmatpush1.msra.mxu0 %v4607
    %4851 = vmatprep.mubr.f32.mxu0 %v4509
    %4852 = vmatmul.mubr.f32.gmra.mrb[0].mxu0 %v4508
    %v4853 = vpop.f32.mrb[0].mxu0
    %v4854 = vadd.f32 %v4784, %v4853
    %v4855 = vpop.f32.mrb[0].mxu0
    %4856 = vdwg.mxu0
    %4857 = vmatprep.subr.mxu0 0.0
    %4858 = vmatpush1.msra.mxu0 %v4608
    %4859 = vmatprep.subr.mxu0 0.0
    %4860 = vmatpush1.msra.mxu0 %v4609
    %4861 = vmatprep.subr.mxu0 0.0
    %4862 = vmatpush1.msra.mxu0 %v4610
    %4863 = vmatprep.subr.mxu0 0.0
    %4864 = vmatpush1.msra.mxu0 %v4611
    %4865 = vmatprep.subr.mxu0 0.0
    %4866 = vmatpush1.msra.mxu0 %v4612
    %4867 = vmatprep.subr.mxu0 0.0
    %4868 = vmatpush1.msra.mxu0 %v4613
    %4869 = vmatprep.subr.mxu0 0.0
    %4870 = vmatpush1.msra.mxu0 %v4614
    %4871 = vmatprep.subr.mxu0 0.0
    %4872 = vmatpush1.msra.mxu0 %v4615
    %4873 = vmatprep.subr.mxu0 0.0
    %4874 = vmatpush1.msra.mxu0 %v4616
    %4875 = vmatprep.subr.mxu0 0.0
    %4876 = vmatpush1.msra.mxu0 %v4617
    %4877 = vmatprep.subr.mxu0 0.0
    %4878 = vmatpush1.msra.mxu0 %v4618
    %4879 = vmatprep.subr.mxu0 0.0
    %4880 = vmatpush1.msra.mxu0 %v4619
    %4881 = vmatprep.subr.mxu0 0.0
    %4882 = vmatpush1.msra.mxu0 %v4620
    %4883 = vmatprep.subr.mxu0 0.0
    %4884 = vmatpush1.msra.mxu0 %v4621
    %4885 = vmatprep.subr.mxu0 0.0
    %4886 = vmatpush1.msra.mxu0 %v4622
    %4887 = vmatprep.subr.mxu0 0.0
    %4888 = vmatpush1.msra.mxu0 %v4623
    %4889 = vmatprep.subr.mxu0 0.0
    %4890 = vmatpush1.msra.mxu0 %v4624
    %4891 = vmatprep.subr.mxu0 0.0
    %4892 = vmatpush1.msra.mxu0 %v4625
    %4893 = vmatprep.subr.mxu0 0.0
    %4894 = vmatpush1.msra.mxu0 %v4626
    %4895 = vmatprep.subr.mxu0 0.0
    %4896 = vmatpush1.msra.mxu0 %v4627
    %4897 = vmatprep.subr.mxu0 0.0
    %4898 = vmatpush1.msra.mxu0 %v4628
    %4899 = vmatprep.subr.mxu0 0.0
    %4900 = vmatpush1.msra.mxu0 %v4629
    %4901 = vmatprep.subr.mxu0 0.0
    %4902 = vmatpush1.msra.mxu0 %v4630
    %4903 = vmatprep.subr.mxu0 0.0
    %4904 = vmatpush1.msra.mxu0 %v4631
    %4905 = vmatprep.subr.mxu0 0.0
    %4906 = vmatpush1.msra.mxu0 %v4632
    %4907 = vmatprep.subr.mxu0 0.0
    %4908 = vmatpush1.msra.mxu0 %v4633
    %4909 = vmatprep.subr.mxu0 0.0
    %4910 = vmatpush1.msra.mxu0 %v4634
    %4911 = vmatprep.subr.mxu0 0.0
    %4912 = vmatpush1.msra.mxu0 %v4635
    %4913 = vmatprep.subr.mxu0 0.0
    %4914 = vmatpush1.msra.mxu0 %v4636
    %4915 = vmatprep.subr.mxu0 0.0
    %4916 = vmatpush1.msra.mxu0 %v4637
    %4917 = vmatprep.subr.mxu0 0.0
    %4918 = vmatpush1.msra.mxu0 %v4638
    %4919 = vmatprep.subr.mxu0 0.0
    %4920 = vmatpush1.msra.mxu0 %v4639
    %4921 = vmatprep.mubr.f32.mxu0 %v4511
    %4922 = vmatmul.mubr.f32.gmra.mrb[0].mxu0 %v4510
    %v4923 = vpop.f32.mrb[0].mxu0
    %v4924 = vadd.f32 %v4854, %v4923
    %v4925 = vpop.f32.mrb[0].mxu0
    %4926 = vdwg.mxu0
    %vm4927 = vcmask 25600
    %4928 = vst.msk [vmem:[#allocation10] sm:$0x3] %vm4927, %v4924
    // Predicated region
    $region83: #{my_lstm_forward.1} parent=1 // pred_check
      _
    $region84: #{my_lstm_forward.1} parent=1 // pred_check_branch
      %4930 = sbr.rel (0) target = $region86
    $region85: #{my_lstm_forward.1} parent=1 // pred_region
      %s4932 = ssub.s32 32, 32
      %4933 = vsyncadd [#allocation11], %s4932
      %s4935 = sshll.u32 [#allocation10], 4
      %s4936 = int_to_ptr.vmem [resolvable:$true] %s4935
      %4938 = dma.vmem_to_hbm [thread:$0]  %s4936, 32, %s18, [#allocation11]
    $region86: #{my_lstm_forward.1} parent=1 // pred_fallthru
      _
    // Predicated region
    $region87: #{my_lstm_forward.1} parent=1 // pred_check
      _
    $region88: #{my_lstm_forward.1} parent=1 // pred_check_branch
      %4940 = sbr.rel (0) target = $region90
    $region89: #{my_lstm_forward.1} parent=1 // pred_region
      %4941 = dma.done [#allocation11], 32
    $region90: #{my_lstm_forward.1} parent=1 // pred_fallthru
      _
    %4942 = vsyncpa [#allocation11], 1
  %4943 = vsyncmov [#allocation9]
  %s4944 = vpop.sfrf %4943
  %p4945 = scmp.eq.s32.totalorder %s4944, 0
  %p4946 = pneg %p4945
  %4948 = shalt.err (%p4946)
  %s4949 = scalar_lea.sflag [#allocation9], 1
  %4950 = vsyncmov %s4949
  %s4951 = vpop.sfrf %4950
  %p4952 = scmp.eq.s32.totalorder %s4951, 0
  %p4953 = pneg %p4952
  %4955 = shalt.err (%p4953)
  %s4956 = scalar_lea.sflag [#allocation9], 2
  %4957 = vsyncmov %s4956
  %s4958 = vpop.sfrf %4957
  %p4959 = scmp.eq.s32.totalorder %s4958, 0
  %p4960 = pneg %p4959
  %4962 = shalt.err (%p4960)
  %s4963 = scalar_lea.sflag [#allocation9], 3
  %4964 = vsyncmov %s4963
  %s4965 = vpop.sfrf %4964
  %p4966 = scmp.eq.s32.totalorder %s4965, 0
  %p4967 = pneg %p4966
  %4969 = shalt.err (%p4967)
  %s4970 = scalar_lea.sflag [#allocation9], 4
  %4971 = vsyncmov %s4970
  %s4972 = vpop.sfrf %4971
  %p4973 = scmp.eq.s32.totalorder %s4972, 0
  %p4974 = pneg %p4973
  %4976 = shalt.err (%p4974)
  %s4977 = scalar_lea.sflag [#allocation9], 5
  %4978 = vsyncmov %s4977
  %s4979 = vpop.sfrf %4978
  %p4980 = scmp.eq.s32.totalorder %s4979, 0
  %p4981 = pneg %p4980
  %4983 = shalt.err (%p4981)
  %s4984 = scalar_lea.sflag [#allocation9], 6
  %4985 = vsyncmov %s4984
  %s4986 = vpop.sfrf %4985
  %p4987 = scmp.eq.s32.totalorder %s4986, 0
  %p4988 = pneg %p4987
  %4990 = shalt.err (%p4988)

</llo_original>
